<compile_context>
chip_gen: v7x
topology: tpu7x:2x2x1
jax: 0.10.0
libtpu: 0.0.40
codegen_flags: <defaults>
</compile_context>

<pallas_src>
import jax
import jax.numpy as jnp
from jax import lax
from jax.experimental import pallas as pl
from jax.experimental.pallas import tpu as pltpu

# ---------------- small synthetic configuration ----------------
B = 2                      # batch of images
C_IN = 3                   # RGB
IMG = 16                   # image height/width
PATCH = 8                  # vision patch size
N_IMG_TOK = (IMG // PATCH) ** 2          # 4 image tokens
PATCH_DIM = C_IN * PATCH * PATCH         # 192
D = 32                     # LM hidden size
H = 4                      # attention heads
HD = D // H                # head dim
FF = 64                    # FFN hidden
V = 64                     # vocab size
P_LEN = 8                  # synthetic prompt length ("<image>\nUSER: ... ASSISTANT:")
MAX_NEW = 4                # max_new_tokens (30 in the real module, kept small here)
S0 = N_IMG_TOK + P_LEN                   # prefill length = 12
S = S0 + MAX_NEW                         # total (cache) length = 16
SCALE = 1.0 / float(HD) ** 0.5


# ---------------- single fused Pallas kernel ----------------
def _llava_generate_kernel(
    # inputs
    patches_ref, prompt_ids_ref,
    patch_w_ref, patch_b_ref,
    mm_w1_ref, mm_b1_ref, mm_w2_ref, mm_b2_ref,
    tok_embed_ref,
    ln1_ref, wqkv_ref, bqkv_ref, wo_ref, bo_ref, ln2_ref,
    w1_ref, b1_ref, w2_ref, b2_ref,
    lm_w_ref, lm_b_ref,
    # output
    gen_ref,
    # VMEM scratch: per-batch KV cache, K|V interleaved along lanes
    kvcache_ref,
):
    f32 = jnp.float32

    # ---- hoist every loop-invariant weight/bias load once ----
    tok_embed = tok_embed_ref[...]            # (V, D)
    ln1 = ln1_ref[...]                        # (1, D)
    ln2 = ln2_ref[...]
    wqkv = wqkv_ref[...]                      # (D, 3D)
    bqkv = bqkv_ref[...]
    wo = wo_ref[...]                          # (D, D)
    bo = bo_ref[...]
    w1 = w1_ref[...]
    b1 = b1_ref[...]
    w2 = w2_ref[...]
    b2 = b2_ref[...]
    lm_w = lm_w_ref[...]
    lm_b = lm_b_ref[...]

    def rms(x, g):
        ms = jnp.mean(x * x, axis=-1, keepdims=True)
        return x * lax.rsqrt(ms + 1e-6) * g

    def linear(x, w, b, act=None):
        y = jnp.dot(x, w, preferred_element_type=f32) + b
        if act == "gelu":
            y = jax.nn.gelu(y)
        return y

    # ---- vision tower (patch embed as matmul) + multimodal projector ----
    feats = linear(patches_ref[...], patch_w_ref[...], patch_b_ref[...])        # (B*4, D)
    img_emb = linear(linear(feats, mm_w1_ref[...], mm_b1_ref[...], "gelu"),
                     mm_w2_ref[...], mm_b2_ref[...])                            # (B*4, D)

    # ---- prompt token embeddings (one-hot matmul gather, batched over B*P_LEN) ----
    p_iota = lax.broadcasted_iota(jnp.int32, (B * P_LEN, V), 1)
    p_onehot = (prompt_ids_ref[...] == p_iota).astype(f32)                      # (B*8, V)
    prompt_emb = jnp.dot(p_onehot, tok_embed, preferred_element_type=f32)       # (B*8, D)

    # ---- prefill: one fused QKV matmul over the full (zero-padded) sequence,
    #      one unmasked aligned store filling the whole KV cache ----
    emb_full = jnp.concatenate(
        [img_emb.reshape(B, N_IMG_TOK, D),
         prompt_emb.reshape(B, P_LEN, D),
         jnp.zeros((B, MAX_NEW, D), f32)], axis=1)                              # (B, S, D)
    qkv_pre = linear(rms(emb_full.reshape(B * S, D), ln1), wqkv, bqkv)          # (B*S, 3D)
    kvcache_ref[...] = qkv_pre[:, D:3 * D].reshape(B, S, 2 * D)                 # K|V interleaved

    # residual-stream input of the first query position = last prompt token embedding
    x = emb_full[:, S0 - 1, :]                                                  # (B, D)

    v_iota = lax.broadcasted_iota(jnp.int32, (B, V), 1)                         # hoisted
    pos_iota = lax.broadcasted_iota(jnp.int32, (B, 1, S), 2)                    # hoisted

    gen_cols = []
    # ---- greedy decode: MAX_NEW identical step bodies, fully batched over B.
    #      (Static unroll keeps all cache indexing static; bodies are uniform.) ----
    for t in range(MAX_NEW):
        qpos = S0 - 1 + t                       # query position producing token t
        qkv = linear(rms(x, ln1), wqkv, bqkv)                                   # (B, 3D)
        # one contiguous 2D-lane K|V store for the new position, all batches at once
        kvcache_ref[:, qpos:qpos + 1, :] = qkv[:, D:3 * D].reshape(B, 1, 2 * D)

        kv = kvcache_ref[...]                                                   # (B, S, 2D)
        mask = pos_iota < (qpos + 1)            # causal visibility (positions 0..qpos)

        o_heads = []
        for h in range(H):
            qh = qkv[:, h * HD:(h + 1) * HD].reshape(B, 1, HD)                  # (B,1,HD)
            kh = kv[:, :, h * HD:(h + 1) * HD]                                  # (B,S,HD)
            vh = kv[:, :, D + h * HD:D + (h + 1) * HD]                          # (B,S,HD)
            s = jnp.einsum('bqd,bkd->bqk', qh, kh,
                           preferred_element_type=f32) * SCALE                  # (B,1,S)
            s = jnp.where(mask, s, -1e30)
            s = s - jnp.max(s, axis=-1, keepdims=True)
            p = jnp.exp(s)
            inv = pl.reciprocal(jnp.sum(p, axis=-1, keepdims=True), approx=True)
            o_heads.append(jnp.einsum('bqk,bkd->bqd', p, vh,
                                      preferred_element_type=f32) * inv)        # (B,1,HD)
        o_cat = jnp.concatenate(o_heads, axis=-1).reshape(B, D)                 # (B, D)
        attn = jnp.dot(o_cat, wo, preferred_element_type=f32) + bo              # single wo matmul

        h1 = x + attn                                                           # (B, D)
        h2 = h1 + linear(linear(rms(h1, ln2), w1, b1, "gelu"), w2, b2)          # (B, D)

        # lm_head only for the last real position (the B new-token rows)
        logits = linear(h2, lm_w, lm_b)                                         # (B, V)
        mx = jnp.max(logits, axis=-1, keepdims=True)
        nid = jnp.min(jnp.where(logits == mx, v_iota, V),
                      axis=-1, keepdims=True)                                   # (B,1) int32 argmax
        gen_cols.append(nid)

        # embedding of the new token -> residual input of the next position
        # TODO(synk): at real vocab sizes (32k) replace this O(V*D) one-hot matmul with a
        # scalar-indexed row gather (SMEM index + tok_embed_ref[pl.ds(idx, 1), :]).
        x = jnp.dot((nid == v_iota).astype(f32), tok_embed,
                    preferred_element_type=f32)                                 # (B, D)

    # single coalesced output store for all generated ids
    gen_ref[...] = jnp.concatenate(gen_cols, axis=1)                            # (B, MAX_NEW)


@jax.jit
def _llava_generate(params, images_nchw):
    # im2col (pure layout glue): NCHW -> (B*num_patches, patch_dim)
    x = images_nchw.transpose(0, 2, 3, 1)
    ph = IMG // PATCH
    x = x.reshape(B, ph, PATCH, ph, PATCH, C_IN).transpose(0, 1, 3, 2, 4, 5)
    patches = x.reshape(B * N_IMG_TOK, PATCH_DIM)

    # synthetic prompt ids ("<image>\nUSER: ... ASSISTANT:"), identical across batch
    prompt_ids = jnp.tile(jnp.arange(P_LEN, dtype=jnp.int32) % V, B).reshape(B * P_LEN, 1)

    inputs = (
        patches, prompt_ids,
        params["patch_w"], params["patch_b"],
        params["mm_w1"], params["mm_b1"],
        params["mm_w2"], params["mm_b2"],
        params["tok_embed"],
        params["ln1_g"], params["wqkv"], params["bqkv"],
        params["wo"], params["bo"], params["ln2_g"],
        params["w1"], params["b1"], params["w2"], params["b2"],
        params["lm_head_w"], params["lm_head_b"],
    )
    # At real LLaVA dims: bf16 weights/KV, explicit vmem_limit_bytes (v7x: 64 MiB VMEM),
    # a grid axis over batch / vocab tiles marked "parallel" for v7x's two TensorCores,
    # and per-generation weight tiling.  Not needed at these toy sizes (<100 KiB VMEM).
    return pl.pallas_call(
        _llava_generate_kernel,
        out_shape=jax.ShapeDtypeStruct((B, MAX_NEW), jnp.int32),
        in_specs=[pl.BlockSpec(memory_space=pltpu.MemorySpace.VMEM)] * len(inputs),
        out_specs=pl.BlockSpec(memory_space=pltpu.MemorySpace.VMEM),
        scratch_shapes=[pltpu.VMEM((B, S, 2 * D), jnp.float32)],  # interleaved K|V cache
    )(*inputs)


def llava_vocabulary_forward(params, images_nchw):
    """Surrogate of LLaVaVocabulary.forward: images -> greedily generated token ids."""
    # TODO(synk): HF AutoProcessor / PIL image loading+resizing has no Pallas equivalent;
    # deterministic synthetic images are fed through the im2col glue above instead.
    gen = _llava_generate(params, images_nchw)                 # (B, MAX_NEW) int32
    # TODO(synk): tokenizer batch_decode + split/set/strip/lower string post-processing has
    # no Pallas equivalent; return the generated token ids per image instead.
    return [gen[i] for i in range(B)]


# ---------------- deterministic synthetic parameters ----------------
def init_params(key):
    ks = jax.random.split(key, 12)

    def dense(k, shape, scale=0.05):
        return (scale * jax.random.normal(k, shape)).astype(jnp.float32)

    def zeros(n):
        return jnp.zeros((1, n), jnp.float32)       # biases pre-shaped (1, N) once

    return {
        "patch_w": dense(ks[0], (PATCH_DIM, D)), "patch_b": zeros(D),
        "mm_w1": dense(ks[1], (D, FF)), "mm_b1": zeros(FF),
        "mm_w2": dense(ks[2], (FF, D)), "mm_b2": zeros(D),
        "tok_embed": dense(ks[3], (V, D)),
        "ln1_g": jnp.ones((1, D), jnp.float32),
        "wqkv": dense(ks[4], (D, 3 * D)), "bqkv": zeros(3 * D),   # fused Q|K|V projection
        "wo": dense(ks[5], (D, D)), "bo": zeros(D),
        "ln2_g": jnp.ones((1, D), jnp.float32),
        "w1": dense(ks[6], (D, FF)), "b1": zeros(FF),
        "w2": dense(ks[7], (FF, D)), "b2": zeros(D),
        "lm_head_w": dense(ks[8], (D, V)), "lm_head_b": zeros(V),
    }


if __name__ == "__main__":
    key = jax.random.PRNGKey(0)
    k_params, k_img = jax.random.split(key)
    params = init_params(k_params)
    # deterministic "images", NCHW like the PyTorch pipeline would feed a conv stem
    images = jax.random.uniform(k_img, (B, C_IN, IMG, IMG), dtype=jnp.float32)

    vocabularies = llava_vocabulary_forward(params, images)
    for v in vocabularies:
        jax.block_until_ready(v)
    assert len(vocabularies) == B
    assert all(v.shape == (MAX_NEW,) and v.dtype == jnp.int32 for v in vocabularies)
    assert all(bool(jnp.all((v >= 0) & (v < V))) for v in vocabularies)
    print("KERNEL_OK")
</pallas_src>

<mosaic_0001>
module attributes {stable_mosaic.version = 11 : i64} {
  func.func @_llava_generate_kernel(%arg0: memref<8x192xf32, #tpu.memory_space<vmem>>, %arg1: memref<16x1xi32, #tpu.memory_space<vmem>>, %arg2: memref<192x32xf32, #tpu.memory_space<vmem>>, %arg3: memref<1x32xf32, #tpu.memory_space<vmem>>, %arg4: memref<32x64xf32, #tpu.memory_space<vmem>>, %arg5: memref<1x64xf32, #tpu.memory_space<vmem>>, %arg6: memref<64x32xf32, #tpu.memory_space<vmem>>, %arg7: memref<1x32xf32, #tpu.memory_space<vmem>>, %arg8: memref<64x32xf32, #tpu.memory_space<vmem>>, %arg9: memref<1x32xf32, #tpu.memory_space<vmem>>, %arg10: memref<32x96xf32, #tpu.memory_space<vmem>>, %arg11: memref<1x96xf32, #tpu.memory_space<vmem>>, %arg12: memref<32x32xf32, #tpu.memory_space<vmem>>, %arg13: memref<1x32xf32, #tpu.memory_space<vmem>>, %arg14: memref<1x32xf32, #tpu.memory_space<vmem>>, %arg15: memref<32x64xf32, #tpu.memory_space<vmem>>, %arg16: memref<1x64xf32, #tpu.memory_space<vmem>>, %arg17: memref<64x32xf32, #tpu.memory_space<vmem>>, %arg18: memref<1x32xf32, #tpu.memory_space<vmem>>, %arg19: memref<32x64xf32, #tpu.memory_space<vmem>>, %arg20: memref<1x64xf32, #tpu.memory_space<vmem>>, %arg21: memref<2x4xi32, #tpu.memory_space<vmem>>, %arg22: memref<2x16x64xf32, #tpu.memory_space<vmem>>) attributes {dimension_semantics = [], scalar_prefetch = 0 : i64, scratch_operands = 1 : i64, tpu.core_type = #tpu.core_type<tc>} {
    %c0 = arith.constant 0 : index
    %c0_0 = arith.constant 0 : index
    %0 = vector.load %arg8[%c0, %c0_0] : memref<64x32xf32, #tpu.memory_space<vmem>>, vector<64x32xf32>
    %c0_1 = arith.constant 0 : index
    %c0_2 = arith.constant 0 : index
    %1 = vector.load %arg9[%c0_1, %c0_2] : memref<1x32xf32, #tpu.memory_space<vmem>>, vector<1x32xf32>
    %c0_3 = arith.constant 0 : index
    %c0_4 = arith.constant 0 : index
    %2 = vector.load %arg14[%c0_3, %c0_4] : memref<1x32xf32, #tpu.memory_space<vmem>>, vector<1x32xf32>
    %c0_5 = arith.constant 0 : index
    %c0_6 = arith.constant 0 : index
    %3 = vector.load %arg10[%c0_5, %c0_6] : memref<32x96xf32, #tpu.memory_space<vmem>>, vector<32x96xf32>
    %c0_7 = arith.constant 0 : index
    %c0_8 = arith.constant 0 : index
    %4 = vector.load %arg11[%c0_7, %c0_8] : memref<1x96xf32, #tpu.memory_space<vmem>>, vector<1x96xf32>
    %c0_9 = arith.constant 0 : index
    %c0_10 = arith.constant 0 : index
    %5 = vector.load %arg12[%c0_9, %c0_10] : memref<32x32xf32, #tpu.memory_space<vmem>>, vector<32x32xf32>
    %c0_11 = arith.constant 0 : index
    %c0_12 = arith.constant 0 : index
    %6 = vector.load %arg13[%c0_11, %c0_12] : memref<1x32xf32, #tpu.memory_space<vmem>>, vector<1x32xf32>
    %c0_13 = arith.constant 0 : index
    %c0_14 = arith.constant 0 : index
    %7 = vector.load %arg15[%c0_13, %c0_14] : memref<32x64xf32, #tpu.memory_space<vmem>>, vector<32x64xf32>
    %c0_15 = arith.constant 0 : index
    %c0_16 = arith.constant 0 : index
    %8 = vector.load %arg16[%c0_15, %c0_16] : memref<1x64xf32, #tpu.memory_space<vmem>>, vector<1x64xf32>
    %c0_17 = arith.constant 0 : index
    %c0_18 = arith.constant 0 : index
    %9 = vector.load %arg17[%c0_17, %c0_18] : memref<64x32xf32, #tpu.memory_space<vmem>>, vector<64x32xf32>
    %c0_19 = arith.constant 0 : index
    %c0_20 = arith.constant 0 : index
    %10 = vector.load %arg18[%c0_19, %c0_20] : memref<1x32xf32, #tpu.memory_space<vmem>>, vector<1x32xf32>
    %c0_21 = arith.constant 0 : index
    %c0_22 = arith.constant 0 : index
    %11 = vector.load %arg19[%c0_21, %c0_22] : memref<32x64xf32, #tpu.memory_space<vmem>>, vector<32x64xf32>
    %c0_23 = arith.constant 0 : index
    %c0_24 = arith.constant 0 : index
    %12 = vector.load %arg20[%c0_23, %c0_24] : memref<1x64xf32, #tpu.memory_space<vmem>>, vector<1x64xf32>
    %c0_25 = arith.constant 0 : index
    %c0_26 = arith.constant 0 : index
    %13 = vector.load %arg0[%c0_25, %c0_26] : memref<8x192xf32, #tpu.memory_space<vmem>>, vector<8x192xf32>
    %c0_27 = arith.constant 0 : index
    %c0_28 = arith.constant 0 : index
    %14 = vector.load %arg2[%c0_27, %c0_28] : memref<192x32xf32, #tpu.memory_space<vmem>>, vector<192x32xf32>
    %c0_29 = arith.constant 0 : index
    %c0_30 = arith.constant 0 : index
    %15 = vector.load %arg3[%c0_29, %c0_30] : memref<1x32xf32, #tpu.memory_space<vmem>>, vector<1x32xf32>
    %cst = arith.constant dense<0.000000e+00> : vector<8x32xf32>
    %16 = tpu.matmul %13, %14, %cst {dimension_numbers = #tpu.dot_dimension_numbers<[1], [0], [0], [1], [0, 0, 1, 1], [], []>} : vector<8x192xf32>, vector<192x32xf32>, vector<8x32xf32> -> vector<8x32xf32>
    %17 = vector.broadcast %15 : vector<1x32xf32> to vector<8x32xf32>
    %18 = arith.addf %16, %17 : vector<8x32xf32>
    %c0_31 = arith.constant 0 : index
    %c0_32 = arith.constant 0 : index
    %19 = vector.load %arg4[%c0_31, %c0_32] : memref<32x64xf32, #tpu.memory_space<vmem>>, vector<32x64xf32>
    %c0_33 = arith.constant 0 : index
    %c0_34 = arith.constant 0 : index
    %20 = vector.load %arg5[%c0_33, %c0_34] : memref<1x64xf32, #tpu.memory_space<vmem>>, vector<1x64xf32>
    %cst_35 = arith.constant dense<0.000000e+00> : vector<8x64xf32>
    %21 = tpu.matmul %18, %19, %cst_35 {dimension_numbers = #tpu.dot_dimension_numbers<[1], [0], [0], [1], [0, 0, 1, 1], [], []>} : vector<8x32xf32>, vector<32x64xf32>, vector<8x64xf32> -> vector<8x64xf32>
    %22 = vector.broadcast %20 : vector<1x64xf32> to vector<8x64xf32>
    %23 = arith.addf %21, %22 : vector<8x64xf32>
    %24 = arith.mulf %23, %23 : vector<8x64xf32>
    %25 = arith.mulf %23, %24 : vector<8x64xf32>
    %cst_36 = arith.constant 4.471500e-02 : f32
    %26 = vector.broadcast %cst_36 : f32 to vector<8x64xf32>
    %27 = arith.mulf %26, %25 : vector<8x64xf32>
    %28 = arith.addf %23, %27 : vector<8x64xf32>
    %cst_37 = arith.constant 0.797884583 : f32
    %29 = vector.broadcast %cst_37 : f32 to vector<8x64xf32>
    %30 = arith.mulf %29, %28 : vector<8x64xf32>
    %31 = math.tanh %30 : vector<8x64xf32>
    %cst_38 = arith.constant 1.000000e+00 : f32
    %32 = vector.broadcast %cst_38 : f32 to vector<8x64xf32>
    %33 = arith.addf %32, %31 : vector<8x64xf32>
    %cst_39 = arith.constant 5.000000e-01 : f32
    %34 = vector.broadcast %cst_39 : f32 to vector<8x64xf32>
    %35 = arith.mulf %34, %33 : vector<8x64xf32>
    %36 = arith.mulf %23, %35 : vector<8x64xf32>
    %c0_40 = arith.constant 0 : index
    %c0_41 = arith.constant 0 : index
    %37 = vector.load %arg6[%c0_40, %c0_41] : memref<64x32xf32, #tpu.memory_space<vmem>>, vector<64x32xf32>
    %c0_42 = arith.constant 0 : index
    %c0_43 = arith.constant 0 : index
    %38 = vector.load %arg7[%c0_42, %c0_43] : memref<1x32xf32, #tpu.memory_space<vmem>>, vector<1x32xf32>
    %cst_44 = arith.constant dense<0.000000e+00> : vector<8x32xf32>
    %39 = tpu.matmul %36, %37, %cst_44 {dimension_numbers = #tpu.dot_dimension_numbers<[1], [0], [0], [1], [0, 0, 1, 1], [], []>} : vector<8x64xf32>, vector<64x32xf32>, vector<8x32xf32> -> vector<8x32xf32>
    %40 = vector.broadcast %38 : vector<1x32xf32> to vector<8x32xf32>
    %41 = arith.addf %39, %40 : vector<8x32xf32>
    %42 = tpu.iota {dimensions = array<i32: 1>} : vector<16x64xi32>
    %c0_45 = arith.constant 0 : index
    %c0_46 = arith.constant 0 : index
    %43 = vector.load %arg1[%c0_45, %c0_46] : memref<16x1xi32, #tpu.memory_space<vmem>>, vector<16x1xi32>
    %44 = vector.broadcast %43 : vector<16x1xi32> to vector<16x64xi32>
    %45 = arith.cmpi eq, %44, %42 : vector<16x64xi32>
    %46 = arith.extui %45 : vector<16x64xi1> to vector<16x64xi32>
    %47 = arith.sitofp %46 : vector<16x64xi32> to vector<16x64xf32>
    %cst_47 = arith.constant dense<0.000000e+00> : vector<16x32xf32>
    %48 = tpu.matmul %47, %0, %cst_47 {dimension_numbers = #tpu.dot_dimension_numbers<[1], [0], [0], [1], [0, 0, 1, 1], [], []>} : vector<16x64xf32>, vector<64x32xf32>, vector<16x32xf32> -> vector<16x32xf32>
    %49 = vector.shape_cast %41 : vector<8x32xf32> to vector<2x4x32xf32>
    %50 = vector.shape_cast %48 : vector<16x32xf32> to vector<2x8x32xf32>
    %cst_48 = arith.constant 0.000000e+00 : f32
    %51 = vector.broadcast %cst_48 : f32 to vector<2x4x32xf32>
    %52 = tpu.concatenate %49, %50, %51 in 1 : vector<2x4x32xf32>, vector<2x8x32xf32>, vector<2x4x32xf32> -> vector<2x16x32xf32>
    %53 = vector.shape_cast %52 : vector<2x16x32xf32> to vector<32x32xf32>
    %54 = arith.mulf %53, %53 : vector<32x32xf32>
    %cst_49 = arith.constant dense<0.000000e+00> : vector<32xf32>
    %55 = vector.multi_reduction <add>, %54, %cst_49 [1] : vector<32x32xf32> to vector<32xf32>
    %56 = vector.shape_cast %55 : vector<32xf32> to vector<32x1xf32>
    %cst_50 = arith.constant 3.200000e+01 : f32
    %57 = vector.broadcast %cst_50 : f32 to vector<32x1xf32>
    %58 = arith.divf %56, %57 : vector<32x1xf32>
    %cst_51 = arith.constant 9.99999997E-7 : f32
    %59 = vector.broadcast %cst_51 : f32 to vector<32x1xf32>
    %60 = arith.addf %58, %59 : vector<32x1xf32>
    %61 = math.rsqrt %60 : vector<32x1xf32>
    %62 = vector.broadcast %61 : vector<32x1xf32> to vector<32x32xf32>
    %63 = arith.mulf %53, %62 : vector<32x32xf32>
    %64 = vector.broadcast %1 : vector<1x32xf32> to vector<32x32xf32>
    %65 = arith.mulf %63, %64 : vector<32x32xf32>
    %cst_52 = arith.constant dense<0.000000e+00> : vector<32x96xf32>
    %66 = tpu.matmul %65, %3, %cst_52 {dimension_numbers = #tpu.dot_dimension_numbers<[1], [0], [0], [1], [0, 0, 1, 1], [], []>} : vector<32x32xf32>, vector<32x96xf32>, vector<32x96xf32> -> vector<32x96xf32>
    %67 = vector.broadcast %4 : vector<1x96xf32> to vector<32x96xf32>
    %68 = arith.addf %66, %67 : vector<32x96xf32>
    %69 = vector.extract_strided_slice %68 {offsets = [0, 32], sizes = [32, 64], strides = [1, 1]} : vector<32x96xf32> to vector<32x64xf32>
    %70 = vector.shape_cast %69 : vector<32x64xf32> to vector<2x16x64xf32>
    %c0_53 = arith.constant 0 : index
    %c0_54 = arith.constant 0 : index
    %c0_55 = arith.constant 0 : index
    %71 = vector.load %arg22[%c0_53, %c0_54, %c0_55] : memref<2x16x64xf32, #tpu.memory_space<vmem>>, vector<2x16x64xf32>
    tpu.vector_store %arg22[%c0_53, %c0_54, %c0_55], %70 {strides = array<i32>} : memref<2x16x64xf32, #tpu.memory_space<vmem>>, vector<2x16x64xf32>,
    %72 = vector.extract_strided_slice %52 {offsets = [0, 11, 0], sizes = [2, 1, 32], strides = [1, 1, 1]} : vector<2x16x32xf32> to vector<2x1x32xf32>
    %73 = vector.shape_cast %72 : vector<2x1x32xf32> to vector<2x32xf32>
    %74 = tpu.iota {dimensions = array<i32: 1>} : vector<2x64xi32>
    %75 = tpu.iota {dimensions = array<i32: 2>} : vector<2x1x16xi32>
    %76 = arith.mulf %73, %73 : vector<2x32xf32>
    %cst_56 = arith.constant dense<0.000000e+00> : vector<2xf32>
    %77 = vector.multi_reduction <add>, %76, %cst_56 [1] : vector<2x32xf32> to vector<2xf32>
    %78 = vector.shape_cast %77 : vector<2xf32> to vector<2x1xf32>
    %cst_57 = arith.constant 3.200000e+01 : f32
    %79 = vector.broadcast %cst_57 : f32 to vector<2x1xf32>
    %80 = arith.divf %78, %79 : vector<2x1xf32>
    %cst_58 = arith.constant 9.99999997E-7 : f32
    %81 = vector.broadcast %cst_58 : f32 to vector<2x1xf32>
    %82 = arith.addf %80, %81 : vector<2x1xf32>
    %83 = math.rsqrt %82 : vector<2x1xf32>
    %84 = vector.broadcast %83 : vector<2x1xf32> to vector<2x32xf32>
    %85 = arith.mulf %73, %84 : vector<2x32xf32>
    %86 = vector.broadcast %1 : vector<1x32xf32> to vector<2x32xf32>
    %87 = arith.mulf %85, %86 : vector<2x32xf32>
    %cst_59 = arith.constant dense<0.000000e+00> : vector<2x96xf32>
    %88 = tpu.matmul %87, %3, %cst_59 {dimension_numbers = #tpu.dot_dimension_numbers<[1], [0], [0], [1], [0, 0, 1, 1], [], []>} : vector<2x32xf32>, vector<32x96xf32>, vector<2x96xf32> -> vector<2x96xf32>
    %89 = vector.broadcast %4 : vector<1x96xf32> to vector<2x96xf32>
    %90 = arith.addf %88, %89 : vector<2x96xf32>
    %91 = vector.extract_strided_slice %90 {offsets = [0, 32], sizes = [2, 64], strides = [1, 1]} : vector<2x96xf32> to vector<2x64xf32>
    %92 = vector.shape_cast %91 : vector<2x64xf32> to vector<2x1x64xf32>
    %c0_60 = arith.constant 0 : index
    %c11 = arith.constant 11 : index
    %c0_61 = arith.constant 0 : index
    %93 = vector.load %arg22[%c0_60, %c11, %c0_61] : memref<2x16x64xf32, #tpu.memory_space<vmem>>, vector<2x1x64xf32>
    tpu.vector_store %arg22[%c0_60, %c11, %c0_61], %92 {strides = array<i32>} : memref<2x16x64xf32, #tpu.memory_space<vmem>>, vector<2x1x64xf32>,
    %c0_62 = arith.constant 0 : index
    %c0_63 = arith.constant 0 : index
    %c0_64 = arith.constant 0 : index
    %94 = vector.load %arg22[%c0_62, %c0_63, %c0_64] : memref<2x16x64xf32, #tpu.memory_space<vmem>>, vector<2x16x64xf32>
    %c12_i32 = arith.constant 12 : i32
    %95 = vector.broadcast %c12_i32 : i32 to vector<2x1x16xi32>
    %96 = arith.cmpi slt, %75, %95 : vector<2x1x16xi32>
    %97 = vector.extract_strided_slice %90 {offsets = [0, 0], sizes = [2, 8], strides = [1, 1]} : vector<2x96xf32> to vector<2x8xf32>
    %98 = vector.shape_cast %97 : vector<2x8xf32> to vector<2x1x8xf32>
    %99 = vector.extract_strided_slice %94 {offsets = [0, 0, 0], sizes = [2, 16, 8], strides = [1, 1, 1]} : vector<2x16x64xf32> to vector<2x16x8xf32>
    %100 = vector.extract_strided_slice %94 {offsets = [0, 0, 32], sizes = [2, 16, 8], strides = [1, 1, 1]} : vector<2x16x64xf32> to vector<2x16x8xf32>
    "tpu.trace_start"() <{level = 10 : i32, message = "bqd,bkd->bqk"}> : () -> ()
    %cst_65 = arith.constant dense<0.000000e+00> : vector<2x1x16xf32>
    %101 = tpu.matmul %98, %99, %cst_65 {dimension_numbers = #tpu.dot_dimension_numbers<[2], [2], [1], [1], [0, 0, 0, 1, 1, 1], [0], [0]>} : vector<2x1x8xf32>, vector<2x16x8xf32>, vector<2x1x16xf32> -> vector<2x1x16xf32>
    "tpu.trace_stop"() : () -> ()
    %cst_66 = arith.constant 0.353553385 : f32
    %102 = vector.broadcast %cst_66 : f32 to vector<2x1x16xf32>
    %103 = arith.mulf %101, %102 : vector<2x1x16xf32>
    %cst_67 = arith.constant -1.000000e+30 : f32
    %104 = vector.broadcast %cst_67 : f32 to vector<2x1x16xf32>
    %105 = arith.select %96, %103, %104 : vector<2x1x16xi1>, vector<2x1x16xf32>
    %cst_68 = arith.constant dense<0xFF800000> : vector<2x1xf32>
    %106 = vector.multi_reduction <maximumf>, %105, %cst_68 [2] : vector<2x1x16xf32> to vector<2x1xf32>
    %107 = vector.shape_cast %106 : vector<2x1xf32> to vector<2x1x1xf32>
    %108 = vector.broadcast %107 : vector<2x1x1xf32> to vector<2x1x16xf32>
    %109 = arith.subf %105, %108 : vector<2x1x16xf32>
    %110 = math.exp %109 : vector<2x1x16xf32>
    %cst_69 = arith.constant dense<0.000000e+00> : vector<2x1xf32>
    %111 = vector.multi_reduction <add>, %110, %cst_69 [2] : vector<2x1x16xf32> to vector<2x1xf32>
    %112 = vector.shape_cast %111 : vector<2x1xf32> to vector<2x1x1xf32>
    %113 = tpu.reciprocal %112 {approx = true} : vector<2x1x1xf32> -> vector<2x1x1xf32>
    "tpu.trace_start"() <{level = 10 : i32, message = "bqk,bkd->bqd"}> : () -> ()
    %cst_70 = arith.constant dense<0.000000e+00> : vector<2x1x8xf32>
    %114 = tpu.matmul %110, %100, %cst_70 {dimension_numbers = #tpu.dot_dimension_numbers<[2], [1], [1], [2], [0, 0, 0, 1, 1, 2], [0], [0]>} : vector<2x1x16xf32>, vector<2x16x8xf32>, vector<2x1x8xf32> -> vector<2x1x8xf32>
    "tpu.trace_stop"() : () -> ()
    %115 = vector.broadcast %113 : vector<2x1x1xf32> to vector<2x1x8xf32>
    %116 = arith.mulf %114, %115 : vector<2x1x8xf32>
    %117 = vector.extract_strided_slice %90 {offsets = [0, 8], sizes = [2, 8], strides = [1, 1]} : vector<2x96xf32> to vector<2x8xf32>
    %118 = vector.shape_cast %117 : vector<2x8xf32> to vector<2x1x8xf32>
    %119 = vector.extract_strided_slice %94 {offsets = [0, 0, 8], sizes = [2, 16, 8], strides = [1, 1, 1]} : vector<2x16x64xf32> to vector<2x16x8xf32>
    %120 = vector.extract_strided_slice %94 {offsets = [0, 0, 40], sizes = [2, 16, 8], strides = [1, 1, 1]} : vector<2x16x64xf32> to vector<2x16x8xf32>
    "tpu.trace_start"() <{level = 10 : i32, message = "bqd,bkd->bqk"}> : () -> ()
    %cst_71 = arith.constant dense<0.000000e+00> : vector<2x1x16xf32>
    %121 = tpu.matmul %118, %119, %cst_71 {dimension_numbers = #tpu.dot_dimension_numbers<[2], [2], [1], [1], [0, 0, 0, 1, 1, 1], [0], [0]>} : vector<2x1x8xf32>, vector<2x16x8xf32>, vector<2x1x16xf32> -> vector<2x1x16xf32>
    "tpu.trace_stop"() : () -> ()
    %cst_72 = arith.constant 0.353553385 : f32
    %122 = vector.broadcast %cst_72 : f32 to vector<2x1x16xf32>
    %123 = arith.mulf %121, %122 : vector<2x1x16xf32>
    %cst_73 = arith.constant -1.000000e+30 : f32
    %124 = vector.broadcast %cst_73 : f32 to vector<2x1x16xf32>
    %125 = arith.select %96, %123, %124 : vector<2x1x16xi1>, vector<2x1x16xf32>
    %cst_74 = arith.constant dense<0xFF800000> : vector<2x1xf32>
    %126 = vector.multi_reduction <maximumf>, %125, %cst_74 [2] : vector<2x1x16xf32> to vector<2x1xf32>
    %127 = vector.shape_cast %126 : vector<2x1xf32> to vector<2x1x1xf32>
    %128 = vector.broadcast %127 : vector<2x1x1xf32> to vector<2x1x16xf32>
    %129 = arith.subf %125, %128 : vector<2x1x16xf32>
    %130 = math.exp %129 : vector<2x1x16xf32>
    %cst_75 = arith.constant dense<0.000000e+00> : vector<2x1xf32>
    %131 = vector.multi_reduction <add>, %130, %cst_75 [2] : vector<2x1x16xf32> to vector<2x1xf32>
    %132 = vector.shape_cast %131 : vector<2x1xf32> to vector<2x1x1xf32>
    %133 = tpu.reciprocal %132 {approx = true} : vector<2x1x1xf32> -> vector<2x1x1xf32>
    "tpu.trace_start"() <{level = 10 : i32, message = "bqk,bkd->bqd"}> : () -> ()
    %cst_76 = arith.constant dense<0.000000e+00> : vector<2x1x8xf32>
    %134 = tpu.matmul %130, %120, %cst_76 {dimension_numbers = #tpu.dot_dimension_numbers<[2], [1], [1], [2], [0, 0, 0, 1, 1, 2], [0], [0]>} : vector<2x1x16xf32>, vector<2x16x8xf32>, vector<2x1x8xf32> -> vector<2x1x8xf32>
    "tpu.trace_stop"() : () -> ()
    %135 = vector.broadcast %133 : vector<2x1x1xf32> to vector<2x1x8xf32>
    %136 = arith.mulf %134, %135 : vector<2x1x8xf32>
    %137 = vector.extract_strided_slice %90 {offsets = [0, 16], sizes = [2, 8], strides = [1, 1]} : vector<2x96xf32> to vector<2x8xf32>
    %138 = vector.shape_cast %137 : vector<2x8xf32> to vector<2x1x8xf32>
    %139 = vector.extract_strided_slice %94 {offsets = [0, 0, 16], sizes = [2, 16, 8], strides = [1, 1, 1]} : vector<2x16x64xf32> to vector<2x16x8xf32>
    %140 = vector.extract_strided_slice %94 {offsets = [0, 0, 48], sizes = [2, 16, 8], strides = [1, 1, 1]} : vector<2x16x64xf32> to vector<2x16x8xf32>
    "tpu.trace_start"() <{level = 10 : i32, message = "bqd,bkd->bqk"}> : () -> ()
    %cst_77 = arith.constant dense<0.000000e+00> : vector<2x1x16xf32>
    %141 = tpu.matmul %138, %139, %cst_77 {dimension_numbers = #tpu.dot_dimension_numbers<[2], [2], [1], [1], [0, 0, 0, 1, 1, 1], [0], [0]>} : vector<2x1x8xf32>, vector<2x16x8xf32>, vector<2x1x16xf32> -> vector<2x1x16xf32>
    "tpu.trace_stop"() : () -> ()
    %cst_78 = arith.constant 0.353553385 : f32
    %142 = vector.broadcast %cst_78 : f32 to vector<2x1x16xf32>
    %143 = arith.mulf %141, %142 : vector<2x1x16xf32>
    %cst_79 = arith.constant -1.000000e+30 : f32
    %144 = vector.broadcast %cst_79 : f32 to vector<2x1x16xf32>
    %145 = arith.select %96, %143, %144 : vector<2x1x16xi1>, vector<2x1x16xf32>
    %cst_80 = arith.constant dense<0xFF800000> : vector<2x1xf32>
    %146 = vector.multi_reduction <maximumf>, %145, %cst_80 [2] : vector<2x1x16xf32> to vector<2x1xf32>
    %147 = vector.shape_cast %146 : vector<2x1xf32> to vector<2x1x1xf32>
    %148 = vector.broadcast %147 : vector<2x1x1xf32> to vector<2x1x16xf32>
    %149 = arith.subf %145, %148 : vector<2x1x16xf32>
    %150 = math.exp %149 : vector<2x1x16xf32>
    %cst_81 = arith.constant dense<0.000000e+00> : vector<2x1xf32>
    %151 = vector.multi_reduction <add>, %150, %cst_81 [2] : vector<2x1x16xf32> to vector<2x1xf32>
    %152 = vector.shape_cast %151 : vector<2x1xf32> to vector<2x1x1xf32>
    %153 = tpu.reciprocal %152 {approx = true} : vector<2x1x1xf32> -> vector<2x1x1xf32>
    "tpu.trace_start"() <{level = 10 : i32, message = "bqk,bkd->bqd"}> : () -> ()
    %cst_82 = arith.constant dense<0.000000e+00> : vector<2x1x8xf32>
    %154 = tpu.matmul %150, %140, %cst_82 {dimension_numbers = #tpu.dot_dimension_numbers<[2], [1], [1], [2], [0, 0, 0, 1, 1, 2], [0], [0]>} : vector<2x1x16xf32>, vector<2x16x8xf32>, vector<2x1x8xf32> -> vector<2x1x8xf32>
    "tpu.trace_stop"() : () -> ()
    %155 = vector.broadcast %153 : vector<2x1x1xf32> to vector<2x1x8xf32>
    %156 = arith.mulf %154, %155 : vector<2x1x8xf32>
    %157 = vector.extract_strided_slice %90 {offsets = [0, 24], sizes = [2, 8], strides = [1, 1]} : vector<2x96xf32> to vector<2x8xf32>
    %158 = vector.shape_cast %157 : vector<2x8xf32> to vector<2x1x8xf32>
    %159 = vector.extract_strided_slice %94 {offsets = [0, 0, 24], sizes = [2, 16, 8], strides = [1, 1, 1]} : vector<2x16x64xf32> to vector<2x16x8xf32>
    %160 = vector.extract_strided_slice %94 {offsets = [0, 0, 56], sizes = [2, 16, 8], strides = [1, 1, 1]} : vector<2x16x64xf32> to vector<2x16x8xf32>
    "tpu.trace_start"() <{level = 10 : i32, message = "bqd,bkd->bqk"}> : () -> ()
    %cst_83 = arith.constant dense<0.000000e+00> : vector<2x1x16xf32>
    %161 = tpu.matmul %158, %159, %cst_83 {dimension_numbers = #tpu.dot_dimension_numbers<[2], [2], [1], [1], [0, 0, 0, 1, 1, 1], [0], [0]>} : vector<2x1x8xf32>, vector<2x16x8xf32>, vector<2x1x16xf32> -> vector<2x1x16xf32>
    "tpu.trace_stop"() : () -> ()
    %cst_84 = arith.constant 0.353553385 : f32
    %162 = vector.broadcast %cst_84 : f32 to vector<2x1x16xf32>
    %163 = arith.mulf %161, %162 : vector<2x1x16xf32>
    %cst_85 = arith.constant -1.000000e+30 : f32
    %164 = vector.broadcast %cst_85 : f32 to vector<2x1x16xf32>
    %165 = arith.select %96, %163, %164 : vector<2x1x16xi1>, vector<2x1x16xf32>
    %cst_86 = arith.constant dense<0xFF800000> : vector<2x1xf32>
    %166 = vector.multi_reduction <maximumf>, %165, %cst_86 [2] : vector<2x1x16xf32> to vector<2x1xf32>
    %167 = vector.shape_cast %166 : vector<2x1xf32> to vector<2x1x1xf32>
    %168 = vector.broadcast %167 : vector<2x1x1xf32> to vector<2x1x16xf32>
    %169 = arith.subf %165, %168 : vector<2x1x16xf32>
    %170 = math.exp %169 : vector<2x1x16xf32>
    %cst_87 = arith.constant dense<0.000000e+00> : vector<2x1xf32>
    %171 = vector.multi_reduction <add>, %170, %cst_87 [2] : vector<2x1x16xf32> to vector<2x1xf32>
    %172 = vector.shape_cast %171 : vector<2x1xf32> to vector<2x1x1xf32>
    %173 = tpu.reciprocal %172 {approx = true} : vector<2x1x1xf32> -> vector<2x1x1xf32>
    "tpu.trace_start"() <{level = 10 : i32, message = "bqk,bkd->bqd"}> : () -> ()
    %cst_88 = arith.constant dense<0.000000e+00> : vector<2x1x8xf32>
    %174 = tpu.matmul %170, %160, %cst_88 {dimension_numbers = #tpu.dot_dimension_numbers<[2], [1], [1], [2], [0, 0, 0, 1, 1, 2], [0], [0]>} : vector<2x1x16xf32>, vector<2x16x8xf32>, vector<2x1x8xf32> -> vector<2x1x8xf32>
    "tpu.trace_stop"() : () -> ()
    %175 = vector.broadcast %173 : vector<2x1x1xf32> to vector<2x1x8xf32>
    %176 = arith.mulf %174, %175 : vector<2x1x8xf32>
    %177 = tpu.concatenate %116, %136, %156, %176 in 2 : vector<2x1x8xf32>, vector<2x1x8xf32>, vector<2x1x8xf32>, vector<2x1x8xf32> -> vector<2x1x32xf32>
    %178 = vector.shape_cast %177 : vector<2x1x32xf32> to vector<2x32xf32>
    %cst_89 = arith.constant dense<0.000000e+00> : vector<2x32xf32>
    %179 = tpu.matmul %178, %5, %cst_89 {dimension_numbers = #tpu.dot_dimension_numbers<[1], [0], [0], [1], [0, 0, 1, 1], [], []>} : vector<2x32xf32>, vector<32x32xf32>, vector<2x32xf32> -> vector<2x32xf32>
    %180 = vector.broadcast %6 : vector<1x32xf32> to vector<2x32xf32>
    %181 = arith.addf %179, %180 : vector<2x32xf32>
    %182 = arith.addf %73, %181 : vector<2x32xf32>
    %183 = arith.mulf %182, %182 : vector<2x32xf32>
    %cst_90 = arith.constant dense<0.000000e+00> : vector<2xf32>
    %184 = vector.multi_reduction <add>, %183, %cst_90 [1] : vector<2x32xf32> to vector<2xf32>
    %185 = vector.shape_cast %184 : vector<2xf32> to vector<2x1xf32>
    %cst_91 = arith.constant 3.200000e+01 : f32
    %186 = vector.broadcast %cst_91 : f32 to vector<2x1xf32>
    %187 = arith.divf %185, %186 : vector<2x1xf32>
    %cst_92 = arith.constant 9.99999997E-7 : f32
    %188 = vector.broadcast %cst_92 : f32 to vector<2x1xf32>
    %189 = arith.addf %187, %188 : vector<2x1xf32>
    %190 = math.rsqrt %189 : vector<2x1xf32>
    %191 = vector.broadcast %190 : vector<2x1xf32> to vector<2x32xf32>
    %192 = arith.mulf %182, %191 : vector<2x32xf32>
    %193 = vector.broadcast %2 : vector<1x32xf32> to vector<2x32xf32>
    %194 = arith.mulf %192, %193 : vector<2x32xf32>
    %cst_93 = arith.constant dense<0.000000e+00> : vector<2x64xf32>
    %195 = tpu.matmul %194, %7, %cst_93 {dimension_numbers = #tpu.dot_dimension_numbers<[1], [0], [0], [1], [0, 0, 1, 1], [], []>} : vector<2x32xf32>, vector<32x64xf32>, vector<2x64xf32> -> vector<2x64xf32>
    %196 = vector.broadcast %8 : vector<1x64xf32> to vector<2x64xf32>
    %197 = arith.addf %195, %196 : vector<2x64xf32>
    %198 = arith.mulf %197, %197 : vector<2x64xf32>
    %199 = arith.mulf %197, %198 : vector<2x64xf32>
    %cst_94 = arith.constant 4.471500e-02 : f32
    %200 = vector.broadcast %cst_94 : f32 to vector<2x64xf32>
    %201 = arith.mulf %200, %199 : vector<2x64xf32>
    %202 = arith.addf %197, %201 : vector<2x64xf32>
    %cst_95 = arith.constant 0.797884583 : f32
    %203 = vector.broadcast %cst_95 : f32 to vector<2x64xf32>
    %204 = arith.mulf %203, %202 : vector<2x64xf32>
    %205 = math.tanh %204 : vector<2x64xf32>
    %cst_96 = arith.constant 1.000000e+00 : f32
    %206 = vector.broadcast %cst_96 : f32 to vector<2x64xf32>
    %207 = arith.addf %206, %205 : vector<2x64xf32>
    %cst_97 = arith.constant 5.000000e-01 : f32
    %208 = vector.broadcast %cst_97 : f32 to vector<2x64xf32>
    %209 = arith.mulf %208, %207 : vector<2x64xf32>
    %210 = arith.mulf %197, %209 : vector<2x64xf32>
    %cst_98 = arith.constant dense<0.000000e+00> : vector<2x32xf32>
    %211 = tpu.matmul %210, %9, %cst_98 {dimension_numbers = #tpu.dot_dimension_numbers<[1], [0], [0], [1], [0, 0, 1, 1], [], []>} : vector<2x64xf32>, vector<64x32xf32>, vector<2x32xf32> -> vector<2x32xf32>
    %212 = vector.broadcast %10 : vector<1x32xf32> to vector<2x32xf32>
    %213 = arith.addf %211, %212 : vector<2x32xf32>
    %214 = arith.addf %182, %213 : vector<2x32xf32>
    %cst_99 = arith.constant dense<0.000000e+00> : vector<2x64xf32>
    %215 = tpu.matmul %214, %11, %cst_99 {dimension_numbers = #tpu.dot_dimension_numbers<[1], [0], [0], [1], [0, 0, 1, 1], [], []>} : vector<2x32xf32>, vector<32x64xf32>, vector<2x64xf32> -> vector<2x64xf32>
    %216 = vector.broadcast %12 : vector<1x64xf32> to vector<2x64xf32>
    %217 = arith.addf %215, %216 : vector<2x64xf32>
    %cst_100 = arith.constant dense<0xFF800000> : vector<2xf32>
    %218 = vector.multi_reduction <maximumf>, %217, %cst_100 [1] : vector<2x64xf32> to vector<2xf32>
    %219 = vector.shape_cast %218 : vector<2xf32> to vector<2x1xf32>
    %220 = vector.broadcast %219 : vector<2x1xf32> to vector<2x64xf32>
    %221 = arith.cmpf oeq, %217, %220 : vector<2x64xf32>
    %c64_i32 = arith.constant 64 : i32
    %222 = vector.broadcast %c64_i32 : i32 to vector<2x64xi32>
    %223 = arith.select %221, %74, %222 : vector<2x64xi1>, vector<2x64xi32>
    %cst_101 = arith.constant dense<2147483647> : vector<2xi32>
    %224 = vector.multi_reduction <minsi>, %223, %cst_101 [1] : vector<2x64xi32> to vector<2xi32>
    %225 = vector.shape_cast %224 : vector<2xi32> to vector<2x1xi32>
    %226 = vector.broadcast %225 : vector<2x1xi32> to vector<2x64xi32>
    %227 = arith.cmpi eq, %226, %74 : vector<2x64xi32>
    %228 = arith.extui %227 : vector<2x64xi1> to vector<2x64xi32>
    %229 = arith.sitofp %228 : vector<2x64xi32> to vector<2x64xf32>
    %cst_102 = arith.constant dense<0.000000e+00> : vector<2x32xf32>
    %230 = tpu.matmul %229, %0, %cst_102 {dimension_numbers = #tpu.dot_dimension_numbers<[1], [0], [0], [1], [0, 0, 1, 1], [], []>} : vector<2x64xf32>, vector<64x32xf32>, vector<2x32xf32> -> vector<2x32xf32>
    %231 = arith.mulf %230, %230 : vector<2x32xf32>
    %cst_103 = arith.constant dense<0.000000e+00> : vector<2xf32>
    %232 = vector.multi_reduction <add>, %231, %cst_103 [1] : vector<2x32xf32> to vector<2xf32>
    %233 = vector.shape_cast %232 : vector<2xf32> to vector<2x1xf32>
    %cst_104 = arith.constant 3.200000e+01 : f32
    %234 = vector.broadcast %cst_104 : f32 to vector<2x1xf32>
    %235 = arith.divf %233, %234 : vector<2x1xf32>
    %cst_105 = arith.constant 9.99999997E-7 : f32
    %236 = vector.broadcast %cst_105 : f32 to vector<2x1xf32>
    %237 = arith.addf %235, %236 : vector<2x1xf32>
    %238 = math.rsqrt %237 : vector<2x1xf32>
    %239 = vector.broadcast %238 : vector<2x1xf32> to vector<2x32xf32>
    %240 = arith.mulf %230, %239 : vector<2x32xf32>
    %241 = vector.broadcast %1 : vector<1x32xf32> to vector<2x32xf32>
    %242 = arith.mulf %240, %241 : vector<2x32xf32>
    %cst_106 = arith.constant dense<0.000000e+00> : vector<2x96xf32>
    %243 = tpu.matmul %242, %3, %cst_106 {dimension_numbers = #tpu.dot_dimension_numbers<[1], [0], [0], [1], [0, 0, 1, 1], [], []>} : vector<2x32xf32>, vector<32x96xf32>, vector<2x96xf32> -> vector<2x96xf32>
    %244 = vector.broadcast %4 : vector<1x96xf32> to vector<2x96xf32>
    %245 = arith.addf %243, %244 : vector<2x96xf32>
    %246 = vector.extract_strided_slice %245 {offsets = [0, 32], sizes = [2, 64], strides = [1, 1]} : vector<2x96xf32> to vector<2x64xf32>
    %247 = vector.shape_cast %246 : vector<2x64xf32> to vector<2x1x64xf32>
    %c0_107 = arith.constant 0 : index
    %c12 = arith.constant 12 : index
    %c0_108 = arith.constant 0 : index
    %248 = vector.load %arg22[%c0_107, %c12, %c0_108] : memref<2x16x64xf32, #tpu.memory_space<vmem>>, vector<2x1x64xf32>
    tpu.vector_store %arg22[%c0_107, %c12, %c0_108], %247 {strides = array<i32>} : memref<2x16x64xf32, #tpu.memory_space<vmem>>, vector<2x1x64xf32>,
    %c0_109 = arith.constant 0 : index
    %c0_110 = arith.constant 0 : index
    %c0_111 = arith.constant 0 : index
    %249 = vector.load %arg22[%c0_109, %c0_110, %c0_111] : memref<2x16x64xf32, #tpu.memory_space<vmem>>, vector<2x16x64xf32>
    %c13_i32 = arith.constant 13 : i32
    %250 = vector.broadcast %c13_i32 : i32 to vector<2x1x16xi32>
    %251 = arith.cmpi slt, %75, %250 : vector<2x1x16xi32>
    %252 = vector.extract_strided_slice %245 {offsets = [0, 0], sizes = [2, 8], strides = [1, 1]} : vector<2x96xf32> to vector<2x8xf32>
    %253 = vector.shape_cast %252 : vector<2x8xf32> to vector<2x1x8xf32>
    %254 = vector.extract_strided_slice %249 {offsets = [0, 0, 0], sizes = [2, 16, 8], strides = [1, 1, 1]} : vector<2x16x64xf32> to vector<2x16x8xf32>
    %255 = vector.extract_strided_slice %249 {offsets = [0, 0, 32], sizes = [2, 16, 8], strides = [1, 1, 1]} : vector<2x16x64xf32> to vector<2x16x8xf32>
    "tpu.trace_start"() <{level = 10 : i32, message = "bqd,bkd->bqk"}> : () -> ()
    %cst_112 = arith.constant dense<0.000000e+00> : vector<2x1x16xf32>
    %256 = tpu.matmul %253, %254, %cst_112 {dimension_numbers = #tpu.dot_dimension_numbers<[2], [2], [1], [1], [0, 0, 0, 1, 1, 1], [0], [0]>} : vector<2x1x8xf32>, vector<2x16x8xf32>, vector<2x1x16xf32> -> vector<2x1x16xf32>
    "tpu.trace_stop"() : () -> ()
    %cst_113 = arith.constant 0.353553385 : f32
    %257 = vector.broadcast %cst_113 : f32 to vector<2x1x16xf32>
    %258 = arith.mulf %256, %257 : vector<2x1x16xf32>
    %cst_114 = arith.constant -1.000000e+30 : f32
    %259 = vector.broadcast %cst_114 : f32 to vector<2x1x16xf32>
    %260 = arith.select %251, %258, %259 : vector<2x1x16xi1>, vector<2x1x16xf32>
    %cst_115 = arith.constant dense<0xFF800000> : vector<2x1xf32>
    %261 = vector.multi_reduction <maximumf>, %260, %cst_115 [2] : vector<2x1x16xf32> to vector<2x1xf32>
    %262 = vector.shape_cast %261 : vector<2x1xf32> to vector<2x1x1xf32>
    %263 = vector.broadcast %262 : vector<2x1x1xf32> to vector<2x1x16xf32>
    %264 = arith.subf %260, %263 : vector<2x1x16xf32>
    %265 = math.exp %264 : vector<2x1x16xf32>
    %cst_116 = arith.constant dense<0.000000e+00> : vector<2x1xf32>
    %266 = vector.multi_reduction <add>, %265, %cst_116 [2] : vector<2x1x16xf32> to vector<2x1xf32>
    %267 = vector.shape_cast %266 : vector<2x1xf32> to vector<2x1x1xf32>
    %268 = tpu.reciprocal %267 {approx = true} : vector<2x1x1xf32> -> vector<2x1x1xf32>
    "tpu.trace_start"() <{level = 10 : i32, message = "bqk,bkd->bqd"}> : () -> ()
    %cst_117 = arith.constant dense<0.000000e+00> : vector<2x1x8xf32>
    %269 = tpu.matmul %265, %255, %cst_117 {dimension_numbers = #tpu.dot_dimension_numbers<[2], [1], [1], [2], [0, 0, 0, 1, 1, 2], [0], [0]>} : vector<2x1x16xf32>, vector<2x16x8xf32>, vector<2x1x8xf32> -> vector<2x1x8xf32>
    "tpu.trace_stop"() : () -> ()
    %270 = vector.broadcast %268 : vector<2x1x1xf32> to vector<2x1x8xf32>
    %271 = arith.mulf %269, %270 : vector<2x1x8xf32>
    %272 = vector.extract_strided_slice %245 {offsets = [0, 8], sizes = [2, 8], strides = [1, 1]} : vector<2x96xf32> to vector<2x8xf32>
    %273 = vector.shape_cast %272 : vector<2x8xf32> to vector<2x1x8xf32>
    %274 = vector.extract_strided_slice %249 {offsets = [0, 0, 8], sizes = [2, 16, 8], strides = [1, 1, 1]} : vector<2x16x64xf32> to vector<2x16x8xf32>
    %275 = vector.extract_strided_slice %249 {offsets = [0, 0, 40], sizes = [2, 16, 8], strides = [1, 1, 1]} : vector<2x16x64xf32> to vector<2x16x8xf32>
    "tpu.trace_start"() <{level = 10 : i32, message = "bqd,bkd->bqk"}> : () -> ()
    %cst_118 = arith.constant dense<0.000000e+00> : vector<2x1x16xf32>
    %276 = tpu.matmul %273, %274, %cst_118 {dimension_numbers = #tpu.dot_dimension_numbers<[2], [2], [1], [1], [0, 0, 0, 1, 1, 1], [0], [0]>} : vector<2x1x8xf32>, vector<2x16x8xf32>, vector<2x1x16xf32> -> vector<2x1x16xf32>
    "tpu.trace_stop"() : () -> ()
    %cst_119 = arith.constant 0.353553385 : f32
    %277 = vector.broadcast %cst_119 : f32 to vector<2x1x16xf32>
    %278 = arith.mulf %276, %277 : vector<2x1x16xf32>
    %cst_120 = arith.constant -1.000000e+30 : f32
    %279 = vector.broadcast %cst_120 : f32 to vector<2x1x16xf32>
    %280 = arith.select %251, %278, %279 : vector<2x1x16xi1>, vector<2x1x16xf32>
    %cst_121 = arith.constant dense<0xFF800000> : vector<2x1xf32>
    %281 = vector.multi_reduction <maximumf>, %280, %cst_121 [2] : vector<2x1x16xf32> to vector<2x1xf32>
    %282 = vector.shape_cast %281 : vector<2x1xf32> to vector<2x1x1xf32>
    %283 = vector.broadcast %282 : vector<2x1x1xf32> to vector<2x1x16xf32>
    %284 = arith.subf %280, %283 : vector<2x1x16xf32>
    %285 = math.exp %284 : vector<2x1x16xf32>
    %cst_122 = arith.constant dense<0.000000e+00> : vector<2x1xf32>
    %286 = vector.multi_reduction <add>, %285, %cst_122 [2] : vector<2x1x16xf32> to vector<2x1xf32>
    %287 = vector.shape_cast %286 : vector<2x1xf32> to vector<2x1x1xf32>
    %288 = tpu.reciprocal %287 {approx = true} : vector<2x1x1xf32> -> vector<2x1x1xf32>
    "tpu.trace_start"() <{level = 10 : i32, message = "bqk,bkd->bqd"}> : () -> ()
    %cst_123 = arith.constant dense<0.000000e+00> : vector<2x1x8xf32>
    %289 = tpu.matmul %285, %275, %cst_123 {dimension_numbers = #tpu.dot_dimension_numbers<[2], [1], [1], [2], [0, 0, 0, 1, 1, 2], [0], [0]>} : vector<2x1x16xf32>, vector<2x16x8xf32>, vector<2x1x8xf32> -> vector<2x1x8xf32>
    "tpu.trace_stop"() : () -> ()
    %290 = vector.broadcast %288 : vector<2x1x1xf32> to vector<2x1x8xf32>
    %291 = arith.mulf %289, %290 : vector<2x1x8xf32>
    %292 = vector.extract_strided_slice %245 {offsets = [0, 16], sizes = [2, 8], strides = [1, 1]} : vector<2x96xf32> to vector<2x8xf32>
    %293 = vector.shape_cast %292 : vector<2x8xf32> to vector<2x1x8xf32>
    %294 = vector.extract_strided_slice %249 {offsets = [0, 0, 16], sizes = [2, 16, 8], strides = [1, 1, 1]} : vector<2x16x64xf32> to vector<2x16x8xf32>
    %295 = vector.extract_strided_slice %249 {offsets = [0, 0, 48], sizes = [2, 16, 8], strides = [1, 1, 1]} : vector<2x16x64xf32> to vector<2x16x8xf32>
    "tpu.trace_start"() <{level = 10 : i32, message = "bqd,bkd->bqk"}> : () -> ()
    %cst_124 = arith.constant dense<0.000000e+00> : vector<2x1x16xf32>
    %296 = tpu.matmul %293, %294, %cst_124 {dimension_numbers = #tpu.dot_dimension_numbers<[2], [2], [1], [1], [0, 0, 0, 1, 1, 1], [0], [0]>} : vector<2x1x8xf32>, vector<2x16x8xf32>, vector<2x1x16xf32> -> vector<2x1x16xf32>
    "tpu.trace_stop"() : () -> ()
    %cst_125 = arith.constant 0.353553385 : f32
    %297 = vector.broadcast %cst_125 : f32 to vector<2x1x16xf32>
    %298 = arith.mulf %296, %297 : vector<2x1x16xf32>
    %cst_126 = arith.constant -1.000000e+30 : f32
    %299 = vector.broadcast %cst_126 : f32 to vector<2x1x16xf32>
    %300 = arith.select %251, %298, %299 : vector<2x1x16xi1>, vector<2x1x16xf32>
    %cst_127 = arith.constant dense<0xFF800000> : vector<2x1xf32>
    %301 = vector.multi_reduction <maximumf>, %300, %cst_127 [2] : vector<2x1x16xf32> to vector<2x1xf32>
    %302 = vector.shape_cast %301 : vector<2x1xf32> to vector<2x1x1xf32>
    %303 = vector.broadcast %302 : vector<2x1x1xf32> to vector<2x1x16xf32>
    %304 = arith.subf %300, %303 : vector<2x1x16xf32>
    %305 = math.exp %304 : vector<2x1x16xf32>
    %cst_128 = arith.constant dense<0.000000e+00> : vector<2x1xf32>
    %306 = vector.multi_reduction <add>, %305, %cst_128 [2] : vector<2x1x16xf32> to vector<2x1xf32>
    %307 = vector.shape_cast %306 : vector<2x1xf32> to vector<2x1x1xf32>
    %308 = tpu.reciprocal %307 {approx = true} : vector<2x1x1xf32> -> vector<2x1x1xf32>
    "tpu.trace_start"() <{level = 10 : i32, message = "bqk,bkd->bqd"}> : () -> ()
    %cst_129 = arith.constant dense<0.000000e+00> : vector<2x1x8xf32>
    %309 = tpu.matmul %305, %295, %cst_129 {dimension_numbers = #tpu.dot_dimension_numbers<[2], [1], [1], [2], [0, 0, 0, 1, 1, 2], [0], [0]>} : vector<2x1x16xf32>, vector<2x16x8xf32>, vector<2x1x8xf32> -> vector<2x1x8xf32>
    "tpu.trace_stop"() : () -> ()
    %310 = vector.broadcast %308 : vector<2x1x1xf32> to vector<2x1x8xf32>
    %311 = arith.mulf %309, %310 : vector<2x1x8xf32>
    %312 = vector.extract_strided_slice %245 {offsets = [0, 24], sizes = [2, 8], strides = [1, 1]} : vector<2x96xf32> to vector<2x8xf32>
    %313 = vector.shape_cast %312 : vector<2x8xf32> to vector<2x1x8xf32>
    %314 = vector.extract_strided_slice %249 {offsets = [0, 0, 24], sizes = [2, 16, 8], strides = [1, 1, 1]} : vector<2x16x64xf32> to vector<2x16x8xf32>
    %315 = vector.extract_strided_slice %249 {offsets = [0, 0, 56], sizes = [2, 16, 8], strides = [1, 1, 1]} : vector<2x16x64xf32> to vector<2x16x8xf32>
    "tpu.trace_start"() <{level = 10 : i32, message = "bqd,bkd->bqk"}> : () -> ()
    %cst_130 = arith.constant dense<0.000000e+00> : vector<2x1x16xf32>
    %316 = tpu.matmul %313, %314, %cst_130 {dimension_numbers = #tpu.dot_dimension_numbers<[2], [2], [1], [1], [0, 0, 0, 1, 1, 1], [0], [0]>} : vector<2x1x8xf32>, vector<2x16x8xf32>, vector<2x1x16xf32> -> vector<2x1x16xf32>
    "tpu.trace_stop"() : () -> ()
    %cst_131 = arith.constant 0.353553385 : f32
    %317 = vector.broadcast %cst_131 : f32 to vector<2x1x16xf32>
    %318 = arith.mulf %316, %317 : vector<2x1x16xf32>
    %cst_132 = arith.constant -1.000000e+30 : f32
    %319 = vector.broadcast %cst_132 : f32 to vector<2x1x16xf32>
    %320 = arith.select %251, %318, %319 : vector<2x1x16xi1>, vector<2x1x16xf32>
    %cst_133 = arith.constant dense<0xFF800000> : vector<2x1xf32>
    %321 = vector.multi_reduction <maximumf>, %320, %cst_133 [2] : vector<2x1x16xf32> to vector<2x1xf32>
    %322 = vector.shape_cast %321 : vector<2x1xf32> to vector<2x1x1xf32>
    %323 = vector.broadcast %322 : vector<2x1x1xf32> to vector<2x1x16xf32>
    %324 = arith.subf %320, %323 : vector<2x1x16xf32>
    %325 = math.exp %324 : vector<2x1x16xf32>
    %cst_134 = arith.constant dense<0.000000e+00> : vector<2x1xf32>
    %326 = vector.multi_reduction <add>, %325, %cst_134 [2] : vector<2x1x16xf32> to vector<2x1xf32>
    %327 = vector.shape_cast %326 : vector<2x1xf32> to vector<2x1x1xf32>
    %328 = tpu.reciprocal %327 {approx = true} : vector<2x1x1xf32> -> vector<2x1x1xf32>
    "tpu.trace_start"() <{level = 10 : i32, message = "bqk,bkd->bqd"}> : () -> ()
    %cst_135 = arith.constant dense<0.000000e+00> : vector<2x1x8xf32>
    %329 = tpu.matmul %325, %315, %cst_135 {dimension_numbers = #tpu.dot_dimension_numbers<[2], [1], [1], [2], [0, 0, 0, 1, 1, 2], [0], [0]>} : vector<2x1x16xf32>, vector<2x16x8xf32>, vector<2x1x8xf32> -> vector<2x1x8xf32>
    "tpu.trace_stop"() : () -> ()
    %330 = vector.broadcast %328 : vector<2x1x1xf32> to vector<2x1x8xf32>
    %331 = arith.mulf %329, %330 : vector<2x1x8xf32>
    %332 = tpu.concatenate %271, %291, %311, %331 in 2 : vector<2x1x8xf32>, vector<2x1x8xf32>, vector<2x1x8xf32>, vector<2x1x8xf32> -> vector<2x1x32xf32>
    %333 = vector.shape_cast %332 : vector<2x1x32xf32> to vector<2x32xf32>
    %cst_136 = arith.constant dense<0.000000e+00> : vector<2x32xf32>
    %334 = tpu.matmul %333, %5, %cst_136 {dimension_numbers = #tpu.dot_dimension_numbers<[1], [0], [0], [1], [0, 0, 1, 1], [], []>} : vector<2x32xf32>, vector<32x32xf32>, vector<2x32xf32> -> vector<2x32xf32>
    %335 = vector.broadcast %6 : vector<1x32xf32> to vector<2x32xf32>
    %336 = arith.addf %334, %335 : vector<2x32xf32>
    %337 = arith.addf %230, %336 : vector<2x32xf32>
    %338 = arith.mulf %337, %337 : vector<2x32xf32>
    %cst_137 = arith.constant dense<0.000000e+00> : vector<2xf32>
    %339 = vector.multi_reduction <add>, %338, %cst_137 [1] : vector<2x32xf32> to vector<2xf32>
    %340 = vector.shape_cast %339 : vector<2xf32> to vector<2x1xf32>
    %cst_138 = arith.constant 3.200000e+01 : f32
    %341 = vector.broadcast %cst_138 : f32 to vector<2x1xf32>
    %342 = arith.divf %340, %341 : vector<2x1xf32>
    %cst_139 = arith.constant 9.99999997E-7 : f32
    %343 = vector.broadcast %cst_139 : f32 to vector<2x1xf32>
    %344 = arith.addf %342, %343 : vector<2x1xf32>
    %345 = math.rsqrt %344 : vector<2x1xf32>
    %346 = vector.broadcast %345 : vector<2x1xf32> to vector<2x32xf32>
    %347 = arith.mulf %337, %346 : vector<2x32xf32>
    %348 = vector.broadcast %2 : vector<1x32xf32> to vector<2x32xf32>
    %349 = arith.mulf %347, %348 : vector<2x32xf32>
    %cst_140 = arith.constant dense<0.000000e+00> : vector<2x64xf32>
    %350 = tpu.matmul %349, %7, %cst_140 {dimension_numbers = #tpu.dot_dimension_numbers<[1], [0], [0], [1], [0, 0, 1, 1], [], []>} : vector<2x32xf32>, vector<32x64xf32>, vector<2x64xf32> -> vector<2x64xf32>
    %351 = vector.broadcast %8 : vector<1x64xf32> to vector<2x64xf32>
    %352 = arith.addf %350, %351 : vector<2x64xf32>
    %353 = arith.mulf %352, %352 : vector<2x64xf32>
    %354 = arith.mulf %352, %353 : vector<2x64xf32>
    %cst_141 = arith.constant 4.471500e-02 : f32
    %355 = vector.broadcast %cst_141 : f32 to vector<2x64xf32>
    %356 = arith.mulf %355, %354 : vector<2x64xf32>
    %357 = arith.addf %352, %356 : vector<2x64xf32>
    %cst_142 = arith.constant 0.797884583 : f32
    %358 = vector.broadcast %cst_142 : f32 to vector<2x64xf32>
    %359 = arith.mulf %358, %357 : vector<2x64xf32>
    %360 = math.tanh %359 : vector<2x64xf32>
    %cst_143 = arith.constant 1.000000e+00 : f32
    %361 = vector.broadcast %cst_143 : f32 to vector<2x64xf32>
    %362 = arith.addf %361, %360 : vector<2x64xf32>
    %cst_144 = arith.constant 5.000000e-01 : f32
    %363 = vector.broadcast %cst_144 : f32 to vector<2x64xf32>
    %364 = arith.mulf %363, %362 : vector<2x64xf32>
    %365 = arith.mulf %352, %364 : vector<2x64xf32>
    %cst_145 = arith.constant dense<0.000000e+00> : vector<2x32xf32>
    %366 = tpu.matmul %365, %9, %cst_145 {dimension_numbers = #tpu.dot_dimension_numbers<[1], [0], [0], [1], [0, 0, 1, 1], [], []>} : vector<2x64xf32>, vector<64x32xf32>, vector<2x32xf32> -> vector<2x32xf32>
    %367 = vector.broadcast %10 : vector<1x32xf32> to vector<2x32xf32>
    %368 = arith.addf %366, %367 : vector<2x32xf32>
    %369 = arith.addf %337, %368 : vector<2x32xf32>
    %cst_146 = arith.constant dense<0.000000e+00> : vector<2x64xf32>
    %370 = tpu.matmul %369, %11, %cst_146 {dimension_numbers = #tpu.dot_dimension_numbers<[1], [0], [0], [1], [0, 0, 1, 1], [], []>} : vector<2x32xf32>, vector<32x64xf32>, vector<2x64xf32> -> vector<2x64xf32>
    %371 = vector.broadcast %12 : vector<1x64xf32> to vector<2x64xf32>
    %372 = arith.addf %370, %371 : vector<2x64xf32>
    %cst_147 = arith.constant dense<0xFF800000> : vector<2xf32>
    %373 = vector.multi_reduction <maximumf>, %372, %cst_147 [1] : vector<2x64xf32> to vector<2xf32>
    %374 = vector.shape_cast %373 : vector<2xf32> to vector<2x1xf32>
    %375 = vector.broadcast %374 : vector<2x1xf32> to vector<2x64xf32>
    %376 = arith.cmpf oeq, %372, %375 : vector<2x64xf32>
    %c64_i32_148 = arith.constant 64 : i32
    %377 = vector.broadcast %c64_i32_148 : i32 to vector<2x64xi32>
    %378 = arith.select %376, %74, %377 : vector<2x64xi1>, vector<2x64xi32>
    %cst_149 = arith.constant dense<2147483647> : vector<2xi32>
    %379 = vector.multi_reduction <minsi>, %378, %cst_149 [1] : vector<2x64xi32> to vector<2xi32>
    %380 = vector.shape_cast %379 : vector<2xi32> to vector<2x1xi32>
    %381 = vector.broadcast %380 : vector<2x1xi32> to vector<2x64xi32>
    %382 = arith.cmpi eq, %381, %74 : vector<2x64xi32>
    %383 = arith.extui %382 : vector<2x64xi1> to vector<2x64xi32>
    %384 = arith.sitofp %383 : vector<2x64xi32> to vector<2x64xf32>
    %cst_150 = arith.constant dense<0.000000e+00> : vector<2x32xf32>
    %385 = tpu.matmul %384, %0, %cst_150 {dimension_numbers = #tpu.dot_dimension_numbers<[1], [0], [0], [1], [0, 0, 1, 1], [], []>} : vector<2x64xf32>, vector<64x32xf32>, vector<2x32xf32> -> vector<2x32xf32>
    %386 = arith.mulf %385, %385 : vector<2x32xf32>
    %cst_151 = arith.constant dense<0.000000e+00> : vector<2xf32>
    %387 = vector.multi_reduction <add>, %386, %cst_151 [1] : vector<2x32xf32> to vector<2xf32>
    %388 = vector.shape_cast %387 : vector<2xf32> to vector<2x1xf32>
    %cst_152 = arith.constant 3.200000e+01 : f32
    %389 = vector.broadcast %cst_152 : f32 to vector<2x1xf32>
    %390 = arith.divf %388, %389 : vector<2x1xf32>
    %cst_153 = arith.constant 9.99999997E-7 : f32
    %391 = vector.broadcast %cst_153 : f32 to vector<2x1xf32>
    %392 = arith.addf %390, %391 : vector<2x1xf32>
    %393 = math.rsqrt %392 : vector<2x1xf32>
    %394 = vector.broadcast %393 : vector<2x1xf32> to vector<2x32xf32>
    %395 = arith.mulf %385, %394 : vector<2x32xf32>
    %396 = vector.broadcast %1 : vector<1x32xf32> to vector<2x32xf32>
    %397 = arith.mulf %395, %396 : vector<2x32xf32>
    %cst_154 = arith.constant dense<0.000000e+00> : vector<2x96xf32>
    %398 = tpu.matmul %397, %3, %cst_154 {dimension_numbers = #tpu.dot_dimension_numbers<[1], [0], [0], [1], [0, 0, 1, 1], [], []>} : vector<2x32xf32>, vector<32x96xf32>, vector<2x96xf32> -> vector<2x96xf32>
    %399 = vector.broadcast %4 : vector<1x96xf32> to vector<2x96xf32>
    %400 = arith.addf %398, %399 : vector<2x96xf32>
    %401 = vector.extract_strided_slice %400 {offsets = [0, 32], sizes = [2, 64], strides = [1, 1]} : vector<2x96xf32> to vector<2x64xf32>
    %402 = vector.shape_cast %401 : vector<2x64xf32> to vector<2x1x64xf32>
    %c0_155 = arith.constant 0 : index
    %c13 = arith.constant 13 : index
    %c0_156 = arith.constant 0 : index
    %403 = vector.load %arg22[%c0_155, %c13, %c0_156] : memref<2x16x64xf32, #tpu.memory_space<vmem>>, vector<2x1x64xf32>
    tpu.vector_store %arg22[%c0_155, %c13, %c0_156], %402 {strides = array<i32>} : memref<2x16x64xf32, #tpu.memory_space<vmem>>, vector<2x1x64xf32>,
    %c0_157 = arith.constant 0 : index
    %c0_158 = arith.constant 0 : index
    %c0_159 = arith.constant 0 : index
    %404 = vector.load %arg22[%c0_157, %c0_158, %c0_159] : memref<2x16x64xf32, #tpu.memory_space<vmem>>, vector<2x16x64xf32>
    %c14_i32 = arith.constant 14 : i32
    %405 = vector.broadcast %c14_i32 : i32 to vector<2x1x16xi32>
    %406 = arith.cmpi slt, %75, %405 : vector<2x1x16xi32>
    %407 = vector.extract_strided_slice %400 {offsets = [0, 0], sizes = [2, 8], strides = [1, 1]} : vector<2x96xf32> to vector<2x8xf32>
    %408 = vector.shape_cast %407 : vector<2x8xf32> to vector<2x1x8xf32>
    %409 = vector.extract_strided_slice %404 {offsets = [0, 0, 0], sizes = [2, 16, 8], strides = [1, 1, 1]} : vector<2x16x64xf32> to vector<2x16x8xf32>
    %410 = vector.extract_strided_slice %404 {offsets = [0, 0, 32], sizes = [2, 16, 8], strides = [1, 1, 1]} : vector<2x16x64xf32> to vector<2x16x8xf32>
    "tpu.trace_start"() <{level = 10 : i32, message = "bqd,bkd->bqk"}> : () -> ()
    %cst_160 = arith.constant dense<0.000000e+00> : vector<2x1x16xf32>
    %411 = tpu.matmul %408, %409, %cst_160 {dimension_numbers = #tpu.dot_dimension_numbers<[2], [2], [1], [1], [0, 0, 0, 1, 1, 1], [0], [0]>} : vector<2x1x8xf32>, vector<2x16x8xf32>, vector<2x1x16xf32> -> vector<2x1x16xf32>
    "tpu.trace_stop"() : () -> ()
    %cst_161 = arith.constant 0.353553385 : f32
    %412 = vector.broadcast %cst_161 : f32 to vector<2x1x16xf32>
    %413 = arith.mulf %411, %412 : vector<2x1x16xf32>
    %cst_162 = arith.constant -1.000000e+30 : f32
    %414 = vector.broadcast %cst_162 : f32 to vector<2x1x16xf32>
    %415 = arith.select %406, %413, %414 : vector<2x1x16xi1>, vector<2x1x16xf32>
    %cst_163 = arith.constant dense<0xFF800000> : vector<2x1xf32>
    %416 = vector.multi_reduction <maximumf>, %415, %cst_163 [2] : vector<2x1x16xf32> to vector<2x1xf32>
    %417 = vector.shape_cast %416 : vector<2x1xf32> to vector<2x1x1xf32>
    %418 = vector.broadcast %417 : vector<2x1x1xf32> to vector<2x1x16xf32>
    %419 = arith.subf %415, %418 : vector<2x1x16xf32>
    %420 = math.exp %419 : vector<2x1x16xf32>
    %cst_164 = arith.constant dense<0.000000e+00> : vector<2x1xf32>
    %421 = vector.multi_reduction <add>, %420, %cst_164 [2] : vector<2x1x16xf32> to vector<2x1xf32>
    %422 = vector.shape_cast %421 : vector<2x1xf32> to vector<2x1x1xf32>
    %423 = tpu.reciprocal %422 {approx = true} : vector<2x1x1xf32> -> vector<2x1x1xf32>
    "tpu.trace_start"() <{level = 10 : i32, message = "bqk,bkd->bqd"}> : () -> ()
    %cst_165 = arith.constant dense<0.000000e+00> : vector<2x1x8xf32>
    %424 = tpu.matmul %420, %410, %cst_165 {dimension_numbers = #tpu.dot_dimension_numbers<[2], [1], [1], [2], [0, 0, 0, 1, 1, 2], [0], [0]>} : vector<2x1x16xf32>, vector<2x16x8xf32>, vector<2x1x8xf32> -> vector<2x1x8xf32>
    "tpu.trace_stop"() : () -> ()
    %425 = vector.broadcast %423 : vector<2x1x1xf32> to vector<2x1x8xf32>
    %426 = arith.mulf %424, %425 : vector<2x1x8xf32>
    %427 = vector.extract_strided_slice %400 {offsets = [0, 8], sizes = [2, 8], strides = [1, 1]} : vector<2x96xf32> to vector<2x8xf32>
    %428 = vector.shape_cast %427 : vector<2x8xf32> to vector<2x1x8xf32>
    %429 = vector.extract_strided_slice %404 {offsets = [0, 0, 8], sizes = [2, 16, 8], strides = [1, 1, 1]} : vector<2x16x64xf32> to vector<2x16x8xf32>
    %430 = vector.extract_strided_slice %404 {offsets = [0, 0, 40], sizes = [2, 16, 8], strides = [1, 1, 1]} : vector<2x16x64xf32> to vector<2x16x8xf32>
    "tpu.trace_start"() <{level = 10 : i32, message = "bqd,bkd->bqk"}> : () -> ()
    %cst_166 = arith.constant dense<0.000000e+00> : vector<2x1x16xf32>
    %431 = tpu.matmul %428, %429, %cst_166 {dimension_numbers = #tpu.dot_dimension_numbers<[2], [2], [1], [1], [0, 0, 0, 1, 1, 1], [0], [0]>} : vector<2x1x8xf32>, vector<2x16x8xf32>, vector<2x1x16xf32> -> vector<2x1x16xf32>
    "tpu.trace_stop"() : () -> ()
    %cst_167 = arith.constant 0.353553385 : f32
    %432 = vector.broadcast %cst_167 : f32 to vector<2x1x16xf32>
    %433 = arith.mulf %431, %432 : vector<2x1x16xf32>
    %cst_168 = arith.constant -1.000000e+30 : f32
    %434 = vector.broadcast %cst_168 : f32 to vector<2x1x16xf32>
    %435 = arith.select %406, %433, %434 : vector<2x1x16xi1>, vector<2x1x16xf32>
    %cst_169 = arith.constant dense<0xFF800000> : vector<2x1xf32>
    %436 = vector.multi_reduction <maximumf>, %435, %cst_169 [2] : vector<2x1x16xf32> to vector<2x1xf32>
    %437 = vector.shape_cast %436 : vector<2x1xf32> to vector<2x1x1xf32>
    %438 = vector.broadcast %437 : vector<2x1x1xf32> to vector<2x1x16xf32>
    %439 = arith.subf %435, %438 : vector<2x1x16xf32>
    %440 = math.exp %439 : vector<2x1x16xf32>
    %cst_170 = arith.constant dense<0.000000e+00> : vector<2x1xf32>
    %441 = vector.multi_reduction <add>, %440, %cst_170 [2] : vector<2x1x16xf32> to vector<2x1xf32>
    %442 = vector.shape_cast %441 : vector<2x1xf32> to vector<2x1x1xf32>
    %443 = tpu.reciprocal %442 {approx = true} : vector<2x1x1xf32> -> vector<2x1x1xf32>
    "tpu.trace_start"() <{level = 10 : i32, message = "bqk,bkd->bqd"}> : () -> ()
    %cst_171 = arith.constant dense<0.000000e+00> : vector<2x1x8xf32>
    %444 = tpu.matmul %440, %430, %cst_171 {dimension_numbers = #tpu.dot_dimension_numbers<[2], [1], [1], [2], [0, 0, 0, 1, 1, 2], [0], [0]>} : vector<2x1x16xf32>, vector<2x16x8xf32>, vector<2x1x8xf32> -> vector<2x1x8xf32>
    "tpu.trace_stop"() : () -> ()
    %445 = vector.broadcast %443 : vector<2x1x1xf32> to vector<2x1x8xf32>
    %446 = arith.mulf %444, %445 : vector<2x1x8xf32>
    %447 = vector.extract_strided_slice %400 {offsets = [0, 16], sizes = [2, 8], strides = [1, 1]} : vector<2x96xf32> to vector<2x8xf32>
    %448 = vector.shape_cast %447 : vector<2x8xf32> to vector<2x1x8xf32>
    %449 = vector.extract_strided_slice %404 {offsets = [0, 0, 16], sizes = [2, 16, 8], strides = [1, 1, 1]} : vector<2x16x64xf32> to vector<2x16x8xf32>
    %450 = vector.extract_strided_slice %404 {offsets = [0, 0, 48], sizes = [2, 16, 8], strides = [1, 1, 1]} : vector<2x16x64xf32> to vector<2x16x8xf32>
    "tpu.trace_start"() <{level = 10 : i32, message = "bqd,bkd->bqk"}> : () -> ()
    %cst_172 = arith.constant dense<0.000000e+00> : vector<2x1x16xf32>
    %451 = tpu.matmul %448, %449, %cst_172 {dimension_numbers = #tpu.dot_dimension_numbers<[2], [2], [1], [1], [0, 0, 0, 1, 1, 1], [0], [0]>} : vector<2x1x8xf32>, vector<2x16x8xf32>, vector<2x1x16xf32> -> vector<2x1x16xf32>
    "tpu.trace_stop"() : () -> ()
    %cst_173 = arith.constant 0.353553385 : f32
    %452 = vector.broadcast %cst_173 : f32 to vector<2x1x16xf32>
    %453 = arith.mulf %451, %452 : vector<2x1x16xf32>
    %cst_174 = arith.constant -1.000000e+30 : f32
    %454 = vector.broadcast %cst_174 : f32 to vector<2x1x16xf32>
    %455 = arith.select %406, %453, %454 : vector<2x1x16xi1>, vector<2x1x16xf32>
    %cst_175 = arith.constant dense<0xFF800000> : vector<2x1xf32>
    %456 = vector.multi_reduction <maximumf>, %455, %cst_175 [2] : vector<2x1x16xf32> to vector<2x1xf32>
    %457 = vector.shape_cast %456 : vector<2x1xf32> to vector<2x1x1xf32>
    %458 = vector.broadcast %457 : vector<2x1x1xf32> to vector<2x1x16xf32>
    %459 = arith.subf %455, %458 : vector<2x1x16xf32>
    %460 = math.exp %459 : vector<2x1x16xf32>
    %cst_176 = arith.constant dense<0.000000e+00> : vector<2x1xf32>
    %461 = vector.multi_reduction <add>, %460, %cst_176 [2] : vector<2x1x16xf32> to vector<2x1xf32>
    %462 = vector.shape_cast %461 : vector<2x1xf32> to vector<2x1x1xf32>
    %463 = tpu.reciprocal %462 {approx = true} : vector<2x1x1xf32> -> vector<2x1x1xf32>
    "tpu.trace_start"() <{level = 10 : i32, message = "bqk,bkd->bqd"}> : () -> ()
    %cst_177 = arith.constant dense<0.000000e+00> : vector<2x1x8xf32>
    %464 = tpu.matmul %460, %450, %cst_177 {dimension_numbers = #tpu.dot_dimension_numbers<[2], [1], [1], [2], [0, 0, 0, 1, 1, 2], [0], [0]>} : vector<2x1x16xf32>, vector<2x16x8xf32>, vector<2x1x8xf32> -> vector<2x1x8xf32>
    "tpu.trace_stop"() : () -> ()
    %465 = vector.broadcast %463 : vector<2x1x1xf32> to vector<2x1x8xf32>
    %466 = arith.mulf %464, %465 : vector<2x1x8xf32>
    %467 = vector.extract_strided_slice %400 {offsets = [0, 24], sizes = [2, 8], strides = [1, 1]} : vector<2x96xf32> to vector<2x8xf32>
    %468 = vector.shape_cast %467 : vector<2x8xf32> to vector<2x1x8xf32>
    %469 = vector.extract_strided_slice %404 {offsets = [0, 0, 24], sizes = [2, 16, 8], strides = [1, 1, 1]} : vector<2x16x64xf32> to vector<2x16x8xf32>
    %470 = vector.extract_strided_slice %404 {offsets = [0, 0, 56], sizes = [2, 16, 8], strides = [1, 1, 1]} : vector<2x16x64xf32> to vector<2x16x8xf32>
    "tpu.trace_start"() <{level = 10 : i32, message = "bqd,bkd->bqk"}> : () -> ()
    %cst_178 = arith.constant dense<0.000000e+00> : vector<2x1x16xf32>
    %471 = tpu.matmul %468, %469, %cst_178 {dimension_numbers = #tpu.dot_dimension_numbers<[2], [2], [1], [1], [0, 0, 0, 1, 1, 1], [0], [0]>} : vector<2x1x8xf32>, vector<2x16x8xf32>, vector<2x1x16xf32> -> vector<2x1x16xf32>
    "tpu.trace_stop"() : () -> ()
    %cst_179 = arith.constant 0.353553385 : f32
    %472 = vector.broadcast %cst_179 : f32 to vector<2x1x16xf32>
    %473 = arith.mulf %471, %472 : vector<2x1x16xf32>
    %cst_180 = arith.constant -1.000000e+30 : f32
    %474 = vector.broadcast %cst_180 : f32 to vector<2x1x16xf32>
    %475 = arith.select %406, %473, %474 : vector<2x1x16xi1>, vector<2x1x16xf32>
    %cst_181 = arith.constant dense<0xFF800000> : vector<2x1xf32>
    %476 = vector.multi_reduction <maximumf>, %475, %cst_181 [2] : vector<2x1x16xf32> to vector<2x1xf32>
    %477 = vector.shape_cast %476 : vector<2x1xf32> to vector<2x1x1xf32>
    %478 = vector.broadcast %477 : vector<2x1x1xf32> to vector<2x1x16xf32>
    %479 = arith.subf %475, %478 : vector<2x1x16xf32>
    %480 = math.exp %479 : vector<2x1x16xf32>
    %cst_182 = arith.constant dense<0.000000e+00> : vector<2x1xf32>
    %481 = vector.multi_reduction <add>, %480, %cst_182 [2] : vector<2x1x16xf32> to vector<2x1xf32>
    %482 = vector.shape_cast %481 : vector<2x1xf32> to vector<2x1x1xf32>
    %483 = tpu.reciprocal %482 {approx = true} : vector<2x1x1xf32> -> vector<2x1x1xf32>
    "tpu.trace_start"() <{level = 10 : i32, message = "bqk,bkd->bqd"}> : () -> ()
    %cst_183 = arith.constant dense<0.000000e+00> : vector<2x1x8xf32>
    %484 = tpu.matmul %480, %470, %cst_183 {dimension_numbers = #tpu.dot_dimension_numbers<[2], [1], [1], [2], [0, 0, 0, 1, 1, 2], [0], [0]>} : vector<2x1x16xf32>, vector<2x16x8xf32>, vector<2x1x8xf32> -> vector<2x1x8xf32>
    "tpu.trace_stop"() : () -> ()
    %485 = vector.broadcast %483 : vector<2x1x1xf32> to vector<2x1x8xf32>
    %486 = arith.mulf %484, %485 : vector<2x1x8xf32>
    %487 = tpu.concatenate %426, %446, %466, %486 in 2 : vector<2x1x8xf32>, vector<2x1x8xf32>, vector<2x1x8xf32>, vector<2x1x8xf32> -> vector<2x1x32xf32>
    %488 = vector.shape_cast %487 : vector<2x1x32xf32> to vector<2x32xf32>
    %cst_184 = arith.constant dense<0.000000e+00> : vector<2x32xf32>
    %489 = tpu.matmul %488, %5, %cst_184 {dimension_numbers = #tpu.dot_dimension_numbers<[1], [0], [0], [1], [0, 0, 1, 1], [], []>} : vector<2x32xf32>, vector<32x32xf32>, vector<2x32xf32> -> vector<2x32xf32>
    %490 = vector.broadcast %6 : vector<1x32xf32> to vector<2x32xf32>
    %491 = arith.addf %489, %490 : vector<2x32xf32>
    %492 = arith.addf %385, %491 : vector<2x32xf32>
    %493 = arith.mulf %492, %492 : vector<2x32xf32>
    %cst_185 = arith.constant dense<0.000000e+00> : vector<2xf32>
    %494 = vector.multi_reduction <add>, %493, %cst_185 [1] : vector<2x32xf32> to vector<2xf32>
    %495 = vector.shape_cast %494 : vector<2xf32> to vector<2x1xf32>
    %cst_186 = arith.constant 3.200000e+01 : f32
    %496 = vector.broadcast %cst_186 : f32 to vector<2x1xf32>
    %497 = arith.divf %495, %496 : vector<2x1xf32>
    %cst_187 = arith.constant 9.99999997E-7 : f32
    %498 = vector.broadcast %cst_187 : f32 to vector<2x1xf32>
    %499 = arith.addf %497, %498 : vector<2x1xf32>
    %500 = math.rsqrt %499 : vector<2x1xf32>
    %501 = vector.broadcast %500 : vector<2x1xf32> to vector<2x32xf32>
    %502 = arith.mulf %492, %501 : vector<2x32xf32>
    %503 = vector.broadcast %2 : vector<1x32xf32> to vector<2x32xf32>
    %504 = arith.mulf %502, %503 : vector<2x32xf32>
    %cst_188 = arith.constant dense<0.000000e+00> : vector<2x64xf32>
    %505 = tpu.matmul %504, %7, %cst_188 {dimension_numbers = #tpu.dot_dimension_numbers<[1], [0], [0], [1], [0, 0, 1, 1], [], []>} : vector<2x32xf32>, vector<32x64xf32>, vector<2x64xf32> -> vector<2x64xf32>
    %506 = vector.broadcast %8 : vector<1x64xf32> to vector<2x64xf32>
    %507 = arith.addf %505, %506 : vector<2x64xf32>
    %508 = arith.mulf %507, %507 : vector<2x64xf32>
    %509 = arith.mulf %507, %508 : vector<2x64xf32>
    %cst_189 = arith.constant 4.471500e-02 : f32
    %510 = vector.broadcast %cst_189 : f32 to vector<2x64xf32>
    %511 = arith.mulf %510, %509 : vector<2x64xf32>
    %512 = arith.addf %507, %511 : vector<2x64xf32>
    %cst_190 = arith.constant 0.797884583 : f32
    %513 = vector.broadcast %cst_190 : f32 to vector<2x64xf32>
    %514 = arith.mulf %513, %512 : vector<2x64xf32>
    %515 = math.tanh %514 : vector<2x64xf32>
    %cst_191 = arith.constant 1.000000e+00 : f32
    %516 = vector.broadcast %cst_191 : f32 to vector<2x64xf32>
    %517 = arith.addf %516, %515 : vector<2x64xf32>
    %cst_192 = arith.constant 5.000000e-01 : f32
    %518 = vector.broadcast %cst_192 : f32 to vector<2x64xf32>
    %519 = arith.mulf %518, %517 : vector<2x64xf32>
    %520 = arith.mulf %507, %519 : vector<2x64xf32>
    %cst_193 = arith.constant dense<0.000000e+00> : vector<2x32xf32>
    %521 = tpu.matmul %520, %9, %cst_193 {dimension_numbers = #tpu.dot_dimension_numbers<[1], [0], [0], [1], [0, 0, 1, 1], [], []>} : vector<2x64xf32>, vector<64x32xf32>, vector<2x32xf32> -> vector<2x32xf32>
    %522 = vector.broadcast %10 : vector<1x32xf32> to vector<2x32xf32>
    %523 = arith.addf %521, %522 : vector<2x32xf32>
    %524 = arith.addf %492, %523 : vector<2x32xf32>
    %cst_194 = arith.constant dense<0.000000e+00> : vector<2x64xf32>
    %525 = tpu.matmul %524, %11, %cst_194 {dimension_numbers = #tpu.dot_dimension_numbers<[1], [0], [0], [1], [0, 0, 1, 1], [], []>} : vector<2x32xf32>, vector<32x64xf32>, vector<2x64xf32> -> vector<2x64xf32>
    %526 = vector.broadcast %12 : vector<1x64xf32> to vector<2x64xf32>
    %527 = arith.addf %525, %526 : vector<2x64xf32>
    %cst_195 = arith.constant dense<0xFF800000> : vector<2xf32>
    %528 = vector.multi_reduction <maximumf>, %527, %cst_195 [1] : vector<2x64xf32> to vector<2xf32>
    %529 = vector.shape_cast %528 : vector<2xf32> to vector<2x1xf32>
    %530 = vector.broadcast %529 : vector<2x1xf32> to vector<2x64xf32>
    %531 = arith.cmpf oeq, %527, %530 : vector<2x64xf32>
    %c64_i32_196 = arith.constant 64 : i32
    %532 = vector.broadcast %c64_i32_196 : i32 to vector<2x64xi32>
    %533 = arith.select %531, %74, %532 : vector<2x64xi1>, vector<2x64xi32>
    %cst_197 = arith.constant dense<2147483647> : vector<2xi32>
    %534 = vector.multi_reduction <minsi>, %533, %cst_197 [1] : vector<2x64xi32> to vector<2xi32>
    %535 = vector.shape_cast %534 : vector<2xi32> to vector<2x1xi32>
    %536 = vector.broadcast %535 : vector<2x1xi32> to vector<2x64xi32>
    %537 = arith.cmpi eq, %536, %74 : vector<2x64xi32>
    %538 = arith.extui %537 : vector<2x64xi1> to vector<2x64xi32>
    %539 = arith.sitofp %538 : vector<2x64xi32> to vector<2x64xf32>
    %cst_198 = arith.constant dense<0.000000e+00> : vector<2x32xf32>
    %540 = tpu.matmul %539, %0, %cst_198 {dimension_numbers = #tpu.dot_dimension_numbers<[1], [0], [0], [1], [0, 0, 1, 1], [], []>} : vector<2x64xf32>, vector<64x32xf32>, vector<2x32xf32> -> vector<2x32xf32>
    %541 = arith.mulf %540, %540 : vector<2x32xf32>
    %cst_199 = arith.constant dense<0.000000e+00> : vector<2xf32>
    %542 = vector.multi_reduction <add>, %541, %cst_199 [1] : vector<2x32xf32> to vector<2xf32>
    %543 = vector.shape_cast %542 : vector<2xf32> to vector<2x1xf32>
    %cst_200 = arith.constant 3.200000e+01 : f32
    %544 = vector.broadcast %cst_200 : f32 to vector<2x1xf32>
    %545 = arith.divf %543, %544 : vector<2x1xf32>
    %cst_201 = arith.constant 9.99999997E-7 : f32
    %546 = vector.broadcast %cst_201 : f32 to vector<2x1xf32>
    %547 = arith.addf %545, %546 : vector<2x1xf32>
    %548 = math.rsqrt %547 : vector<2x1xf32>
    %549 = vector.broadcast %548 : vector<2x1xf32> to vector<2x32xf32>
    %550 = arith.mulf %540, %549 : vector<2x32xf32>
    %551 = vector.broadcast %1 : vector<1x32xf32> to vector<2x32xf32>
    %552 = arith.mulf %550, %551 : vector<2x32xf32>
    %cst_202 = arith.constant dense<0.000000e+00> : vector<2x96xf32>
    %553 = tpu.matmul %552, %3, %cst_202 {dimension_numbers = #tpu.dot_dimension_numbers<[1], [0], [0], [1], [0, 0, 1, 1], [], []>} : vector<2x32xf32>, vector<32x96xf32>, vector<2x96xf32> -> vector<2x96xf32>
    %554 = vector.broadcast %4 : vector<1x96xf32> to vector<2x96xf32>
    %555 = arith.addf %553, %554 : vector<2x96xf32>
    %556 = vector.extract_strided_slice %555 {offsets = [0, 32], sizes = [2, 64], strides = [1, 1]} : vector<2x96xf32> to vector<2x64xf32>
    %557 = vector.shape_cast %556 : vector<2x64xf32> to vector<2x1x64xf32>
    %c0_203 = arith.constant 0 : index
    %c14 = arith.constant 14 : index
    %c0_204 = arith.constant 0 : index
    %558 = vector.load %arg22[%c0_203, %c14, %c0_204] : memref<2x16x64xf32, #tpu.memory_space<vmem>>, vector<2x1x64xf32>
    tpu.vector_store %arg22[%c0_203, %c14, %c0_204], %557 {strides = array<i32>} : memref<2x16x64xf32, #tpu.memory_space<vmem>>, vector<2x1x64xf32>,
    %c0_205 = arith.constant 0 : index
    %c0_206 = arith.constant 0 : index
    %c0_207 = arith.constant 0 : index
    %559 = vector.load %arg22[%c0_205, %c0_206, %c0_207] : memref<2x16x64xf32, #tpu.memory_space<vmem>>, vector<2x16x64xf32>
    %c15_i32 = arith.constant 15 : i32
    %560 = vector.broadcast %c15_i32 : i32 to vector<2x1x16xi32>
    %561 = arith.cmpi slt, %75, %560 : vector<2x1x16xi32>
    %562 = vector.extract_strided_slice %555 {offsets = [0, 0], sizes = [2, 8], strides = [1, 1]} : vector<2x96xf32> to vector<2x8xf32>
    %563 = vector.shape_cast %562 : vector<2x8xf32> to vector<2x1x8xf32>
    %564 = vector.extract_strided_slice %559 {offsets = [0, 0, 0], sizes = [2, 16, 8], strides = [1, 1, 1]} : vector<2x16x64xf32> to vector<2x16x8xf32>
    %565 = vector.extract_strided_slice %559 {offsets = [0, 0, 32], sizes = [2, 16, 8], strides = [1, 1, 1]} : vector<2x16x64xf32> to vector<2x16x8xf32>
    "tpu.trace_start"() <{level = 10 : i32, message = "bqd,bkd->bqk"}> : () -> ()
    %cst_208 = arith.constant dense<0.000000e+00> : vector<2x1x16xf32>
    %566 = tpu.matmul %563, %564, %cst_208 {dimension_numbers = #tpu.dot_dimension_numbers<[2], [2], [1], [1], [0, 0, 0, 1, 1, 1], [0], [0]>} : vector<2x1x8xf32>, vector<2x16x8xf32>, vector<2x1x16xf32> -> vector<2x1x16xf32>
    "tpu.trace_stop"() : () -> ()
    %cst_209 = arith.constant 0.353553385 : f32
    %567 = vector.broadcast %cst_209 : f32 to vector<2x1x16xf32>
    %568 = arith.mulf %566, %567 : vector<2x1x16xf32>
    %cst_210 = arith.constant -1.000000e+30 : f32
    %569 = vector.broadcast %cst_210 : f32 to vector<2x1x16xf32>
    %570 = arith.select %561, %568, %569 : vector<2x1x16xi1>, vector<2x1x16xf32>
    %cst_211 = arith.constant dense<0xFF800000> : vector<2x1xf32>
    %571 = vector.multi_reduction <maximumf>, %570, %cst_211 [2] : vector<2x1x16xf32> to vector<2x1xf32>
    %572 = vector.shape_cast %571 : vector<2x1xf32> to vector<2x1x1xf32>
    %573 = vector.broadcast %572 : vector<2x1x1xf32> to vector<2x1x16xf32>
    %574 = arith.subf %570, %573 : vector<2x1x16xf32>
    %575 = math.exp %574 : vector<2x1x16xf32>
    %cst_212 = arith.constant dense<0.000000e+00> : vector<2x1xf32>
    %576 = vector.multi_reduction <add>, %575, %cst_212 [2] : vector<2x1x16xf32> to vector<2x1xf32>
    %577 = vector.shape_cast %576 : vector<2x1xf32> to vector<2x1x1xf32>
    %578 = tpu.reciprocal %577 {approx = true} : vector<2x1x1xf32> -> vector<2x1x1xf32>
    "tpu.trace_start"() <{level = 10 : i32, message = "bqk,bkd->bqd"}> : () -> ()
    %cst_213 = arith.constant dense<0.000000e+00> : vector<2x1x8xf32>
    %579 = tpu.matmul %575, %565, %cst_213 {dimension_numbers = #tpu.dot_dimension_numbers<[2], [1], [1], [2], [0, 0, 0, 1, 1, 2], [0], [0]>} : vector<2x1x16xf32>, vector<2x16x8xf32>, vector<2x1x8xf32> -> vector<2x1x8xf32>
    "tpu.trace_stop"() : () -> ()
    %580 = vector.broadcast %578 : vector<2x1x1xf32> to vector<2x1x8xf32>
    %581 = arith.mulf %579, %580 : vector<2x1x8xf32>
    %582 = vector.extract_strided_slice %555 {offsets = [0, 8], sizes = [2, 8], strides = [1, 1]} : vector<2x96xf32> to vector<2x8xf32>
    %583 = vector.shape_cast %582 : vector<2x8xf32> to vector<2x1x8xf32>
    %584 = vector.extract_strided_slice %559 {offsets = [0, 0, 8], sizes = [2, 16, 8], strides = [1, 1, 1]} : vector<2x16x64xf32> to vector<2x16x8xf32>
    %585 = vector.extract_strided_slice %559 {offsets = [0, 0, 40], sizes = [2, 16, 8], strides = [1, 1, 1]} : vector<2x16x64xf32> to vector<2x16x8xf32>
    "tpu.trace_start"() <{level = 10 : i32, message = "bqd,bkd->bqk"}> : () -> ()
    %cst_214 = arith.constant dense<0.000000e+00> : vector<2x1x16xf32>
    %586 = tpu.matmul %583, %584, %cst_214 {dimension_numbers = #tpu.dot_dimension_numbers<[2], [2], [1], [1], [0, 0, 0, 1, 1, 1], [0], [0]>} : vector<2x1x8xf32>, vector<2x16x8xf32>, vector<2x1x16xf32> -> vector<2x1x16xf32>
    "tpu.trace_stop"() : () -> ()
    %cst_215 = arith.constant 0.353553385 : f32
    %587 = vector.broadcast %cst_215 : f32 to vector<2x1x16xf32>
    %588 = arith.mulf %586, %587 : vector<2x1x16xf32>
    %cst_216 = arith.constant -1.000000e+30 : f32
    %589 = vector.broadcast %cst_216 : f32 to vector<2x1x16xf32>
    %590 = arith.select %561, %588, %589 : vector<2x1x16xi1>, vector<2x1x16xf32>
    %cst_217 = arith.constant dense<0xFF800000> : vector<2x1xf32>
    %591 = vector.multi_reduction <maximumf>, %590, %cst_217 [2] : vector<2x1x16xf32> to vector<2x1xf32>
    %592 = vector.shape_cast %591 : vector<2x1xf32> to vector<2x1x1xf32>
    %593 = vector.broadcast %592 : vector<2x1x1xf32> to vector<2x1x16xf32>
    %594 = arith.subf %590, %593 : vector<2x1x16xf32>
    %595 = math.exp %594 : vector<2x1x16xf32>
    %cst_218 = arith.constant dense<0.000000e+00> : vector<2x1xf32>
    %596 = vector.multi_reduction <add>, %595, %cst_218 [2] : vector<2x1x16xf32> to vector<2x1xf32>
    %597 = vector.shape_cast %596 : vector<2x1xf32> to vector<2x1x1xf32>
    %598 = tpu.reciprocal %597 {approx = true} : vector<2x1x1xf32> -> vector<2x1x1xf32>
    "tpu.trace_start"() <{level = 10 : i32, message = "bqk,bkd->bqd"}> : () -> ()
    %cst_219 = arith.constant dense<0.000000e+00> : vector<2x1x8xf32>
    %599 = tpu.matmul %595, %585, %cst_219 {dimension_numbers = #tpu.dot_dimension_numbers<[2], [1], [1], [2], [0, 0, 0, 1, 1, 2], [0], [0]>} : vector<2x1x16xf32>, vector<2x16x8xf32>, vector<2x1x8xf32> -> vector<2x1x8xf32>
    "tpu.trace_stop"() : () -> ()
    %600 = vector.broadcast %598 : vector<2x1x1xf32> to vector<2x1x8xf32>
    %601 = arith.mulf %599, %600 : vector<2x1x8xf32>
    %602 = vector.extract_strided_slice %555 {offsets = [0, 16], sizes = [2, 8], strides = [1, 1]} : vector<2x96xf32> to vector<2x8xf32>
    %603 = vector.shape_cast %602 : vector<2x8xf32> to vector<2x1x8xf32>
    %604 = vector.extract_strided_slice %559 {offsets = [0, 0, 16], sizes = [2, 16, 8], strides = [1, 1, 1]} : vector<2x16x64xf32> to vector<2x16x8xf32>
    %605 = vector.extract_strided_slice %559 {offsets = [0, 0, 48], sizes = [2, 16, 8], strides = [1, 1, 1]} : vector<2x16x64xf32> to vector<2x16x8xf32>
    "tpu.trace_start"() <{level = 10 : i32, message = "bqd,bkd->bqk"}> : () -> ()
    %cst_220 = arith.constant dense<0.000000e+00> : vector<2x1x16xf32>
    %606 = tpu.matmul %603, %604, %cst_220 {dimension_numbers = #tpu.dot_dimension_numbers<[2], [2], [1], [1], [0, 0, 0, 1, 1, 1], [0], [0]>} : vector<2x1x8xf32>, vector<2x16x8xf32>, vector<2x1x16xf32> -> vector<2x1x16xf32>
    "tpu.trace_stop"() : () -> ()
    %cst_221 = arith.constant 0.353553385 : f32
    %607 = vector.broadcast %cst_221 : f32 to vector<2x1x16xf32>
    %608 = arith.mulf %606, %607 : vector<2x1x16xf32>
    %cst_222 = arith.constant -1.000000e+30 : f32
    %609 = vector.broadcast %cst_222 : f32 to vector<2x1x16xf32>
    %610 = arith.select %561, %608, %609 : vector<2x1x16xi1>, vector<2x1x16xf32>
    %cst_223 = arith.constant dense<0xFF800000> : vector<2x1xf32>
    %611 = vector.multi_reduction <maximumf>, %610, %cst_223 [2] : vector<2x1x16xf32> to vector<2x1xf32>
    %612 = vector.shape_cast %611 : vector<2x1xf32> to vector<2x1x1xf32>
    %613 = vector.broadcast %612 : vector<2x1x1xf32> to vector<2x1x16xf32>
    %614 = arith.subf %610, %613 : vector<2x1x16xf32>
    %615 = math.exp %614 : vector<2x1x16xf32>
    %cst_224 = arith.constant dense<0.000000e+00> : vector<2x1xf32>
    %616 = vector.multi_reduction <add>, %615, %cst_224 [2] : vector<2x1x16xf32> to vector<2x1xf32>
    %617 = vector.shape_cast %616 : vector<2x1xf32> to vector<2x1x1xf32>
    %618 = tpu.reciprocal %617 {approx = true} : vector<2x1x1xf32> -> vector<2x1x1xf32>
    "tpu.trace_start"() <{level = 10 : i32, message = "bqk,bkd->bqd"}> : () -> ()
    %cst_225 = arith.constant dense<0.000000e+00> : vector<2x1x8xf32>
    %619 = tpu.matmul %615, %605, %cst_225 {dimension_numbers = #tpu.dot_dimension_numbers<[2], [1], [1], [2], [0, 0, 0, 1, 1, 2], [0], [0]>} : vector<2x1x16xf32>, vector<2x16x8xf32>, vector<2x1x8xf32> -> vector<2x1x8xf32>
    "tpu.trace_stop"() : () -> ()
    %620 = vector.broadcast %618 : vector<2x1x1xf32> to vector<2x1x8xf32>
    %621 = arith.mulf %619, %620 : vector<2x1x8xf32>
    %622 = vector.extract_strided_slice %555 {offsets = [0, 24], sizes = [2, 8], strides = [1, 1]} : vector<2x96xf32> to vector<2x8xf32>
    %623 = vector.shape_cast %622 : vector<2x8xf32> to vector<2x1x8xf32>
    %624 = vector.extract_strided_slice %559 {offsets = [0, 0, 24], sizes = [2, 16, 8], strides = [1, 1, 1]} : vector<2x16x64xf32> to vector<2x16x8xf32>
    %625 = vector.extract_strided_slice %559 {offsets = [0, 0, 56], sizes = [2, 16, 8], strides = [1, 1, 1]} : vector<2x16x64xf32> to vector<2x16x8xf32>
    "tpu.trace_start"() <{level = 10 : i32, message = "bqd,bkd->bqk"}> : () -> ()
    %cst_226 = arith.constant dense<0.000000e+00> : vector<2x1x16xf32>
    %626 = tpu.matmul %623, %624, %cst_226 {dimension_numbers = #tpu.dot_dimension_numbers<[2], [2], [1], [1], [0, 0, 0, 1, 1, 1], [0], [0]>} : vector<2x1x8xf32>, vector<2x16x8xf32>, vector<2x1x16xf32> -> vector<2x1x16xf32>
    "tpu.trace_stop"() : () -> ()
    %cst_227 = arith.constant 0.353553385 : f32
    %627 = vector.broadcast %cst_227 : f32 to vector<2x1x16xf32>
    %628 = arith.mulf %626, %627 : vector<2x1x16xf32>
    %cst_228 = arith.constant -1.000000e+30 : f32
    %629 = vector.broadcast %cst_228 : f32 to vector<2x1x16xf32>
    %630 = arith.select %561, %628, %629 : vector<2x1x16xi1>, vector<2x1x16xf32>
    %cst_229 = arith.constant dense<0xFF800000> : vector<2x1xf32>
    %631 = vector.multi_reduction <maximumf>, %630, %cst_229 [2] : vector<2x1x16xf32> to vector<2x1xf32>
    %632 = vector.shape_cast %631 : vector<2x1xf32> to vector<2x1x1xf32>
    %633 = vector.broadcast %632 : vector<2x1x1xf32> to vector<2x1x16xf32>
    %634 = arith.subf %630, %633 : vector<2x1x16xf32>
    %635 = math.exp %634 : vector<2x1x16xf32>
    %cst_230 = arith.constant dense<0.000000e+00> : vector<2x1xf32>
    %636 = vector.multi_reduction <add>, %635, %cst_230 [2] : vector<2x1x16xf32> to vector<2x1xf32>
    %637 = vector.shape_cast %636 : vector<2x1xf32> to vector<2x1x1xf32>
    %638 = tpu.reciprocal %637 {approx = true} : vector<2x1x1xf32> -> vector<2x1x1xf32>
    "tpu.trace_start"() <{level = 10 : i32, message = "bqk,bkd->bqd"}> : () -> ()
    %cst_231 = arith.constant dense<0.000000e+00> : vector<2x1x8xf32>
    %639 = tpu.matmul %635, %625, %cst_231 {dimension_numbers = #tpu.dot_dimension_numbers<[2], [1], [1], [2], [0, 0, 0, 1, 1, 2], [0], [0]>} : vector<2x1x16xf32>, vector<2x16x8xf32>, vector<2x1x8xf32> -> vector<2x1x8xf32>
    "tpu.trace_stop"() : () -> ()
    %640 = vector.broadcast %638 : vector<2x1x1xf32> to vector<2x1x8xf32>
    %641 = arith.mulf %639, %640 : vector<2x1x8xf32>
    %642 = tpu.concatenate %581, %601, %621, %641 in 2 : vector<2x1x8xf32>, vector<2x1x8xf32>, vector<2x1x8xf32>, vector<2x1x8xf32> -> vector<2x1x32xf32>
    %643 = vector.shape_cast %642 : vector<2x1x32xf32> to vector<2x32xf32>
    %cst_232 = arith.constant dense<0.000000e+00> : vector<2x32xf32>
    %644 = tpu.matmul %643, %5, %cst_232 {dimension_numbers = #tpu.dot_dimension_numbers<[1], [0], [0], [1], [0, 0, 1, 1], [], []>} : vector<2x32xf32>, vector<32x32xf32>, vector<2x32xf32> -> vector<2x32xf32>
    %645 = vector.broadcast %6 : vector<1x32xf32> to vector<2x32xf32>
    %646 = arith.addf %644, %645 : vector<2x32xf32>
    %647 = arith.addf %540, %646 : vector<2x32xf32>
    %648 = arith.mulf %647, %647 : vector<2x32xf32>
    %cst_233 = arith.constant dense<0.000000e+00> : vector<2xf32>
    %649 = vector.multi_reduction <add>, %648, %cst_233 [1] : vector<2x32xf32> to vector<2xf32>
    %650 = vector.shape_cast %649 : vector<2xf32> to vector<2x1xf32>
    %cst_234 = arith.constant 3.200000e+01 : f32
    %651 = vector.broadcast %cst_234 : f32 to vector<2x1xf32>
    %652 = arith.divf %650, %651 : vector<2x1xf32>
    %cst_235 = arith.constant 9.99999997E-7 : f32
    %653 = vector.broadcast %cst_235 : f32 to vector<2x1xf32>
    %654 = arith.addf %652, %653 : vector<2x1xf32>
    %655 = math.rsqrt %654 : vector<2x1xf32>
    %656 = vector.broadcast %655 : vector<2x1xf32> to vector<2x32xf32>
    %657 = arith.mulf %647, %656 : vector<2x32xf32>
    %658 = vector.broadcast %2 : vector<1x32xf32> to vector<2x32xf32>
    %659 = arith.mulf %657, %658 : vector<2x32xf32>
    %cst_236 = arith.constant dense<0.000000e+00> : vector<2x64xf32>
    %660 = tpu.matmul %659, %7, %cst_236 {dimension_numbers = #tpu.dot_dimension_numbers<[1], [0], [0], [1], [0, 0, 1, 1], [], []>} : vector<2x32xf32>, vector<32x64xf32>, vector<2x64xf32> -> vector<2x64xf32>
    %661 = vector.broadcast %8 : vector<1x64xf32> to vector<2x64xf32>
    %662 = arith.addf %660, %661 : vector<2x64xf32>
    %663 = arith.mulf %662, %662 : vector<2x64xf32>
    %664 = arith.mulf %662, %663 : vector<2x64xf32>
    %cst_237 = arith.constant 4.471500e-02 : f32
    %665 = vector.broadcast %cst_237 : f32 to vector<2x64xf32>
    %666 = arith.mulf %665, %664 : vector<2x64xf32>
    %667 = arith.addf %662, %666 : vector<2x64xf32>
    %cst_238 = arith.constant 0.797884583 : f32
    %668 = vector.broadcast %cst_238 : f32 to vector<2x64xf32>
    %669 = arith.mulf %668, %667 : vector<2x64xf32>
    %670 = math.tanh %669 : vector<2x64xf32>
    %cst_239 = arith.constant 1.000000e+00 : f32
    %671 = vector.broadcast %cst_239 : f32 to vector<2x64xf32>
    %672 = arith.addf %671, %670 : vector<2x64xf32>
    %cst_240 = arith.constant 5.000000e-01 : f32
    %673 = vector.broadcast %cst_240 : f32 to vector<2x64xf32>
    %674 = arith.mulf %673, %672 : vector<2x64xf32>
    %675 = arith.mulf %662, %674 : vector<2x64xf32>
    %cst_241 = arith.constant dense<0.000000e+00> : vector<2x32xf32>
    %676 = tpu.matmul %675, %9, %cst_241 {dimension_numbers = #tpu.dot_dimension_numbers<[1], [0], [0], [1], [0, 0, 1, 1], [], []>} : vector<2x64xf32>, vector<64x32xf32>, vector<2x32xf32> -> vector<2x32xf32>
    %677 = vector.broadcast %10 : vector<1x32xf32> to vector<2x32xf32>
    %678 = arith.addf %676, %677 : vector<2x32xf32>
    %679 = arith.addf %647, %678 : vector<2x32xf32>
    %cst_242 = arith.constant dense<0.000000e+00> : vector<2x64xf32>
    %680 = tpu.matmul %679, %11, %cst_242 {dimension_numbers = #tpu.dot_dimension_numbers<[1], [0], [0], [1], [0, 0, 1, 1], [], []>} : vector<2x32xf32>, vector<32x64xf32>, vector<2x64xf32> -> vector<2x64xf32>
    %681 = vector.broadcast %12 : vector<1x64xf32> to vector<2x64xf32>
    %682 = arith.addf %680, %681 : vector<2x64xf32>
    %cst_243 = arith.constant dense<0xFF800000> : vector<2xf32>
    %683 = vector.multi_reduction <maximumf>, %682, %cst_243 [1] : vector<2x64xf32> to vector<2xf32>
    %684 = vector.shape_cast %683 : vector<2xf32> to vector<2x1xf32>
    %685 = vector.broadcast %684 : vector<2x1xf32> to vector<2x64xf32>
    %686 = arith.cmpf oeq, %682, %685 : vector<2x64xf32>
    %c64_i32_244 = arith.constant 64 : i32
    %687 = vector.broadcast %c64_i32_244 : i32 to vector<2x64xi32>
    %688 = arith.select %686, %74, %687 : vector<2x64xi1>, vector<2x64xi32>
    %cst_245 = arith.constant dense<2147483647> : vector<2xi32>
    %689 = vector.multi_reduction <minsi>, %688, %cst_245 [1] : vector<2x64xi32> to vector<2xi32>
    %690 = vector.shape_cast %689 : vector<2xi32> to vector<2x1xi32>
    %691 = tpu.concatenate %225, %380, %535, %690 in 1 : vector<2x1xi32>, vector<2x1xi32>, vector<2x1xi32>, vector<2x1xi32> -> vector<2x4xi32>
    %c0_246 = arith.constant 0 : index
    %c0_247 = arith.constant 0 : index
    %692 = vector.load %arg21[%c0_246, %c0_247] : memref<2x4xi32, #tpu.memory_space<vmem>>, vector<2x4xi32>
    tpu.vector_store %arg21[%c0_246, %c0_247], %691 {strides = array<i32>} : memref<2x4xi32, #tpu.memory_space<vmem>>, vector<2x4xi32>,
    return
  }
}

</mosaic_0001>

<llo_original>
// kernel: tile.0
$region0: #{tile.0}
  %s0 = inlined_call_operand.vmem [shape: s32[2,8], index: 0, kind: input, shape index: {}]
  %s1 = inlined_call_operand.vmem [shape: s32[16,1], index: 1, kind: output, shape index: {}]
  $region1: #{tile.0} parent=0
    #allocation0 [shape = 'u8[4096]{0}', space=vmem, size = 0x1000, scoped, tag = 'scoped mem for input reshape']
    %s3 = sshllo.u32 0, 2
    %v4 = vld [vmem:[%s0] sm:%s3]
    %5 = vst [vmem:[#allocation0] sm:%s3] %v4
    %v6 = vld [vmem:[#allocation0] sm:$0x3]
    %vm7 = vcmask 7168
    %8 = vst.msk [vmem:[%s1] ss:$8 sm:$0x3] %vm7, %v6
    %v9 = vld [vmem:[#allocation0] sm:$0x3]
    %10 = vrot.lane.b32.xlu0 %v9, 127
    %v11 = vpop.permute.xlu0 %10
    %vm12 = vcmask 7168
    %s13 = scalar_lea.vmem %s1, 1
    %14 = vst.msk [vmem:[%s13] ss:$8 sm:$0x3] %vm12, %v11
    %v15 = vld [vmem:[#allocation0] sm:$0x3]
    %16 = vrot.lane.b32.xlu0 %v15, 126
    %v17 = vpop.permute.xlu0 %16
    %vm18 = vcmask 7168
    %s19 = scalar_lea.vmem %s1, 2
    %20 = vst.msk [vmem:[%s19] ss:$8 sm:$0x3] %vm18, %v17
    %v21 = vld [vmem:[#allocation0] sm:$0x3]
    %22 = vrot.lane.b32.xlu0 %v21, 125
    %v23 = vpop.permute.xlu0 %22
    %vm24 = vcmask 7168
    %s25 = scalar_lea.vmem %s1, 3
    %26 = vst.msk [vmem:[%s25] ss:$8 sm:$0x3] %vm24, %v23
    %v27 = vld [vmem:[#allocation0] sm:$0x3]
    %28 = vrot.lane.b32.xlu0 %v27, 124
    %v29 = vpop.permute.xlu0 %28
    %vm30 = vcmask 7168
    %s31 = scalar_lea.vmem %s1, 4
    %32 = vst.msk [vmem:[%s31] ss:$8 sm:$0x3] %vm30, %v29
    %v33 = vld [vmem:[#allocation0] sm:$0x3]
    %34 = vrot.lane.b32.xlu0 %v33, 123
    %v35 = vpop.permute.xlu0 %34
    %vm36 = vcmask 7168
    %s37 = scalar_lea.vmem %s1, 5
    %38 = vst.msk [vmem:[%s37] ss:$8 sm:$0x3] %vm36, %v35
    %v39 = vld [vmem:[#allocation0] sm:$0x3]
    %40 = vrot.lane.b32.xlu0 %v39, 122
    %v41 = vpop.permute.xlu0 %40
    %vm42 = vcmask 7168
    %s43 = scalar_lea.vmem %s1, 6
    %44 = vst.msk [vmem:[%s43] ss:$8 sm:$0x3] %vm42, %v41
    %v45 = vld [vmem:[#allocation0] sm:$0x3]
    %46 = vrot.lane.b32.xlu0 %v45, 121
    %v47 = vpop.permute.xlu0 %46
    %vm48 = vcmask 7168
    %s49 = scalar_lea.vmem %s1, 7
    %50 = vst.msk [vmem:[%s49] ss:$8 sm:$0x3] %vm48, %v47

// kernel: tile.8
$region0: #{tile.8}
  #allocation0 [shape = 's32[1]{0}', space=sflag, size = 0x4, scoped, tag = 'scoped memory for tile.8']
  %s0 = inlined_call_operand.vmem [shape: s32[8], index: 0, kind: input, shape index: {}]
  %s1 = inlined_call_operand.vmem [shape: s32[2,8], index: 1, kind: output, shape index: {}]
  // Predicated region
  $region2: #{tile.8} parent=0 // pred_check
    _
  $region3: #{tile.8} parent=0 // pred_check_branch
    %3 = sbr.rel (0) target = $region5
  $region4: #{tile.8} parent=0 // pred_region
    _
  $region5: #{tile.8} parent=0 // pred_fallthru
    _
  %v4 = vld [vmem:[%s0] ss:$0 sm:$0xff]
  %5 = vst [vmem:[%s1] sm:$0x3] %v4

// kernel: _llava_generate.1
$region0: #{_llava_generate.1}
  #allocation0 [shape = 'u32[]', space=smem, size = 0x4, offset = 0x4, fixed_abs, tag = 'smem constant byte address 0x4 - core index']
  #allocation1 [shape = 'u32[144,128]{1,0:T(1,128)}', space=vmem, size = 0x12000, scoped, tag = 'internal scratch']
  #allocation2 [shape = 'f32[2,16,64]{2,1,0:T(8,128)}', space=vmem, size = 0x4000, scoped, tag = 'scratch operand']
  %s0 = inlined_call_operand.vmem [shape: f32[8,192], index: 0, kind: input, shape index: {}]
  %s1 = inlined_call_operand.vmem [shape: s32[16,1], index: 1, kind: input, shape index: {}]
  %s2 = inlined_call_operand.vmem [shape: f32[192,32], index: 2, kind: input, shape index: {}]
  %s3 = inlined_call_operand.vmem [shape: f32[1,32], index: 3, kind: input, shape index: {}]
  %s4 = inlined_call_operand.vmem [shape: f32[32,64], index: 4, kind: input, shape index: {}]
  %s5 = inlined_call_operand.vmem [shape: f32[1,64], index: 5, kind: input, shape index: {}]
  %s6 = inlined_call_operand.vmem [shape: f32[64,32], index: 6, kind: input, shape index: {}]
  %s7 = inlined_call_operand.vmem [shape: f32[1,32], index: 7, kind: input, shape index: {}]
  %s8 = inlined_call_operand.vmem [shape: f32[64,32], index: 8, kind: input, shape index: {}]
  %s9 = inlined_call_operand.vmem [shape: f32[1,32], index: 9, kind: input, shape index: {}]
  %s10 = inlined_call_operand.vmem [shape: f32[32,96], index: 10, kind: input, shape index: {}]
  %s11 = inlined_call_operand.vmem [shape: f32[1,96], index: 11, kind: input, shape index: {}]
  %s12 = inlined_call_operand.vmem [shape: f32[32,32], index: 12, kind: input, shape index: {}]
  %s13 = inlined_call_operand.vmem [shape: f32[1,32], index: 13, kind: input, shape index: {}]
  %s14 = inlined_call_operand.vmem [shape: f32[1,32], index: 14, kind: input, shape index: {}]
  %s15 = inlined_call_operand.vmem [shape: f32[32,64], index: 15, kind: input, shape index: {}]
  %s16 = inlined_call_operand.vmem [shape: f32[1,64], index: 16, kind: input, shape index: {}]
  %s17 = inlined_call_operand.vmem [shape: f32[64,32], index: 17, kind: input, shape index: {}]
  %s18 = inlined_call_operand.vmem [shape: f32[1,32], index: 18, kind: input, shape index: {}]
  %s19 = inlined_call_operand.vmem [shape: f32[32,64], index: 19, kind: input, shape index: {}]
  %s20 = inlined_call_operand.vmem [shape: f32[1,64], index: 20, kind: input, shape index: {}]
  %s21 = inlined_call_operand.hbm [shape: s32[2,4], index: 21, kind: output, shape index: {}]
  %s22 = sld [smem:[#allocation0]]
  $region94: #{_llava_generate.1} parent=0
    _
  %s24 = ssub.s32 1, %s22
  %s25 = scalar_select 0, %s24, %s22
  $region1: #{_llava_generate.1} parent=0
    #allocation3 [shape = 'u8[1024]{0}', space=vmem, size = 0x400, scoped, tag = 'output window, operand 0, single buffered']
    #allocation4 [shape = 's32[1]{0}', space=sflag, size = 0x4, scoped, tag = 'scoped memory for _llava_generate.1']
    %26 = vsyncpa [#allocation4], 0
    // Predicated region
    $region2: #{_llava_generate.1} parent=1 // pred_check
      _
    $region3: #{_llava_generate.1} parent=1 // pred_check_branch
      %28 = sbr.rel (0) target = $region5
    $region4: #{_llava_generate.1} parent=1 // pred_region
      _
    $region5: #{_llava_generate.1} parent=1 // pred_fallthru
      _
    // Predicated region
    $region6: #{_llava_generate.1} parent=1 // pred_check
      _
    $region7: #{_llava_generate.1} parent=1 // pred_check_branch
      %30 = sbr.rel (0) target = $region9
    $region8: #{_llava_generate.1} parent=1 // pred_region
      _
    $region9: #{_llava_generate.1} parent=1 // pred_fallthru
      _
    // Predicated region
    $region10: #{_llava_generate.1} parent=1 // pred_check
      _
    $region11: #{_llava_generate.1} parent=1 // pred_check_branch
      %32 = sbr.rel (0) target = $region13
    $region12: #{_llava_generate.1} parent=1 // pred_region
      _
    $region13: #{_llava_generate.1} parent=1 // pred_fallthru
      _
    // Predicated region
    $region14: #{_llava_generate.1} parent=1 // pred_check
      _
    $region15: #{_llava_generate.1} parent=1 // pred_check_branch
      %34 = sbr.rel (0) target = $region17
    $region16: #{_llava_generate.1} parent=1 // pred_region
      _
    $region17: #{_llava_generate.1} parent=1 // pred_fallthru
      _
    // Predicated region
    $region18: #{_llava_generate.1} parent=1 // pred_check
      _
    $region19: #{_llava_generate.1} parent=1 // pred_check_branch
      %36 = sbr.rel (0) target = $region21
    $region20: #{_llava_generate.1} parent=1 // pred_region
      _
    $region21: #{_llava_generate.1} parent=1 // pred_fallthru
      _
    // Predicated region
    $region22: #{_llava_generate.1} parent=1 // pred_check
      _
    $region23: #{_llava_generate.1} parent=1 // pred_check_branch
      %38 = sbr.rel (0) target = $region25
    $region24: #{_llava_generate.1} parent=1 // pred_region
      _
    $region25: #{_llava_generate.1} parent=1 // pred_fallthru
      _
    // Predicated region
    $region26: #{_llava_generate.1} parent=1 // pred_check
      _
    $region27: #{_llava_generate.1} parent=1 // pred_check_branch
      %40 = sbr.rel (0) target = $region29
    $region28: #{_llava_generate.1} parent=1 // pred_region
      _
    $region29: #{_llava_generate.1} parent=1 // pred_fallthru
      _
    // Predicated region
    $region30: #{_llava_generate.1} parent=1 // pred_check
      _
    $region31: #{_llava_generate.1} parent=1 // pred_check_branch
      %42 = sbr.rel (0) target = $region33
    $region32: #{_llava_generate.1} parent=1 // pred_region
      _
    $region33: #{_llava_generate.1} parent=1 // pred_fallthru
      _
    // Predicated region
    $region34: #{_llava_generate.1} parent=1 // pred_check
      _
    $region35: #{_llava_generate.1} parent=1 // pred_check_branch
      %44 = sbr.rel (0) target = $region37
    $region36: #{_llava_generate.1} parent=1 // pred_region
      _
    $region37: #{_llava_generate.1} parent=1 // pred_fallthru
      _
    // Predicated region
    $region38: #{_llava_generate.1} parent=1 // pred_check
      _
    $region39: #{_llava_generate.1} parent=1 // pred_check_branch
      %46 = sbr.rel (0) target = $region41
    $region40: #{_llava_generate.1} parent=1 // pred_region
      _
    $region41: #{_llava_generate.1} parent=1 // pred_fallthru
      _
    // Predicated region
    $region42: #{_llava_generate.1} parent=1 // pred_check
      _
    $region43: #{_llava_generate.1} parent=1 // pred_check_branch
      %48 = sbr.rel (0) target = $region45
    $region44: #{_llava_generate.1} parent=1 // pred_region
      _
    $region45: #{_llava_generate.1} parent=1 // pred_fallthru
      _
    // Predicated region
    $region46: #{_llava_generate.1} parent=1 // pred_check
      _
    $region47: #{_llava_generate.1} parent=1 // pred_check_branch
      %50 = sbr.rel (0) target = $region49
    $region48: #{_llava_generate.1} parent=1 // pred_region
      _
    $region49: #{_llava_generate.1} parent=1 // pred_fallthru
      _
    // Predicated region
    $region50: #{_llava_generate.1} parent=1 // pred_check
      _
    $region51: #{_llava_generate.1} parent=1 // pred_check_branch
      %52 = sbr.rel (0) target = $region53
    $region52: #{_llava_generate.1} parent=1 // pred_region
      _
    $region53: #{_llava_generate.1} parent=1 // pred_fallthru
      _
    // Predicated region
    $region54: #{_llava_generate.1} parent=1 // pred_check
      _
    $region55: #{_llava_generate.1} parent=1 // pred_check_branch
      %54 = sbr.rel (0) target = $region57
    $region56: #{_llava_generate.1} parent=1 // pred_region
      _
    $region57: #{_llava_generate.1} parent=1 // pred_fallthru
      _
    // Predicated region
    $region58: #{_llava_generate.1} parent=1 // pred_check
      _
    $region59: #{_llava_generate.1} parent=1 // pred_check_branch
      %56 = sbr.rel (0) target = $region61
    $region60: #{_llava_generate.1} parent=1 // pred_region
      _
    $region61: #{_llava_generate.1} parent=1 // pred_fallthru
      _
    // Predicated region
    $region62: #{_llava_generate.1} parent=1 // pred_check
      _
    $region63: #{_llava_generate.1} parent=1 // pred_check_branch
      %58 = sbr.rel (0) target = $region65
    $region64: #{_llava_generate.1} parent=1 // pred_region
      _
    $region65: #{_llava_generate.1} parent=1 // pred_fallthru
      _
    // Predicated region
    $region66: #{_llava_generate.1} parent=1 // pred_check
      _
    $region67: #{_llava_generate.1} parent=1 // pred_check_branch
      %60 = sbr.rel (0) target = $region69
    $region68: #{_llava_generate.1} parent=1 // pred_region
      _
    $region69: #{_llava_generate.1} parent=1 // pred_fallthru
      _
    // Predicated region
    $region70: #{_llava_generate.1} parent=1 // pred_check
      _
    $region71: #{_llava_generate.1} parent=1 // pred_check_branch
      %62 = sbr.rel (0) target = $region73
    $region72: #{_llava_generate.1} parent=1 // pred_region
      _
    $region73: #{_llava_generate.1} parent=1 // pred_fallthru
      _
    // Predicated region
    $region74: #{_llava_generate.1} parent=1 // pred_check
      _
    $region75: #{_llava_generate.1} parent=1 // pred_check_branch
      %64 = sbr.rel (0) target = $region77
    $region76: #{_llava_generate.1} parent=1 // pred_region
      _
    $region77: #{_llava_generate.1} parent=1 // pred_fallthru
      _
    // Predicated region
    $region78: #{_llava_generate.1} parent=1 // pred_check
      _
    $region79: #{_llava_generate.1} parent=1 // pred_check_branch
      %66 = sbr.rel (0) target = $region81
    $region80: #{_llava_generate.1} parent=1 // pred_region
      _
    $region81: #{_llava_generate.1} parent=1 // pred_fallthru
      _
    // Predicated region
    $region82: #{_llava_generate.1} parent=1 // pred_check
      _
    $region83: #{_llava_generate.1} parent=1 // pred_check_branch
      %68 = sbr.rel (0) target = $region85
    $region84: #{_llava_generate.1} parent=1 // pred_region
      _
    $region85: #{_llava_generate.1} parent=1 // pred_fallthru
      _
    %v69 = vld [vmem:[%s8] sm:$0xff]
    %v70 = vld [vmem:[%s8 + $0x8] sm:$0xff]
    %v71 = vld [vmem:[%s8 + $0x10] sm:$0xff]
    %v72 = vld [vmem:[%s8 + $0x18] sm:$0xff]
    %v73 = vld [vmem:[%s8 + $0x20] sm:$0xff]
    %v74 = vld [vmem:[%s8 + $0x28] sm:$0xff]
    %v75 = vld [vmem:[%s8 + $0x30] sm:$0xff]
    %v76 = vld [vmem:[%s8 + $0x38] sm:$0xff]
    %v77 = vld [vmem:[%s9] sm:$0x1]
    %v78 = vld [vmem:[%s14] sm:$0x1]
    %v79 = vld [vmem:[%s10] sm:$0xff]
    %v80 = vld [vmem:[%s10 + $0x8] sm:$0xff]
    %v81 = vld [vmem:[%s10 + $0x10] sm:$0xff]
    %v82 = vld [vmem:[%s10 + $0x18] sm:$0xff]
    %v83 = vld [vmem:[%s11] sm:$0x1]
    %v84 = vld [vmem:[%s12] sm:$0xff]
    %v85 = vld [vmem:[%s12 + $0x8] sm:$0xff]
    %v86 = vld [vmem:[%s12 + $0x10] sm:$0xff]
    %v87 = vld [vmem:[%s12 + $0x18] sm:$0xff]
    %v88 = vld [vmem:[%s13] sm:$0x1]
    %v89 = vld [vmem:[%s15] sm:$0xff]
    %v90 = vld [vmem:[%s15 + $0x8] sm:$0xff]
    %v91 = vld [vmem:[%s15 + $0x10] sm:$0xff]
    %v92 = vld [vmem:[%s15 + $0x18] sm:$0xff]
    %v93 = vld [vmem:[%s16] sm:$0x1]
    %v94 = vld [vmem:[%s17] sm:$0xff]
    %v95 = vld [vmem:[%s17 + $0x8] sm:$0xff]
    %v96 = vld [vmem:[%s17 + $0x10] sm:$0xff]
    %v97 = vld [vmem:[%s17 + $0x18] sm:$0xff]
    %v98 = vld [vmem:[%s17 + $0x20] sm:$0xff]
    %v99 = vld [vmem:[%s17 + $0x28] sm:$0xff]
    %v100 = vld [vmem:[%s17 + $0x30] sm:$0xff]
    %v101 = vld [vmem:[%s17 + $0x38] sm:$0xff]
    %v102 = vld [vmem:[%s18] sm:$0x1]
    %v103 = vld [vmem:[%s19] sm:$0xff]
    %v104 = vld [vmem:[%s19 + $0x8] sm:$0xff]
    %v105 = vld [vmem:[%s19 + $0x10] sm:$0xff]
    %v106 = vld [vmem:[%s19 + $0x18] sm:$0xff]
    %v107 = vld [vmem:[%s20] sm:$0x1]
    %v108 = vld [vmem:[%s0] sm:$0xff]
    %v109 = vld [vmem:[%s0 + $0x8] sm:$0xff]
    %v110 = vld [vmem:[%s2] sm:$0xff]
    %v111 = vld [vmem:[%s2 + $0x8] sm:$0xff]
    %v112 = vld [vmem:[%s2 + $0x10] sm:$0xff]
    %v113 = vld [vmem:[%s2 + $0x18] sm:$0xff]
    %v114 = vld [vmem:[%s2 + $0x20] sm:$0xff]
    %v115 = vld [vmem:[%s2 + $0x28] sm:$0xff]
    %v116 = vld [vmem:[%s2 + $0x30] sm:$0xff]
    %v117 = vld [vmem:[%s2 + $0x38] sm:$0xff]
    %v118 = vld [vmem:[%s2 + $0x40] sm:$0xff]
    %v119 = vld [vmem:[%s2 + $0x48] sm:$0xff]
    %v120 = vld [vmem:[%s2 + $0x50] sm:$0xff]
    %v121 = vld [vmem:[%s2 + $0x58] sm:$0xff]
    %v122 = vld [vmem:[%s2 + $0x60] sm:$0xff]
    %v123 = vld [vmem:[%s2 + $0x68] sm:$0xff]
    %v124 = vld [vmem:[%s2 + $0x70] sm:$0xff]
    %v125 = vld [vmem:[%s2 + $0x78] sm:$0xff]
    %v126 = vld [vmem:[%s2 + $0x80] sm:$0xff]
    %v127 = vld [vmem:[%s2 + $0x88] sm:$0xff]
    %v128 = vld [vmem:[%s2 + $0x90] sm:$0xff]
    %v129 = vld [vmem:[%s2 + $0x98] sm:$0xff]
    %v130 = vld [vmem:[%s2 + $0xa0] sm:$0xff]
    %v131 = vld [vmem:[%s2 + $0xa8] sm:$0xff]
    %v132 = vld [vmem:[%s2 + $0xb0] sm:$0xff]
    %v133 = vld [vmem:[%s2 + $0xb8] sm:$0xff]
    %v134 = vld [vmem:[%s3] sm:$0x1]
    %v136 = vlaneseq
    %v137 = vshrl.u32 %v136, 7
    %v138 = vsub.s32 0, %v137
    %v139 = vrot.slane %v134, %v138
    %vm141 = vcmask 523264
    %v143 = vsel %vm141, %v109, 0
    %145 = vmatprep.subr.mxu0 0.0
    %146 = vmatpush1.msra.mxu0 %v110
    %147 = vmatprep.subr.mxu0 0.0
    %148 = vmatpush1.msra.mxu0 %v111
    %149 = vmatprep.subr.mxu0 0.0
    %150 = vmatpush1.msra.mxu0 %v112
    %151 = vmatprep.subr.mxu0 0.0
    %152 = vmatpush1.msra.mxu0 %v113
    %153 = vmatprep.subr.mxu0 0.0
    %154 = vmatpush1.msra.mxu0 %v114
    %155 = vmatprep.subr.mxu0 0.0
    %156 = vmatpush1.msra.mxu0 %v115
    %157 = vmatprep.subr.mxu0 0.0
    %158 = vmatpush1.msra.mxu0 %v116
    %159 = vmatprep.subr.mxu0 0.0
    %160 = vmatpush1.msra.mxu0 %v117
    %161 = vmatprep.subr.mxu0 0.0
    %162 = vmatpush1.msra.mxu0 %v118
    %163 = vmatprep.subr.mxu0 0.0
    %164 = vmatpush1.msra.mxu0 %v119
    %165 = vmatprep.subr.mxu0 0.0
    %166 = vmatpush1.msra.mxu0 %v120
    %167 = vmatprep.subr.mxu0 0.0
    %168 = vmatpush1.msra.mxu0 %v121
    %169 = vmatprep.subr.mxu0 0.0
    %170 = vmatpush1.msra.mxu0 %v122
    %171 = vmatprep.subr.mxu0 0.0
    %172 = vmatpush1.msra.mxu0 %v123
    %173 = vmatprep.subr.mxu0 0.0
    %174 = vmatpush1.msra.mxu0 %v124
    %175 = vmatprep.subr.mxu0 0.0
    %176 = vmatpush1.msra.mxu0 %v125
    %177 = vmatprep.subr.mxu0 0.0
    %178 = vmatpush1.msra.mxu0 %v126
    %179 = vmatprep.subr.mxu0 0.0
    %180 = vmatpush1.msra.mxu0 %v127
    %181 = vmatprep.subr.mxu0 0.0
    %182 = vmatpush1.msra.mxu0 %v128
    %183 = vmatprep.subr.mxu0 0.0
    %184 = vmatpush1.msra.mxu0 %v129
    %185 = vmatprep.subr.mxu0 0.0
    %186 = vmatpush1.msra.mxu0 %v130
    %187 = vmatprep.subr.mxu0 0.0
    %188 = vmatpush1.msra.mxu0 %v131
    %189 = vmatprep.subr.mxu0 0.0
    %190 = vmatpush1.msra.mxu0 %v132
    %191 = vmatprep.subr.mxu0 0.0
    %192 = vmatpush1.msra.mxu0 %v133
    %193 = vmatprep.subr.mxu0 0.0
    %194 = vmatpush1.msra.mxu0 0.0
    %195 = vmatprep.subr.mxu0 0.0
    %196 = vmatpush1.msra.mxu0 0.0
    %197 = vmatprep.subr.mxu0 0.0
    %198 = vmatpush1.msra.mxu0 0.0
    %199 = vmatprep.subr.mxu0 0.0
    %200 = vmatpush1.msra.mxu0 0.0
    %201 = vmatprep.subr.mxu0 0.0
    %202 = vmatpush1.msra.mxu0 0.0
    %203 = vmatprep.subr.mxu0 0.0
    %204 = vmatpush1.msra.mxu0 0.0
    %205 = vmatprep.subr.mxu0 0.0
    %206 = vmatpush1.msra.mxu0 0.0
    %207 = vmatprep.subr.mxu0 0.0
    %208 = vmatpush1.msra.mxu0 0.0
    %209 = vmatprep.mubr.f32.mxu0 %v143
    %210 = vmatmul.mubr.f32.gmra.mrb[0].mxu0 %v108
    %v211 = vpop.f32.mrb[0].mxu0
    %v212 = vadd.f32 %v139, %v211
    %v213 = vpop.f32.mrb[0].mxu0
    %214 = vdwg.mxu0
    %v215 = vld [vmem:[%s4] sm:$0xff]
    %v216 = vld [vmem:[%s4 + $0x8] sm:$0xff]
    %v217 = vld [vmem:[%s4 + $0x10] sm:$0xff]
    %v218 = vld [vmem:[%s4 + $0x18] sm:$0xff]
    %v219 = vld [vmem:[%s5] sm:$0x1]
    %v221 = vlaneseq
    %v222 = vshrl.u32 %v221, 7
    %v223 = vsub.s32 0, %v222
    %v224 = vrot.slane %v219, %v223
    %vm226 = vcmask 261120
    %v228 = vsel %vm226, %v212, 0
    %230 = vmatprep.subr.mxu0 0.0
    %231 = vmatpush1.msra.mxu0 %v215
    %232 = vmatprep.subr.mxu0 0.0
    %233 = vmatpush1.msra.mxu0 %v216
    %234 = vmatprep.subr.mxu0 0.0
    %235 = vmatpush1.msra.mxu0 %v217
    %236 = vmatprep.subr.mxu0 0.0
    %237 = vmatpush1.msra.mxu0 %v218
    %238 = vmatprep.subr.mxu0 0.0
    %239 = vmatpush1.msra.mxu0 0.0
    %240 = vmatprep.subr.mxu0 0.0
    %241 = vmatpush1.msra.mxu0 0.0
    %242 = vmatprep.subr.mxu0 0.0
    %243 = vmatpush1.msra.mxu0 0.0
    %244 = vmatprep.subr.mxu0 0.0
    %245 = vmatpush1.msra.mxu0 0.0
    %246 = vmatprep.subr.mxu0 0.0
    %247 = vmatpush1.msra.mxu0 0.0
    %248 = vmatprep.subr.mxu0 0.0
    %249 = vmatpush1.msra.mxu0 0.0
    %250 = vmatprep.subr.mxu0 0.0
    %251 = vmatpush1.msra.mxu0 0.0
    %252 = vmatprep.subr.mxu0 0.0
    %253 = vmatpush1.msra.mxu0 0.0
    %254 = vmatprep.subr.mxu0 0.0
    %255 = vmatpush1.msra.mxu0 0.0
    %256 = vmatprep.subr.mxu0 0.0
    %257 = vmatpush1.msra.mxu0 0.0
    %258 = vmatprep.subr.mxu0 0.0
    %259 = vmatpush1.msra.mxu0 0.0
    %260 = vmatprep.subr.mxu0 0.0
    %261 = vmatpush1.msra.mxu0 0.0
    %262 = vmatprep.subr.mxu0 0.0
    %263 = vmatpush1.msra.mxu0 0.0
    %264 = vmatprep.subr.mxu0 0.0
    %265 = vmatpush1.msra.mxu0 0.0
    %266 = vmatprep.subr.mxu0 0.0
    %267 = vmatpush1.msra.mxu0 0.0
    %268 = vmatprep.subr.mxu0 0.0
    %269 = vmatpush1.msra.mxu0 0.0
    %270 = vmatprep.subr.mxu0 0.0
    %271 = vmatpush1.msra.mxu0 0.0
    %272 = vmatprep.subr.mxu0 0.0
    %273 = vmatpush1.msra.mxu0 0.0
    %274 = vmatprep.subr.mxu0 0.0
    %275 = vmatpush1.msra.mxu0 0.0
    %276 = vmatprep.subr.mxu0 0.0
    %277 = vmatpush1.msra.mxu0 0.0
    %278 = vmatprep.subr.mxu0 0.0
    %279 = vmatpush1.msra.mxu0 0.0
    %280 = vmatprep.subr.mxu0 0.0
    %281 = vmatpush1.msra.mxu0 0.0
    %282 = vmatprep.subr.mxu0 0.0
    %283 = vmatpush1.msra.mxu0 0.0
    %284 = vmatprep.subr.mxu0 0.0
    %285 = vmatpush1.msra.mxu0 0.0
    %286 = vmatprep.subr.mxu0 0.0
    %287 = vmatpush1.msra.mxu0 0.0
    %288 = vmatprep.subr.mxu0 0.0
    %289 = vmatpush1.msra.mxu0 0.0
    %290 = vmatprep.subr.mxu0 0.0
    %291 = vmatpush1.msra.mxu0 0.0
    %292 = vmatprep.subr.mxu0 0.0
    %293 = vmatpush1.msra.mxu0 0.0
    %294 = vmatprep.mubr.f32.mxu0 0.0
    %295 = vmatmul.mubr.f32.gmra.mrb[0].mxu0 %v228
    %v296 = vpop.f32.mrb[0].mxu0
    %v297 = vadd.f32 %v224, %v296
    %v298 = vpop.f32.mrb[0].mxu0
    %299 = vdwg.mxu0
    %v300 = vmul.f32 %v297, %v297
    %v301 = vmul.f32 %v297, %v300
    %v302 = vmul.f32 %v301, 0.044715
    %v303 = vadd.f32 %v297, %v302
    %v304 = vmul.f32 %v303, 0.7978846
    %v305 = vtanh.pop %v304
    %v306 = vadd.f32 %v305, 1.0
    %v307 = vmul.f32 %v306, 0.5
    %v308 = vmul.f32 %v297, %v307
    %v309 = vld [vmem:[%s6] sm:$0xff]
    %v310 = vld [vmem:[%s6 + $0x8] sm:$0xff]
    %v311 = vld [vmem:[%s6 + $0x10] sm:$0xff]
    %v312 = vld [vmem:[%s6 + $0x18] sm:$0xff]
    %v313 = vld [vmem:[%s6 + $0x20] sm:$0xff]
    %v314 = vld [vmem:[%s6 + $0x28] sm:$0xff]
    %v315 = vld [vmem:[%s6 + $0x30] sm:$0xff]
    %v316 = vld [vmem:[%s6 + $0x38] sm:$0xff]
    %v317 = vld [vmem:[%s7] sm:$0x1]
    %v319 = vlaneseq
    %v320 = vshrl.u32 %v319, 7
    %v321 = vsub.s32 0, %v320
    %v322 = vrot.slane %v317, %v321
    %v325 = vsel %vm141, %v308, 0
    %327 = vmatprep.subr.mxu0 0.0
    %328 = vmatpush1.msra.mxu0 %v309
    %329 = vmatprep.subr.mxu0 0.0
    %330 = vmatpush1.msra.mxu0 %v310
    %331 = vmatprep.subr.mxu0 0.0
    %332 = vmatpush1.msra.mxu0 %v311
    %333 = vmatprep.subr.mxu0 0.0
    %334 = vmatpush1.msra.mxu0 %v312
    %335 = vmatprep.subr.mxu0 0.0
    %336 = vmatpush1.msra.mxu0 %v313
    %337 = vmatprep.subr.mxu0 0.0
    %338 = vmatpush1.msra.mxu0 %v314
    %339 = vmatprep.subr.mxu0 0.0
    %340 = vmatpush1.msra.mxu0 %v315
    %341 = vmatprep.subr.mxu0 0.0
    %342 = vmatpush1.msra.mxu0 %v316
    %343 = vmatprep.subr.mxu0 0.0
    %344 = vmatpush1.msra.mxu0 0.0
    %345 = vmatprep.subr.mxu0 0.0
    %346 = vmatpush1.msra.mxu0 0.0
    %347 = vmatprep.subr.mxu0 0.0
    %348 = vmatpush1.msra.mxu0 0.0
    %349 = vmatprep.subr.mxu0 0.0
    %350 = vmatpush1.msra.mxu0 0.0
    %351 = vmatprep.subr.mxu0 0.0
    %352 = vmatpush1.msra.mxu0 0.0
    %353 = vmatprep.subr.mxu0 0.0
    %354 = vmatpush1.msra.mxu0 0.0
    %355 = vmatprep.subr.mxu0 0.0
    %356 = vmatpush1.msra.mxu0 0.0
    %357 = vmatprep.subr.mxu0 0.0
    %358 = vmatpush1.msra.mxu0 0.0
    %359 = vmatprep.subr.mxu0 0.0
    %360 = vmatpush1.msra.mxu0 0.0
    %361 = vmatprep.subr.mxu0 0.0
    %362 = vmatpush1.msra.mxu0 0.0
    %363 = vmatprep.subr.mxu0 0.0
    %364 = vmatpush1.msra.mxu0 0.0
    %365 = vmatprep.subr.mxu0 0.0
    %366 = vmatpush1.msra.mxu0 0.0
    %367 = vmatprep.subr.mxu0 0.0
    %368 = vmatpush1.msra.mxu0 0.0
    %369 = vmatprep.subr.mxu0 0.0
    %370 = vmatpush1.msra.mxu0 0.0
    %371 = vmatprep.subr.mxu0 0.0
    %372 = vmatpush1.msra.mxu0 0.0
    %373 = vmatprep.subr.mxu0 0.0
    %374 = vmatpush1.msra.mxu0 0.0
    %375 = vmatprep.subr.mxu0 0.0
    %376 = vmatpush1.msra.mxu0 0.0
    %377 = vmatprep.subr.mxu0 0.0
    %378 = vmatpush1.msra.mxu0 0.0
    %379 = vmatprep.subr.mxu0 0.0
    %380 = vmatpush1.msra.mxu0 0.0
    %381 = vmatprep.subr.mxu0 0.0
    %382 = vmatpush1.msra.mxu0 0.0
    %383 = vmatprep.subr.mxu0 0.0
    %384 = vmatpush1.msra.mxu0 0.0
    %385 = vmatprep.subr.mxu0 0.0
    %386 = vmatpush1.msra.mxu0 0.0
    %387 = vmatprep.subr.mxu0 0.0
    %388 = vmatpush1.msra.mxu0 0.0
    %389 = vmatprep.subr.mxu0 0.0
    %390 = vmatpush1.msra.mxu0 0.0
    %391 = vmatprep.mubr.f32.mxu0 0.0
    %392 = vmatmul.mubr.f32.gmra.mrb[0].mxu0 %v325
    %v393 = vpop.f32.mrb[0].mxu0
    %v394 = vadd.f32 %v322, %v393
    %v395 = vpop.f32.mrb[0].mxu0
    %396 = vdwg.mxu0
    %v397 = vlaneseq
    %v398 = vand.u32 %v397, 127
    %v399 = vld [vmem:[%s1] sm:$0xff]
    %v400 = vld [vmem:[%s1 + $0x8] sm:$0xff]
    %401 = vset.pattern.permute.xlu0 0
    %402 = vperm.xlu0 %401, %v399
    %v403 = vpop.permute.xlu0 %402
    %404 = vset.pattern.permute.xlu0 0
    %405 = vperm.xlu0 %404, %v400
    %v406 = vpop.permute.xlu0 %405
    %vm407 = vcmp.eq.s32.totalorder %v403, %v398
    %vm408 = vcmp.eq.s32.totalorder %v406, %v398
    %v409 = vsel %vm407, 1, 0
    %v410 = vsel %vm408, 1, 0
    %v411 = vcvt.s32.f32 %v409
    %v412 = vcvt.s32.f32 %v410
    %v414 = vsel %vm141, %v411, 0
    %v417 = vsel %vm141, %v412, 0
    %419 = vmatprep.subr.mxu0 0.0
    %420 = vmatpush1.msra.mxu0 %v69
    %421 = vmatprep.subr.mxu0 0.0
    %422 = vmatpush1.msra.mxu0 %v70
    %423 = vmatprep.subr.mxu0 0.0
    %424 = vmatpush1.msra.mxu0 %v71
    %425 = vmatprep.subr.mxu0 0.0
    %426 = vmatpush1.msra.mxu0 %v72
    %427 = vmatprep.subr.mxu0 0.0
    %428 = vmatpush1.msra.mxu0 %v73
    %429 = vmatprep.subr.mxu0 0.0
    %430 = vmatpush1.msra.mxu0 %v74
    %431 = vmatprep.subr.mxu0 0.0
    %432 = vmatpush1.msra.mxu0 %v75
    %433 = vmatprep.subr.mxu0 0.0
    %434 = vmatpush1.msra.mxu0 %v76
    %435 = vmatprep.subr.mxu0 0.0
    %436 = vmatpush1.msra.mxu0 0.0
    %437 = vmatprep.subr.mxu0 0.0
    %438 = vmatpush1.msra.mxu0 0.0
    %439 = vmatprep.subr.mxu0 0.0
    %440 = vmatpush1.msra.mxu0 0.0
    %441 = vmatprep.subr.mxu0 0.0
    %442 = vmatpush1.msra.mxu0 0.0
    %443 = vmatprep.subr.mxu0 0.0
    %444 = vmatpush1.msra.mxu0 0.0
    %445 = vmatprep.subr.mxu0 0.0
    %446 = vmatpush1.msra.mxu0 0.0
    %447 = vmatprep.subr.mxu0 0.0
    %448 = vmatpush1.msra.mxu0 0.0
    %449 = vmatprep.subr.mxu0 0.0
    %450 = vmatpush1.msra.mxu0 0.0
    %451 = vmatprep.subr.mxu0 0.0
    %452 = vmatpush1.msra.mxu0 0.0
    %453 = vmatprep.subr.mxu0 0.0
    %454 = vmatpush1.msra.mxu0 0.0
    %455 = vmatprep.subr.mxu0 0.0
    %456 = vmatpush1.msra.mxu0 0.0
    %457 = vmatprep.subr.mxu0 0.0
    %458 = vmatpush1.msra.mxu0 0.0
    %459 = vmatprep.subr.mxu0 0.0
    %460 = vmatpush1.msra.mxu0 0.0
    %461 = vmatprep.subr.mxu0 0.0
    %462 = vmatpush1.msra.mxu0 0.0
    %463 = vmatprep.subr.mxu0 0.0
    %464 = vmatpush1.msra.mxu0 0.0
    %465 = vmatprep.subr.mxu0 0.0
    %466 = vmatpush1.msra.mxu0 0.0
    %467 = vmatprep.subr.mxu0 0.0
    %468 = vmatpush1.msra.mxu0 0.0
    %469 = vmatprep.subr.mxu0 0.0
    %470 = vmatpush1.msra.mxu0 0.0
    %471 = vmatprep.subr.mxu0 0.0
    %472 = vmatpush1.msra.mxu0 0.0
    %473 = vmatprep.subr.mxu0 0.0
    %474 = vmatpush1.msra.mxu0 0.0
    %475 = vmatprep.subr.mxu0 0.0
    %476 = vmatpush1.msra.mxu0 0.0
    %477 = vmatprep.subr.mxu0 0.0
    %478 = vmatpush1.msra.mxu0 0.0
    %479 = vmatprep.subr.mxu0 0.0
    %480 = vmatpush1.msra.mxu0 0.0
    %481 = vmatprep.subr.mxu0 0.0
    %482 = vmatpush1.msra.mxu0 0.0
    %483 = vmatprep.mubr.f32.mxu0 0.0
    %484 = vmatmul.mubr.f32.gmra.mrb[0].mxu0 %v414
    %v485 = vpop.f32.mrb[0].mxu0
    %v486 = vadd.f32 0.0, %v485
    %v487 = vpop.f32.mrb[0].mxu0
    %488 = vmatprep.mubr.f32.mxu0 0.0
    %489 = vmatmul.mubr.f32.gmra.mrb[0].mxu0 %v417
    %v490 = vpop.f32.mrb[0].mxu0
    %v491 = vadd.f32 0.0, %v490
    %v492 = vpop.f32.mrb[0].mxu0
    %493 = vdwg.mxu0
    %v495 = vcombine.high %v394, %v394
    %v499 = vrot.slane %v486, 4
    %v500 = vrot.slane %v491, 4
    %vm503 = vcmask 1043456
    %v504 = vsel %vm503, %v394, %v499
    %v505 = vsel %vm503, %v495, %v500
    %v506 = vsel %vm503, %v499, 0.0
    %v507 = vsel %vm503, %v500, 0.0
    %v508 = vmul.f32 %v504, %v504
    %v509 = vmul.f32 %v506, %v506
    %v510 = vmul.f32 %v505, %v505
    %v511 = vmul.f32 %v507, %v507
    %v512 = vsel %vm226, %v508, 0.0
    %513 = vadd.xlane.f32.xlu0 %v512
    %v514 = vpop.xlane.xlu0 %513
    %v515 = vsel %vm226, %v509, 0.0
    %516 = vadd.xlane.f32.xlu0 %v515
    %v517 = vpop.xlane.xlu0 %516
    %v518 = vsel %vm226, %v510, 0.0
    %519 = vadd.xlane.f32.xlu0 %v518
    %v520 = vpop.xlane.xlu0 %519
    %v521 = vsel %vm226, %v511, 0.0
    %522 = vadd.xlane.f32.xlu0 %v521
    %v523 = vpop.xlane.xlu0 %522
    %v524 = vrcp.pop 32.0
    %v525 = vmul.f32 %v514, %v524
    %v526 = vmul.f32 %v517, %v524
    %v527 = vmul.f32 %v520, %v524
    %v528 = vmul.f32 %v523, %v524
    %v529 = vadd.f32 %v525, 1e-06
    %v530 = vadd.f32 %v526, 1e-06
    %v531 = vadd.f32 %v527, 1e-06
    %v532 = vadd.f32 %v528, 1e-06
    %v533 = vrsqrt.pop %v529
    %v534 = vrsqrt.pop %v530
    %v535 = vrsqrt.pop %v531
    %v536 = vrsqrt.pop %v532
    %v537 = vmul.f32 %v504, %v533
    %v538 = vmul.f32 %v506, %v534
    %v539 = vmul.f32 %v505, %v535
    %v540 = vmul.f32 %v507, %v536
    %v542 = vlaneseq
    %v543 = vshrl.u32 %v542, 7
    %v544 = vsub.s32 0, %v543
    %v545 = vrot.slane %v77, %v544
    %v547 = vmul.f32 %v537, %v545
    %v548 = vmul.f32 %v538, %v545
    %v549 = vmul.f32 %v539, %v545
    %v550 = vmul.f32 %v540, %v545
    %v552 = vlaneseq
    %v553 = vshrl.u32 %v552, 7
    %v554 = vsub.s32 0, %v553
    %v555 = vrot.slane %v83, %v554
    %v558 = vsel %vm226, %v547, 0
    %v561 = vsel %vm226, %v548, 0
    %v564 = vsel %vm226, %v549, 0
    %v567 = vsel %vm226, %v550, 0
    %569 = vmatprep.subr.mxu0 0.0
    %570 = vmatpush1.msra.mxu0 %v79
    %571 = vmatprep.subr.mxu0 0.0
    %572 = vmatpush1.msra.mxu0 %v80
    %573 = vmatprep.subr.mxu0 0.0
    %574 = vmatpush1.msra.mxu0 %v81
    %575 = vmatprep.subr.mxu0 0.0
    %576 = vmatpush1.msra.mxu0 %v82
    %577 = vmatprep.subr.mxu0 0.0
    %578 = vmatpush1.msra.mxu0 0.0
    %579 = vmatprep.subr.mxu0 0.0
    %580 = vmatpush1.msra.mxu0 0.0
    %581 = vmatprep.subr.mxu0 0.0
    %582 = vmatpush1.msra.mxu0 0.0
    %583 = vmatprep.subr.mxu0 0.0
    %584 = vmatpush1.msra.mxu0 0.0
    %585 = vmatprep.subr.mxu0 0.0
    %586 = vmatpush1.msra.mxu0 0.0
    %587 = vmatprep.subr.mxu0 0.0
    %588 = vmatpush1.msra.mxu0 0.0
    %589 = vmatprep.subr.mxu0 0.0
    %590 = vmatpush1.msra.mxu0 0.0
    %591 = vmatprep.subr.mxu0 0.0
    %592 = vmatpush1.msra.mxu0 0.0
    %593 = vmatprep.subr.mxu0 0.0
    %594 = vmatpush1.msra.mxu0 0.0
    %595 = vmatprep.subr.mxu0 0.0
    %596 = vmatpush1.msra.mxu0 0.0
    %597 = vmatprep.subr.mxu0 0.0
    %598 = vmatpush1.msra.mxu0 0.0
    %599 = vmatprep.subr.mxu0 0.0
    %600 = vmatpush1.msra.mxu0 0.0
    %601 = vmatprep.subr.mxu0 0.0
    %602 = vmatpush1.msra.mxu0 0.0
    %603 = vmatprep.subr.mxu0 0.0
    %604 = vmatpush1.msra.mxu0 0.0
    %605 = vmatprep.subr.mxu0 0.0
    %606 = vmatpush1.msra.mxu0 0.0
    %607 = vmatprep.subr.mxu0 0.0
    %608 = vmatpush1.msra.mxu0 0.0
    %609 = vmatprep.subr.mxu0 0.0
    %610 = vmatpush1.msra.mxu0 0.0
    %611 = vmatprep.subr.mxu0 0.0
    %612 = vmatpush1.msra.mxu0 0.0
    %613 = vmatprep.subr.mxu0 0.0
    %614 = vmatpush1.msra.mxu0 0.0
    %615 = vmatprep.subr.mxu0 0.0
    %616 = vmatpush1.msra.mxu0 0.0
    %617 = vmatprep.subr.mxu0 0.0
    %618 = vmatpush1.msra.mxu0 0.0
    %619 = vmatprep.subr.mxu0 0.0
    %620 = vmatpush1.msra.mxu0 0.0
    %621 = vmatprep.subr.mxu0 0.0
    %622 = vmatpush1.msra.mxu0 0.0
    %623 = vmatprep.subr.mxu0 0.0
    %624 = vmatpush1.msra.mxu0 0.0
    %625 = vmatprep.subr.mxu0 0.0
    %626 = vmatpush1.msra.mxu0 0.0
    %627 = vmatprep.subr.mxu0 0.0
    %628 = vmatpush1.msra.mxu0 0.0
    %629 = vmatprep.subr.mxu0 0.0
    %630 = vmatpush1.msra.mxu0 0.0
    %631 = vmatprep.subr.mxu0 0.0
    %632 = vmatpush1.msra.mxu0 0.0
    %633 = vmatprep.mubr.f32.mxu0 0.0
    %634 = vmatmul.mubr.f32.gmra.mrb[0].mxu0 %v558
    %v635 = vpop.f32.mrb[0].mxu0
    %v636 = vadd.f32 %v555, %v635
    %v637 = vpop.f32.mrb[0].mxu0
    %638 = vmatprep.mubr.f32.mxu0 0.0
    %639 = vmatmul.mubr.f32.gmra.mrb[0].mxu0 %v561
    %v640 = vpop.f32.mrb[0].mxu0
    %v641 = vadd.f32 %v555, %v640
    %v642 = vpop.f32.mrb[0].mxu0
    %643 = vmatprep.mubr.f32.mxu0 0.0
    %644 = vmatmul.mubr.f32.gmra.mrb[0].mxu0 %v564
    %v645 = vpop.f32.mrb[0].mxu0
    %v646 = vadd.f32 %v555, %v645
    %v647 = vpop.f32.mrb[0].mxu0
    %648 = vmatprep.mubr.f32.mxu0 0.0
    %649 = vmatmul.mubr.f32.gmra.mrb[0].mxu0 %v567
    %v650 = vpop.f32.mrb[0].mxu0
    %v651 = vadd.f32 %v555, %v650
    %v652 = vpop.f32.mrb[0].mxu0
    %653 = vdwg.mxu0
    %658 = vrot.lane.b32.xlu0 %v636, 96
    %v659 = vpop.permute.xlu0 %658
    %660 = vrot.lane.b32.xlu0 %v641, 96
    %v661 = vpop.permute.xlu0 %660
    %662 = vrot.lane.b32.xlu0 %v646, 96
    %v663 = vpop.permute.xlu0 %662
    %664 = vrot.lane.b32.xlu0 %v651, 96
    %v665 = vpop.permute.xlu0 %664
    %670 = vst.msk [vmem:[#allocation2] sm:$0xff] %vm141, %v659
    %671 = vst.msk [vmem:[#allocation2 + $0x8] sm:$0xff] %vm141, %v661
    %672 = vst.msk [vmem:[#allocation2 + $0x10] sm:$0xff] %vm141, %v663
    %673 = vst.msk [vmem:[#allocation2 + $0x18] sm:$0xff] %vm141, %v665
    %v676 = vrot.slane %v511, 7
    %vm677 = vcmask 1044484
    %v678 = vsel %vm677, %v676, %v509
    %vm680 = vcmask 258051
    %v681 = vsel %vm680, %v678, 0.0
    %682 = vadd.xlane.f32.xlu0 %v681
    %v683 = vpop.xlane.xlu0 %682
    %v684 = vmul.f32 %v683, %v524
    %v685 = vadd.f32 %v684, 1e-06
    %v686 = vrsqrt.pop %v685
    %v688 = vrot.slane %v686, 1
    %v691 = vmul.f32 %v506, %v686
    %v692 = vmul.f32 %v507, %v688
    %v693 = vmul.f32 %v691, %v545
    %v694 = vmul.f32 %v692, %v545
    %v697 = vrot.slane %v693, 3
    %v698 = vrot.slane %v694, 2
    %vm699 = vcmask 1041409
    %v700 = vsel %vm699, %v698, %v697
    %v701 = vsel %vm226, %v700, 0
    %703 = vmatprep.subr.mxu0 0.0
    %704 = vmatpush1.msra.mxu0 %v79
    %705 = vmatprep.subr.mxu0 0.0
    %706 = vmatpush1.msra.mxu0 %v80
    %707 = vmatprep.subr.mxu0 0.0
    %708 = vmatpush1.msra.mxu0 %v81
    %709 = vmatprep.subr.mxu0 0.0
    %710 = vmatpush1.msra.mxu0 %v82
    %711 = vmatprep.subr.mxu0 0.0
    %712 = vmatpush1.msra.mxu0 0.0
    %713 = vmatprep.subr.mxu0 0.0
    %714 = vmatpush1.msra.mxu0 0.0
    %715 = vmatprep.subr.mxu0 0.0
    %716 = vmatpush1.msra.mxu0 0.0
    %717 = vmatprep.subr.mxu0 0.0
    %718 = vmatpush1.msra.mxu0 0.0
    %719 = vmatprep.subr.mxu0 0.0
    %720 = vmatpush1.msra.mxu0 0.0
    %721 = vmatprep.subr.mxu0 0.0
    %722 = vmatpush1.msra.mxu0 0.0
    %723 = vmatprep.subr.mxu0 0.0
    %724 = vmatpush1.msra.mxu0 0.0
    %725 = vmatprep.subr.mxu0 0.0
    %726 = vmatpush1.msra.mxu0 0.0
    %727 = vmatprep.subr.mxu0 0.0
    %728 = vmatpush1.msra.mxu0 0.0
    %729 = vmatprep.subr.mxu0 0.0
    %730 = vmatpush1.msra.mxu0 0.0
    %731 = vmatprep.subr.mxu0 0.0
    %732 = vmatpush1.msra.mxu0 0.0
    %733 = vmatprep.subr.mxu0 0.0
    %734 = vmatpush1.msra.mxu0 0.0
    %735 = vmatprep.subr.mxu0 0.0
    %736 = vmatpush1.msra.mxu0 0.0
    %737 = vmatprep.subr.mxu0 0.0
    %738 = vmatpush1.msra.mxu0 0.0
    %739 = vmatprep.subr.mxu0 0.0
    %740 = vmatpush1.msra.mxu0 0.0
    %741 = vmatprep.subr.mxu0 0.0
    %742 = vmatpush1.msra.mxu0 0.0
    %743 = vmatprep.subr.mxu0 0.0
    %744 = vmatpush1.msra.mxu0 0.0
    %745 = vmatprep.subr.mxu0 0.0
    %746 = vmatpush1.msra.mxu0 0.0
    %747 = vmatprep.subr.mxu0 0.0
    %748 = vmatpush1.msra.mxu0 0.0
    %749 = vmatprep.subr.mxu0 0.0
    %750 = vmatpush1.msra.mxu0 0.0
    %751 = vmatprep.subr.mxu0 0.0
    %752 = vmatpush1.msra.mxu0 0.0
    %753 = vmatprep.subr.mxu0 0.0
    %754 = vmatpush1.msra.mxu0 0.0
    %755 = vmatprep.subr.mxu0 0.0
    %756 = vmatpush1.msra.mxu0 0.0
    %757 = vmatprep.subr.mxu0 0.0
    %758 = vmatpush1.msra.mxu0 0.0
    %759 = vmatprep.subr.mxu0 0.0
    %760 = vmatpush1.msra.mxu0 0.0
    %761 = vmatprep.subr.mxu0 0.0
    %762 = vmatpush1.msra.mxu0 0.0
    %763 = vmatprep.subr.mxu0 0.0
    %764 = vmatpush1.msra.mxu0 0.0
    %765 = vmatprep.subr.mxu0 0.0
    %766 = vmatpush1.msra.mxu0 0.0
    %767 = vmatprep.mubr.f32.mxu0 0.0
    %768 = vmatmul.mubr.f32.gmra.mrb[0].mxu0 %v701
    %v769 = vpop.f32.mrb[0].mxu0
    %v770 = vadd.f32 %v555, %v769
    %v771 = vpop.f32.mrb[0].mxu0
    %772 = vdwg.mxu0
    %v775 = vunpack.c.l.s4 1966171168
    %v776 = vunpack.c.0.s8 %v775
    %v777 = vlaneseq
    %v778 = vshrl.u32 %v777, 7
    %v779 = vsub.s32 %v776, %v778
    %v780 = vrot.slane %v770, %v779
    %v781 = vcombine.high %v780, %v780
    %v783 = vunpack.c.l.s4 1966171168
    %v784 = vunpack.c.0.s8 %v783
    %v785 = vlaneseq
    %v786 = vshrl.u32 %v785, 7
    %v787 = vsub.s32 %v784, %v786
    %v788 = vrot.slane %v780, %v787
    %v790 = vunpack.c.l.s4 1966171168
    %v791 = vunpack.c.0.s8 %v790
    %v792 = vlaneseq
    %v793 = vshrl.u32 %v792, 7
    %v794 = vsub.s32 %v791, %v793
    %v795 = vrot.slane %v781, %v794
    %v796 = vlaneseq
    %v797 = vshrl.u32 %v796, 7
    %v798 = vsub.s32 0, %v797
    %v799 = vrot.slane %v788, %v798
    %v800 = vlaneseq
    %v801 = vshrl.u32 %v800, 7
    %v802 = vsub.s32 0, %v801
    %v803 = vrot.slane %v795, %v802
    %804 = vrot.lane.b32.xlu0 %v799, 96
    %v805 = vpop.permute.xlu0 %804
    %806 = vrot.lane.b32.xlu0 %v803, 96
    %v807 = vpop.permute.xlu0 %806
    %vm810 = vcmask 516096
    %811 = vst.msk [vmem:[#allocation2 + $0xb] sm:$0x1] %vm810, %v805
    %812 = vst.msk [vmem:[#allocation2 + $0x1b] sm:$0x1] %vm810, %v807
    %v813 = vld [vmem:[#allocation2] sm:$0xff]
    %v814 = vld [vmem:[#allocation2 + $0x8] sm:$0xff]
    %v815 = vld [vmem:[#allocation2 + $0x10] sm:$0xff]
    %v816 = vld [vmem:[#allocation2 + $0x18] sm:$0xff]
    %vm817 = vcmp.lt.s32.totalorder %v398, 12
    %vm818 = vcmask 64512
    %v819 = vsel %vm818, %v788, 0
    %v822 = vsel %vm818, %v813, 0
    %v825 = vsel %vm818, %v814, 0
    %827 = vmatprep.subr.mxu0 0.0
    %828 = vmatpush1.xpose.msra.mxu0 %v822
    %829 = vmatprep.subr.mxu0 0.0
    %830 = vmatpush1.xpose.msra.mxu0 %v825
    %831 = vmatprep.subr.mxu0 0.0
    %832 = vmatpush1.xpose.msra.mxu0 0.0
    %833 = vmatprep.subr.mxu0 0.0
    %834 = vmatpush1.xpose.msra.mxu0 0.0
    %835 = vmatprep.subr.mxu0 0.0
    %836 = vmatpush1.xpose.msra.mxu0 0.0
    %837 = vmatprep.subr.mxu0 0.0
    %838 = vmatpush1.xpose.msra.mxu0 0.0
    %839 = vmatprep.subr.mxu0 0.0
    %840 = vmatpush1.xpose.msra.mxu0 0.0
    %841 = vmatprep.subr.mxu0 0.0
    %842 = vmatpush1.xpose.msra.mxu0 0.0
    %843 = vmatprep.subr.mxu0 0.0
    %844 = vmatpush1.xpose.msra.mxu0 0.0
    %845 = vmatprep.subr.mxu0 0.0
    %846 = vmatpush1.xpose.msra.mxu0 0.0
    %847 = vmatprep.subr.mxu0 0.0
    %848 = vmatpush1.xpose.msra.mxu0 0.0
    %849 = vmatprep.subr.mxu0 0.0
    %850 = vmatpush1.xpose.msra.mxu0 0.0
    %851 = vmatprep.subr.mxu0 0.0
    %852 = vmatpush1.xpose.msra.mxu0 0.0
    %853 = vmatprep.subr.mxu0 0.0
    %854 = vmatpush1.xpose.msra.mxu0 0.0
    %855 = vmatprep.subr.mxu0 0.0
    %856 = vmatpush1.xpose.msra.mxu0 0.0
    %857 = vmatprep.subr.mxu0 0.0
    %858 = vmatpush1.xpose.msra.mxu0 0.0
    %859 = vmatprep.subr.mxu0 0.0
    %860 = vmatpush1.xpose.msra.mxu0 0.0
    %861 = vmatprep.subr.mxu0 0.0
    %862 = vmatpush1.xpose.msra.mxu0 0.0
    %863 = vmatprep.subr.mxu0 0.0
    %864 = vmatpush1.xpose.msra.mxu0 0.0
    %865 = vmatprep.subr.mxu0 0.0
    %866 = vmatpush1.xpose.msra.mxu0 0.0
    %867 = vmatprep.subr.mxu0 0.0
    %868 = vmatpush1.xpose.msra.mxu0 0.0
    %869 = vmatprep.subr.mxu0 0.0
    %870 = vmatpush1.xpose.msra.mxu0 0.0
    %871 = vmatprep.subr.mxu0 0.0
    %872 = vmatpush1.xpose.msra.mxu0 0.0
    %873 = vmatprep.subr.mxu0 0.0
    %874 = vmatpush1.xpose.msra.mxu0 0.0
    %875 = vmatprep.subr.mxu0 0.0
    %876 = vmatpush1.xpose.msra.mxu0 0.0
    %877 = vmatprep.subr.mxu0 0.0
    %878 = vmatpush1.xpose.msra.mxu0 0.0
    %879 = vmatprep.subr.mxu0 0.0
    %880 = vmatpush1.xpose.msra.mxu0 0.0
    %881 = vmatprep.subr.mxu0 0.0
    %882 = vmatpush1.xpose.msra.mxu0 0.0
    %883 = vmatprep.subr.mxu0 0.0
    %884 = vmatpush1.xpose.msra.mxu0 0.0
    %885 = vmatprep.subr.mxu0 0.0
    %886 = vmatpush1.xpose.msra.mxu0 0.0
    %887 = vmatprep.subr.mxu0 0.0
    %888 = vmatpush1.xpose.msra.mxu0 0.0
    %889 = vmatprep.subr.mxu0 0.0
    %890 = vmatpush1.xpose.msra.mxu0 0.0
    %891 = vmatprep.mubr.f32.mxu0 0.0
    %892 = vmatmul.mubr.f32.gmra.mrb[0].mxu0 %v819
    %v893 = vpop.f32.mrb[0].mxu0
    %v894 = vadd.f32 0.0, %v893
    %v895 = vpop.f32.mrb[0].mxu0
    %896 = vdwg.mxu0
    %v897 = vsel %vm818, %v795, 0
    %v900 = vsel %vm818, %v815, 0
    %v903 = vsel %vm818, %v816, 0
    %905 = vmatprep.subr.mxu0 0.0
    %906 = vmatpush1.xpose.msra.mxu0 %v900
    %907 = vmatprep.subr.mxu0 0.0
    %908 = vmatpush1.xpose.msra.mxu0 %v903
    %909 = vmatprep.subr.mxu0 0.0
    %910 = vmatpush1.xpose.msra.mxu0 0.0
    %911 = vmatprep.subr.mxu0 0.0
    %912 = vmatpush1.xpose.msra.mxu0 0.0
    %913 = vmatprep.subr.mxu0 0.0
    %914 = vmatpush1.xpose.msra.mxu0 0.0
    %915 = vmatprep.subr.mxu0 0.0
    %916 = vmatpush1.xpose.msra.mxu0 0.0
    %917 = vmatprep.subr.mxu0 0.0
    %918 = vmatpush1.xpose.msra.mxu0 0.0
    %919 = vmatprep.subr.mxu0 0.0
    %920 = vmatpush1.xpose.msra.mxu0 0.0
    %921 = vmatprep.subr.mxu0 0.0
    %922 = vmatpush1.xpose.msra.mxu0 0.0
    %923 = vmatprep.subr.mxu0 0.0
    %924 = vmatpush1.xpose.msra.mxu0 0.0
    %925 = vmatprep.subr.mxu0 0.0
    %926 = vmatpush1.xpose.msra.mxu0 0.0
    %927 = vmatprep.subr.mxu0 0.0
    %928 = vmatpush1.xpose.msra.mxu0 0.0
    %929 = vmatprep.subr.mxu0 0.0
    %930 = vmatpush1.xpose.msra.mxu0 0.0
    %931 = vmatprep.subr.mxu0 0.0
    %932 = vmatpush1.xpose.msra.mxu0 0.0
    %933 = vmatprep.subr.mxu0 0.0
    %934 = vmatpush1.xpose.msra.mxu0 0.0
    %935 = vmatprep.subr.mxu0 0.0
    %936 = vmatpush1.xpose.msra.mxu0 0.0
    %937 = vmatprep.subr.mxu0 0.0
    %938 = vmatpush1.xpose.msra.mxu0 0.0
    %939 = vmatprep.subr.mxu0 0.0
    %940 = vmatpush1.xpose.msra.mxu0 0.0
    %941 = vmatprep.subr.mxu0 0.0
    %942 = vmatpush1.xpose.msra.mxu0 0.0
    %943 = vmatprep.subr.mxu0 0.0
    %944 = vmatpush1.xpose.msra.mxu0 0.0
    %945 = vmatprep.subr.mxu0 0.0
    %946 = vmatpush1.xpose.msra.mxu0 0.0
    %947 = vmatprep.subr.mxu0 0.0
    %948 = vmatpush1.xpose.msra.mxu0 0.0
    %949 = vmatprep.subr.mxu0 0.0
    %950 = vmatpush1.xpose.msra.mxu0 0.0
    %951 = vmatprep.subr.mxu0 0.0
    %952 = vmatpush1.xpose.msra.mxu0 0.0
    %953 = vmatprep.subr.mxu0 0.0
    %954 = vmatpush1.xpose.msra.mxu0 0.0
    %955 = vmatprep.subr.mxu0 0.0
    %956 = vmatpush1.xpose.msra.mxu0 0.0
    %957 = vmatprep.subr.mxu0 0.0
    %958 = vmatpush1.xpose.msra.mxu0 0.0
    %959 = vmatprep.subr.mxu0 0.0
    %960 = vmatpush1.xpose.msra.mxu0 0.0
    %961 = vmatprep.subr.mxu0 0.0
    %962 = vmatpush1.xpose.msra.mxu0 0.0
    %963 = vmatprep.subr.mxu0 0.0
    %964 = vmatpush1.xpose.msra.mxu0 0.0
    %965 = vmatprep.subr.mxu0 0.0
    %966 = vmatpush1.xpose.msra.mxu0 0.0
    %967 = vmatprep.subr.mxu0 0.0
    %968 = vmatpush1.xpose.msra.mxu0 0.0
    %969 = vmatprep.mubr.f32.mxu0 0.0
    %970 = vmatmul.mubr.f32.gmra.mrb[0].mxu0 %v897
    %v971 = vpop.f32.mrb[0].mxu0
    %v972 = vadd.f32 0.0, %v971
    %v973 = vpop.f32.mrb[0].mxu0
    %974 = vdwg.mxu0
    %v975 = vmul.f32 %v894, 0.35355338
    %v976 = vmul.f32 %v972, 0.35355338
    %v977 = vsel %vm817, %v975, -1e+30
    %v978 = vsel %vm817, %v976, -1e+30
    %vm979 = vcmask 122880
    %v980 = vsel %vm979, %v977, -inf
    %981 = vmax.xlane.f32.xlu0 %v980
    %v982 = vpop.xlane.xlu0 %981
    %v983 = vsel %vm979, %v978, -inf
    %984 = vmax.xlane.f32.xlu0 %v983
    %v985 = vpop.xlane.xlu0 %984
    %v986 = vsub.f32 %v977, %v982
    %v987 = vsub.f32 %v978, %v985
    %v988 = vmul.f32 %v986, 1.442695
    %v989 = vpow.pop %v988
    %v990 = vmul.f32 %v987, 1.442695
    %v991 = vpow.pop %v990
    %v992 = vsel %vm979, %v989, 0.0
    %993 = vadd.xlane.f32.xlu0 %v992
    %v994 = vpop.xlane.xlu0 %993
    %v995 = vsel %vm979, %v991, 0.0
    %996 = vadd.xlane.f32.xlu0 %v995
    %v997 = vpop.xlane.xlu0 %996
    %v998 = vrcp.pop %v994
    %v999 = vrcp.pop %v997
    %1000 = vrot.lane.b32.xlu0 %v813, 96
    %v1001 = vpop.permute.xlu0 %1000
    %1002 = vrot.lane.b32.xlu0 %v814, 96
    %v1003 = vpop.permute.xlu0 %1002
    %vm1006 = vcmask 130048
    %v1008 = vsel %vm1006, %v989, 0
    %1010 = vmatprep.subr.mxu0 0.0
    %1011 = vmatpush1.msra.mxu0 %v1001
    %1012 = vmatprep.subr.mxu0 0.0
    %1013 = vmatpush1.msra.mxu0 %v1003
    %1014 = vmatprep.subr.mxu0 0.0
    %1015 = vmatpush1.msra.mxu0 0.0
    %1016 = vmatprep.subr.mxu0 0.0
    %1017 = vmatpush1.msra.mxu0 0.0
    %1018 = vmatprep.subr.mxu0 0.0
    %1019 = vmatpush1.msra.mxu0 0.0
    %1020 = vmatprep.subr.mxu0 0.0
    %1021 = vmatpush1.msra.mxu0 0.0
    %1022 = vmatprep.subr.mxu0 0.0
    %1023 = vmatpush1.msra.mxu0 0.0
    %1024 = vmatprep.subr.mxu0 0.0
    %1025 = vmatpush1.msra.mxu0 0.0
    %1026 = vmatprep.subr.mxu0 0.0
    %1027 = vmatpush1.msra.mxu0 0.0
    %1028 = vmatprep.subr.mxu0 0.0
    %1029 = vmatpush1.msra.mxu0 0.0
    %1030 = vmatprep.subr.mxu0 0.0
    %1031 = vmatpush1.msra.mxu0 0.0
    %1032 = vmatprep.subr.mxu0 0.0
    %1033 = vmatpush1.msra.mxu0 0.0
    %1034 = vmatprep.subr.mxu0 0.0
    %1035 = vmatpush1.msra.mxu0 0.0
    %1036 = vmatprep.subr.mxu0 0.0
    %1037 = vmatpush1.msra.mxu0 0.0
    %1038 = vmatprep.subr.mxu0 0.0
    %1039 = vmatpush1.msra.mxu0 0.0
    %1040 = vmatprep.subr.mxu0 0.0
    %1041 = vmatpush1.msra.mxu0 0.0
    %1042 = vmatprep.subr.mxu0 0.0
    %1043 = vmatpush1.msra.mxu0 0.0
    %1044 = vmatprep.subr.mxu0 0.0
    %1045 = vmatpush1.msra.mxu0 0.0
    %1046 = vmatprep.subr.mxu0 0.0
    %1047 = vmatpush1.msra.mxu0 0.0
    %1048 = vmatprep.subr.mxu0 0.0
    %1049 = vmatpush1.msra.mxu0 0.0
    %1050 = vmatprep.subr.mxu0 0.0
    %1051 = vmatpush1.msra.mxu0 0.0
    %1052 = vmatprep.subr.mxu0 0.0
    %1053 = vmatpush1.msra.mxu0 0.0
    %1054 = vmatprep.subr.mxu0 0.0
    %1055 = vmatpush1.msra.mxu0 0.0
    %1056 = vmatprep.subr.mxu0 0.0
    %1057 = vmatpush1.msra.mxu0 0.0
    %1058 = vmatprep.subr.mxu0 0.0
    %1059 = vmatpush1.msra.mxu0 0.0
    %1060 = vmatprep.subr.mxu0 0.0
    %1061 = vmatpush1.msra.mxu0 0.0
    %1062 = vmatprep.subr.mxu0 0.0
    %1063 = vmatpush1.msra.mxu0 0.0
    %1064 = vmatprep.subr.mxu0 0.0
    %1065 = vmatpush1.msra.mxu0 0.0
    %1066 = vmatprep.subr.mxu0 0.0
    %1067 = vmatpush1.msra.mxu0 0.0
    %1068 = vmatprep.subr.mxu0 0.0
    %1069 = vmatpush1.msra.mxu0 0.0
    %1070 = vmatprep.subr.mxu0 0.0
    %1071 = vmatpush1.msra.mxu0 0.0
    %1072 = vmatprep.subr.mxu0 0.0
    %1073 = vmatpush1.msra.mxu0 0.0
    %1074 = vmatprep.mubr.f32.mxu0 0.0
    %1075 = vmatmul.mubr.f32.gmra.mrb[0].mxu0 %v1008
    %v1076 = vpop.f32.mrb[0].mxu0
    %v1077 = vadd.f32 0.0, %v1076
    %v1078 = vpop.f32.mrb[0].mxu0
    %1079 = vdwg.mxu0
    %1080 = vrot.lane.b32.xlu0 %v815, 96
    %v1081 = vpop.permute.xlu0 %1080
    %1082 = vrot.lane.b32.xlu0 %v816, 96
    %v1083 = vpop.permute.xlu0 %1082
    %v1087 = vsel %vm1006, %v991, 0
    %1089 = vmatprep.subr.mxu0 0.0
    %1090 = vmatpush1.msra.mxu0 %v1081
    %1091 = vmatprep.subr.mxu0 0.0
    %1092 = vmatpush1.msra.mxu0 %v1083
    %1093 = vmatprep.subr.mxu0 0.0
    %1094 = vmatpush1.msra.mxu0 0.0
    %1095 = vmatprep.subr.mxu0 0.0
    %1096 = vmatpush1.msra.mxu0 0.0
    %1097 = vmatprep.subr.mxu0 0.0
    %1098 = vmatpush1.msra.mxu0 0.0
    %1099 = vmatprep.subr.mxu0 0.0
    %1100 = vmatpush1.msra.mxu0 0.0
    %1101 = vmatprep.subr.mxu0 0.0
    %1102 = vmatpush1.msra.mxu0 0.0
    %1103 = vmatprep.subr.mxu0 0.0
    %1104 = vmatpush1.msra.mxu0 0.0
    %1105 = vmatprep.subr.mxu0 0.0
    %1106 = vmatpush1.msra.mxu0 0.0
    %1107 = vmatprep.subr.mxu0 0.0
    %1108 = vmatpush1.msra.mxu0 0.0
    %1109 = vmatprep.subr.mxu0 0.0
    %1110 = vmatpush1.msra.mxu0 0.0
    %1111 = vmatprep.subr.mxu0 0.0
    %1112 = vmatpush1.msra.mxu0 0.0
    %1113 = vmatprep.subr.mxu0 0.0
    %1114 = vmatpush1.msra.mxu0 0.0
    %1115 = vmatprep.subr.mxu0 0.0
    %1116 = vmatpush1.msra.mxu0 0.0
    %1117 = vmatprep.subr.mxu0 0.0
    %1118 = vmatpush1.msra.mxu0 0.0
    %1119 = vmatprep.subr.mxu0 0.0
    %1120 = vmatpush1.msra.mxu0 0.0
    %1121 = vmatprep.subr.mxu0 0.0
    %1122 = vmatpush1.msra.mxu0 0.0
    %1123 = vmatprep.subr.mxu0 0.0
    %1124 = vmatpush1.msra.mxu0 0.0
    %1125 = vmatprep.subr.mxu0 0.0
    %1126 = vmatpush1.msra.mxu0 0.0
    %1127 = vmatprep.subr.mxu0 0.0
    %1128 = vmatpush1.msra.mxu0 0.0
    %1129 = vmatprep.subr.mxu0 0.0
    %1130 = vmatpush1.msra.mxu0 0.0
    %1131 = vmatprep.subr.mxu0 0.0
    %1132 = vmatpush1.msra.mxu0 0.0
    %1133 = vmatprep.subr.mxu0 0.0
    %1134 = vmatpush1.msra.mxu0 0.0
    %1135 = vmatprep.subr.mxu0 0.0
    %1136 = vmatpush1.msra.mxu0 0.0
    %1137 = vmatprep.subr.mxu0 0.0
    %1138 = vmatpush1.msra.mxu0 0.0
    %1139 = vmatprep.subr.mxu0 0.0
    %1140 = vmatpush1.msra.mxu0 0.0
    %1141 = vmatprep.subr.mxu0 0.0
    %1142 = vmatpush1.msra.mxu0 0.0
    %1143 = vmatprep.subr.mxu0 0.0
    %1144 = vmatpush1.msra.mxu0 0.0
    %1145 = vmatprep.subr.mxu0 0.0
    %1146 = vmatpush1.msra.mxu0 0.0
    %1147 = vmatprep.subr.mxu0 0.0
    %1148 = vmatpush1.msra.mxu0 0.0
    %1149 = vmatprep.subr.mxu0 0.0
    %1150 = vmatpush1.msra.mxu0 0.0
    %1151 = vmatprep.subr.mxu0 0.0
    %1152 = vmatpush1.msra.mxu0 0.0
    %1153 = vmatprep.mubr.f32.mxu0 0.0
    %1154 = vmatmul.mubr.f32.gmra.mrb[0].mxu0 %v1087
    %v1155 = vpop.f32.mrb[0].mxu0
    %v1156 = vadd.f32 0.0, %v1155
    %v1157 = vpop.f32.mrb[0].mxu0
    %1158 = vdwg.mxu0
    %v1159 = vmul.f32 %v1077, %v998
    %v1160 = vmul.f32 %v1156, %v999
    %1161 = vrot.lane.b32.xlu0 %v799, 120
    %v1162 = vpop.permute.xlu0 %1161
    %1163 = vrot.lane.b32.xlu0 %v813, 120
    %v1164 = vpop.permute.xlu0 %1163
    %1165 = vrot.lane.b32.xlu0 %v814, 120
    %v1166 = vpop.permute.xlu0 %1165
    %v1167 = vsel %vm818, %v1162, 0
    %v1169 = vsel %vm818, %v1164, 0
    %v1171 = vsel %vm818, %v1166, 0
    %1173 = vmatprep.subr.mxu0 0.0
    %1174 = vmatpush1.xpose.msra.mxu0 %v1169
    %1175 = vmatprep.subr.mxu0 0.0
    %1176 = vmatpush1.xpose.msra.mxu0 %v1171
    %1177 = vmatprep.subr.mxu0 0.0
    %1178 = vmatpush1.xpose.msra.mxu0 0.0
    %1179 = vmatprep.subr.mxu0 0.0
    %1180 = vmatpush1.xpose.msra.mxu0 0.0
    %1181 = vmatprep.subr.mxu0 0.0
    %1182 = vmatpush1.xpose.msra.mxu0 0.0
    %1183 = vmatprep.subr.mxu0 0.0
    %1184 = vmatpush1.xpose.msra.mxu0 0.0
    %1185 = vmatprep.subr.mxu0 0.0
    %1186 = vmatpush1.xpose.msra.mxu0 0.0
    %1187 = vmatprep.subr.mxu0 0.0
    %1188 = vmatpush1.xpose.msra.mxu0 0.0
    %1189 = vmatprep.subr.mxu0 0.0
    %1190 = vmatpush1.xpose.msra.mxu0 0.0
    %1191 = vmatprep.subr.mxu0 0.0
    %1192 = vmatpush1.xpose.msra.mxu0 0.0
    %1193 = vmatprep.subr.mxu0 0.0
    %1194 = vmatpush1.xpose.msra.mxu0 0.0
    %1195 = vmatprep.subr.mxu0 0.0
    %1196 = vmatpush1.xpose.msra.mxu0 0.0
    %1197 = vmatprep.subr.mxu0 0.0
    %1198 = vmatpush1.xpose.msra.mxu0 0.0
    %1199 = vmatprep.subr.mxu0 0.0
    %1200 = vmatpush1.xpose.msra.mxu0 0.0
    %1201 = vmatprep.subr.mxu0 0.0
    %1202 = vmatpush1.xpose.msra.mxu0 0.0
    %1203 = vmatprep.subr.mxu0 0.0
    %1204 = vmatpush1.xpose.msra.mxu0 0.0
    %1205 = vmatprep.subr.mxu0 0.0
    %1206 = vmatpush1.xpose.msra.mxu0 0.0
    %1207 = vmatprep.subr.mxu0 0.0
    %1208 = vmatpush1.xpose.msra.mxu0 0.0
    %1209 = vmatprep.subr.mxu0 0.0
    %1210 = vmatpush1.xpose.msra.mxu0 0.0
    %1211 = vmatprep.subr.mxu0 0.0
    %1212 = vmatpush1.xpose.msra.mxu0 0.0
    %1213 = vmatprep.subr.mxu0 0.0
    %1214 = vmatpush1.xpose.msra.mxu0 0.0
    %1215 = vmatprep.subr.mxu0 0.0
    %1216 = vmatpush1.xpose.msra.mxu0 0.0
    %1217 = vmatprep.subr.mxu0 0.0
    %1218 = vmatpush1.xpose.msra.mxu0 0.0
    %1219 = vmatprep.subr.mxu0 0.0
    %1220 = vmatpush1.xpose.msra.mxu0 0.0
    %1221 = vmatprep.subr.mxu0 0.0
    %1222 = vmatpush1.xpose.msra.mxu0 0.0
    %1223 = vmatprep.subr.mxu0 0.0
    %1224 = vmatpush1.xpose.msra.mxu0 0.0
    %1225 = vmatprep.subr.mxu0 0.0
    %1226 = vmatpush1.xpose.msra.mxu0 0.0
    %1227 = vmatprep.subr.mxu0 0.0
    %1228 = vmatpush1.xpose.msra.mxu0 0.0
    %1229 = vmatprep.subr.mxu0 0.0
    %1230 = vmatpush1.xpose.msra.mxu0 0.0
    %1231 = vmatprep.subr.mxu0 0.0
    %1232 = vmatpush1.xpose.msra.mxu0 0.0
    %1233 = vmatprep.subr.mxu0 0.0
    %1234 = vmatpush1.xpose.msra.mxu0 0.0
    %1235 = vmatprep.subr.mxu0 0.0
    %1236 = vmatpush1.xpose.msra.mxu0 0.0
    %1237 = vmatprep.mubr.f32.mxu0 0.0
    %1238 = vmatmul.mubr.f32.gmra.mrb[0].mxu0 %v1167
    %v1239 = vpop.f32.mrb[0].mxu0
    %v1240 = vadd.f32 0.0, %v1239
    %v1241 = vpop.f32.mrb[0].mxu0
    %1242 = vdwg.mxu0
    %1243 = vrot.lane.b32.xlu0 %v803, 120
    %v1244 = vpop.permute.xlu0 %1243
    %1245 = vrot.lane.b32.xlu0 %v815, 120
    %v1246 = vpop.permute.xlu0 %1245
    %1247 = vrot.lane.b32.xlu0 %v816, 120
    %v1248 = vpop.permute.xlu0 %1247
    %v1249 = vsel %vm818, %v1244, 0
    %v1251 = vsel %vm818, %v1246, 0
    %v1253 = vsel %vm818, %v1248, 0
    %1255 = vmatprep.subr.mxu0 0.0
    %1256 = vmatpush1.xpose.msra.mxu0 %v1251
    %1257 = vmatprep.subr.mxu0 0.0
    %1258 = vmatpush1.xpose.msra.mxu0 %v1253
    %1259 = vmatprep.subr.mxu0 0.0
    %1260 = vmatpush1.xpose.msra.mxu0 0.0
    %1261 = vmatprep.subr.mxu0 0.0
    %1262 = vmatpush1.xpose.msra.mxu0 0.0
    %1263 = vmatprep.subr.mxu0 0.0
    %1264 = vmatpush1.xpose.msra.mxu0 0.0
    %1265 = vmatprep.subr.mxu0 0.0
    %1266 = vmatpush1.xpose.msra.mxu0 0.0
    %1267 = vmatprep.subr.mxu0 0.0
    %1268 = vmatpush1.xpose.msra.mxu0 0.0
    %1269 = vmatprep.subr.mxu0 0.0
    %1270 = vmatpush1.xpose.msra.mxu0 0.0
    %1271 = vmatprep.subr.mxu0 0.0
    %1272 = vmatpush1.xpose.msra.mxu0 0.0
    %1273 = vmatprep.subr.mxu0 0.0
    %1274 = vmatpush1.xpose.msra.mxu0 0.0
    %1275 = vmatprep.subr.mxu0 0.0
    %1276 = vmatpush1.xpose.msra.mxu0 0.0
    %1277 = vmatprep.subr.mxu0 0.0
    %1278 = vmatpush1.xpose.msra.mxu0 0.0
    %1279 = vmatprep.subr.mxu0 0.0
    %1280 = vmatpush1.xpose.msra.mxu0 0.0
    %1281 = vmatprep.subr.mxu0 0.0
    %1282 = vmatpush1.xpose.msra.mxu0 0.0
    %1283 = vmatprep.subr.mxu0 0.0
    %1284 = vmatpush1.xpose.msra.mxu0 0.0
    %1285 = vmatprep.subr.mxu0 0.0
    %1286 = vmatpush1.xpose.msra.mxu0 0.0
    %1287 = vmatprep.subr.mxu0 0.0
    %1288 = vmatpush1.xpose.msra.mxu0 0.0
    %1289 = vmatprep.subr.mxu0 0.0
    %1290 = vmatpush1.xpose.msra.mxu0 0.0
    %1291 = vmatprep.subr.mxu0 0.0
    %1292 = vmatpush1.xpose.msra.mxu0 0.0
    %1293 = vmatprep.subr.mxu0 0.0
    %1294 = vmatpush1.xpose.msra.mxu0 0.0
    %1295 = vmatprep.subr.mxu0 0.0
    %1296 = vmatpush1.xpose.msra.mxu0 0.0
    %1297 = vmatprep.subr.mxu0 0.0
    %1298 = vmatpush1.xpose.msra.mxu0 0.0
    %1299 = vmatprep.subr.mxu0 0.0
    %1300 = vmatpush1.xpose.msra.mxu0 0.0
    %1301 = vmatprep.subr.mxu0 0.0
    %1302 = vmatpush1.xpose.msra.mxu0 0.0
    %1303 = vmatprep.subr.mxu0 0.0
    %1304 = vmatpush1.xpose.msra.mxu0 0.0
    %1305 = vmatprep.subr.mxu0 0.0
    %1306 = vmatpush1.xpose.msra.mxu0 0.0
    %1307 = vmatprep.subr.mxu0 0.0
    %1308 = vmatpush1.xpose.msra.mxu0 0.0
    %1309 = vmatprep.subr.mxu0 0.0
    %1310 = vmatpush1.xpose.msra.mxu0 0.0
    %1311 = vmatprep.subr.mxu0 0.0
    %1312 = vmatpush1.xpose.msra.mxu0 0.0
    %1313 = vmatprep.subr.mxu0 0.0
    %1314 = vmatpush1.xpose.msra.mxu0 0.0
    %1315 = vmatprep.subr.mxu0 0.0
    %1316 = vmatpush1.xpose.msra.mxu0 0.0
    %1317 = vmatprep.subr.mxu0 0.0
    %1318 = vmatpush1.xpose.msra.mxu0 0.0
    %1319 = vmatprep.mubr.f32.mxu0 0.0
    %1320 = vmatmul.mubr.f32.gmra.mrb[0].mxu0 %v1249
    %v1321 = vpop.f32.mrb[0].mxu0
    %v1322 = vadd.f32 0.0, %v1321
    %v1323 = vpop.f32.mrb[0].mxu0
    %1324 = vdwg.mxu0
    %v1325 = vmul.f32 %v1240, 0.35355338
    %v1326 = vmul.f32 %v1322, 0.35355338
    %v1327 = vsel %vm817, %v1325, -1e+30
    %v1328 = vsel %vm817, %v1326, -1e+30
    %v1329 = vsel %vm979, %v1327, -inf
    %1330 = vmax.xlane.f32.xlu0 %v1329
    %v1331 = vpop.xlane.xlu0 %1330
    %v1332 = vsel %vm979, %v1328, -inf
    %1333 = vmax.xlane.f32.xlu0 %v1332
    %v1334 = vpop.xlane.xlu0 %1333
    %v1335 = vsub.f32 %v1327, %v1331
    %v1336 = vsub.f32 %v1328, %v1334
    %v1337 = vmul.f32 %v1335, 1.442695
    %v1338 = vpow.pop %v1337
    %v1339 = vmul.f32 %v1336, 1.442695
    %v1340 = vpow.pop %v1339
    %v1341 = vsel %vm979, %v1338, 0.0
    %1342 = vadd.xlane.f32.xlu0 %v1341
    %v1343 = vpop.xlane.xlu0 %1342
    %v1344 = vsel %vm979, %v1340, 0.0
    %1345 = vadd.xlane.f32.xlu0 %v1344
    %v1346 = vpop.xlane.xlu0 %1345
    %v1347 = vrcp.pop %v1343
    %v1348 = vrcp.pop %v1346
    %1349 = vrot.lane.b32.xlu0 %v813, 88
    %v1350 = vpop.permute.xlu0 %1349
    %1351 = vrot.lane.b32.xlu0 %v814, 88
    %v1352 = vpop.permute.xlu0 %1351
    %v1356 = vsel %vm1006, %v1338, 0
    %1358 = vmatprep.subr.mxu0 0.0
    %1359 = vmatpush1.msra.mxu0 %v1350
    %1360 = vmatprep.subr.mxu0 0.0
    %1361 = vmatpush1.msra.mxu0 %v1352
    %1362 = vmatprep.subr.mxu0 0.0
    %1363 = vmatpush1.msra.mxu0 0.0
    %1364 = vmatprep.subr.mxu0 0.0
    %1365 = vmatpush1.msra.mxu0 0.0
    %1366 = vmatprep.subr.mxu0 0.0
    %1367 = vmatpush1.msra.mxu0 0.0
    %1368 = vmatprep.subr.mxu0 0.0
    %1369 = vmatpush1.msra.mxu0 0.0
    %1370 = vmatprep.subr.mxu0 0.0
    %1371 = vmatpush1.msra.mxu0 0.0
    %1372 = vmatprep.subr.mxu0 0.0
    %1373 = vmatpush1.msra.mxu0 0.0
    %1374 = vmatprep.subr.mxu0 0.0
    %1375 = vmatpush1.msra.mxu0 0.0
    %1376 = vmatprep.subr.mxu0 0.0
    %1377 = vmatpush1.msra.mxu0 0.0
    %1378 = vmatprep.subr.mxu0 0.0
    %1379 = vmatpush1.msra.mxu0 0.0
    %1380 = vmatprep.subr.mxu0 0.0
    %1381 = vmatpush1.msra.mxu0 0.0
    %1382 = vmatprep.subr.mxu0 0.0
    %1383 = vmatpush1.msra.mxu0 0.0
    %1384 = vmatprep.subr.mxu0 0.0
    %1385 = vmatpush1.msra.mxu0 0.0
    %1386 = vmatprep.subr.mxu0 0.0
    %1387 = vmatpush1.msra.mxu0 0.0
    %1388 = vmatprep.subr.mxu0 0.0
    %1389 = vmatpush1.msra.mxu0 0.0
    %1390 = vmatprep.subr.mxu0 0.0
    %1391 = vmatpush1.msra.mxu0 0.0
    %1392 = vmatprep.subr.mxu0 0.0
    %1393 = vmatpush1.msra.mxu0 0.0
    %1394 = vmatprep.subr.mxu0 0.0
    %1395 = vmatpush1.msra.mxu0 0.0
    %1396 = vmatprep.subr.mxu0 0.0
    %1397 = vmatpush1.msra.mxu0 0.0
    %1398 = vmatprep.subr.mxu0 0.0
    %1399 = vmatpush1.msra.mxu0 0.0
    %1400 = vmatprep.subr.mxu0 0.0
    %1401 = vmatpush1.msra.mxu0 0.0
    %1402 = vmatprep.subr.mxu0 0.0
    %1403 = vmatpush1.msra.mxu0 0.0
    %1404 = vmatprep.subr.mxu0 0.0
    %1405 = vmatpush1.msra.mxu0 0.0
    %1406 = vmatprep.subr.mxu0 0.0
    %1407 = vmatpush1.msra.mxu0 0.0
    %1408 = vmatprep.subr.mxu0 0.0
    %1409 = vmatpush1.msra.mxu0 0.0
    %1410 = vmatprep.subr.mxu0 0.0
    %1411 = vmatpush1.msra.mxu0 0.0
    %1412 = vmatprep.subr.mxu0 0.0
    %1413 = vmatpush1.msra.mxu0 0.0
    %1414 = vmatprep.subr.mxu0 0.0
    %1415 = vmatpush1.msra.mxu0 0.0
    %1416 = vmatprep.subr.mxu0 0.0
    %1417 = vmatpush1.msra.mxu0 0.0
    %1418 = vmatprep.subr.mxu0 0.0
    %1419 = vmatpush1.msra.mxu0 0.0
    %1420 = vmatprep.subr.mxu0 0.0
    %1421 = vmatpush1.msra.mxu0 0.0
    %1422 = vmatprep.mubr.f32.mxu0 0.0
    %1423 = vmatmul.mubr.f32.gmra.mrb[0].mxu0 %v1356
    %v1424 = vpop.f32.mrb[0].mxu0
    %v1425 = vadd.f32 0.0, %v1424
    %v1426 = vpop.f32.mrb[0].mxu0
    %1427 = vdwg.mxu0
    %1428 = vrot.lane.b32.xlu0 %v815, 88
    %v1429 = vpop.permute.xlu0 %1428
    %1430 = vrot.lane.b32.xlu0 %v816, 88
    %v1431 = vpop.permute.xlu0 %1430
    %v1435 = vsel %vm1006, %v1340, 0
    %1437 = vmatprep.subr.mxu0 0.0
    %1438 = vmatpush1.msra.mxu0 %v1429
    %1439 = vmatprep.subr.mxu0 0.0
    %1440 = vmatpush1.msra.mxu0 %v1431
    %1441 = vmatprep.subr.mxu0 0.0
    %1442 = vmatpush1.msra.mxu0 0.0
    %1443 = vmatprep.subr.mxu0 0.0
    %1444 = vmatpush1.msra.mxu0 0.0
    %1445 = vmatprep.subr.mxu0 0.0
    %1446 = vmatpush1.msra.mxu0 0.0
    %1447 = vmatprep.subr.mxu0 0.0
    %1448 = vmatpush1.msra.mxu0 0.0
    %1449 = vmatprep.subr.mxu0 0.0
    %1450 = vmatpush1.msra.mxu0 0.0
    %1451 = vmatprep.subr.mxu0 0.0
    %1452 = vmatpush1.msra.mxu0 0.0
    %1453 = vmatprep.subr.mxu0 0.0
    %1454 = vmatpush1.msra.mxu0 0.0
    %1455 = vmatprep.subr.mxu0 0.0
    %1456 = vmatpush1.msra.mxu0 0.0
    %1457 = vmatprep.subr.mxu0 0.0
    %1458 = vmatpush1.msra.mxu0 0.0
    %1459 = vmatprep.subr.mxu0 0.0
    %1460 = vmatpush1.msra.mxu0 0.0
    %1461 = vmatprep.subr.mxu0 0.0
    %1462 = vmatpush1.msra.mxu0 0.0
    %1463 = vmatprep.subr.mxu0 0.0
    %1464 = vmatpush1.msra.mxu0 0.0
    %1465 = vmatprep.subr.mxu0 0.0
    %1466 = vmatpush1.msra.mxu0 0.0
    %1467 = vmatprep.subr.mxu0 0.0
    %1468 = vmatpush1.msra.mxu0 0.0
    %1469 = vmatprep.subr.mxu0 0.0
    %1470 = vmatpush1.msra.mxu0 0.0
    %1471 = vmatprep.subr.mxu0 0.0
    %1472 = vmatpush1.msra.mxu0 0.0
    %1473 = vmatprep.subr.mxu0 0.0
    %1474 = vmatpush1.msra.mxu0 0.0
    %1475 = vmatprep.subr.mxu0 0.0
    %1476 = vmatpush1.msra.mxu0 0.0
    %1477 = vmatprep.subr.mxu0 0.0
    %1478 = vmatpush1.msra.mxu0 0.0
    %1479 = vmatprep.subr.mxu0 0.0
    %1480 = vmatpush1.msra.mxu0 0.0
    %1481 = vmatprep.subr.mxu0 0.0
    %1482 = vmatpush1.msra.mxu0 0.0
    %1483 = vmatprep.subr.mxu0 0.0
    %1484 = vmatpush1.msra.mxu0 0.0
    %1485 = vmatprep.subr.mxu0 0.0
    %1486 = vmatpush1.msra.mxu0 0.0
    %1487 = vmatprep.subr.mxu0 0.0
    %1488 = vmatpush1.msra.mxu0 0.0
    %1489 = vmatprep.subr.mxu0 0.0
    %1490 = vmatpush1.msra.mxu0 0.0
    %1491 = vmatprep.subr.mxu0 0.0
    %1492 = vmatpush1.msra.mxu0 0.0
    %1493 = vmatprep.subr.mxu0 0.0
    %1494 = vmatpush1.msra.mxu0 0.0
    %1495 = vmatprep.subr.mxu0 0.0
    %1496 = vmatpush1.msra.mxu0 0.0
    %1497 = vmatprep.subr.mxu0 0.0
    %1498 = vmatpush1.msra.mxu0 0.0
    %1499 = vmatprep.subr.mxu0 0.0
    %1500 = vmatpush1.msra.mxu0 0.0
    %1501 = vmatprep.mubr.f32.mxu0 0.0
    %1502 = vmatmul.mubr.f32.gmra.mrb[0].mxu0 %v1435
    %v1503 = vpop.f32.mrb[0].mxu0
    %v1504 = vadd.f32 0.0, %v1503
    %v1505 = vpop.f32.mrb[0].mxu0
    %1506 = vdwg.mxu0
    %v1507 = vmul.f32 %v1425, %v1347
    %v1508 = vmul.f32 %v1504, %v1348
    %1509 = vrot.lane.b32.xlu0 %v799, 112
    %v1510 = vpop.permute.xlu0 %1509
    %1511 = vrot.lane.b32.xlu0 %v813, 112
    %v1512 = vpop.permute.xlu0 %1511
    %1513 = vrot.lane.b32.xlu0 %v814, 112
    %v1514 = vpop.permute.xlu0 %1513
    %v1515 = vsel %vm818, %v1510, 0
    %v1517 = vsel %vm818, %v1512, 0
    %v1519 = vsel %vm818, %v1514, 0
    %1521 = vmatprep.subr.mxu0 0.0
    %1522 = vmatpush1.xpose.msra.mxu0 %v1517
    %1523 = vmatprep.subr.mxu0 0.0
    %1524 = vmatpush1.xpose.msra.mxu0 %v1519
    %1525 = vmatprep.subr.mxu0 0.0
    %1526 = vmatpush1.xpose.msra.mxu0 0.0
    %1527 = vmatprep.subr.mxu0 0.0
    %1528 = vmatpush1.xpose.msra.mxu0 0.0
    %1529 = vmatprep.subr.mxu0 0.0
    %1530 = vmatpush1.xpose.msra.mxu0 0.0
    %1531 = vmatprep.subr.mxu0 0.0
    %1532 = vmatpush1.xpose.msra.mxu0 0.0
    %1533 = vmatprep.subr.mxu0 0.0
    %1534 = vmatpush1.xpose.msra.mxu0 0.0
    %1535 = vmatprep.subr.mxu0 0.0
    %1536 = vmatpush1.xpose.msra.mxu0 0.0
    %1537 = vmatprep.subr.mxu0 0.0
    %1538 = vmatpush1.xpose.msra.mxu0 0.0
    %1539 = vmatprep.subr.mxu0 0.0
    %1540 = vmatpush1.xpose.msra.mxu0 0.0
    %1541 = vmatprep.subr.mxu0 0.0
    %1542 = vmatpush1.xpose.msra.mxu0 0.0
    %1543 = vmatprep.subr.mxu0 0.0
    %1544 = vmatpush1.xpose.msra.mxu0 0.0
    %1545 = vmatprep.subr.mxu0 0.0
    %1546 = vmatpush1.xpose.msra.mxu0 0.0
    %1547 = vmatprep.subr.mxu0 0.0
    %1548 = vmatpush1.xpose.msra.mxu0 0.0
    %1549 = vmatprep.subr.mxu0 0.0
    %1550 = vmatpush1.xpose.msra.mxu0 0.0
    %1551 = vmatprep.subr.mxu0 0.0
    %1552 = vmatpush1.xpose.msra.mxu0 0.0
    %1553 = vmatprep.subr.mxu0 0.0
    %1554 = vmatpush1.xpose.msra.mxu0 0.0
    %1555 = vmatprep.subr.mxu0 0.0
    %1556 = vmatpush1.xpose.msra.mxu0 0.0
    %1557 = vmatprep.subr.mxu0 0.0
    %1558 = vmatpush1.xpose.msra.mxu0 0.0
    %1559 = vmatprep.subr.mxu0 0.0
    %1560 = vmatpush1.xpose.msra.mxu0 0.0
    %1561 = vmatprep.subr.mxu0 0.0
    %1562 = vmatpush1.xpose.msra.mxu0 0.0
    %1563 = vmatprep.subr.mxu0 0.0
    %1564 = vmatpush1.xpose.msra.mxu0 0.0
    %1565 = vmatprep.subr.mxu0 0.0
    %1566 = vmatpush1.xpose.msra.mxu0 0.0
    %1567 = vmatprep.subr.mxu0 0.0
    %1568 = vmatpush1.xpose.msra.mxu0 0.0
    %1569 = vmatprep.subr.mxu0 0.0
    %1570 = vmatpush1.xpose.msra.mxu0 0.0
    %1571 = vmatprep.subr.mxu0 0.0
    %1572 = vmatpush1.xpose.msra.mxu0 0.0
    %1573 = vmatprep.subr.mxu0 0.0
    %1574 = vmatpush1.xpose.msra.mxu0 0.0
    %1575 = vmatprep.subr.mxu0 0.0
    %1576 = vmatpush1.xpose.msra.mxu0 0.0
    %1577 = vmatprep.subr.mxu0 0.0
    %1578 = vmatpush1.xpose.msra.mxu0 0.0
    %1579 = vmatprep.subr.mxu0 0.0
    %1580 = vmatpush1.xpose.msra.mxu0 0.0
    %1581 = vmatprep.subr.mxu0 0.0
    %1582 = vmatpush1.xpose.msra.mxu0 0.0
    %1583 = vmatprep.subr.mxu0 0.0
    %1584 = vmatpush1.xpose.msra.mxu0 0.0
    %1585 = vmatprep.mubr.f32.mxu0 0.0
    %1586 = vmatmul.mubr.f32.gmra.mrb[0].mxu0 %v1515
    %v1587 = vpop.f32.mrb[0].mxu0
    %v1588 = vadd.f32 0.0, %v1587
    %v1589 = vpop.f32.mrb[0].mxu0
    %1590 = vdwg.mxu0
    %1591 = vrot.lane.b32.xlu0 %v803, 112
    %v1592 = vpop.permute.xlu0 %1591
    %1593 = vrot.lane.b32.xlu0 %v815, 112
    %v1594 = vpop.permute.xlu0 %1593
    %1595 = vrot.lane.b32.xlu0 %v816, 112
    %v1596 = vpop.permute.xlu0 %1595
    %v1597 = vsel %vm818, %v1592, 0
    %v1599 = vsel %vm818, %v1594, 0
    %v1601 = vsel %vm818, %v1596, 0
    %1603 = vmatprep.subr.mxu0 0.0
    %1604 = vmatpush1.xpose.msra.mxu0 %v1599
    %1605 = vmatprep.subr.mxu0 0.0
    %1606 = vmatpush1.xpose.msra.mxu0 %v1601
    %1607 = vmatprep.subr.mxu0 0.0
    %1608 = vmatpush1.xpose.msra.mxu0 0.0
    %1609 = vmatprep.subr.mxu0 0.0
    %1610 = vmatpush1.xpose.msra.mxu0 0.0
    %1611 = vmatprep.subr.mxu0 0.0
    %1612 = vmatpush1.xpose.msra.mxu0 0.0
    %1613 = vmatprep.subr.mxu0 0.0
    %1614 = vmatpush1.xpose.msra.mxu0 0.0
    %1615 = vmatprep.subr.mxu0 0.0
    %1616 = vmatpush1.xpose.msra.mxu0 0.0
    %1617 = vmatprep.subr.mxu0 0.0
    %1618 = vmatpush1.xpose.msra.mxu0 0.0
    %1619 = vmatprep.subr.mxu0 0.0
    %1620 = vmatpush1.xpose.msra.mxu0 0.0
    %1621 = vmatprep.subr.mxu0 0.0
    %1622 = vmatpush1.xpose.msra.mxu0 0.0
    %1623 = vmatprep.subr.mxu0 0.0
    %1624 = vmatpush1.xpose.msra.mxu0 0.0
    %1625 = vmatprep.subr.mxu0 0.0
    %1626 = vmatpush1.xpose.msra.mxu0 0.0
    %1627 = vmatprep.subr.mxu0 0.0
    %1628 = vmatpush1.xpose.msra.mxu0 0.0
    %1629 = vmatprep.subr.mxu0 0.0
    %1630 = vmatpush1.xpose.msra.mxu0 0.0
    %1631 = vmatprep.subr.mxu0 0.0
    %1632 = vmatpush1.xpose.msra.mxu0 0.0
    %1633 = vmatprep.subr.mxu0 0.0
    %1634 = vmatpush1.xpose.msra.mxu0 0.0
    %1635 = vmatprep.subr.mxu0 0.0
    %1636 = vmatpush1.xpose.msra.mxu0 0.0
    %1637 = vmatprep.subr.mxu0 0.0
    %1638 = vmatpush1.xpose.msra.mxu0 0.0
    %1639 = vmatprep.subr.mxu0 0.0
    %1640 = vmatpush1.xpose.msra.mxu0 0.0
    %1641 = vmatprep.subr.mxu0 0.0
    %1642 = vmatpush1.xpose.msra.mxu0 0.0
    %1643 = vmatprep.subr.mxu0 0.0
    %1644 = vmatpush1.xpose.msra.mxu0 0.0
    %1645 = vmatprep.subr.mxu0 0.0
    %1646 = vmatpush1.xpose.msra.mxu0 0.0
    %1647 = vmatprep.subr.mxu0 0.0
    %1648 = vmatpush1.xpose.msra.mxu0 0.0
    %1649 = vmatprep.subr.mxu0 0.0
    %1650 = vmatpush1.xpose.msra.mxu0 0.0
    %1651 = vmatprep.subr.mxu0 0.0
    %1652 = vmatpush1.xpose.msra.mxu0 0.0
    %1653 = vmatprep.subr.mxu0 0.0
    %1654 = vmatpush1.xpose.msra.mxu0 0.0
    %1655 = vmatprep.subr.mxu0 0.0
    %1656 = vmatpush1.xpose.msra.mxu0 0.0
    %1657 = vmatprep.subr.mxu0 0.0
    %1658 = vmatpush1.xpose.msra.mxu0 0.0
    %1659 = vmatprep.subr.mxu0 0.0
    %1660 = vmatpush1.xpose.msra.mxu0 0.0
    %1661 = vmatprep.subr.mxu0 0.0
    %1662 = vmatpush1.xpose.msra.mxu0 0.0
    %1663 = vmatprep.subr.mxu0 0.0
    %1664 = vmatpush1.xpose.msra.mxu0 0.0
    %1665 = vmatprep.subr.mxu0 0.0
    %1666 = vmatpush1.xpose.msra.mxu0 0.0
    %1667 = vmatprep.mubr.f32.mxu0 0.0
    %1668 = vmatmul.mubr.f32.gmra.mrb[0].mxu0 %v1597
    %v1669 = vpop.f32.mrb[0].mxu0
    %v1670 = vadd.f32 0.0, %v1669
    %v1671 = vpop.f32.mrb[0].mxu0
    %1672 = vdwg.mxu0
    %v1673 = vmul.f32 %v1588, 0.35355338
    %v1674 = vmul.f32 %v1670, 0.35355338
    %v1675 = vsel %vm817, %v1673, -1e+30
    %v1676 = vsel %vm817, %v1674, -1e+30
    %v1677 = vsel %vm979, %v1675, -inf
    %1678 = vmax.xlane.f32.xlu0 %v1677
    %v1679 = vpop.xlane.xlu0 %1678
    %v1680 = vsel %vm979, %v1676, -inf
    %1681 = vmax.xlane.f32.xlu0 %v1680
    %v1682 = vpop.xlane.xlu0 %1681
    %v1683 = vsub.f32 %v1675, %v1679
    %v1684 = vsub.f32 %v1676, %v1682
    %v1685 = vmul.f32 %v1683, 1.442695
    %v1686 = vpow.pop %v1685
    %v1687 = vmul.f32 %v1684, 1.442695
    %v1688 = vpow.pop %v1687
    %v1689 = vsel %vm979, %v1686, 0.0
    %1690 = vadd.xlane.f32.xlu0 %v1689
    %v1691 = vpop.xlane.xlu0 %1690
    %v1692 = vsel %vm979, %v1688, 0.0
    %1693 = vadd.xlane.f32.xlu0 %v1692
    %v1694 = vpop.xlane.xlu0 %1693
    %v1695 = vrcp.pop %v1691
    %v1696 = vrcp.pop %v1694
    %1697 = vrot.lane.b32.xlu0 %v813, 80
    %v1698 = vpop.permute.xlu0 %1697
    %1699 = vrot.lane.b32.xlu0 %v814, 80
    %v1700 = vpop.permute.xlu0 %1699
    %v1704 = vsel %vm1006, %v1686, 0
    %1706 = vmatprep.subr.mxu0 0.0
    %1707 = vmatpush1.msra.mxu0 %v1698
    %1708 = vmatprep.subr.mxu0 0.0
    %1709 = vmatpush1.msra.mxu0 %v1700
    %1710 = vmatprep.subr.mxu0 0.0
    %1711 = vmatpush1.msra.mxu0 0.0
    %1712 = vmatprep.subr.mxu0 0.0
    %1713 = vmatpush1.msra.mxu0 0.0
    %1714 = vmatprep.subr.mxu0 0.0
    %1715 = vmatpush1.msra.mxu0 0.0
    %1716 = vmatprep.subr.mxu0 0.0
    %1717 = vmatpush1.msra.mxu0 0.0
    %1718 = vmatprep.subr.mxu0 0.0
    %1719 = vmatpush1.msra.mxu0 0.0
    %1720 = vmatprep.subr.mxu0 0.0
    %1721 = vmatpush1.msra.mxu0 0.0
    %1722 = vmatprep.subr.mxu0 0.0
    %1723 = vmatpush1.msra.mxu0 0.0
    %1724 = vmatprep.subr.mxu0 0.0
    %1725 = vmatpush1.msra.mxu0 0.0
    %1726 = vmatprep.subr.mxu0 0.0
    %1727 = vmatpush1.msra.mxu0 0.0
    %1728 = vmatprep.subr.mxu0 0.0
    %1729 = vmatpush1.msra.mxu0 0.0
    %1730 = vmatprep.subr.mxu0 0.0
    %1731 = vmatpush1.msra.mxu0 0.0
    %1732 = vmatprep.subr.mxu0 0.0
    %1733 = vmatpush1.msra.mxu0 0.0
    %1734 = vmatprep.subr.mxu0 0.0
    %1735 = vmatpush1.msra.mxu0 0.0
    %1736 = vmatprep.subr.mxu0 0.0
    %1737 = vmatpush1.msra.mxu0 0.0
    %1738 = vmatprep.subr.mxu0 0.0
    %1739 = vmatpush1.msra.mxu0 0.0
    %1740 = vmatprep.subr.mxu0 0.0
    %1741 = vmatpush1.msra.mxu0 0.0
    %1742 = vmatprep.subr.mxu0 0.0
    %1743 = vmatpush1.msra.mxu0 0.0
    %1744 = vmatprep.subr.mxu0 0.0
    %1745 = vmatpush1.msra.mxu0 0.0
    %1746 = vmatprep.subr.mxu0 0.0
    %1747 = vmatpush1.msra.mxu0 0.0
    %1748 = vmatprep.subr.mxu0 0.0
    %1749 = vmatpush1.msra.mxu0 0.0
    %1750 = vmatprep.subr.mxu0 0.0
    %1751 = vmatpush1.msra.mxu0 0.0
    %1752 = vmatprep.subr.mxu0 0.0
    %1753 = vmatpush1.msra.mxu0 0.0
    %1754 = vmatprep.subr.mxu0 0.0
    %1755 = vmatpush1.msra.mxu0 0.0
    %1756 = vmatprep.subr.mxu0 0.0
    %1757 = vmatpush1.msra.mxu0 0.0
    %1758 = vmatprep.subr.mxu0 0.0
    %1759 = vmatpush1.msra.mxu0 0.0
    %1760 = vmatprep.subr.mxu0 0.0
    %1761 = vmatpush1.msra.mxu0 0.0
    %1762 = vmatprep.subr.mxu0 0.0
    %1763 = vmatpush1.msra.mxu0 0.0
    %1764 = vmatprep.subr.mxu0 0.0
    %1765 = vmatpush1.msra.mxu0 0.0
    %1766 = vmatprep.subr.mxu0 0.0
    %1767 = vmatpush1.msra.mxu0 0.0
    %1768 = vmatprep.subr.mxu0 0.0
    %1769 = vmatpush1.msra.mxu0 0.0
    %1770 = vmatprep.mubr.f32.mxu0 0.0
    %1771 = vmatmul.mubr.f32.gmra.mrb[0].mxu0 %v1704
    %v1772 = vpop.f32.mrb[0].mxu0
    %v1773 = vadd.f32 0.0, %v1772
    %v1774 = vpop.f32.mrb[0].mxu0
    %1775 = vdwg.mxu0
    %1776 = vrot.lane.b32.xlu0 %v815, 80
    %v1777 = vpop.permute.xlu0 %1776
    %1778 = vrot.lane.b32.xlu0 %v816, 80
    %v1779 = vpop.permute.xlu0 %1778
    %v1783 = vsel %vm1006, %v1688, 0
    %1785 = vmatprep.subr.mxu0 0.0
    %1786 = vmatpush1.msra.mxu0 %v1777
    %1787 = vmatprep.subr.mxu0 0.0
    %1788 = vmatpush1.msra.mxu0 %v1779
    %1789 = vmatprep.subr.mxu0 0.0
    %1790 = vmatpush1.msra.mxu0 0.0
    %1791 = vmatprep.subr.mxu0 0.0
    %1792 = vmatpush1.msra.mxu0 0.0
    %1793 = vmatprep.subr.mxu0 0.0
    %1794 = vmatpush1.msra.mxu0 0.0
    %1795 = vmatprep.subr.mxu0 0.0
    %1796 = vmatpush1.msra.mxu0 0.0
    %1797 = vmatprep.subr.mxu0 0.0
    %1798 = vmatpush1.msra.mxu0 0.0
    %1799 = vmatprep.subr.mxu0 0.0
    %1800 = vmatpush1.msra.mxu0 0.0
    %1801 = vmatprep.subr.mxu0 0.0
    %1802 = vmatpush1.msra.mxu0 0.0
    %1803 = vmatprep.subr.mxu0 0.0
    %1804 = vmatpush1.msra.mxu0 0.0
    %1805 = vmatprep.subr.mxu0 0.0
    %1806 = vmatpush1.msra.mxu0 0.0
    %1807 = vmatprep.subr.mxu0 0.0
    %1808 = vmatpush1.msra.mxu0 0.0
    %1809 = vmatprep.subr.mxu0 0.0
    %1810 = vmatpush1.msra.mxu0 0.0
    %1811 = vmatprep.subr.mxu0 0.0
    %1812 = vmatpush1.msra.mxu0 0.0
    %1813 = vmatprep.subr.mxu0 0.0
    %1814 = vmatpush1.msra.mxu0 0.0
    %1815 = vmatprep.subr.mxu0 0.0
    %1816 = vmatpush1.msra.mxu0 0.0
    %1817 = vmatprep.subr.mxu0 0.0
    %1818 = vmatpush1.msra.mxu0 0.0
    %1819 = vmatprep.subr.mxu0 0.0
    %1820 = vmatpush1.msra.mxu0 0.0
    %1821 = vmatprep.subr.mxu0 0.0
    %1822 = vmatpush1.msra.mxu0 0.0
    %1823 = vmatprep.subr.mxu0 0.0
    %1824 = vmatpush1.msra.mxu0 0.0
    %1825 = vmatprep.subr.mxu0 0.0
    %1826 = vmatpush1.msra.mxu0 0.0
    %1827 = vmatprep.subr.mxu0 0.0
    %1828 = vmatpush1.msra.mxu0 0.0
    %1829 = vmatprep.subr.mxu0 0.0
    %1830 = vmatpush1.msra.mxu0 0.0
    %1831 = vmatprep.subr.mxu0 0.0
    %1832 = vmatpush1.msra.mxu0 0.0
    %1833 = vmatprep.subr.mxu0 0.0
    %1834 = vmatpush1.msra.mxu0 0.0
    %1835 = vmatprep.subr.mxu0 0.0
    %1836 = vmatpush1.msra.mxu0 0.0
    %1837 = vmatprep.subr.mxu0 0.0
    %1838 = vmatpush1.msra.mxu0 0.0
    %1839 = vmatprep.subr.mxu0 0.0
    %1840 = vmatpush1.msra.mxu0 0.0
    %1841 = vmatprep.subr.mxu0 0.0
    %1842 = vmatpush1.msra.mxu0 0.0
    %1843 = vmatprep.subr.mxu0 0.0
    %1844 = vmatpush1.msra.mxu0 0.0
    %1845 = vmatprep.subr.mxu0 0.0
    %1846 = vmatpush1.msra.mxu0 0.0
    %1847 = vmatprep.subr.mxu0 0.0
    %1848 = vmatpush1.msra.mxu0 0.0
    %1849 = vmatprep.mubr.f32.mxu0 0.0
    %1850 = vmatmul.mubr.f32.gmra.mrb[0].mxu0 %v1783
    %v1851 = vpop.f32.mrb[0].mxu0
    %v1852 = vadd.f32 0.0, %v1851
    %v1853 = vpop.f32.mrb[0].mxu0
    %1854 = vdwg.mxu0
    %v1855 = vmul.f32 %v1773, %v1695
    %v1856 = vmul.f32 %v1852, %v1696
    %1857 = vrot.lane.b32.xlu0 %v799, 104
    %v1858 = vpop.permute.xlu0 %1857
    %1859 = vrot.lane.b32.xlu0 %v813, 104
    %v1860 = vpop.permute.xlu0 %1859
    %1861 = vrot.lane.b32.xlu0 %v814, 104
    %v1862 = vpop.permute.xlu0 %1861
    %v1863 = vsel %vm818, %v1858, 0
    %v1865 = vsel %vm818, %v1860, 0
    %v1867 = vsel %vm818, %v1862, 0
    %1869 = vmatprep.subr.mxu0 0.0
    %1870 = vmatpush1.xpose.msra.mxu0 %v1865
    %1871 = vmatprep.subr.mxu0 0.0
    %1872 = vmatpush1.xpose.msra.mxu0 %v1867
    %1873 = vmatprep.subr.mxu0 0.0
    %1874 = vmatpush1.xpose.msra.mxu0 0.0
    %1875 = vmatprep.subr.mxu0 0.0
    %1876 = vmatpush1.xpose.msra.mxu0 0.0
    %1877 = vmatprep.subr.mxu0 0.0
    %1878 = vmatpush1.xpose.msra.mxu0 0.0
    %1879 = vmatprep.subr.mxu0 0.0
    %1880 = vmatpush1.xpose.msra.mxu0 0.0
    %1881 = vmatprep.subr.mxu0 0.0
    %1882 = vmatpush1.xpose.msra.mxu0 0.0
    %1883 = vmatprep.subr.mxu0 0.0
    %1884 = vmatpush1.xpose.msra.mxu0 0.0
    %1885 = vmatprep.subr.mxu0 0.0
    %1886 = vmatpush1.xpose.msra.mxu0 0.0
    %1887 = vmatprep.subr.mxu0 0.0
    %1888 = vmatpush1.xpose.msra.mxu0 0.0
    %1889 = vmatprep.subr.mxu0 0.0
    %1890 = vmatpush1.xpose.msra.mxu0 0.0
    %1891 = vmatprep.subr.mxu0 0.0
    %1892 = vmatpush1.xpose.msra.mxu0 0.0
    %1893 = vmatprep.subr.mxu0 0.0
    %1894 = vmatpush1.xpose.msra.mxu0 0.0
    %1895 = vmatprep.subr.mxu0 0.0
    %1896 = vmatpush1.xpose.msra.mxu0 0.0
    %1897 = vmatprep.subr.mxu0 0.0
    %1898 = vmatpush1.xpose.msra.mxu0 0.0
    %1899 = vmatprep.subr.mxu0 0.0
    %1900 = vmatpush1.xpose.msra.mxu0 0.0
    %1901 = vmatprep.subr.mxu0 0.0
    %1902 = vmatpush1.xpose.msra.mxu0 0.0
    %1903 = vmatprep.subr.mxu0 0.0
    %1904 = vmatpush1.xpose.msra.mxu0 0.0
    %1905 = vmatprep.subr.mxu0 0.0
    %1906 = vmatpush1.xpose.msra.mxu0 0.0
    %1907 = vmatprep.subr.mxu0 0.0
    %1908 = vmatpush1.xpose.msra.mxu0 0.0
    %1909 = vmatprep.subr.mxu0 0.0
    %1910 = vmatpush1.xpose.msra.mxu0 0.0
    %1911 = vmatprep.subr.mxu0 0.0
    %1912 = vmatpush1.xpose.msra.mxu0 0.0
    %1913 = vmatprep.subr.mxu0 0.0
    %1914 = vmatpush1.xpose.msra.mxu0 0.0
    %1915 = vmatprep.subr.mxu0 0.0
    %1916 = vmatpush1.xpose.msra.mxu0 0.0
    %1917 = vmatprep.subr.mxu0 0.0
    %1918 = vmatpush1.xpose.msra.mxu0 0.0
    %1919 = vmatprep.subr.mxu0 0.0
    %1920 = vmatpush1.xpose.msra.mxu0 0.0
    %1921 = vmatprep.subr.mxu0 0.0
    %1922 = vmatpush1.xpose.msra.mxu0 0.0
    %1923 = vmatprep.subr.mxu0 0.0
    %1924 = vmatpush1.xpose.msra.mxu0 0.0
    %1925 = vmatprep.subr.mxu0 0.0
    %1926 = vmatpush1.xpose.msra.mxu0 0.0
    %1927 = vmatprep.subr.mxu0 0.0
    %1928 = vmatpush1.xpose.msra.mxu0 0.0
    %1929 = vmatprep.subr.mxu0 0.0
    %1930 = vmatpush1.xpose.msra.mxu0 0.0
    %1931 = vmatprep.subr.mxu0 0.0
    %1932 = vmatpush1.xpose.msra.mxu0 0.0
    %1933 = vmatprep.mubr.f32.mxu0 0.0
    %1934 = vmatmul.mubr.f32.gmra.mrb[0].mxu0 %v1863
    %v1935 = vpop.f32.mrb[0].mxu0
    %v1936 = vadd.f32 0.0, %v1935
    %v1937 = vpop.f32.mrb[0].mxu0
    %1938 = vdwg.mxu0
    %1939 = vrot.lane.b32.xlu0 %v803, 104
    %v1940 = vpop.permute.xlu0 %1939
    %1941 = vrot.lane.b32.xlu0 %v815, 104
    %v1942 = vpop.permute.xlu0 %1941
    %1943 = vrot.lane.b32.xlu0 %v816, 104
    %v1944 = vpop.permute.xlu0 %1943
    %v1945 = vsel %vm818, %v1940, 0
    %v1947 = vsel %vm818, %v1942, 0
    %v1949 = vsel %vm818, %v1944, 0
    %1951 = vmatprep.subr.mxu0 0.0
    %1952 = vmatpush1.xpose.msra.mxu0 %v1947
    %1953 = vmatprep.subr.mxu0 0.0
    %1954 = vmatpush1.xpose.msra.mxu0 %v1949
    %1955 = vmatprep.subr.mxu0 0.0
    %1956 = vmatpush1.xpose.msra.mxu0 0.0
    %1957 = vmatprep.subr.mxu0 0.0
    %1958 = vmatpush1.xpose.msra.mxu0 0.0
    %1959 = vmatprep.subr.mxu0 0.0
    %1960 = vmatpush1.xpose.msra.mxu0 0.0
    %1961 = vmatprep.subr.mxu0 0.0
    %1962 = vmatpush1.xpose.msra.mxu0 0.0
    %1963 = vmatprep.subr.mxu0 0.0
    %1964 = vmatpush1.xpose.msra.mxu0 0.0
    %1965 = vmatprep.subr.mxu0 0.0
    %1966 = vmatpush1.xpose.msra.mxu0 0.0
    %1967 = vmatprep.subr.mxu0 0.0
    %1968 = vmatpush1.xpose.msra.mxu0 0.0
    %1969 = vmatprep.subr.mxu0 0.0
    %1970 = vmatpush1.xpose.msra.mxu0 0.0
    %1971 = vmatprep.subr.mxu0 0.0
    %1972 = vmatpush1.xpose.msra.mxu0 0.0
    %1973 = vmatprep.subr.mxu0 0.0
    %1974 = vmatpush1.xpose.msra.mxu0 0.0
    %1975 = vmatprep.subr.mxu0 0.0
    %1976 = vmatpush1.xpose.msra.mxu0 0.0
    %1977 = vmatprep.subr.mxu0 0.0
    %1978 = vmatpush1.xpose.msra.mxu0 0.0
    %1979 = vmatprep.subr.mxu0 0.0
    %1980 = vmatpush1.xpose.msra.mxu0 0.0
    %1981 = vmatprep.subr.mxu0 0.0
    %1982 = vmatpush1.xpose.msra.mxu0 0.0
    %1983 = vmatprep.subr.mxu0 0.0
    %1984 = vmatpush1.xpose.msra.mxu0 0.0
    %1985 = vmatprep.subr.mxu0 0.0
    %1986 = vmatpush1.xpose.msra.mxu0 0.0
    %1987 = vmatprep.subr.mxu0 0.0
    %1988 = vmatpush1.xpose.msra.mxu0 0.0
    %1989 = vmatprep.subr.mxu0 0.0
    %1990 = vmatpush1.xpose.msra.mxu0 0.0
    %1991 = vmatprep.subr.mxu0 0.0
    %1992 = vmatpush1.xpose.msra.mxu0 0.0
    %1993 = vmatprep.subr.mxu0 0.0
    %1994 = vmatpush1.xpose.msra.mxu0 0.0
    %1995 = vmatprep.subr.mxu0 0.0
    %1996 = vmatpush1.xpose.msra.mxu0 0.0
    %1997 = vmatprep.subr.mxu0 0.0
    %1998 = vmatpush1.xpose.msra.mxu0 0.0
    %1999 = vmatprep.subr.mxu0 0.0
    %2000 = vmatpush1.xpose.msra.mxu0 0.0
    %2001 = vmatprep.subr.mxu0 0.0
    %2002 = vmatpush1.xpose.msra.mxu0 0.0
    %2003 = vmatprep.subr.mxu0 0.0
    %2004 = vmatpush1.xpose.msra.mxu0 0.0
    %2005 = vmatprep.subr.mxu0 0.0
    %2006 = vmatpush1.xpose.msra.mxu0 0.0
    %2007 = vmatprep.subr.mxu0 0.0
    %2008 = vmatpush1.xpose.msra.mxu0 0.0
    %2009 = vmatprep.subr.mxu0 0.0
    %2010 = vmatpush1.xpose.msra.mxu0 0.0
    %2011 = vmatprep.subr.mxu0 0.0
    %2012 = vmatpush1.xpose.msra.mxu0 0.0
    %2013 = vmatprep.subr.mxu0 0.0
    %2014 = vmatpush1.xpose.msra.mxu0 0.0
    %2015 = vmatprep.mubr.f32.mxu0 0.0
    %2016 = vmatmul.mubr.f32.gmra.mrb[0].mxu0 %v1945
    %v2017 = vpop.f32.mrb[0].mxu0
    %v2018 = vadd.f32 0.0, %v2017
    %v2019 = vpop.f32.mrb[0].mxu0
    %2020 = vdwg.mxu0
    %v2021 = vmul.f32 %v1936, 0.35355338
    %v2022 = vmul.f32 %v2018, 0.35355338
    %v2023 = vsel %vm817, %v2021, -1e+30
    %v2024 = vsel %vm817, %v2022, -1e+30
    %v2025 = vsel %vm979, %v2023, -inf
    %2026 = vmax.xlane.f32.xlu0 %v2025
    %v2027 = vpop.xlane.xlu0 %2026
    %v2028 = vsel %vm979, %v2024, -inf
    %2029 = vmax.xlane.f32.xlu0 %v2028
    %v2030 = vpop.xlane.xlu0 %2029
    %v2031 = vsub.f32 %v2023, %v2027
    %v2032 = vsub.f32 %v2024, %v2030
    %v2033 = vmul.f32 %v2031, 1.442695
    %v2034 = vpow.pop %v2033
    %v2035 = vmul.f32 %v2032, 1.442695
    %v2036 = vpow.pop %v2035
    %v2037 = vsel %vm979, %v2034, 0.0
    %2038 = vadd.xlane.f32.xlu0 %v2037
    %v2039 = vpop.xlane.xlu0 %2038
    %v2040 = vsel %vm979, %v2036, 0.0
    %2041 = vadd.xlane.f32.xlu0 %v2040
    %v2042 = vpop.xlane.xlu0 %2041
    %v2043 = vrcp.pop %v2039
    %v2044 = vrcp.pop %v2042
    %2045 = vrot.lane.b32.xlu0 %v813, 72
    %v2046 = vpop.permute.xlu0 %2045
    %2047 = vrot.lane.b32.xlu0 %v814, 72
    %v2048 = vpop.permute.xlu0 %2047
    %v2052 = vsel %vm1006, %v2034, 0
    %2054 = vmatprep.subr.mxu0 0.0
    %2055 = vmatpush1.msra.mxu0 %v2046
    %2056 = vmatprep.subr.mxu0 0.0
    %2057 = vmatpush1.msra.mxu0 %v2048
    %2058 = vmatprep.subr.mxu0 0.0
    %2059 = vmatpush1.msra.mxu0 0.0
    %2060 = vmatprep.subr.mxu0 0.0
    %2061 = vmatpush1.msra.mxu0 0.0
    %2062 = vmatprep.subr.mxu0 0.0
    %2063 = vmatpush1.msra.mxu0 0.0
    %2064 = vmatprep.subr.mxu0 0.0
    %2065 = vmatpush1.msra.mxu0 0.0
    %2066 = vmatprep.subr.mxu0 0.0
    %2067 = vmatpush1.msra.mxu0 0.0
    %2068 = vmatprep.subr.mxu0 0.0
    %2069 = vmatpush1.msra.mxu0 0.0
    %2070 = vmatprep.subr.mxu0 0.0
    %2071 = vmatpush1.msra.mxu0 0.0
    %2072 = vmatprep.subr.mxu0 0.0
    %2073 = vmatpush1.msra.mxu0 0.0
    %2074 = vmatprep.subr.mxu0 0.0
    %2075 = vmatpush1.msra.mxu0 0.0
    %2076 = vmatprep.subr.mxu0 0.0
    %2077 = vmatpush1.msra.mxu0 0.0
    %2078 = vmatprep.subr.mxu0 0.0
    %2079 = vmatpush1.msra.mxu0 0.0
    %2080 = vmatprep.subr.mxu0 0.0
    %2081 = vmatpush1.msra.mxu0 0.0
    %2082 = vmatprep.subr.mxu0 0.0
    %2083 = vmatpush1.msra.mxu0 0.0
    %2084 = vmatprep.subr.mxu0 0.0
    %2085 = vmatpush1.msra.mxu0 0.0
    %2086 = vmatprep.subr.mxu0 0.0
    %2087 = vmatpush1.msra.mxu0 0.0
    %2088 = vmatprep.subr.mxu0 0.0
    %2089 = vmatpush1.msra.mxu0 0.0
    %2090 = vmatprep.subr.mxu0 0.0
    %2091 = vmatpush1.msra.mxu0 0.0
    %2092 = vmatprep.subr.mxu0 0.0
    %2093 = vmatpush1.msra.mxu0 0.0
    %2094 = vmatprep.subr.mxu0 0.0
    %2095 = vmatpush1.msra.mxu0 0.0
    %2096 = vmatprep.subr.mxu0 0.0
    %2097 = vmatpush1.msra.mxu0 0.0
    %2098 = vmatprep.subr.mxu0 0.0
    %2099 = vmatpush1.msra.mxu0 0.0
    %2100 = vmatprep.subr.mxu0 0.0
    %2101 = vmatpush1.msra.mxu0 0.0
    %2102 = vmatprep.subr.mxu0 0.0
    %2103 = vmatpush1.msra.mxu0 0.0
    %2104 = vmatprep.subr.mxu0 0.0
    %2105 = vmatpush1.msra.mxu0 0.0
    %2106 = vmatprep.subr.mxu0 0.0
    %2107 = vmatpush1.msra.mxu0 0.0
    %2108 = vmatprep.subr.mxu0 0.0
    %2109 = vmatpush1.msra.mxu0 0.0
    %2110 = vmatprep.subr.mxu0 0.0
    %2111 = vmatpush1.msra.mxu0 0.0
    %2112 = vmatprep.subr.mxu0 0.0
    %2113 = vmatpush1.msra.mxu0 0.0
    %2114 = vmatprep.subr.mxu0 0.0
    %2115 = vmatpush1.msra.mxu0 0.0
    %2116 = vmatprep.subr.mxu0 0.0
    %2117 = vmatpush1.msra.mxu0 0.0
    %2118 = vmatprep.mubr.f32.mxu0 0.0
    %2119 = vmatmul.mubr.f32.gmra.mrb[0].mxu0 %v2052
    %v2120 = vpop.f32.mrb[0].mxu0
    %v2121 = vadd.f32 0.0, %v2120
    %v2122 = vpop.f32.mrb[0].mxu0
    %2123 = vdwg.mxu0
    %2124 = vrot.lane.b32.xlu0 %v815, 72
    %v2125 = vpop.permute.xlu0 %2124
    %2126 = vrot.lane.b32.xlu0 %v816, 72
    %v2127 = vpop.permute.xlu0 %2126
    %v2131 = vsel %vm1006, %v2036, 0
    %2133 = vmatprep.subr.mxu0 0.0
    %2134 = vmatpush1.msra.mxu0 %v2125
    %2135 = vmatprep.subr.mxu0 0.0
    %2136 = vmatpush1.msra.mxu0 %v2127
    %2137 = vmatprep.subr.mxu0 0.0
    %2138 = vmatpush1.msra.mxu0 0.0
    %2139 = vmatprep.subr.mxu0 0.0
    %2140 = vmatpush1.msra.mxu0 0.0
    %2141 = vmatprep.subr.mxu0 0.0
    %2142 = vmatpush1.msra.mxu0 0.0
    %2143 = vmatprep.subr.mxu0 0.0
    %2144 = vmatpush1.msra.mxu0 0.0
    %2145 = vmatprep.subr.mxu0 0.0
    %2146 = vmatpush1.msra.mxu0 0.0
    %2147 = vmatprep.subr.mxu0 0.0
    %2148 = vmatpush1.msra.mxu0 0.0
    %2149 = vmatprep.subr.mxu0 0.0
    %2150 = vmatpush1.msra.mxu0 0.0
    %2151 = vmatprep.subr.mxu0 0.0
    %2152 = vmatpush1.msra.mxu0 0.0
    %2153 = vmatprep.subr.mxu0 0.0
    %2154 = vmatpush1.msra.mxu0 0.0
    %2155 = vmatprep.subr.mxu0 0.0
    %2156 = vmatpush1.msra.mxu0 0.0
    %2157 = vmatprep.subr.mxu0 0.0
    %2158 = vmatpush1.msra.mxu0 0.0
    %2159 = vmatprep.subr.mxu0 0.0
    %2160 = vmatpush1.msra.mxu0 0.0
    %2161 = vmatprep.subr.mxu0 0.0
    %2162 = vmatpush1.msra.mxu0 0.0
    %2163 = vmatprep.subr.mxu0 0.0
    %2164 = vmatpush1.msra.mxu0 0.0
    %2165 = vmatprep.subr.mxu0 0.0
    %2166 = vmatpush1.msra.mxu0 0.0
    %2167 = vmatprep.subr.mxu0 0.0
    %2168 = vmatpush1.msra.mxu0 0.0
    %2169 = vmatprep.subr.mxu0 0.0
    %2170 = vmatpush1.msra.mxu0 0.0
    %2171 = vmatprep.subr.mxu0 0.0
    %2172 = vmatpush1.msra.mxu0 0.0
    %2173 = vmatprep.subr.mxu0 0.0
    %2174 = vmatpush1.msra.mxu0 0.0
    %2175 = vmatprep.subr.mxu0 0.0
    %2176 = vmatpush1.msra.mxu0 0.0
    %2177 = vmatprep.subr.mxu0 0.0
    %2178 = vmatpush1.msra.mxu0 0.0
    %2179 = vmatprep.subr.mxu0 0.0
    %2180 = vmatpush1.msra.mxu0 0.0
    %2181 = vmatprep.subr.mxu0 0.0
    %2182 = vmatpush1.msra.mxu0 0.0
    %2183 = vmatprep.subr.mxu0 0.0
    %2184 = vmatpush1.msra.mxu0 0.0
    %2185 = vmatprep.subr.mxu0 0.0
    %2186 = vmatpush1.msra.mxu0 0.0
    %2187 = vmatprep.subr.mxu0 0.0
    %2188 = vmatpush1.msra.mxu0 0.0
    %2189 = vmatprep.subr.mxu0 0.0
    %2190 = vmatpush1.msra.mxu0 0.0
    %2191 = vmatprep.subr.mxu0 0.0
    %2192 = vmatpush1.msra.mxu0 0.0
    %2193 = vmatprep.subr.mxu0 0.0
    %2194 = vmatpush1.msra.mxu0 0.0
    %2195 = vmatprep.subr.mxu0 0.0
    %2196 = vmatpush1.msra.mxu0 0.0
    %2197 = vmatprep.mubr.f32.mxu0 0.0
    %2198 = vmatmul.mubr.f32.gmra.mrb[0].mxu0 %v2131
    %v2199 = vpop.f32.mrb[0].mxu0
    %v2200 = vadd.f32 0.0, %v2199
    %v2201 = vpop.f32.mrb[0].mxu0
    %2202 = vdwg.mxu0
    %v2203 = vmul.f32 %v2121, %v2043
    %v2204 = vmul.f32 %v2200, %v2044
    %2207 = vrot.lane.b32.xlu0 %v1507, 8
    %v2208 = vpop.permute.xlu0 %2207
    %2209 = vrot.lane.b32.xlu0 %v1508, 8
    %v2210 = vpop.permute.xlu0 %2209
    %2215 = vrot.lane.b32.xlu0 %v1855, 16
    %v2216 = vpop.permute.xlu0 %2215
    %2217 = vrot.lane.b32.xlu0 %v1856, 16
    %v2218 = vpop.permute.xlu0 %2217
    %2223 = vrot.lane.b32.xlu0 %v2203, 24
    %v2224 = vpop.permute.xlu0 %2223
    %2225 = vrot.lane.b32.xlu0 %v2204, 24
    %v2226 = vpop.permute.xlu0 %2225
    %v2229 = vsel %vm818, %v1159, %v2208
    %v2230 = vsel %vm818, %v1160, %v2210
    %v2231 = vsel %vm1006, %v2229, %v2216
    %v2232 = vsel %vm1006, %v2230, %v2218
    %vm2233 = vcmask 195584
    %v2234 = vsel %vm2233, %v2231, %v2224
    %v2235 = vsel %vm2233, %v2232, %v2226
    %v2237 = vlaneseq
    %v2238 = vshrl.u32 %v2237, 7
    %v2239 = vsub.s32 0, %v2238
    %v2240 = vrot.slane %v88, %v2239
    %v2244 = vrot.slane %v2235, 7
    %v2245 = vsel %vm699, %v2244, %v2234
    %v2246 = vsel %vm226, %v2245, 0
    %2248 = vmatprep.subr.mxu0 0.0
    %2249 = vmatpush1.msra.mxu0 %v84
    %2250 = vmatprep.subr.mxu0 0.0
    %2251 = vmatpush1.msra.mxu0 %v85
    %2252 = vmatprep.subr.mxu0 0.0
    %2253 = vmatpush1.msra.mxu0 %v86
    %2254 = vmatprep.subr.mxu0 0.0
    %2255 = vmatpush1.msra.mxu0 %v87
    %2256 = vmatprep.subr.mxu0 0.0
    %2257 = vmatpush1.msra.mxu0 0.0
    %2258 = vmatprep.subr.mxu0 0.0
    %2259 = vmatpush1.msra.mxu0 0.0
    %2260 = vmatprep.subr.mxu0 0.0
    %2261 = vmatpush1.msra.mxu0 0.0
    %2262 = vmatprep.subr.mxu0 0.0
    %2263 = vmatpush1.msra.mxu0 0.0
    %2264 = vmatprep.subr.mxu0 0.0
    %2265 = vmatpush1.msra.mxu0 0.0
    %2266 = vmatprep.subr.mxu0 0.0
    %2267 = vmatpush1.msra.mxu0 0.0
    %2268 = vmatprep.subr.mxu0 0.0
    %2269 = vmatpush1.msra.mxu0 0.0
    %2270 = vmatprep.subr.mxu0 0.0
    %2271 = vmatpush1.msra.mxu0 0.0
    %2272 = vmatprep.subr.mxu0 0.0
    %2273 = vmatpush1.msra.mxu0 0.0
    %2274 = vmatprep.subr.mxu0 0.0
    %2275 = vmatpush1.msra.mxu0 0.0
    %2276 = vmatprep.subr.mxu0 0.0
    %2277 = vmatpush1.msra.mxu0 0.0
    %2278 = vmatprep.subr.mxu0 0.0
    %2279 = vmatpush1.msra.mxu0 0.0
    %2280 = vmatprep.subr.mxu0 0.0
    %2281 = vmatpush1.msra.mxu0 0.0
    %2282 = vmatprep.subr.mxu0 0.0
    %2283 = vmatpush1.msra.mxu0 0.0
    %2284 = vmatprep.subr.mxu0 0.0
    %2285 = vmatpush1.msra.mxu0 0.0
    %2286 = vmatprep.subr.mxu0 0.0
    %2287 = vmatpush1.msra.mxu0 0.0
    %2288 = vmatprep.subr.mxu0 0.0
    %2289 = vmatpush1.msra.mxu0 0.0
    %2290 = vmatprep.subr.mxu0 0.0
    %2291 = vmatpush1.msra.mxu0 0.0
    %2292 = vmatprep.subr.mxu0 0.0
    %2293 = vmatpush1.msra.mxu0 0.0
    %2294 = vmatprep.subr.mxu0 0.0
    %2295 = vmatpush1.msra.mxu0 0.0
    %2296 = vmatprep.subr.mxu0 0.0
    %2297 = vmatpush1.msra.mxu0 0.0
    %2298 = vmatprep.subr.mxu0 0.0
    %2299 = vmatpush1.msra.mxu0 0.0
    %2300 = vmatprep.subr.mxu0 0.0
    %2301 = vmatpush1.msra.mxu0 0.0
    %2302 = vmatprep.subr.mxu0 0.0
    %2303 = vmatpush1.msra.mxu0 0.0
    %2304 = vmatprep.subr.mxu0 0.0
    %2305 = vmatpush1.msra.mxu0 0.0
    %2306 = vmatprep.subr.mxu0 0.0
    %2307 = vmatpush1.msra.mxu0 0.0
    %2308 = vmatprep.subr.mxu0 0.0
    %2309 = vmatpush1.msra.mxu0 0.0
    %2310 = vmatprep.subr.mxu0 0.0
    %2311 = vmatpush1.msra.mxu0 0.0
    %2312 = vmatprep.mubr.f32.mxu0 0.0
    %2313 = vmatmul.mubr.f32.gmra.mrb[0].mxu0 %v2246
    %v2314 = vpop.f32.mrb[0].mxu0
    %v2315 = vadd.f32 %v2240, %v2314
    %v2316 = vpop.f32.mrb[0].mxu0
    %2317 = vdwg.mxu0
    %v2319 = vrot.slane %v2315, 5
    %v2320 = vrot.slane %v2315, 6
    %v2323 = vadd.f32 %v506, %v2319
    %v2324 = vadd.f32 %v507, %v2320
    %v2325 = vmul.f32 %v2323, %v2323
    %v2326 = vmul.f32 %v2324, %v2324
    %v2329 = vrot.slane %v2326, 7
    %v2330 = vsel %vm677, %v2329, %v2325
    %v2332 = vsel %vm680, %v2330, 0.0
    %2333 = vadd.xlane.f32.xlu0 %v2332
    %v2334 = vpop.xlane.xlu0 %2333
    %v2335 = vmul.f32 %v2334, %v524
    %v2336 = vadd.f32 %v2335, 1e-06
    %v2337 = vrsqrt.pop %v2336
    %v2339 = vrot.slane %v2337, 1
    %v2342 = vmul.f32 %v2323, %v2337
    %v2343 = vmul.f32 %v2324, %v2339
    %v2345 = vlaneseq
    %v2346 = vshrl.u32 %v2345, 7
    %v2347 = vsub.s32 0, %v2346
    %v2348 = vrot.slane %v78, %v2347
    %v2350 = vmul.f32 %v2342, %v2348
    %v2351 = vmul.f32 %v2343, %v2348
    %v2353 = vlaneseq
    %v2354 = vshrl.u32 %v2353, 7
    %v2355 = vsub.s32 0, %v2354
    %v2356 = vrot.slane %v93, %v2355
    %v2360 = vrot.slane %v2350, 3
    %v2361 = vrot.slane %v2351, 2
    %v2362 = vsel %vm699, %v2361, %v2360
    %v2363 = vsel %vm226, %v2362, 0
    %2365 = vmatprep.subr.mxu0 0.0
    %2366 = vmatpush1.msra.mxu0 %v89
    %2367 = vmatprep.subr.mxu0 0.0
    %2368 = vmatpush1.msra.mxu0 %v90
    %2369 = vmatprep.subr.mxu0 0.0
    %2370 = vmatpush1.msra.mxu0 %v91
    %2371 = vmatprep.subr.mxu0 0.0
    %2372 = vmatpush1.msra.mxu0 %v92
    %2373 = vmatprep.subr.mxu0 0.0
    %2374 = vmatpush1.msra.mxu0 0.0
    %2375 = vmatprep.subr.mxu0 0.0
    %2376 = vmatpush1.msra.mxu0 0.0
    %2377 = vmatprep.subr.mxu0 0.0
    %2378 = vmatpush1.msra.mxu0 0.0
    %2379 = vmatprep.subr.mxu0 0.0
    %2380 = vmatpush1.msra.mxu0 0.0
    %2381 = vmatprep.subr.mxu0 0.0
    %2382 = vmatpush1.msra.mxu0 0.0
    %2383 = vmatprep.subr.mxu0 0.0
    %2384 = vmatpush1.msra.mxu0 0.0
    %2385 = vmatprep.subr.mxu0 0.0
    %2386 = vmatpush1.msra.mxu0 0.0
    %2387 = vmatprep.subr.mxu0 0.0
    %2388 = vmatpush1.msra.mxu0 0.0
    %2389 = vmatprep.subr.mxu0 0.0
    %2390 = vmatpush1.msra.mxu0 0.0
    %2391 = vmatprep.subr.mxu0 0.0
    %2392 = vmatpush1.msra.mxu0 0.0
    %2393 = vmatprep.subr.mxu0 0.0
    %2394 = vmatpush1.msra.mxu0 0.0
    %2395 = vmatprep.subr.mxu0 0.0
    %2396 = vmatpush1.msra.mxu0 0.0
    %2397 = vmatprep.subr.mxu0 0.0
    %2398 = vmatpush1.msra.mxu0 0.0
    %2399 = vmatprep.subr.mxu0 0.0
    %2400 = vmatpush1.msra.mxu0 0.0
    %2401 = vmatprep.subr.mxu0 0.0
    %2402 = vmatpush1.msra.mxu0 0.0
    %2403 = vmatprep.subr.mxu0 0.0
    %2404 = vmatpush1.msra.mxu0 0.0
    %2405 = vmatprep.subr.mxu0 0.0
    %2406 = vmatpush1.msra.mxu0 0.0
    %2407 = vmatprep.subr.mxu0 0.0
    %2408 = vmatpush1.msra.mxu0 0.0
    %2409 = vmatprep.subr.mxu0 0.0
    %2410 = vmatpush1.msra.mxu0 0.0
    %2411 = vmatprep.subr.mxu0 0.0
    %2412 = vmatpush1.msra.mxu0 0.0
    %2413 = vmatprep.subr.mxu0 0.0
    %2414 = vmatpush1.msra.mxu0 0.0
    %2415 = vmatprep.subr.mxu0 0.0
    %2416 = vmatpush1.msra.mxu0 0.0
    %2417 = vmatprep.subr.mxu0 0.0
    %2418 = vmatpush1.msra.mxu0 0.0
    %2419 = vmatprep.subr.mxu0 0.0
    %2420 = vmatpush1.msra.mxu0 0.0
    %2421 = vmatprep.subr.mxu0 0.0
    %2422 = vmatpush1.msra.mxu0 0.0
    %2423 = vmatprep.subr.mxu0 0.0
    %2424 = vmatpush1.msra.mxu0 0.0
    %2425 = vmatprep.subr.mxu0 0.0
    %2426 = vmatpush1.msra.mxu0 0.0
    %2427 = vmatprep.subr.mxu0 0.0
    %2428 = vmatpush1.msra.mxu0 0.0
    %2429 = vmatprep.mubr.f32.mxu0 0.0
    %2430 = vmatmul.mubr.f32.gmra.mrb[0].mxu0 %v2363
    %v2431 = vpop.f32.mrb[0].mxu0
    %v2432 = vadd.f32 %v2356, %v2431
    %v2433 = vpop.f32.mrb[0].mxu0
    %2434 = vdwg.mxu0
    %v2435 = vmul.f32 %v2432, %v2432
    %v2436 = vmul.f32 %v2432, %v2435
    %v2437 = vmul.f32 %v2436, 0.044715
    %v2438 = vadd.f32 %v2432, %v2437
    %v2439 = vmul.f32 %v2438, 0.7978846
    %v2440 = vtanh.pop %v2439
    %v2441 = vadd.f32 %v2440, 1.0
    %v2442 = vmul.f32 %v2441, 0.5
    %v2443 = vmul.f32 %v2432, %v2442
    %v2445 = vlaneseq
    %v2446 = vshrl.u32 %v2445, 7
    %v2447 = vsub.s32 0, %v2446
    %v2448 = vrot.slane %v102, %v2447
    %v2451 = vsel %vm141, %v2443, 0
    %2453 = vmatprep.subr.mxu0 0.0
    %2454 = vmatpush1.msra.mxu0 %v94
    %2455 = vmatprep.subr.mxu0 0.0
    %2456 = vmatpush1.msra.mxu0 %v95
    %2457 = vmatprep.subr.mxu0 0.0
    %2458 = vmatpush1.msra.mxu0 %v96
    %2459 = vmatprep.subr.mxu0 0.0
    %2460 = vmatpush1.msra.mxu0 %v97
    %2461 = vmatprep.subr.mxu0 0.0
    %2462 = vmatpush1.msra.mxu0 %v98
    %2463 = vmatprep.subr.mxu0 0.0
    %2464 = vmatpush1.msra.mxu0 %v99
    %2465 = vmatprep.subr.mxu0 0.0
    %2466 = vmatpush1.msra.mxu0 %v100
    %2467 = vmatprep.subr.mxu0 0.0
    %2468 = vmatpush1.msra.mxu0 %v101
    %2469 = vmatprep.subr.mxu0 0.0
    %2470 = vmatpush1.msra.mxu0 0.0
    %2471 = vmatprep.subr.mxu0 0.0
    %2472 = vmatpush1.msra.mxu0 0.0
    %2473 = vmatprep.subr.mxu0 0.0
    %2474 = vmatpush1.msra.mxu0 0.0
    %2475 = vmatprep.subr.mxu0 0.0
    %2476 = vmatpush1.msra.mxu0 0.0
    %2477 = vmatprep.subr.mxu0 0.0
    %2478 = vmatpush1.msra.mxu0 0.0
    %2479 = vmatprep.subr.mxu0 0.0
    %2480 = vmatpush1.msra.mxu0 0.0
    %2481 = vmatprep.subr.mxu0 0.0
    %2482 = vmatpush1.msra.mxu0 0.0
    %2483 = vmatprep.subr.mxu0 0.0
    %2484 = vmatpush1.msra.mxu0 0.0
    %2485 = vmatprep.subr.mxu0 0.0
    %2486 = vmatpush1.msra.mxu0 0.0
    %2487 = vmatprep.subr.mxu0 0.0
    %2488 = vmatpush1.msra.mxu0 0.0
    %2489 = vmatprep.subr.mxu0 0.0
    %2490 = vmatpush1.msra.mxu0 0.0
    %2491 = vmatprep.subr.mxu0 0.0
    %2492 = vmatpush1.msra.mxu0 0.0
    %2493 = vmatprep.subr.mxu0 0.0
    %2494 = vmatpush1.msra.mxu0 0.0
    %2495 = vmatprep.subr.mxu0 0.0
    %2496 = vmatpush1.msra.mxu0 0.0
    %2497 = vmatprep.subr.mxu0 0.0
    %2498 = vmatpush1.msra.mxu0 0.0
    %2499 = vmatprep.subr.mxu0 0.0
    %2500 = vmatpush1.msra.mxu0 0.0
    %2501 = vmatprep.subr.mxu0 0.0
    %2502 = vmatpush1.msra.mxu0 0.0
    %2503 = vmatprep.subr.mxu0 0.0
    %2504 = vmatpush1.msra.mxu0 0.0
    %2505 = vmatprep.subr.mxu0 0.0
    %2506 = vmatpush1.msra.mxu0 0.0
    %2507 = vmatprep.subr.mxu0 0.0
    %2508 = vmatpush1.msra.mxu0 0.0
    %2509 = vmatprep.subr.mxu0 0.0
    %2510 = vmatpush1.msra.mxu0 0.0
    %2511 = vmatprep.subr.mxu0 0.0
    %2512 = vmatpush1.msra.mxu0 0.0
    %2513 = vmatprep.subr.mxu0 0.0
    %2514 = vmatpush1.msra.mxu0 0.0
    %2515 = vmatprep.subr.mxu0 0.0
    %2516 = vmatpush1.msra.mxu0 0.0
    %2517 = vmatprep.mubr.f32.mxu0 0.0
    %2518 = vmatmul.mubr.f32.gmra.mrb[0].mxu0 %v2451
    %v2519 = vpop.f32.mrb[0].mxu0
    %v2520 = vadd.f32 %v2448, %v2519
    %v2521 = vpop.f32.mrb[0].mxu0
    %2522 = vdwg.mxu0
    %v2524 = vrot.slane %v2520, 5
    %v2525 = vrot.slane %v2520, 6
    %v2528 = vadd.f32 %v2323, %v2524
    %v2529 = vadd.f32 %v2324, %v2525
    %v2531 = vlaneseq
    %v2532 = vshrl.u32 %v2531, 7
    %v2533 = vsub.s32 0, %v2532
    %v2534 = vrot.slane %v107, %v2533
    %v2538 = vrot.slane %v2528, 3
    %v2539 = vrot.slane %v2529, 2
    %v2540 = vsel %vm699, %v2539, %v2538
    %v2541 = vsel %vm226, %v2540, 0
    %2543 = vmatprep.subr.mxu0 0.0
    %2544 = vmatpush1.msra.mxu0 %v103
    %2545 = vmatprep.subr.mxu0 0.0
    %2546 = vmatpush1.msra.mxu0 %v104
    %2547 = vmatprep.subr.mxu0 0.0
    %2548 = vmatpush1.msra.mxu0 %v105
    %2549 = vmatprep.subr.mxu0 0.0
    %2550 = vmatpush1.msra.mxu0 %v106
    %2551 = vmatprep.subr.mxu0 0.0
    %2552 = vmatpush1.msra.mxu0 0.0
    %2553 = vmatprep.subr.mxu0 0.0
    %2554 = vmatpush1.msra.mxu0 0.0
    %2555 = vmatprep.subr.mxu0 0.0
    %2556 = vmatpush1.msra.mxu0 0.0
    %2557 = vmatprep.subr.mxu0 0.0
    %2558 = vmatpush1.msra.mxu0 0.0
    %2559 = vmatprep.subr.mxu0 0.0
    %2560 = vmatpush1.msra.mxu0 0.0
    %2561 = vmatprep.subr.mxu0 0.0
    %2562 = vmatpush1.msra.mxu0 0.0
    %2563 = vmatprep.subr.mxu0 0.0
    %2564 = vmatpush1.msra.mxu0 0.0
    %2565 = vmatprep.subr.mxu0 0.0
    %2566 = vmatpush1.msra.mxu0 0.0
    %2567 = vmatprep.subr.mxu0 0.0
    %2568 = vmatpush1.msra.mxu0 0.0
    %2569 = vmatprep.subr.mxu0 0.0
    %2570 = vmatpush1.msra.mxu0 0.0
    %2571 = vmatprep.subr.mxu0 0.0
    %2572 = vmatpush1.msra.mxu0 0.0
    %2573 = vmatprep.subr.mxu0 0.0
    %2574 = vmatpush1.msra.mxu0 0.0
    %2575 = vmatprep.subr.mxu0 0.0
    %2576 = vmatpush1.msra.mxu0 0.0
    %2577 = vmatprep.subr.mxu0 0.0
    %2578 = vmatpush1.msra.mxu0 0.0
    %2579 = vmatprep.subr.mxu0 0.0
    %2580 = vmatpush1.msra.mxu0 0.0
    %2581 = vmatprep.subr.mxu0 0.0
    %2582 = vmatpush1.msra.mxu0 0.0
    %2583 = vmatprep.subr.mxu0 0.0
    %2584 = vmatpush1.msra.mxu0 0.0
    %2585 = vmatprep.subr.mxu0 0.0
    %2586 = vmatpush1.msra.mxu0 0.0
    %2587 = vmatprep.subr.mxu0 0.0
    %2588 = vmatpush1.msra.mxu0 0.0
    %2589 = vmatprep.subr.mxu0 0.0
    %2590 = vmatpush1.msra.mxu0 0.0
    %2591 = vmatprep.subr.mxu0 0.0
    %2592 = vmatpush1.msra.mxu0 0.0
    %2593 = vmatprep.subr.mxu0 0.0
    %2594 = vmatpush1.msra.mxu0 0.0
    %2595 = vmatprep.subr.mxu0 0.0
    %2596 = vmatpush1.msra.mxu0 0.0
    %2597 = vmatprep.subr.mxu0 0.0
    %2598 = vmatpush1.msra.mxu0 0.0
    %2599 = vmatprep.subr.mxu0 0.0
    %2600 = vmatpush1.msra.mxu0 0.0
    %2601 = vmatprep.subr.mxu0 0.0
    %2602 = vmatpush1.msra.mxu0 0.0
    %2603 = vmatprep.subr.mxu0 0.0
    %2604 = vmatpush1.msra.mxu0 0.0
    %2605 = vmatprep.subr.mxu0 0.0
    %2606 = vmatpush1.msra.mxu0 0.0
    %2607 = vmatprep.mubr.f32.mxu0 0.0
    %2608 = vmatmul.mubr.f32.gmra.mrb[0].mxu0 %v2541
    %v2609 = vpop.f32.mrb[0].mxu0
    %v2610 = vadd.f32 %v2534, %v2609
    %v2611 = vpop.f32.mrb[0].mxu0
    %2612 = vdwg.mxu0
    %vm2613 = vcmask 517120
    %v2614 = vsel %vm2613, %v2610, -inf
    %2615 = vmax.xlane.f32.xlu0 %v2614
    %v2616 = vpop.xlane.xlu0 %2615
    %vm2617 = vcmp.eq.f32.partialorder %v2610, %v2616
    %v2618 = vsel %vm2617, %v398, 64
    %v2619 = vsel %vm2613, %v2618, 2147483647
    %v2620 = vand.u32 %v2619, 65535
    %v2621 = vshra.s32 %v2619, 16
    %v2622 = vcvt.s32.f32 %v2620
    %v2623 = vcvt.s32.f32 %v2621
    %2624 = vmin.xlane.f32.xlu0 %v2623
    %v2625 = vpop.xlane.xlu0 %2624
    %vm2626 = vcmp.eq.f32.partialorder %v2623, %v2625
    %v2627 = vsel %vm2626, %v2622, inf
    %2628 = vmin.xlane.f32.xlu0 %v2627
    %v2629 = vpop.xlane.xlu0 %2628
    %v2630 = vcvt.f32.s32 %v2629
    %v2631 = vcvt.f32.s32 %v2625
    %v2632 = vshll.u32 %v2631, 16
    %v2633 = vadd.s32 %v2632, %v2630
    %vm2634 = vcmp.eq.s32.totalorder %v2633, %v398
    %v2635 = vsel %vm2634, 1, 0
    %v2636 = vcvt.s32.f32 %v2635
    %v2638 = vsel %vm141, %v2636, 0
    %2640 = vmatprep.subr.mxu0 0.0
    %2641 = vmatpush1.msra.mxu0 %v69
    %2642 = vmatprep.subr.mxu0 0.0
    %2643 = vmatpush1.msra.mxu0 %v70
    %2644 = vmatprep.subr.mxu0 0.0
    %2645 = vmatpush1.msra.mxu0 %v71
    %2646 = vmatprep.subr.mxu0 0.0
    %2647 = vmatpush1.msra.mxu0 %v72
    %2648 = vmatprep.subr.mxu0 0.0
    %2649 = vmatpush1.msra.mxu0 %v73
    %2650 = vmatprep.subr.mxu0 0.0
    %2651 = vmatpush1.msra.mxu0 %v74
    %2652 = vmatprep.subr.mxu0 0.0
    %2653 = vmatpush1.msra.mxu0 %v75
    %2654 = vmatprep.subr.mxu0 0.0
    %2655 = vmatpush1.msra.mxu0 %v76
    %2656 = vmatprep.subr.mxu0 0.0
    %2657 = vmatpush1.msra.mxu0 0.0
    %2658 = vmatprep.subr.mxu0 0.0
    %2659 = vmatpush1.msra.mxu0 0.0
    %2660 = vmatprep.subr.mxu0 0.0
    %2661 = vmatpush1.msra.mxu0 0.0
    %2662 = vmatprep.subr.mxu0 0.0
    %2663 = vmatpush1.msra.mxu0 0.0
    %2664 = vmatprep.subr.mxu0 0.0
    %2665 = vmatpush1.msra.mxu0 0.0
    %2666 = vmatprep.subr.mxu0 0.0
    %2667 = vmatpush1.msra.mxu0 0.0
    %2668 = vmatprep.subr.mxu0 0.0
    %2669 = vmatpush1.msra.mxu0 0.0
    %2670 = vmatprep.subr.mxu0 0.0
    %2671 = vmatpush1.msra.mxu0 0.0
    %2672 = vmatprep.subr.mxu0 0.0
    %2673 = vmatpush1.msra.mxu0 0.0
    %2674 = vmatprep.subr.mxu0 0.0
    %2675 = vmatpush1.msra.mxu0 0.0
    %2676 = vmatprep.subr.mxu0 0.0
    %2677 = vmatpush1.msra.mxu0 0.0
    %2678 = vmatprep.subr.mxu0 0.0
    %2679 = vmatpush1.msra.mxu0 0.0
    %2680 = vmatprep.subr.mxu0 0.0
    %2681 = vmatpush1.msra.mxu0 0.0
    %2682 = vmatprep.subr.mxu0 0.0
    %2683 = vmatpush1.msra.mxu0 0.0
    %2684 = vmatprep.subr.mxu0 0.0
    %2685 = vmatpush1.msra.mxu0 0.0
    %2686 = vmatprep.subr.mxu0 0.0
    %2687 = vmatpush1.msra.mxu0 0.0
    %2688 = vmatprep.subr.mxu0 0.0
    %2689 = vmatpush1.msra.mxu0 0.0
    %2690 = vmatprep.subr.mxu0 0.0
    %2691 = vmatpush1.msra.mxu0 0.0
    %2692 = vmatprep.subr.mxu0 0.0
    %2693 = vmatpush1.msra.mxu0 0.0
    %2694 = vmatprep.subr.mxu0 0.0
    %2695 = vmatpush1.msra.mxu0 0.0
    %2696 = vmatprep.subr.mxu0 0.0
    %2697 = vmatpush1.msra.mxu0 0.0
    %2698 = vmatprep.subr.mxu0 0.0
    %2699 = vmatpush1.msra.mxu0 0.0
    %2700 = vmatprep.subr.mxu0 0.0
    %2701 = vmatpush1.msra.mxu0 0.0
    %2702 = vmatprep.subr.mxu0 0.0
    %2703 = vmatpush1.msra.mxu0 0.0
    %2704 = vmatprep.mubr.f32.mxu0 0.0
    %2705 = vmatmul.mubr.f32.gmra.mrb[0].mxu0 %v2638
    %v2706 = vpop.f32.mrb[0].mxu0
    %v2707 = vadd.f32 0.0, %v2706
    %v2708 = vpop.f32.mrb[0].mxu0
    %2709 = vdwg.mxu0
    %v2710 = vmul.f32 %v2707, %v2707
    %vm2711 = vcmask 254976
    %v2712 = vsel %vm2711, %v2710, 0.0
    %2713 = vadd.xlane.f32.xlu0 %v2712
    %v2714 = vpop.xlane.xlu0 %2713
    %v2715 = vmul.f32 %v2714, %v524
    %v2716 = vadd.f32 %v2715, 1e-06
    %v2717 = vrsqrt.pop %v2716
    %v2718 = vmul.f32 %v2707, %v2717
    %v2719 = vmul.f32 %v2718, %v545
    %v2721 = vsel %vm226, %v2719, 0
    %2723 = vmatprep.subr.mxu0 0.0
    %2724 = vmatpush1.msra.mxu0 %v79
    %2725 = vmatprep.subr.mxu0 0.0
    %2726 = vmatpush1.msra.mxu0 %v80
    %2727 = vmatprep.subr.mxu0 0.0
    %2728 = vmatpush1.msra.mxu0 %v81
    %2729 = vmatprep.subr.mxu0 0.0
    %2730 = vmatpush1.msra.mxu0 %v82
    %2731 = vmatprep.subr.mxu0 0.0
    %2732 = vmatpush1.msra.mxu0 0.0
    %2733 = vmatprep.subr.mxu0 0.0
    %2734 = vmatpush1.msra.mxu0 0.0
    %2735 = vmatprep.subr.mxu0 0.0
    %2736 = vmatpush1.msra.mxu0 0.0
    %2737 = vmatprep.subr.mxu0 0.0
    %2738 = vmatpush1.msra.mxu0 0.0
    %2739 = vmatprep.subr.mxu0 0.0
    %2740 = vmatpush1.msra.mxu0 0.0
    %2741 = vmatprep.subr.mxu0 0.0
    %2742 = vmatpush1.msra.mxu0 0.0
    %2743 = vmatprep.subr.mxu0 0.0
    %2744 = vmatpush1.msra.mxu0 0.0
    %2745 = vmatprep.subr.mxu0 0.0
    %2746 = vmatpush1.msra.mxu0 0.0
    %2747 = vmatprep.subr.mxu0 0.0
    %2748 = vmatpush1.msra.mxu0 0.0
    %2749 = vmatprep.subr.mxu0 0.0
    %2750 = vmatpush1.msra.mxu0 0.0
    %2751 = vmatprep.subr.mxu0 0.0
    %2752 = vmatpush1.msra.mxu0 0.0
    %2753 = vmatprep.subr.mxu0 0.0
    %2754 = vmatpush1.msra.mxu0 0.0
    %2755 = vmatprep.subr.mxu0 0.0
    %2756 = vmatpush1.msra.mxu0 0.0
    %2757 = vmatprep.subr.mxu0 0.0
    %2758 = vmatpush1.msra.mxu0 0.0
    %2759 = vmatprep.subr.mxu0 0.0
    %2760 = vmatpush1.msra.mxu0 0.0
    %2761 = vmatprep.subr.mxu0 0.0
    %2762 = vmatpush1.msra.mxu0 0.0
    %2763 = vmatprep.subr.mxu0 0.0
    %2764 = vmatpush1.msra.mxu0 0.0
    %2765 = vmatprep.subr.mxu0 0.0
    %2766 = vmatpush1.msra.mxu0 0.0
    %2767 = vmatprep.subr.mxu0 0.0
    %2768 = vmatpush1.msra.mxu0 0.0
    %2769 = vmatprep.subr.mxu0 0.0
    %2770 = vmatpush1.msra.mxu0 0.0
    %2771 = vmatprep.subr.mxu0 0.0
    %2772 = vmatpush1.msra.mxu0 0.0
    %2773 = vmatprep.subr.mxu0 0.0
    %2774 = vmatpush1.msra.mxu0 0.0
    %2775 = vmatprep.subr.mxu0 0.0
    %2776 = vmatpush1.msra.mxu0 0.0
    %2777 = vmatprep.subr.mxu0 0.0
    %2778 = vmatpush1.msra.mxu0 0.0
    %2779 = vmatprep.subr.mxu0 0.0
    %2780 = vmatpush1.msra.mxu0 0.0
    %2781 = vmatprep.subr.mxu0 0.0
    %2782 = vmatpush1.msra.mxu0 0.0
    %2783 = vmatprep.subr.mxu0 0.0
    %2784 = vmatpush1.msra.mxu0 0.0
    %2785 = vmatprep.subr.mxu0 0.0
    %2786 = vmatpush1.msra.mxu0 0.0
    %2787 = vmatprep.mubr.f32.mxu0 0.0
    %2788 = vmatmul.mubr.f32.gmra.mrb[0].mxu0 %v2721
    %v2789 = vpop.f32.mrb[0].mxu0
    %v2790 = vadd.f32 %v555, %v2789
    %v2791 = vpop.f32.mrb[0].mxu0
    %2792 = vdwg.mxu0
    %v2795 = vunpack.c.l.s4 1966171168
    %v2796 = vunpack.c.0.s8 %v2795
    %v2797 = vlaneseq
    %v2798 = vshrl.u32 %v2797, 7
    %v2799 = vsub.s32 %v2796, %v2798
    %v2800 = vrot.slane %v2790, %v2799
    %v2801 = vcombine.high %v2800, %v2800
    %v2803 = vunpack.c.l.s4 1966171168
    %v2804 = vunpack.c.0.s8 %v2803
    %v2805 = vlaneseq
    %v2806 = vshrl.u32 %v2805, 7
    %v2807 = vsub.s32 %v2804, %v2806
    %v2808 = vrot.slane %v2800, %v2807
    %v2810 = vunpack.c.l.s4 1966171168
    %v2811 = vunpack.c.0.s8 %v2810
    %v2812 = vlaneseq
    %v2813 = vshrl.u32 %v2812, 7
    %v2814 = vsub.s32 %v2811, %v2813
    %v2815 = vrot.slane %v2801, %v2814
    %v2816 = vlaneseq
    %v2817 = vshrl.u32 %v2816, 7
    %v2818 = vsub.s32 0, %v2817
    %v2819 = vrot.slane %v2808, %v2818
    %v2820 = vlaneseq
    %v2821 = vshrl.u32 %v2820, 7
    %v2822 = vsub.s32 0, %v2821
    %v2823 = vrot.slane %v2815, %v2822
    %2824 = vrot.lane.b32.xlu0 %v2819, 96
    %v2825 = vpop.permute.xlu0 %2824
    %2826 = vrot.lane.b32.xlu0 %v2823, 96
    %v2827 = vpop.permute.xlu0 %2826
    %2830 = vst.msk [vmem:[#allocation2 + $0xc] sm:$0x1] %vm810, %v2825
    %2831 = vst.msk [vmem:[#allocation2 + $0x1c] sm:$0x1] %vm810, %v2827
    %v2832 = vld [vmem:[#allocation2] sm:$0xff]
    %v2833 = vld [vmem:[#allocation2 + $0x8] sm:$0xff]
    %v2834 = vld [vmem:[#allocation2 + $0x10] sm:$0xff]
    %v2835 = vld [vmem:[#allocation2 + $0x18] sm:$0xff]
    %vm2836 = vcmp.lt.s32.totalorder %v398, 13
    %v2837 = vsel %vm818, %v2808, 0
    %v2840 = vsel %vm818, %v2832, 0
    %v2843 = vsel %vm818, %v2833, 0
    %2845 = vmatprep.subr.mxu0 0.0
    %2846 = vmatpush1.xpose.msra.mxu0 %v2840
    %2847 = vmatprep.subr.mxu0 0.0
    %2848 = vmatpush1.xpose.msra.mxu0 %v2843
    %2849 = vmatprep.subr.mxu0 0.0
    %2850 = vmatpush1.xpose.msra.mxu0 0.0
    %2851 = vmatprep.subr.mxu0 0.0
    %2852 = vmatpush1.xpose.msra.mxu0 0.0
    %2853 = vmatprep.subr.mxu0 0.0
    %2854 = vmatpush1.xpose.msra.mxu0 0.0
    %2855 = vmatprep.subr.mxu0 0.0
    %2856 = vmatpush1.xpose.msra.mxu0 0.0
    %2857 = vmatprep.subr.mxu0 0.0
    %2858 = vmatpush1.xpose.msra.mxu0 0.0
    %2859 = vmatprep.subr.mxu0 0.0
    %2860 = vmatpush1.xpose.msra.mxu0 0.0
    %2861 = vmatprep.subr.mxu0 0.0
    %2862 = vmatpush1.xpose.msra.mxu0 0.0
    %2863 = vmatprep.subr.mxu0 0.0
    %2864 = vmatpush1.xpose.msra.mxu0 0.0
    %2865 = vmatprep.subr.mxu0 0.0
    %2866 = vmatpush1.xpose.msra.mxu0 0.0
    %2867 = vmatprep.subr.mxu0 0.0
    %2868 = vmatpush1.xpose.msra.mxu0 0.0
    %2869 = vmatprep.subr.mxu0 0.0
    %2870 = vmatpush1.xpose.msra.mxu0 0.0
    %2871 = vmatprep.subr.mxu0 0.0
    %2872 = vmatpush1.xpose.msra.mxu0 0.0
    %2873 = vmatprep.subr.mxu0 0.0
    %2874 = vmatpush1.xpose.msra.mxu0 0.0
    %2875 = vmatprep.subr.mxu0 0.0
    %2876 = vmatpush1.xpose.msra.mxu0 0.0
    %2877 = vmatprep.subr.mxu0 0.0
    %2878 = vmatpush1.xpose.msra.mxu0 0.0
    %2879 = vmatprep.subr.mxu0 0.0
    %2880 = vmatpush1.xpose.msra.mxu0 0.0
    %2881 = vmatprep.subr.mxu0 0.0
    %2882 = vmatpush1.xpose.msra.mxu0 0.0
    %2883 = vmatprep.subr.mxu0 0.0
    %2884 = vmatpush1.xpose.msra.mxu0 0.0
    %2885 = vmatprep.subr.mxu0 0.0
    %2886 = vmatpush1.xpose.msra.mxu0 0.0
    %2887 = vmatprep.subr.mxu0 0.0
    %2888 = vmatpush1.xpose.msra.mxu0 0.0
    %2889 = vmatprep.subr.mxu0 0.0
    %2890 = vmatpush1.xpose.msra.mxu0 0.0
    %2891 = vmatprep.subr.mxu0 0.0
    %2892 = vmatpush1.xpose.msra.mxu0 0.0
    %2893 = vmatprep.subr.mxu0 0.0
    %2894 = vmatpush1.xpose.msra.mxu0 0.0
    %2895 = vmatprep.subr.mxu0 0.0
    %2896 = vmatpush1.xpose.msra.mxu0 0.0
    %2897 = vmatprep.subr.mxu0 0.0
    %2898 = vmatpush1.xpose.msra.mxu0 0.0
    %2899 = vmatprep.subr.mxu0 0.0
    %2900 = vmatpush1.xpose.msra.mxu0 0.0
    %2901 = vmatprep.subr.mxu0 0.0
    %2902 = vmatpush1.xpose.msra.mxu0 0.0
    %2903 = vmatprep.subr.mxu0 0.0
    %2904 = vmatpush1.xpose.msra.mxu0 0.0
    %2905 = vmatprep.subr.mxu0 0.0
    %2906 = vmatpush1.xpose.msra.mxu0 0.0
    %2907 = vmatprep.subr.mxu0 0.0
    %2908 = vmatpush1.xpose.msra.mxu0 0.0
    %2909 = vmatprep.mubr.f32.mxu0 0.0
    %2910 = vmatmul.mubr.f32.gmra.mrb[0].mxu0 %v2837
    %v2911 = vpop.f32.mrb[0].mxu0
    %v2912 = vadd.f32 0.0, %v2911
    %v2913 = vpop.f32.mrb[0].mxu0
    %2914 = vdwg.mxu0
    %v2915 = vsel %vm818, %v2815, 0
    %v2918 = vsel %vm818, %v2834, 0
    %v2921 = vsel %vm818, %v2835, 0
    %2923 = vmatprep.subr.mxu0 0.0
    %2924 = vmatpush1.xpose.msra.mxu0 %v2918
    %2925 = vmatprep.subr.mxu0 0.0
    %2926 = vmatpush1.xpose.msra.mxu0 %v2921
    %2927 = vmatprep.subr.mxu0 0.0
    %2928 = vmatpush1.xpose.msra.mxu0 0.0
    %2929 = vmatprep.subr.mxu0 0.0
    %2930 = vmatpush1.xpose.msra.mxu0 0.0
    %2931 = vmatprep.subr.mxu0 0.0
    %2932 = vmatpush1.xpose.msra.mxu0 0.0
    %2933 = vmatprep.subr.mxu0 0.0
    %2934 = vmatpush1.xpose.msra.mxu0 0.0
    %2935 = vmatprep.subr.mxu0 0.0
    %2936 = vmatpush1.xpose.msra.mxu0 0.0
    %2937 = vmatprep.subr.mxu0 0.0
    %2938 = vmatpush1.xpose.msra.mxu0 0.0
    %2939 = vmatprep.subr.mxu0 0.0
    %2940 = vmatpush1.xpose.msra.mxu0 0.0
    %2941 = vmatprep.subr.mxu0 0.0
    %2942 = vmatpush1.xpose.msra.mxu0 0.0
    %2943 = vmatprep.subr.mxu0 0.0
    %2944 = vmatpush1.xpose.msra.mxu0 0.0
    %2945 = vmatprep.subr.mxu0 0.0
    %2946 = vmatpush1.xpose.msra.mxu0 0.0
    %2947 = vmatprep.subr.mxu0 0.0
    %2948 = vmatpush1.xpose.msra.mxu0 0.0
    %2949 = vmatprep.subr.mxu0 0.0
    %2950 = vmatpush1.xpose.msra.mxu0 0.0
    %2951 = vmatprep.subr.mxu0 0.0
    %2952 = vmatpush1.xpose.msra.mxu0 0.0
    %2953 = vmatprep.subr.mxu0 0.0
    %2954 = vmatpush1.xpose.msra.mxu0 0.0
    %2955 = vmatprep.subr.mxu0 0.0
    %2956 = vmatpush1.xpose.msra.mxu0 0.0
    %2957 = vmatprep.subr.mxu0 0.0
    %2958 = vmatpush1.xpose.msra.mxu0 0.0
    %2959 = vmatprep.subr.mxu0 0.0
    %2960 = vmatpush1.xpose.msra.mxu0 0.0
    %2961 = vmatprep.subr.mxu0 0.0
    %2962 = vmatpush1.xpose.msra.mxu0 0.0
    %2963 = vmatprep.subr.mxu0 0.0
    %2964 = vmatpush1.xpose.msra.mxu0 0.0
    %2965 = vmatprep.subr.mxu0 0.0
    %2966 = vmatpush1.xpose.msra.mxu0 0.0
    %2967 = vmatprep.subr.mxu0 0.0
    %2968 = vmatpush1.xpose.msra.mxu0 0.0
    %2969 = vmatprep.subr.mxu0 0.0
    %2970 = vmatpush1.xpose.msra.mxu0 0.0
    %2971 = vmatprep.subr.mxu0 0.0
    %2972 = vmatpush1.xpose.msra.mxu0 0.0
    %2973 = vmatprep.subr.mxu0 0.0
    %2974 = vmatpush1.xpose.msra.mxu0 0.0
    %2975 = vmatprep.subr.mxu0 0.0
    %2976 = vmatpush1.xpose.msra.mxu0 0.0
    %2977 = vmatprep.subr.mxu0 0.0
    %2978 = vmatpush1.xpose.msra.mxu0 0.0
    %2979 = vmatprep.subr.mxu0 0.0
    %2980 = vmatpush1.xpose.msra.mxu0 0.0
    %2981 = vmatprep.subr.mxu0 0.0
    %2982 = vmatpush1.xpose.msra.mxu0 0.0
    %2983 = vmatprep.subr.mxu0 0.0
    %2984 = vmatpush1.xpose.msra.mxu0 0.0
    %2985 = vmatprep.subr.mxu0 0.0
    %2986 = vmatpush1.xpose.msra.mxu0 0.0
    %2987 = vmatprep.mubr.f32.mxu0 0.0
    %2988 = vmatmul.mubr.f32.gmra.mrb[0].mxu0 %v2915
    %v2989 = vpop.f32.mrb[0].mxu0
    %v2990 = vadd.f32 0.0, %v2989
    %v2991 = vpop.f32.mrb[0].mxu0
    %2992 = vdwg.mxu0
    %v2993 = vmul.f32 %v2912, 0.35355338
    %v2994 = vmul.f32 %v2990, 0.35355338
    %v2995 = vsel %vm2836, %v2993, -1e+30
    %v2996 = vsel %vm2836, %v2994, -1e+30
    %v2997 = vsel %vm979, %v2995, -inf
    %2998 = vmax.xlane.f32.xlu0 %v2997
    %v2999 = vpop.xlane.xlu0 %2998
    %v3000 = vsel %vm979, %v2996, -inf
    %3001 = vmax.xlane.f32.xlu0 %v3000
    %v3002 = vpop.xlane.xlu0 %3001
    %v3003 = vsub.f32 %v2995, %v2999
    %v3004 = vsub.f32 %v2996, %v3002
    %v3005 = vmul.f32 %v3003, 1.442695
    %v3006 = vpow.pop %v3005
    %v3007 = vmul.f32 %v3004, 1.442695
    %v3008 = vpow.pop %v3007
    %v3009 = vsel %vm979, %v3006, 0.0
    %3010 = vadd.xlane.f32.xlu0 %v3009
    %v3011 = vpop.xlane.xlu0 %3010
    %v3012 = vsel %vm979, %v3008, 0.0
    %3013 = vadd.xlane.f32.xlu0 %v3012
    %v3014 = vpop.xlane.xlu0 %3013
    %v3015 = vrcp.pop %v3011
    %v3016 = vrcp.pop %v3014
    %3017 = vrot.lane.b32.xlu0 %v2832, 96
    %v3018 = vpop.permute.xlu0 %3017
    %3019 = vrot.lane.b32.xlu0 %v2833, 96
    %v3020 = vpop.permute.xlu0 %3019
    %v3024 = vsel %vm1006, %v3006, 0
    %3026 = vmatprep.subr.mxu0 0.0
    %3027 = vmatpush1.msra.mxu0 %v3018
    %3028 = vmatprep.subr.mxu0 0.0
    %3029 = vmatpush1.msra.mxu0 %v3020
    %3030 = vmatprep.subr.mxu0 0.0
    %3031 = vmatpush1.msra.mxu0 0.0
    %3032 = vmatprep.subr.mxu0 0.0
    %3033 = vmatpush1.msra.mxu0 0.0
    %3034 = vmatprep.subr.mxu0 0.0
    %3035 = vmatpush1.msra.mxu0 0.0
    %3036 = vmatprep.subr.mxu0 0.0
    %3037 = vmatpush1.msra.mxu0 0.0
    %3038 = vmatprep.subr.mxu0 0.0
    %3039 = vmatpush1.msra.mxu0 0.0
    %3040 = vmatprep.subr.mxu0 0.0
    %3041 = vmatpush1.msra.mxu0 0.0
    %3042 = vmatprep.subr.mxu0 0.0
    %3043 = vmatpush1.msra.mxu0 0.0
    %3044 = vmatprep.subr.mxu0 0.0
    %3045 = vmatpush1.msra.mxu0 0.0
    %3046 = vmatprep.subr.mxu0 0.0
    %3047 = vmatpush1.msra.mxu0 0.0
    %3048 = vmatprep.subr.mxu0 0.0
    %3049 = vmatpush1.msra.mxu0 0.0
    %3050 = vmatprep.subr.mxu0 0.0
    %3051 = vmatpush1.msra.mxu0 0.0
    %3052 = vmatprep.subr.mxu0 0.0
    %3053 = vmatpush1.msra.mxu0 0.0
    %3054 = vmatprep.subr.mxu0 0.0
    %3055 = vmatpush1.msra.mxu0 0.0
    %3056 = vmatprep.subr.mxu0 0.0
    %3057 = vmatpush1.msra.mxu0 0.0
    %3058 = vmatprep.subr.mxu0 0.0
    %3059 = vmatpush1.msra.mxu0 0.0
    %3060 = vmatprep.subr.mxu0 0.0
    %3061 = vmatpush1.msra.mxu0 0.0
    %3062 = vmatprep.subr.mxu0 0.0
    %3063 = vmatpush1.msra.mxu0 0.0
    %3064 = vmatprep.subr.mxu0 0.0
    %3065 = vmatpush1.msra.mxu0 0.0
    %3066 = vmatprep.subr.mxu0 0.0
    %3067 = vmatpush1.msra.mxu0 0.0
    %3068 = vmatprep.subr.mxu0 0.0
    %3069 = vmatpush1.msra.mxu0 0.0
    %3070 = vmatprep.subr.mxu0 0.0
    %3071 = vmatpush1.msra.mxu0 0.0
    %3072 = vmatprep.subr.mxu0 0.0
    %3073 = vmatpush1.msra.mxu0 0.0
    %3074 = vmatprep.subr.mxu0 0.0
    %3075 = vmatpush1.msra.mxu0 0.0
    %3076 = vmatprep.subr.mxu0 0.0
    %3077 = vmatpush1.msra.mxu0 0.0
    %3078 = vmatprep.subr.mxu0 0.0
    %3079 = vmatpush1.msra.mxu0 0.0
    %3080 = vmatprep.subr.mxu0 0.0
    %3081 = vmatpush1.msra.mxu0 0.0
    %3082 = vmatprep.subr.mxu0 0.0
    %3083 = vmatpush1.msra.mxu0 0.0
    %3084 = vmatprep.subr.mxu0 0.0
    %3085 = vmatpush1.msra.mxu0 0.0
    %3086 = vmatprep.subr.mxu0 0.0
    %3087 = vmatpush1.msra.mxu0 0.0
    %3088 = vmatprep.subr.mxu0 0.0
    %3089 = vmatpush1.msra.mxu0 0.0
    %3090 = vmatprep.mubr.f32.mxu0 0.0
    %3091 = vmatmul.mubr.f32.gmra.mrb[0].mxu0 %v3024
    %v3092 = vpop.f32.mrb[0].mxu0
    %v3093 = vadd.f32 0.0, %v3092
    %v3094 = vpop.f32.mrb[0].mxu0
    %3095 = vdwg.mxu0
    %3096 = vrot.lane.b32.xlu0 %v2834, 96
    %v3097 = vpop.permute.xlu0 %3096
    %3098 = vrot.lane.b32.xlu0 %v2835, 96
    %v3099 = vpop.permute.xlu0 %3098
    %v3103 = vsel %vm1006, %v3008, 0
    %3105 = vmatprep.subr.mxu0 0.0
    %3106 = vmatpush1.msra.mxu0 %v3097
    %3107 = vmatprep.subr.mxu0 0.0
    %3108 = vmatpush1.msra.mxu0 %v3099
    %3109 = vmatprep.subr.mxu0 0.0
    %3110 = vmatpush1.msra.mxu0 0.0
    %3111 = vmatprep.subr.mxu0 0.0
    %3112 = vmatpush1.msra.mxu0 0.0
    %3113 = vmatprep.subr.mxu0 0.0
    %3114 = vmatpush1.msra.mxu0 0.0
    %3115 = vmatprep.subr.mxu0 0.0
    %3116 = vmatpush1.msra.mxu0 0.0
    %3117 = vmatprep.subr.mxu0 0.0
    %3118 = vmatpush1.msra.mxu0 0.0
    %3119 = vmatprep.subr.mxu0 0.0
    %3120 = vmatpush1.msra.mxu0 0.0
    %3121 = vmatprep.subr.mxu0 0.0
    %3122 = vmatpush1.msra.mxu0 0.0
    %3123 = vmatprep.subr.mxu0 0.0
    %3124 = vmatpush1.msra.mxu0 0.0
    %3125 = vmatprep.subr.mxu0 0.0
    %3126 = vmatpush1.msra.mxu0 0.0
    %3127 = vmatprep.subr.mxu0 0.0
    %3128 = vmatpush1.msra.mxu0 0.0
    %3129 = vmatprep.subr.mxu0 0.0
    %3130 = vmatpush1.msra.mxu0 0.0
    %3131 = vmatprep.subr.mxu0 0.0
    %3132 = vmatpush1.msra.mxu0 0.0
    %3133 = vmatprep.subr.mxu0 0.0
    %3134 = vmatpush1.msra.mxu0 0.0
    %3135 = vmatprep.subr.mxu0 0.0
    %3136 = vmatpush1.msra.mxu0 0.0
    %3137 = vmatprep.subr.mxu0 0.0
    %3138 = vmatpush1.msra.mxu0 0.0
    %3139 = vmatprep.subr.mxu0 0.0
    %3140 = vmatpush1.msra.mxu0 0.0
    %3141 = vmatprep.subr.mxu0 0.0
    %3142 = vmatpush1.msra.mxu0 0.0
    %3143 = vmatprep.subr.mxu0 0.0
    %3144 = vmatpush1.msra.mxu0 0.0
    %3145 = vmatprep.subr.mxu0 0.0
    %3146 = vmatpush1.msra.mxu0 0.0
    %3147 = vmatprep.subr.mxu0 0.0
    %3148 = vmatpush1.msra.mxu0 0.0
    %3149 = vmatprep.subr.mxu0 0.0
    %3150 = vmatpush1.msra.mxu0 0.0
    %3151 = vmatprep.subr.mxu0 0.0
    %3152 = vmatpush1.msra.mxu0 0.0
    %3153 = vmatprep.subr.mxu0 0.0
    %3154 = vmatpush1.msra.mxu0 0.0
    %3155 = vmatprep.subr.mxu0 0.0
    %3156 = vmatpush1.msra.mxu0 0.0
    %3157 = vmatprep.subr.mxu0 0.0
    %3158 = vmatpush1.msra.mxu0 0.0
    %3159 = vmatprep.subr.mxu0 0.0
    %3160 = vmatpush1.msra.mxu0 0.0
    %3161 = vmatprep.subr.mxu0 0.0
    %3162 = vmatpush1.msra.mxu0 0.0
    %3163 = vmatprep.subr.mxu0 0.0
    %3164 = vmatpush1.msra.mxu0 0.0
    %3165 = vmatprep.subr.mxu0 0.0
    %3166 = vmatpush1.msra.mxu0 0.0
    %3167 = vmatprep.subr.mxu0 0.0
    %3168 = vmatpush1.msra.mxu0 0.0
    %3169 = vmatprep.mubr.f32.mxu0 0.0
    %3170 = vmatmul.mubr.f32.gmra.mrb[0].mxu0 %v3103
    %v3171 = vpop.f32.mrb[0].mxu0
    %v3172 = vadd.f32 0.0, %v3171
    %v3173 = vpop.f32.mrb[0].mxu0
    %3174 = vdwg.mxu0
    %v3175 = vmul.f32 %v3093, %v3015
    %v3176 = vmul.f32 %v3172, %v3016
    %3177 = vrot.lane.b32.xlu0 %v2819, 120
    %v3178 = vpop.permute.xlu0 %3177
    %3179 = vrot.lane.b32.xlu0 %v2832, 120
    %v3180 = vpop.permute.xlu0 %3179
    %3181 = vrot.lane.b32.xlu0 %v2833, 120
    %v3182 = vpop.permute.xlu0 %3181
    %v3183 = vsel %vm818, %v3178, 0
    %v3185 = vsel %vm818, %v3180, 0
    %v3187 = vsel %vm818, %v3182, 0
    %3189 = vmatprep.subr.mxu0 0.0
    %3190 = vmatpush1.xpose.msra.mxu0 %v3185
    %3191 = vmatprep.subr.mxu0 0.0
    %3192 = vmatpush1.xpose.msra.mxu0 %v3187
    %3193 = vmatprep.subr.mxu0 0.0
    %3194 = vmatpush1.xpose.msra.mxu0 0.0
    %3195 = vmatprep.subr.mxu0 0.0
    %3196 = vmatpush1.xpose.msra.mxu0 0.0
    %3197 = vmatprep.subr.mxu0 0.0
    %3198 = vmatpush1.xpose.msra.mxu0 0.0
    %3199 = vmatprep.subr.mxu0 0.0
    %3200 = vmatpush1.xpose.msra.mxu0 0.0
    %3201 = vmatprep.subr.mxu0 0.0
    %3202 = vmatpush1.xpose.msra.mxu0 0.0
    %3203 = vmatprep.subr.mxu0 0.0
    %3204 = vmatpush1.xpose.msra.mxu0 0.0
    %3205 = vmatprep.subr.mxu0 0.0
    %3206 = vmatpush1.xpose.msra.mxu0 0.0
    %3207 = vmatprep.subr.mxu0 0.0
    %3208 = vmatpush1.xpose.msra.mxu0 0.0
    %3209 = vmatprep.subr.mxu0 0.0
    %3210 = vmatpush1.xpose.msra.mxu0 0.0
    %3211 = vmatprep.subr.mxu0 0.0
    %3212 = vmatpush1.xpose.msra.mxu0 0.0
    %3213 = vmatprep.subr.mxu0 0.0
    %3214 = vmatpush1.xpose.msra.mxu0 0.0
    %3215 = vmatprep.subr.mxu0 0.0
    %3216 = vmatpush1.xpose.msra.mxu0 0.0
    %3217 = vmatprep.subr.mxu0 0.0
    %3218 = vmatpush1.xpose.msra.mxu0 0.0
    %3219 = vmatprep.subr.mxu0 0.0
    %3220 = vmatpush1.xpose.msra.mxu0 0.0
    %3221 = vmatprep.subr.mxu0 0.0
    %3222 = vmatpush1.xpose.msra.mxu0 0.0
    %3223 = vmatprep.subr.mxu0 0.0
    %3224 = vmatpush1.xpose.msra.mxu0 0.0
    %3225 = vmatprep.subr.mxu0 0.0
    %3226 = vmatpush1.xpose.msra.mxu0 0.0
    %3227 = vmatprep.subr.mxu0 0.0
    %3228 = vmatpush1.xpose.msra.mxu0 0.0
    %3229 = vmatprep.subr.mxu0 0.0
    %3230 = vmatpush1.xpose.msra.mxu0 0.0
    %3231 = vmatprep.subr.mxu0 0.0
    %3232 = vmatpush1.xpose.msra.mxu0 0.0
    %3233 = vmatprep.subr.mxu0 0.0
    %3234 = vmatpush1.xpose.msra.mxu0 0.0
    %3235 = vmatprep.subr.mxu0 0.0
    %3236 = vmatpush1.xpose.msra.mxu0 0.0
    %3237 = vmatprep.subr.mxu0 0.0
    %3238 = vmatpush1.xpose.msra.mxu0 0.0
    %3239 = vmatprep.subr.mxu0 0.0
    %3240 = vmatpush1.xpose.msra.mxu0 0.0
    %3241 = vmatprep.subr.mxu0 0.0
    %3242 = vmatpush1.xpose.msra.mxu0 0.0
    %3243 = vmatprep.subr.mxu0 0.0
    %3244 = vmatpush1.xpose.msra.mxu0 0.0
    %3245 = vmatprep.subr.mxu0 0.0
    %3246 = vmatpush1.xpose.msra.mxu0 0.0
    %3247 = vmatprep.subr.mxu0 0.0
    %3248 = vmatpush1.xpose.msra.mxu0 0.0
    %3249 = vmatprep.subr.mxu0 0.0
    %3250 = vmatpush1.xpose.msra.mxu0 0.0
    %3251 = vmatprep.subr.mxu0 0.0
    %3252 = vmatpush1.xpose.msra.mxu0 0.0
    %3253 = vmatprep.mubr.f32.mxu0 0.0
    %3254 = vmatmul.mubr.f32.gmra.mrb[0].mxu0 %v3183
    %v3255 = vpop.f32.mrb[0].mxu0
    %v3256 = vadd.f32 0.0, %v3255
    %v3257 = vpop.f32.mrb[0].mxu0
    %3258 = vdwg.mxu0
    %3259 = vrot.lane.b32.xlu0 %v2823, 120
    %v3260 = vpop.permute.xlu0 %3259
    %3261 = vrot.lane.b32.xlu0 %v2834, 120
    %v3262 = vpop.permute.xlu0 %3261
    %3263 = vrot.lane.b32.xlu0 %v2835, 120
    %v3264 = vpop.permute.xlu0 %3263
    %v3265 = vsel %vm818, %v3260, 0
    %v3267 = vsel %vm818, %v3262, 0
    %v3269 = vsel %vm818, %v3264, 0
    %3271 = vmatprep.subr.mxu0 0.0
    %3272 = vmatpush1.xpose.msra.mxu0 %v3267
    %3273 = vmatprep.subr.mxu0 0.0
    %3274 = vmatpush1.xpose.msra.mxu0 %v3269
    %3275 = vmatprep.subr.mxu0 0.0
    %3276 = vmatpush1.xpose.msra.mxu0 0.0
    %3277 = vmatprep.subr.mxu0 0.0
    %3278 = vmatpush1.xpose.msra.mxu0 0.0
    %3279 = vmatprep.subr.mxu0 0.0
    %3280 = vmatpush1.xpose.msra.mxu0 0.0
    %3281 = vmatprep.subr.mxu0 0.0
    %3282 = vmatpush1.xpose.msra.mxu0 0.0
    %3283 = vmatprep.subr.mxu0 0.0
    %3284 = vmatpush1.xpose.msra.mxu0 0.0
    %3285 = vmatprep.subr.mxu0 0.0
    %3286 = vmatpush1.xpose.msra.mxu0 0.0
    %3287 = vmatprep.subr.mxu0 0.0
    %3288 = vmatpush1.xpose.msra.mxu0 0.0
    %3289 = vmatprep.subr.mxu0 0.0
    %3290 = vmatpush1.xpose.msra.mxu0 0.0
    %3291 = vmatprep.subr.mxu0 0.0
    %3292 = vmatpush1.xpose.msra.mxu0 0.0
    %3293 = vmatprep.subr.mxu0 0.0
    %3294 = vmatpush1.xpose.msra.mxu0 0.0
    %3295 = vmatprep.subr.mxu0 0.0
    %3296 = vmatpush1.xpose.msra.mxu0 0.0
    %3297 = vmatprep.subr.mxu0 0.0
    %3298 = vmatpush1.xpose.msra.mxu0 0.0
    %3299 = vmatprep.subr.mxu0 0.0
    %3300 = vmatpush1.xpose.msra.mxu0 0.0
    %3301 = vmatprep.subr.mxu0 0.0
    %3302 = vmatpush1.xpose.msra.mxu0 0.0
    %3303 = vmatprep.subr.mxu0 0.0
    %3304 = vmatpush1.xpose.msra.mxu0 0.0
    %3305 = vmatprep.subr.mxu0 0.0
    %3306 = vmatpush1.xpose.msra.mxu0 0.0
    %3307 = vmatprep.subr.mxu0 0.0
    %3308 = vmatpush1.xpose.msra.mxu0 0.0
    %3309 = vmatprep.subr.mxu0 0.0
    %3310 = vmatpush1.xpose.msra.mxu0 0.0
    %3311 = vmatprep.subr.mxu0 0.0
    %3312 = vmatpush1.xpose.msra.mxu0 0.0
    %3313 = vmatprep.subr.mxu0 0.0
    %3314 = vmatpush1.xpose.msra.mxu0 0.0
    %3315 = vmatprep.subr.mxu0 0.0
    %3316 = vmatpush1.xpose.msra.mxu0 0.0
    %3317 = vmatprep.subr.mxu0 0.0
    %3318 = vmatpush1.xpose.msra.mxu0 0.0
    %3319 = vmatprep.subr.mxu0 0.0
    %3320 = vmatpush1.xpose.msra.mxu0 0.0
    %3321 = vmatprep.subr.mxu0 0.0
    %3322 = vmatpush1.xpose.msra.mxu0 0.0
    %3323 = vmatprep.subr.mxu0 0.0
    %3324 = vmatpush1.xpose.msra.mxu0 0.0
    %3325 = vmatprep.subr.mxu0 0.0
    %3326 = vmatpush1.xpose.msra.mxu0 0.0
    %3327 = vmatprep.subr.mxu0 0.0
    %3328 = vmatpush1.xpose.msra.mxu0 0.0
    %3329 = vmatprep.subr.mxu0 0.0
    %3330 = vmatpush1.xpose.msra.mxu0 0.0
    %3331 = vmatprep.subr.mxu0 0.0
    %3332 = vmatpush1.xpose.msra.mxu0 0.0
    %3333 = vmatprep.subr.mxu0 0.0
    %3334 = vmatpush1.xpose.msra.mxu0 0.0
    %3335 = vmatprep.mubr.f32.mxu0 0.0
    %3336 = vmatmul.mubr.f32.gmra.mrb[0].mxu0 %v3265
    %v3337 = vpop.f32.mrb[0].mxu0
    %v3338 = vadd.f32 0.0, %v3337
    %v3339 = vpop.f32.mrb[0].mxu0
    %3340 = vdwg.mxu0
    %v3341 = vmul.f32 %v3256, 0.35355338
    %v3342 = vmul.f32 %v3338, 0.35355338
    %v3343 = vsel %vm2836, %v3341, -1e+30
    %v3344 = vsel %vm2836, %v3342, -1e+30
    %v3345 = vsel %vm979, %v3343, -inf
    %3346 = vmax.xlane.f32.xlu0 %v3345
    %v3347 = vpop.xlane.xlu0 %3346
    %v3348 = vsel %vm979, %v3344, -inf
    %3349 = vmax.xlane.f32.xlu0 %v3348
    %v3350 = vpop.xlane.xlu0 %3349
    %v3351 = vsub.f32 %v3343, %v3347
    %v3352 = vsub.f32 %v3344, %v3350
    %v3353 = vmul.f32 %v3351, 1.442695
    %v3354 = vpow.pop %v3353
    %v3355 = vmul.f32 %v3352, 1.442695
    %v3356 = vpow.pop %v3355
    %v3357 = vsel %vm979, %v3354, 0.0
    %3358 = vadd.xlane.f32.xlu0 %v3357
    %v3359 = vpop.xlane.xlu0 %3358
    %v3360 = vsel %vm979, %v3356, 0.0
    %3361 = vadd.xlane.f32.xlu0 %v3360
    %v3362 = vpop.xlane.xlu0 %3361
    %v3363 = vrcp.pop %v3359
    %v3364 = vrcp.pop %v3362
    %3365 = vrot.lane.b32.xlu0 %v2832, 88
    %v3366 = vpop.permute.xlu0 %3365
    %3367 = vrot.lane.b32.xlu0 %v2833, 88
    %v3368 = vpop.permute.xlu0 %3367
    %v3372 = vsel %vm1006, %v3354, 0
    %3374 = vmatprep.subr.mxu0 0.0
    %3375 = vmatpush1.msra.mxu0 %v3366
    %3376 = vmatprep.subr.mxu0 0.0
    %3377 = vmatpush1.msra.mxu0 %v3368
    %3378 = vmatprep.subr.mxu0 0.0
    %3379 = vmatpush1.msra.mxu0 0.0
    %3380 = vmatprep.subr.mxu0 0.0
    %3381 = vmatpush1.msra.mxu0 0.0
    %3382 = vmatprep.subr.mxu0 0.0
    %3383 = vmatpush1.msra.mxu0 0.0
    %3384 = vmatprep.subr.mxu0 0.0
    %3385 = vmatpush1.msra.mxu0 0.0
    %3386 = vmatprep.subr.mxu0 0.0
    %3387 = vmatpush1.msra.mxu0 0.0
    %3388 = vmatprep.subr.mxu0 0.0
    %3389 = vmatpush1.msra.mxu0 0.0
    %3390 = vmatprep.subr.mxu0 0.0
    %3391 = vmatpush1.msra.mxu0 0.0
    %3392 = vmatprep.subr.mxu0 0.0
    %3393 = vmatpush1.msra.mxu0 0.0
    %3394 = vmatprep.subr.mxu0 0.0
    %3395 = vmatpush1.msra.mxu0 0.0
    %3396 = vmatprep.subr.mxu0 0.0
    %3397 = vmatpush1.msra.mxu0 0.0
    %3398 = vmatprep.subr.mxu0 0.0
    %3399 = vmatpush1.msra.mxu0 0.0
    %3400 = vmatprep.subr.mxu0 0.0
    %3401 = vmatpush1.msra.mxu0 0.0
    %3402 = vmatprep.subr.mxu0 0.0
    %3403 = vmatpush1.msra.mxu0 0.0
    %3404 = vmatprep.subr.mxu0 0.0
    %3405 = vmatpush1.msra.mxu0 0.0
    %3406 = vmatprep.subr.mxu0 0.0
    %3407 = vmatpush1.msra.mxu0 0.0
    %3408 = vmatprep.subr.mxu0 0.0
    %3409 = vmatpush1.msra.mxu0 0.0
    %3410 = vmatprep.subr.mxu0 0.0
    %3411 = vmatpush1.msra.mxu0 0.0
    %3412 = vmatprep.subr.mxu0 0.0
    %3413 = vmatpush1.msra.mxu0 0.0
    %3414 = vmatprep.subr.mxu0 0.0
    %3415 = vmatpush1.msra.mxu0 0.0
    %3416 = vmatprep.subr.mxu0 0.0
    %3417 = vmatpush1.msra.mxu0 0.0
    %3418 = vmatprep.subr.mxu0 0.0
    %3419 = vmatpush1.msra.mxu0 0.0
    %3420 = vmatprep.subr.mxu0 0.0
    %3421 = vmatpush1.msra.mxu0 0.0
    %3422 = vmatprep.subr.mxu0 0.0
    %3423 = vmatpush1.msra.mxu0 0.0
    %3424 = vmatprep.subr.mxu0 0.0
    %3425 = vmatpush1.msra.mxu0 0.0
    %3426 = vmatprep.subr.mxu0 0.0
    %3427 = vmatpush1.msra.mxu0 0.0
    %3428 = vmatprep.subr.mxu0 0.0
    %3429 = vmatpush1.msra.mxu0 0.0
    %3430 = vmatprep.subr.mxu0 0.0
    %3431 = vmatpush1.msra.mxu0 0.0
    %3432 = vmatprep.subr.mxu0 0.0
    %3433 = vmatpush1.msra.mxu0 0.0
    %3434 = vmatprep.subr.mxu0 0.0
    %3435 = vmatpush1.msra.mxu0 0.0
    %3436 = vmatprep.subr.mxu0 0.0
    %3437 = vmatpush1.msra.mxu0 0.0
    %3438 = vmatprep.mubr.f32.mxu0 0.0
    %3439 = vmatmul.mubr.f32.gmra.mrb[0].mxu0 %v3372
    %v3440 = vpop.f32.mrb[0].mxu0
    %v3441 = vadd.f32 0.0, %v3440
    %v3442 = vpop.f32.mrb[0].mxu0
    %3443 = vdwg.mxu0
    %3444 = vrot.lane.b32.xlu0 %v2834, 88
    %v3445 = vpop.permute.xlu0 %3444
    %3446 = vrot.lane.b32.xlu0 %v2835, 88
    %v3447 = vpop.permute.xlu0 %3446
    %v3451 = vsel %vm1006, %v3356, 0
    %3453 = vmatprep.subr.mxu0 0.0
    %3454 = vmatpush1.msra.mxu0 %v3445
    %3455 = vmatprep.subr.mxu0 0.0
    %3456 = vmatpush1.msra.mxu0 %v3447
    %3457 = vmatprep.subr.mxu0 0.0
    %3458 = vmatpush1.msra.mxu0 0.0
    %3459 = vmatprep.subr.mxu0 0.0
    %3460 = vmatpush1.msra.mxu0 0.0
    %3461 = vmatprep.subr.mxu0 0.0
    %3462 = vmatpush1.msra.mxu0 0.0
    %3463 = vmatprep.subr.mxu0 0.0
    %3464 = vmatpush1.msra.mxu0 0.0
    %3465 = vmatprep.subr.mxu0 0.0
    %3466 = vmatpush1.msra.mxu0 0.0
    %3467 = vmatprep.subr.mxu0 0.0
    %3468 = vmatpush1.msra.mxu0 0.0
    %3469 = vmatprep.subr.mxu0 0.0
    %3470 = vmatpush1.msra.mxu0 0.0
    %3471 = vmatprep.subr.mxu0 0.0
    %3472 = vmatpush1.msra.mxu0 0.0
    %3473 = vmatprep.subr.mxu0 0.0
    %3474 = vmatpush1.msra.mxu0 0.0
    %3475 = vmatprep.subr.mxu0 0.0
    %3476 = vmatpush1.msra.mxu0 0.0
    %3477 = vmatprep.subr.mxu0 0.0
    %3478 = vmatpush1.msra.mxu0 0.0
    %3479 = vmatprep.subr.mxu0 0.0
    %3480 = vmatpush1.msra.mxu0 0.0
    %3481 = vmatprep.subr.mxu0 0.0
    %3482 = vmatpush1.msra.mxu0 0.0
    %3483 = vmatprep.subr.mxu0 0.0
    %3484 = vmatpush1.msra.mxu0 0.0
    %3485 = vmatprep.subr.mxu0 0.0
    %3486 = vmatpush1.msra.mxu0 0.0
    %3487 = vmatprep.subr.mxu0 0.0
    %3488 = vmatpush1.msra.mxu0 0.0
    %3489 = vmatprep.subr.mxu0 0.0
    %3490 = vmatpush1.msra.mxu0 0.0
    %3491 = vmatprep.subr.mxu0 0.0
    %3492 = vmatpush1.msra.mxu0 0.0
    %3493 = vmatprep.subr.mxu0 0.0
    %3494 = vmatpush1.msra.mxu0 0.0
    %3495 = vmatprep.subr.mxu0 0.0
    %3496 = vmatpush1.msra.mxu0 0.0
    %3497 = vmatprep.subr.mxu0 0.0
    %3498 = vmatpush1.msra.mxu0 0.0
    %3499 = vmatprep.subr.mxu0 0.0
    %3500 = vmatpush1.msra.mxu0 0.0
    %3501 = vmatprep.subr.mxu0 0.0
    %3502 = vmatpush1.msra.mxu0 0.0
    %3503 = vmatprep.subr.mxu0 0.0
    %3504 = vmatpush1.msra.mxu0 0.0
    %3505 = vmatprep.subr.mxu0 0.0
    %3506 = vmatpush1.msra.mxu0 0.0
    %3507 = vmatprep.subr.mxu0 0.0
    %3508 = vmatpush1.msra.mxu0 0.0
    %3509 = vmatprep.subr.mxu0 0.0
    %3510 = vmatpush1.msra.mxu0 0.0
    %3511 = vmatprep.subr.mxu0 0.0
    %3512 = vmatpush1.msra.mxu0 0.0
    %3513 = vmatprep.subr.mxu0 0.0
    %3514 = vmatpush1.msra.mxu0 0.0
    %3515 = vmatprep.subr.mxu0 0.0
    %3516 = vmatpush1.msra.mxu0 0.0
    %3517 = vmatprep.mubr.f32.mxu0 0.0
    %3518 = vmatmul.mubr.f32.gmra.mrb[0].mxu0 %v3451
    %v3519 = vpop.f32.mrb[0].mxu0
    %v3520 = vadd.f32 0.0, %v3519
    %v3521 = vpop.f32.mrb[0].mxu0
    %3522 = vdwg.mxu0
    %v3523 = vmul.f32 %v3441, %v3363
    %v3524 = vmul.f32 %v3520, %v3364
    %3525 = vrot.lane.b32.xlu0 %v2819, 112
    %v3526 = vpop.permute.xlu0 %3525
    %3527 = vrot.lane.b32.xlu0 %v2832, 112
    %v3528 = vpop.permute.xlu0 %3527
    %3529 = vrot.lane.b32.xlu0 %v2833, 112
    %v3530 = vpop.permute.xlu0 %3529
    %v3531 = vsel %vm818, %v3526, 0
    %v3533 = vsel %vm818, %v3528, 0
    %v3535 = vsel %vm818, %v3530, 0
    %3537 = vmatprep.subr.mxu0 0.0
    %3538 = vmatpush1.xpose.msra.mxu0 %v3533
    %3539 = vmatprep.subr.mxu0 0.0
    %3540 = vmatpush1.xpose.msra.mxu0 %v3535
    %3541 = vmatprep.subr.mxu0 0.0
    %3542 = vmatpush1.xpose.msra.mxu0 0.0
    %3543 = vmatprep.subr.mxu0 0.0
    %3544 = vmatpush1.xpose.msra.mxu0 0.0
    %3545 = vmatprep.subr.mxu0 0.0
    %3546 = vmatpush1.xpose.msra.mxu0 0.0
    %3547 = vmatprep.subr.mxu0 0.0
    %3548 = vmatpush1.xpose.msra.mxu0 0.0
    %3549 = vmatprep.subr.mxu0 0.0
    %3550 = vmatpush1.xpose.msra.mxu0 0.0
    %3551 = vmatprep.subr.mxu0 0.0
    %3552 = vmatpush1.xpose.msra.mxu0 0.0
    %3553 = vmatprep.subr.mxu0 0.0
    %3554 = vmatpush1.xpose.msra.mxu0 0.0
    %3555 = vmatprep.subr.mxu0 0.0
    %3556 = vmatpush1.xpose.msra.mxu0 0.0
    %3557 = vmatprep.subr.mxu0 0.0
    %3558 = vmatpush1.xpose.msra.mxu0 0.0
    %3559 = vmatprep.subr.mxu0 0.0
    %3560 = vmatpush1.xpose.msra.mxu0 0.0
    %3561 = vmatprep.subr.mxu0 0.0
    %3562 = vmatpush1.xpose.msra.mxu0 0.0
    %3563 = vmatprep.subr.mxu0 0.0
    %3564 = vmatpush1.xpose.msra.mxu0 0.0
    %3565 = vmatprep.subr.mxu0 0.0
    %3566 = vmatpush1.xpose.msra.mxu0 0.0
    %3567 = vmatprep.subr.mxu0 0.0
    %3568 = vmatpush1.xpose.msra.mxu0 0.0
    %3569 = vmatprep.subr.mxu0 0.0
    %3570 = vmatpush1.xpose.msra.mxu0 0.0
    %3571 = vmatprep.subr.mxu0 0.0
    %3572 = vmatpush1.xpose.msra.mxu0 0.0
    %3573 = vmatprep.subr.mxu0 0.0
    %3574 = vmatpush1.xpose.msra.mxu0 0.0
    %3575 = vmatprep.subr.mxu0 0.0
    %3576 = vmatpush1.xpose.msra.mxu0 0.0
    %3577 = vmatprep.subr.mxu0 0.0
    %3578 = vmatpush1.xpose.msra.mxu0 0.0
    %3579 = vmatprep.subr.mxu0 0.0
    %3580 = vmatpush1.xpose.msra.mxu0 0.0
    %3581 = vmatprep.subr.mxu0 0.0
    %3582 = vmatpush1.xpose.msra.mxu0 0.0
    %3583 = vmatprep.subr.mxu0 0.0
    %3584 = vmatpush1.xpose.msra.mxu0 0.0
    %3585 = vmatprep.subr.mxu0 0.0
    %3586 = vmatpush1.xpose.msra.mxu0 0.0
    %3587 = vmatprep.subr.mxu0 0.0
    %3588 = vmatpush1.xpose.msra.mxu0 0.0
    %3589 = vmatprep.subr.mxu0 0.0
    %3590 = vmatpush1.xpose.msra.mxu0 0.0
    %3591 = vmatprep.subr.mxu0 0.0
    %3592 = vmatpush1.xpose.msra.mxu0 0.0
    %3593 = vmatprep.subr.mxu0 0.0
    %3594 = vmatpush1.xpose.msra.mxu0 0.0
    %3595 = vmatprep.subr.mxu0 0.0
    %3596 = vmatpush1.xpose.msra.mxu0 0.0
    %3597 = vmatprep.subr.mxu0 0.0
    %3598 = vmatpush1.xpose.msra.mxu0 0.0
    %3599 = vmatprep.subr.mxu0 0.0
    %3600 = vmatpush1.xpose.msra.mxu0 0.0
    %3601 = vmatprep.mubr.f32.mxu0 0.0
    %3602 = vmatmul.mubr.f32.gmra.mrb[0].mxu0 %v3531
    %v3603 = vpop.f32.mrb[0].mxu0
    %v3604 = vadd.f32 0.0, %v3603
    %v3605 = vpop.f32.mrb[0].mxu0
    %3606 = vdwg.mxu0
    %3607 = vrot.lane.b32.xlu0 %v2823, 112
    %v3608 = vpop.permute.xlu0 %3607
    %3609 = vrot.lane.b32.xlu0 %v2834, 112
    %v3610 = vpop.permute.xlu0 %3609
    %3611 = vrot.lane.b32.xlu0 %v2835, 112
    %v3612 = vpop.permute.xlu0 %3611
    %v3613 = vsel %vm818, %v3608, 0
    %v3615 = vsel %vm818, %v3610, 0
    %v3617 = vsel %vm818, %v3612, 0
    %3619 = vmatprep.subr.mxu0 0.0
    %3620 = vmatpush1.xpose.msra.mxu0 %v3615
    %3621 = vmatprep.subr.mxu0 0.0
    %3622 = vmatpush1.xpose.msra.mxu0 %v3617
    %3623 = vmatprep.subr.mxu0 0.0
    %3624 = vmatpush1.xpose.msra.mxu0 0.0
    %3625 = vmatprep.subr.mxu0 0.0
    %3626 = vmatpush1.xpose.msra.mxu0 0.0
    %3627 = vmatprep.subr.mxu0 0.0
    %3628 = vmatpush1.xpose.msra.mxu0 0.0
    %3629 = vmatprep.subr.mxu0 0.0
    %3630 = vmatpush1.xpose.msra.mxu0 0.0
    %3631 = vmatprep.subr.mxu0 0.0
    %3632 = vmatpush1.xpose.msra.mxu0 0.0
    %3633 = vmatprep.subr.mxu0 0.0
    %3634 = vmatpush1.xpose.msra.mxu0 0.0
    %3635 = vmatprep.subr.mxu0 0.0
    %3636 = vmatpush1.xpose.msra.mxu0 0.0
    %3637 = vmatprep.subr.mxu0 0.0
    %3638 = vmatpush1.xpose.msra.mxu0 0.0
    %3639 = vmatprep.subr.mxu0 0.0
    %3640 = vmatpush1.xpose.msra.mxu0 0.0
    %3641 = vmatprep.subr.mxu0 0.0
    %3642 = vmatpush1.xpose.msra.mxu0 0.0
    %3643 = vmatprep.subr.mxu0 0.0
    %3644 = vmatpush1.xpose.msra.mxu0 0.0
    %3645 = vmatprep.subr.mxu0 0.0
    %3646 = vmatpush1.xpose.msra.mxu0 0.0
    %3647 = vmatprep.subr.mxu0 0.0
    %3648 = vmatpush1.xpose.msra.mxu0 0.0
    %3649 = vmatprep.subr.mxu0 0.0
    %3650 = vmatpush1.xpose.msra.mxu0 0.0
    %3651 = vmatprep.subr.mxu0 0.0
    %3652 = vmatpush1.xpose.msra.mxu0 0.0
    %3653 = vmatprep.subr.mxu0 0.0
    %3654 = vmatpush1.xpose.msra.mxu0 0.0
    %3655 = vmatprep.subr.mxu0 0.0
    %3656 = vmatpush1.xpose.msra.mxu0 0.0
    %3657 = vmatprep.subr.mxu0 0.0
    %3658 = vmatpush1.xpose.msra.mxu0 0.0
    %3659 = vmatprep.subr.mxu0 0.0
    %3660 = vmatpush1.xpose.msra.mxu0 0.0
    %3661 = vmatprep.subr.mxu0 0.0
    %3662 = vmatpush1.xpose.msra.mxu0 0.0
    %3663 = vmatprep.subr.mxu0 0.0
    %3664 = vmatpush1.xpose.msra.mxu0 0.0
    %3665 = vmatprep.subr.mxu0 0.0
    %3666 = vmatpush1.xpose.msra.mxu0 0.0
    %3667 = vmatprep.subr.mxu0 0.0
    %3668 = vmatpush1.xpose.msra.mxu0 0.0
    %3669 = vmatprep.subr.mxu0 0.0
    %3670 = vmatpush1.xpose.msra.mxu0 0.0
    %3671 = vmatprep.subr.mxu0 0.0
    %3672 = vmatpush1.xpose.msra.mxu0 0.0
    %3673 = vmatprep.subr.mxu0 0.0
    %3674 = vmatpush1.xpose.msra.mxu0 0.0
    %3675 = vmatprep.subr.mxu0 0.0
    %3676 = vmatpush1.xpose.msra.mxu0 0.0
    %3677 = vmatprep.subr.mxu0 0.0
    %3678 = vmatpush1.xpose.msra.mxu0 0.0
    %3679 = vmatprep.subr.mxu0 0.0
    %3680 = vmatpush1.xpose.msra.mxu0 0.0
    %3681 = vmatprep.subr.mxu0 0.0
    %3682 = vmatpush1.xpose.msra.mxu0 0.0
    %3683 = vmatprep.mubr.f32.mxu0 0.0
    %3684 = vmatmul.mubr.f32.gmra.mrb[0].mxu0 %v3613
    %v3685 = vpop.f32.mrb[0].mxu0
    %v3686 = vadd.f32 0.0, %v3685
    %v3687 = vpop.f32.mrb[0].mxu0
    %3688 = vdwg.mxu0
    %v3689 = vmul.f32 %v3604, 0.35355338
    %v3690 = vmul.f32 %v3686, 0.35355338
    %v3691 = vsel %vm2836, %v3689, -1e+30
    %v3692 = vsel %vm2836, %v3690, -1e+30
    %v3693 = vsel %vm979, %v3691, -inf
    %3694 = vmax.xlane.f32.xlu0 %v3693
    %v3695 = vpop.xlane.xlu0 %3694
    %v3696 = vsel %vm979, %v3692, -inf
    %3697 = vmax.xlane.f32.xlu0 %v3696
    %v3698 = vpop.xlane.xlu0 %3697
    %v3699 = vsub.f32 %v3691, %v3695
    %v3700 = vsub.f32 %v3692, %v3698
    %v3701 = vmul.f32 %v3699, 1.442695
    %v3702 = vpow.pop %v3701
    %v3703 = vmul.f32 %v3700, 1.442695
    %v3704 = vpow.pop %v3703
    %v3705 = vsel %vm979, %v3702, 0.0
    %3706 = vadd.xlane.f32.xlu0 %v3705
    %v3707 = vpop.xlane.xlu0 %3706
    %v3708 = vsel %vm979, %v3704, 0.0
    %3709 = vadd.xlane.f32.xlu0 %v3708
    %v3710 = vpop.xlane.xlu0 %3709
    %v3711 = vrcp.pop %v3707
    %v3712 = vrcp.pop %v3710
    %3713 = vrot.lane.b32.xlu0 %v2832, 80
    %v3714 = vpop.permute.xlu0 %3713
    %3715 = vrot.lane.b32.xlu0 %v2833, 80
    %v3716 = vpop.permute.xlu0 %3715
    %v3720 = vsel %vm1006, %v3702, 0
    %3722 = vmatprep.subr.mxu0 0.0
    %3723 = vmatpush1.msra.mxu0 %v3714
    %3724 = vmatprep.subr.mxu0 0.0
    %3725 = vmatpush1.msra.mxu0 %v3716
    %3726 = vmatprep.subr.mxu0 0.0
    %3727 = vmatpush1.msra.mxu0 0.0
    %3728 = vmatprep.subr.mxu0 0.0
    %3729 = vmatpush1.msra.mxu0 0.0
    %3730 = vmatprep.subr.mxu0 0.0
    %3731 = vmatpush1.msra.mxu0 0.0
    %3732 = vmatprep.subr.mxu0 0.0
    %3733 = vmatpush1.msra.mxu0 0.0
    %3734 = vmatprep.subr.mxu0 0.0
    %3735 = vmatpush1.msra.mxu0 0.0
    %3736 = vmatprep.subr.mxu0 0.0
    %3737 = vmatpush1.msra.mxu0 0.0
    %3738 = vmatprep.subr.mxu0 0.0
    %3739 = vmatpush1.msra.mxu0 0.0
    %3740 = vmatprep.subr.mxu0 0.0
    %3741 = vmatpush1.msra.mxu0 0.0
    %3742 = vmatprep.subr.mxu0 0.0
    %3743 = vmatpush1.msra.mxu0 0.0
    %3744 = vmatprep.subr.mxu0 0.0
    %3745 = vmatpush1.msra.mxu0 0.0
    %3746 = vmatprep.subr.mxu0 0.0
    %3747 = vmatpush1.msra.mxu0 0.0
    %3748 = vmatprep.subr.mxu0 0.0
    %3749 = vmatpush1.msra.mxu0 0.0
    %3750 = vmatprep.subr.mxu0 0.0
    %3751 = vmatpush1.msra.mxu0 0.0
    %3752 = vmatprep.subr.mxu0 0.0
    %3753 = vmatpush1.msra.mxu0 0.0
    %3754 = vmatprep.subr.mxu0 0.0
    %3755 = vmatpush1.msra.mxu0 0.0
    %3756 = vmatprep.subr.mxu0 0.0
    %3757 = vmatpush1.msra.mxu0 0.0
    %3758 = vmatprep.subr.mxu0 0.0
    %3759 = vmatpush1.msra.mxu0 0.0
    %3760 = vmatprep.subr.mxu0 0.0
    %3761 = vmatpush1.msra.mxu0 0.0
    %3762 = vmatprep.subr.mxu0 0.0
    %3763 = vmatpush1.msra.mxu0 0.0
    %3764 = vmatprep.subr.mxu0 0.0
    %3765 = vmatpush1.msra.mxu0 0.0
    %3766 = vmatprep.subr.mxu0 0.0
    %3767 = vmatpush1.msra.mxu0 0.0
    %3768 = vmatprep.subr.mxu0 0.0
    %3769 = vmatpush1.msra.mxu0 0.0
    %3770 = vmatprep.subr.mxu0 0.0
    %3771 = vmatpush1.msra.mxu0 0.0
    %3772 = vmatprep.subr.mxu0 0.0
    %3773 = vmatpush1.msra.mxu0 0.0
    %3774 = vmatprep.subr.mxu0 0.0
    %3775 = vmatpush1.msra.mxu0 0.0
    %3776 = vmatprep.subr.mxu0 0.0
    %3777 = vmatpush1.msra.mxu0 0.0
    %3778 = vmatprep.subr.mxu0 0.0
    %3779 = vmatpush1.msra.mxu0 0.0
    %3780 = vmatprep.subr.mxu0 0.0
    %3781 = vmatpush1.msra.mxu0 0.0
    %3782 = vmatprep.subr.mxu0 0.0
    %3783 = vmatpush1.msra.mxu0 0.0
    %3784 = vmatprep.subr.mxu0 0.0
    %3785 = vmatpush1.msra.mxu0 0.0
    %3786 = vmatprep.mubr.f32.mxu0 0.0
    %3787 = vmatmul.mubr.f32.gmra.mrb[0].mxu0 %v3720
    %v3788 = vpop.f32.mrb[0].mxu0
    %v3789 = vadd.f32 0.0, %v3788
    %v3790 = vpop.f32.mrb[0].mxu0
    %3791 = vdwg.mxu0
    %3792 = vrot.lane.b32.xlu0 %v2834, 80
    %v3793 = vpop.permute.xlu0 %3792
    %3794 = vrot.lane.b32.xlu0 %v2835, 80
    %v3795 = vpop.permute.xlu0 %3794
    %v3799 = vsel %vm1006, %v3704, 0
    %3801 = vmatprep.subr.mxu0 0.0
    %3802 = vmatpush1.msra.mxu0 %v3793
    %3803 = vmatprep.subr.mxu0 0.0
    %3804 = vmatpush1.msra.mxu0 %v3795
    %3805 = vmatprep.subr.mxu0 0.0
    %3806 = vmatpush1.msra.mxu0 0.0
    %3807 = vmatprep.subr.mxu0 0.0
    %3808 = vmatpush1.msra.mxu0 0.0
    %3809 = vmatprep.subr.mxu0 0.0
    %3810 = vmatpush1.msra.mxu0 0.0
    %3811 = vmatprep.subr.mxu0 0.0
    %3812 = vmatpush1.msra.mxu0 0.0
    %3813 = vmatprep.subr.mxu0 0.0
    %3814 = vmatpush1.msra.mxu0 0.0
    %3815 = vmatprep.subr.mxu0 0.0
    %3816 = vmatpush1.msra.mxu0 0.0
    %3817 = vmatprep.subr.mxu0 0.0
    %3818 = vmatpush1.msra.mxu0 0.0
    %3819 = vmatprep.subr.mxu0 0.0
    %3820 = vmatpush1.msra.mxu0 0.0
    %3821 = vmatprep.subr.mxu0 0.0
    %3822 = vmatpush1.msra.mxu0 0.0
    %3823 = vmatprep.subr.mxu0 0.0
    %3824 = vmatpush1.msra.mxu0 0.0
    %3825 = vmatprep.subr.mxu0 0.0
    %3826 = vmatpush1.msra.mxu0 0.0
    %3827 = vmatprep.subr.mxu0 0.0
    %3828 = vmatpush1.msra.mxu0 0.0
    %3829 = vmatprep.subr.mxu0 0.0
    %3830 = vmatpush1.msra.mxu0 0.0
    %3831 = vmatprep.subr.mxu0 0.0
    %3832 = vmatpush1.msra.mxu0 0.0
    %3833 = vmatprep.subr.mxu0 0.0
    %3834 = vmatpush1.msra.mxu0 0.0
    %3835 = vmatprep.subr.mxu0 0.0
    %3836 = vmatpush1.msra.mxu0 0.0
    %3837 = vmatprep.subr.mxu0 0.0
    %3838 = vmatpush1.msra.mxu0 0.0
    %3839 = vmatprep.subr.mxu0 0.0
    %3840 = vmatpush1.msra.mxu0 0.0
    %3841 = vmatprep.subr.mxu0 0.0
    %3842 = vmatpush1.msra.mxu0 0.0
    %3843 = vmatprep.subr.mxu0 0.0
    %3844 = vmatpush1.msra.mxu0 0.0
    %3845 = vmatprep.subr.mxu0 0.0
    %3846 = vmatpush1.msra.mxu0 0.0
    %3847 = vmatprep.subr.mxu0 0.0
    %3848 = vmatpush1.msra.mxu0 0.0
    %3849 = vmatprep.subr.mxu0 0.0
    %3850 = vmatpush1.msra.mxu0 0.0
    %3851 = vmatprep.subr.mxu0 0.0
    %3852 = vmatpush1.msra.mxu0 0.0
    %3853 = vmatprep.subr.mxu0 0.0
    %3854 = vmatpush1.msra.mxu0 0.0
    %3855 = vmatprep.subr.mxu0 0.0
    %3856 = vmatpush1.msra.mxu0 0.0
    %3857 = vmatprep.subr.mxu0 0.0
    %3858 = vmatpush1.msra.mxu0 0.0
    %3859 = vmatprep.subr.mxu0 0.0
    %3860 = vmatpush1.msra.mxu0 0.0
    %3861 = vmatprep.subr.mxu0 0.0
    %3862 = vmatpush1.msra.mxu0 0.0
    %3863 = vmatprep.subr.mxu0 0.0
    %3864 = vmatpush1.msra.mxu0 0.0
    %3865 = vmatprep.mubr.f32.mxu0 0.0
    %3866 = vmatmul.mubr.f32.gmra.mrb[0].mxu0 %v3799
    %v3867 = vpop.f32.mrb[0].mxu0
    %v3868 = vadd.f32 0.0, %v3867
    %v3869 = vpop.f32.mrb[0].mxu0
    %3870 = vdwg.mxu0
    %v3871 = vmul.f32 %v3789, %v3711
    %v3872 = vmul.f32 %v3868, %v3712
    %3873 = vrot.lane.b32.xlu0 %v2819, 104
    %v3874 = vpop.permute.xlu0 %3873
    %3875 = vrot.lane.b32.xlu0 %v2832, 104
    %v3876 = vpop.permute.xlu0 %3875
    %3877 = vrot.lane.b32.xlu0 %v2833, 104
    %v3878 = vpop.permute.xlu0 %3877
    %v3879 = vsel %vm818, %v3874, 0
    %v3881 = vsel %vm818, %v3876, 0
    %v3883 = vsel %vm818, %v3878, 0
    %3885 = vmatprep.subr.mxu0 0.0
    %3886 = vmatpush1.xpose.msra.mxu0 %v3881
    %3887 = vmatprep.subr.mxu0 0.0
    %3888 = vmatpush1.xpose.msra.mxu0 %v3883
    %3889 = vmatprep.subr.mxu0 0.0
    %3890 = vmatpush1.xpose.msra.mxu0 0.0
    %3891 = vmatprep.subr.mxu0 0.0
    %3892 = vmatpush1.xpose.msra.mxu0 0.0
    %3893 = vmatprep.subr.mxu0 0.0
    %3894 = vmatpush1.xpose.msra.mxu0 0.0
    %3895 = vmatprep.subr.mxu0 0.0
    %3896 = vmatpush1.xpose.msra.mxu0 0.0
    %3897 = vmatprep.subr.mxu0 0.0
    %3898 = vmatpush1.xpose.msra.mxu0 0.0
    %3899 = vmatprep.subr.mxu0 0.0
    %3900 = vmatpush1.xpose.msra.mxu0 0.0
    %3901 = vmatprep.subr.mxu0 0.0
    %3902 = vmatpush1.xpose.msra.mxu0 0.0
    %3903 = vmatprep.subr.mxu0 0.0
    %3904 = vmatpush1.xpose.msra.mxu0 0.0
    %3905 = vmatprep.subr.mxu0 0.0
    %3906 = vmatpush1.xpose.msra.mxu0 0.0
    %3907 = vmatprep.subr.mxu0 0.0
    %3908 = vmatpush1.xpose.msra.mxu0 0.0
    %3909 = vmatprep.subr.mxu0 0.0
    %3910 = vmatpush1.xpose.msra.mxu0 0.0
    %3911 = vmatprep.subr.mxu0 0.0
    %3912 = vmatpush1.xpose.msra.mxu0 0.0
    %3913 = vmatprep.subr.mxu0 0.0
    %3914 = vmatpush1.xpose.msra.mxu0 0.0
    %3915 = vmatprep.subr.mxu0 0.0
    %3916 = vmatpush1.xpose.msra.mxu0 0.0
    %3917 = vmatprep.subr.mxu0 0.0
    %3918 = vmatpush1.xpose.msra.mxu0 0.0
    %3919 = vmatprep.subr.mxu0 0.0
    %3920 = vmatpush1.xpose.msra.mxu0 0.0
    %3921 = vmatprep.subr.mxu0 0.0
    %3922 = vmatpush1.xpose.msra.mxu0 0.0
    %3923 = vmatprep.subr.mxu0 0.0
    %3924 = vmatpush1.xpose.msra.mxu0 0.0
    %3925 = vmatprep.subr.mxu0 0.0
    %3926 = vmatpush1.xpose.msra.mxu0 0.0
    %3927 = vmatprep.subr.mxu0 0.0
    %3928 = vmatpush1.xpose.msra.mxu0 0.0
    %3929 = vmatprep.subr.mxu0 0.0
    %3930 = vmatpush1.xpose.msra.mxu0 0.0
    %3931 = vmatprep.subr.mxu0 0.0
    %3932 = vmatpush1.xpose.msra.mxu0 0.0
    %3933 = vmatprep.subr.mxu0 0.0
    %3934 = vmatpush1.xpose.msra.mxu0 0.0
    %3935 = vmatprep.subr.mxu0 0.0
    %3936 = vmatpush1.xpose.msra.mxu0 0.0
    %3937 = vmatprep.subr.mxu0 0.0
    %3938 = vmatpush1.xpose.msra.mxu0 0.0
    %3939 = vmatprep.subr.mxu0 0.0
    %3940 = vmatpush1.xpose.msra.mxu0 0.0
    %3941 = vmatprep.subr.mxu0 0.0
    %3942 = vmatpush1.xpose.msra.mxu0 0.0
    %3943 = vmatprep.subr.mxu0 0.0
    %3944 = vmatpush1.xpose.msra.mxu0 0.0
    %3945 = vmatprep.subr.mxu0 0.0
    %3946 = vmatpush1.xpose.msra.mxu0 0.0
    %3947 = vmatprep.subr.mxu0 0.0
    %3948 = vmatpush1.xpose.msra.mxu0 0.0
    %3949 = vmatprep.mubr.f32.mxu0 0.0
    %3950 = vmatmul.mubr.f32.gmra.mrb[0].mxu0 %v3879
    %v3951 = vpop.f32.mrb[0].mxu0
    %v3952 = vadd.f32 0.0, %v3951
    %v3953 = vpop.f32.mrb[0].mxu0
    %3954 = vdwg.mxu0
    %3955 = vrot.lane.b32.xlu0 %v2823, 104
    %v3956 = vpop.permute.xlu0 %3955
    %3957 = vrot.lane.b32.xlu0 %v2834, 104
    %v3958 = vpop.permute.xlu0 %3957
    %3959 = vrot.lane.b32.xlu0 %v2835, 104
    %v3960 = vpop.permute.xlu0 %3959
    %v3961 = vsel %vm818, %v3956, 0
    %v3963 = vsel %vm818, %v3958, 0
    %v3965 = vsel %vm818, %v3960, 0
    %3967 = vmatprep.subr.mxu0 0.0
    %3968 = vmatpush1.xpose.msra.mxu0 %v3963
    %3969 = vmatprep.subr.mxu0 0.0
    %3970 = vmatpush1.xpose.msra.mxu0 %v3965
    %3971 = vmatprep.subr.mxu0 0.0
    %3972 = vmatpush1.xpose.msra.mxu0 0.0
    %3973 = vmatprep.subr.mxu0 0.0
    %3974 = vmatpush1.xpose.msra.mxu0 0.0
    %3975 = vmatprep.subr.mxu0 0.0
    %3976 = vmatpush1.xpose.msra.mxu0 0.0
    %3977 = vmatprep.subr.mxu0 0.0
    %3978 = vmatpush1.xpose.msra.mxu0 0.0
    %3979 = vmatprep.subr.mxu0 0.0
    %3980 = vmatpush1.xpose.msra.mxu0 0.0
    %3981 = vmatprep.subr.mxu0 0.0
    %3982 = vmatpush1.xpose.msra.mxu0 0.0
    %3983 = vmatprep.subr.mxu0 0.0
    %3984 = vmatpush1.xpose.msra.mxu0 0.0
    %3985 = vmatprep.subr.mxu0 0.0
    %3986 = vmatpush1.xpose.msra.mxu0 0.0
    %3987 = vmatprep.subr.mxu0 0.0
    %3988 = vmatpush1.xpose.msra.mxu0 0.0
    %3989 = vmatprep.subr.mxu0 0.0
    %3990 = vmatpush1.xpose.msra.mxu0 0.0
    %3991 = vmatprep.subr.mxu0 0.0
    %3992 = vmatpush1.xpose.msra.mxu0 0.0
    %3993 = vmatprep.subr.mxu0 0.0
    %3994 = vmatpush1.xpose.msra.mxu0 0.0
    %3995 = vmatprep.subr.mxu0 0.0
    %3996 = vmatpush1.xpose.msra.mxu0 0.0
    %3997 = vmatprep.subr.mxu0 0.0
    %3998 = vmatpush1.xpose.msra.mxu0 0.0
    %3999 = vmatprep.subr.mxu0 0.0
    %4000 = vmatpush1.xpose.msra.mxu0 0.0
    %4001 = vmatprep.subr.mxu0 0.0
    %4002 = vmatpush1.xpose.msra.mxu0 0.0
    %4003 = vmatprep.subr.mxu0 0.0
    %4004 = vmatpush1.xpose.msra.mxu0 0.0
    %4005 = vmatprep.subr.mxu0 0.0
    %4006 = vmatpush1.xpose.msra.mxu0 0.0
    %4007 = vmatprep.subr.mxu0 0.0
    %4008 = vmatpush1.xpose.msra.mxu0 0.0
    %4009 = vmatprep.subr.mxu0 0.0
    %4010 = vmatpush1.xpose.msra.mxu0 0.0
    %4011 = vmatprep.subr.mxu0 0.0
    %4012 = vmatpush1.xpose.msra.mxu0 0.0
    %4013 = vmatprep.subr.mxu0 0.0
    %4014 = vmatpush1.xpose.msra.mxu0 0.0
    %4015 = vmatprep.subr.mxu0 0.0
    %4016 = vmatpush1.xpose.msra.mxu0 0.0
    %4017 = vmatprep.subr.mxu0 0.0
    %4018 = vmatpush1.xpose.msra.mxu0 0.0
    %4019 = vmatprep.subr.mxu0 0.0
    %4020 = vmatpush1.xpose.msra.mxu0 0.0
    %4021 = vmatprep.subr.mxu0 0.0
    %4022 = vmatpush1.xpose.msra.mxu0 0.0
    %4023 = vmatprep.subr.mxu0 0.0
    %4024 = vmatpush1.xpose.msra.mxu0 0.0
    %4025 = vmatprep.subr.mxu0 0.0
    %4026 = vmatpush1.xpose.msra.mxu0 0.0
    %4027 = vmatprep.subr.mxu0 0.0
    %4028 = vmatpush1.xpose.msra.mxu0 0.0
    %4029 = vmatprep.subr.mxu0 0.0
    %4030 = vmatpush1.xpose.msra.mxu0 0.0
    %4031 = vmatprep.mubr.f32.mxu0 0.0
    %4032 = vmatmul.mubr.f32.gmra.mrb[0].mxu0 %v3961
    %v4033 = vpop.f32.mrb[0].mxu0
    %v4034 = vadd.f32 0.0, %v4033
    %v4035 = vpop.f32.mrb[0].mxu0
    %4036 = vdwg.mxu0
    %v4037 = vmul.f32 %v3952, 0.35355338
    %v4038 = vmul.f32 %v4034, 0.35355338
    %v4039 = vsel %vm2836, %v4037, -1e+30
    %v4040 = vsel %vm2836, %v4038, -1e+30
    %v4041 = vsel %vm979, %v4039, -inf
    %4042 = vmax.xlane.f32.xlu0 %v4041
    %v4043 = vpop.xlane.xlu0 %4042
    %v4044 = vsel %vm979, %v4040, -inf
    %4045 = vmax.xlane.f32.xlu0 %v4044
    %v4046 = vpop.xlane.xlu0 %4045
    %v4047 = vsub.f32 %v4039, %v4043
    %v4048 = vsub.f32 %v4040, %v4046
    %v4049 = vmul.f32 %v4047, 1.442695
    %v4050 = vpow.pop %v4049
    %v4051 = vmul.f32 %v4048, 1.442695
    %v4052 = vpow.pop %v4051
    %v4053 = vsel %vm979, %v4050, 0.0
    %4054 = vadd.xlane.f32.xlu0 %v4053
    %v4055 = vpop.xlane.xlu0 %4054
    %v4056 = vsel %vm979, %v4052, 0.0
    %4057 = vadd.xlane.f32.xlu0 %v4056
    %v4058 = vpop.xlane.xlu0 %4057
    %v4059 = vrcp.pop %v4055
    %v4060 = vrcp.pop %v4058
    %4061 = vrot.lane.b32.xlu0 %v2832, 72
    %v4062 = vpop.permute.xlu0 %4061
    %4063 = vrot.lane.b32.xlu0 %v2833, 72
    %v4064 = vpop.permute.xlu0 %4063
    %v4068 = vsel %vm1006, %v4050, 0
    %4070 = vmatprep.subr.mxu0 0.0
    %4071 = vmatpush1.msra.mxu0 %v4062
    %4072 = vmatprep.subr.mxu0 0.0
    %4073 = vmatpush1.msra.mxu0 %v4064
    %4074 = vmatprep.subr.mxu0 0.0
    %4075 = vmatpush1.msra.mxu0 0.0
    %4076 = vmatprep.subr.mxu0 0.0
    %4077 = vmatpush1.msra.mxu0 0.0
    %4078 = vmatprep.subr.mxu0 0.0
    %4079 = vmatpush1.msra.mxu0 0.0
    %4080 = vmatprep.subr.mxu0 0.0
    %4081 = vmatpush1.msra.mxu0 0.0
    %4082 = vmatprep.subr.mxu0 0.0
    %4083 = vmatpush1.msra.mxu0 0.0
    %4084 = vmatprep.subr.mxu0 0.0
    %4085 = vmatpush1.msra.mxu0 0.0
    %4086 = vmatprep.subr.mxu0 0.0
    %4087 = vmatpush1.msra.mxu0 0.0
    %4088 = vmatprep.subr.mxu0 0.0
    %4089 = vmatpush1.msra.mxu0 0.0
    %4090 = vmatprep.subr.mxu0 0.0
    %4091 = vmatpush1.msra.mxu0 0.0
    %4092 = vmatprep.subr.mxu0 0.0
    %4093 = vmatpush1.msra.mxu0 0.0
    %4094 = vmatprep.subr.mxu0 0.0
    %4095 = vmatpush1.msra.mxu0 0.0
    %4096 = vmatprep.subr.mxu0 0.0
    %4097 = vmatpush1.msra.mxu0 0.0
    %4098 = vmatprep.subr.mxu0 0.0
    %4099 = vmatpush1.msra.mxu0 0.0
    %4100 = vmatprep.subr.mxu0 0.0
    %4101 = vmatpush1.msra.mxu0 0.0
    %4102 = vmatprep.subr.mxu0 0.0
    %4103 = vmatpush1.msra.mxu0 0.0
    %4104 = vmatprep.subr.mxu0 0.0
    %4105 = vmatpush1.msra.mxu0 0.0
    %4106 = vmatprep.subr.mxu0 0.0
    %4107 = vmatpush1.msra.mxu0 0.0
    %4108 = vmatprep.subr.mxu0 0.0
    %4109 = vmatpush1.msra.mxu0 0.0
    %4110 = vmatprep.subr.mxu0 0.0
    %4111 = vmatpush1.msra.mxu0 0.0
    %4112 = vmatprep.subr.mxu0 0.0
    %4113 = vmatpush1.msra.mxu0 0.0
    %4114 = vmatprep.subr.mxu0 0.0
    %4115 = vmatpush1.msra.mxu0 0.0
    %4116 = vmatprep.subr.mxu0 0.0
    %4117 = vmatpush1.msra.mxu0 0.0
    %4118 = vmatprep.subr.mxu0 0.0
    %4119 = vmatpush1.msra.mxu0 0.0
    %4120 = vmatprep.subr.mxu0 0.0
    %4121 = vmatpush1.msra.mxu0 0.0
    %4122 = vmatprep.subr.mxu0 0.0
    %4123 = vmatpush1.msra.mxu0 0.0
    %4124 = vmatprep.subr.mxu0 0.0
    %4125 = vmatpush1.msra.mxu0 0.0
    %4126 = vmatprep.subr.mxu0 0.0
    %4127 = vmatpush1.msra.mxu0 0.0
    %4128 = vmatprep.subr.mxu0 0.0
    %4129 = vmatpush1.msra.mxu0 0.0
    %4130 = vmatprep.subr.mxu0 0.0
    %4131 = vmatpush1.msra.mxu0 0.0
    %4132 = vmatprep.subr.mxu0 0.0
    %4133 = vmatpush1.msra.mxu0 0.0
    %4134 = vmatprep.mubr.f32.mxu0 0.0
    %4135 = vmatmul.mubr.f32.gmra.mrb[0].mxu0 %v4068
    %v4136 = vpop.f32.mrb[0].mxu0
    %v4137 = vadd.f32 0.0, %v4136
    %v4138 = vpop.f32.mrb[0].mxu0
    %4139 = vdwg.mxu0
    %4140 = vrot.lane.b32.xlu0 %v2834, 72
    %v4141 = vpop.permute.xlu0 %4140
    %4142 = vrot.lane.b32.xlu0 %v2835, 72
    %v4143 = vpop.permute.xlu0 %4142
    %v4147 = vsel %vm1006, %v4052, 0
    %4149 = vmatprep.subr.mxu0 0.0
    %4150 = vmatpush1.msra.mxu0 %v4141
    %4151 = vmatprep.subr.mxu0 0.0
    %4152 = vmatpush1.msra.mxu0 %v4143
    %4153 = vmatprep.subr.mxu0 0.0
    %4154 = vmatpush1.msra.mxu0 0.0
    %4155 = vmatprep.subr.mxu0 0.0
    %4156 = vmatpush1.msra.mxu0 0.0
    %4157 = vmatprep.subr.mxu0 0.0
    %4158 = vmatpush1.msra.mxu0 0.0
    %4159 = vmatprep.subr.mxu0 0.0
    %4160 = vmatpush1.msra.mxu0 0.0
    %4161 = vmatprep.subr.mxu0 0.0
    %4162 = vmatpush1.msra.mxu0 0.0
    %4163 = vmatprep.subr.mxu0 0.0
    %4164 = vmatpush1.msra.mxu0 0.0
    %4165 = vmatprep.subr.mxu0 0.0
    %4166 = vmatpush1.msra.mxu0 0.0
    %4167 = vmatprep.subr.mxu0 0.0
    %4168 = vmatpush1.msra.mxu0 0.0
    %4169 = vmatprep.subr.mxu0 0.0
    %4170 = vmatpush1.msra.mxu0 0.0
    %4171 = vmatprep.subr.mxu0 0.0
    %4172 = vmatpush1.msra.mxu0 0.0
    %4173 = vmatprep.subr.mxu0 0.0
    %4174 = vmatpush1.msra.mxu0 0.0
    %4175 = vmatprep.subr.mxu0 0.0
    %4176 = vmatpush1.msra.mxu0 0.0
    %4177 = vmatprep.subr.mxu0 0.0
    %4178 = vmatpush1.msra.mxu0 0.0
    %4179 = vmatprep.subr.mxu0 0.0
    %4180 = vmatpush1.msra.mxu0 0.0
    %4181 = vmatprep.subr.mxu0 0.0
    %4182 = vmatpush1.msra.mxu0 0.0
    %4183 = vmatprep.subr.mxu0 0.0
    %4184 = vmatpush1.msra.mxu0 0.0
    %4185 = vmatprep.subr.mxu0 0.0
    %4186 = vmatpush1.msra.mxu0 0.0
    %4187 = vmatprep.subr.mxu0 0.0
    %4188 = vmatpush1.msra.mxu0 0.0
    %4189 = vmatprep.subr.mxu0 0.0
    %4190 = vmatpush1.msra.mxu0 0.0
    %4191 = vmatprep.subr.mxu0 0.0
    %4192 = vmatpush1.msra.mxu0 0.0
    %4193 = vmatprep.subr.mxu0 0.0
    %4194 = vmatpush1.msra.mxu0 0.0
    %4195 = vmatprep.subr.mxu0 0.0
    %4196 = vmatpush1.msra.mxu0 0.0
    %4197 = vmatprep.subr.mxu0 0.0
    %4198 = vmatpush1.msra.mxu0 0.0
    %4199 = vmatprep.subr.mxu0 0.0
    %4200 = vmatpush1.msra.mxu0 0.0
    %4201 = vmatprep.subr.mxu0 0.0
    %4202 = vmatpush1.msra.mxu0 0.0
    %4203 = vmatprep.subr.mxu0 0.0
    %4204 = vmatpush1.msra.mxu0 0.0
    %4205 = vmatprep.subr.mxu0 0.0
    %4206 = vmatpush1.msra.mxu0 0.0
    %4207 = vmatprep.subr.mxu0 0.0
    %4208 = vmatpush1.msra.mxu0 0.0
    %4209 = vmatprep.subr.mxu0 0.0
    %4210 = vmatpush1.msra.mxu0 0.0
    %4211 = vmatprep.subr.mxu0 0.0
    %4212 = vmatpush1.msra.mxu0 0.0
    %4213 = vmatprep.mubr.f32.mxu0 0.0
    %4214 = vmatmul.mubr.f32.gmra.mrb[0].mxu0 %v4147
    %v4215 = vpop.f32.mrb[0].mxu0
    %v4216 = vadd.f32 0.0, %v4215
    %v4217 = vpop.f32.mrb[0].mxu0
    %4218 = vdwg.mxu0
    %v4219 = vmul.f32 %v4137, %v4059
    %v4220 = vmul.f32 %v4216, %v4060
    %4223 = vrot.lane.b32.xlu0 %v3523, 8
    %v4224 = vpop.permute.xlu0 %4223
    %4225 = vrot.lane.b32.xlu0 %v3524, 8
    %v4226 = vpop.permute.xlu0 %4225
    %4231 = vrot.lane.b32.xlu0 %v3871, 16
    %v4232 = vpop.permute.xlu0 %4231
    %4233 = vrot.lane.b32.xlu0 %v3872, 16
    %v4234 = vpop.permute.xlu0 %4233
    %4239 = vrot.lane.b32.xlu0 %v4219, 24
    %v4240 = vpop.permute.xlu0 %4239
    %4241 = vrot.lane.b32.xlu0 %v4220, 24
    %v4242 = vpop.permute.xlu0 %4241
    %v4245 = vsel %vm818, %v3175, %v4224
    %v4246 = vsel %vm818, %v3176, %v4226
    %v4247 = vsel %vm1006, %v4245, %v4232
    %v4248 = vsel %vm1006, %v4246, %v4234
    %v4249 = vsel %vm2233, %v4247, %v4240
    %v4250 = vsel %vm2233, %v4248, %v4242
    %v4253 = vrot.slane %v4250, 7
    %v4254 = vsel %vm699, %v4253, %v4249
    %v4255 = vsel %vm226, %v4254, 0
    %4257 = vmatprep.subr.mxu0 0.0
    %4258 = vmatpush1.msra.mxu0 %v84
    %4259 = vmatprep.subr.mxu0 0.0
    %4260 = vmatpush1.msra.mxu0 %v85
    %4261 = vmatprep.subr.mxu0 0.0
    %4262 = vmatpush1.msra.mxu0 %v86
    %4263 = vmatprep.subr.mxu0 0.0
    %4264 = vmatpush1.msra.mxu0 %v87
    %4265 = vmatprep.subr.mxu0 0.0
    %4266 = vmatpush1.msra.mxu0 0.0
    %4267 = vmatprep.subr.mxu0 0.0
    %4268 = vmatpush1.msra.mxu0 0.0
    %4269 = vmatprep.subr.mxu0 0.0
    %4270 = vmatpush1.msra.mxu0 0.0
    %4271 = vmatprep.subr.mxu0 0.0
    %4272 = vmatpush1.msra.mxu0 0.0
    %4273 = vmatprep.subr.mxu0 0.0
    %4274 = vmatpush1.msra.mxu0 0.0
    %4275 = vmatprep.subr.mxu0 0.0
    %4276 = vmatpush1.msra.mxu0 0.0
    %4277 = vmatprep.subr.mxu0 0.0
    %4278 = vmatpush1.msra.mxu0 0.0
    %4279 = vmatprep.subr.mxu0 0.0
    %4280 = vmatpush1.msra.mxu0 0.0
    %4281 = vmatprep.subr.mxu0 0.0
    %4282 = vmatpush1.msra.mxu0 0.0
    %4283 = vmatprep.subr.mxu0 0.0
    %4284 = vmatpush1.msra.mxu0 0.0
    %4285 = vmatprep.subr.mxu0 0.0
    %4286 = vmatpush1.msra.mxu0 0.0
    %4287 = vmatprep.subr.mxu0 0.0
    %4288 = vmatpush1.msra.mxu0 0.0
    %4289 = vmatprep.subr.mxu0 0.0
    %4290 = vmatpush1.msra.mxu0 0.0
    %4291 = vmatprep.subr.mxu0 0.0
    %4292 = vmatpush1.msra.mxu0 0.0
    %4293 = vmatprep.subr.mxu0 0.0
    %4294 = vmatpush1.msra.mxu0 0.0
    %4295 = vmatprep.subr.mxu0 0.0
    %4296 = vmatpush1.msra.mxu0 0.0
    %4297 = vmatprep.subr.mxu0 0.0
    %4298 = vmatpush1.msra.mxu0 0.0
    %4299 = vmatprep.subr.mxu0 0.0
    %4300 = vmatpush1.msra.mxu0 0.0
    %4301 = vmatprep.subr.mxu0 0.0
    %4302 = vmatpush1.msra.mxu0 0.0
    %4303 = vmatprep.subr.mxu0 0.0
    %4304 = vmatpush1.msra.mxu0 0.0
    %4305 = vmatprep.subr.mxu0 0.0
    %4306 = vmatpush1.msra.mxu0 0.0
    %4307 = vmatprep.subr.mxu0 0.0
    %4308 = vmatpush1.msra.mxu0 0.0
    %4309 = vmatprep.subr.mxu0 0.0
    %4310 = vmatpush1.msra.mxu0 0.0
    %4311 = vmatprep.subr.mxu0 0.0
    %4312 = vmatpush1.msra.mxu0 0.0
    %4313 = vmatprep.subr.mxu0 0.0
    %4314 = vmatpush1.msra.mxu0 0.0
    %4315 = vmatprep.subr.mxu0 0.0
    %4316 = vmatpush1.msra.mxu0 0.0
    %4317 = vmatprep.subr.mxu0 0.0
    %4318 = vmatpush1.msra.mxu0 0.0
    %4319 = vmatprep.subr.mxu0 0.0
    %4320 = vmatpush1.msra.mxu0 0.0
    %4321 = vmatprep.mubr.f32.mxu0 0.0
    %4322 = vmatmul.mubr.f32.gmra.mrb[0].mxu0 %v4255
    %v4323 = vpop.f32.mrb[0].mxu0
    %v4324 = vadd.f32 %v2240, %v4323
    %v4325 = vpop.f32.mrb[0].mxu0
    %4326 = vdwg.mxu0
    %v4327 = vadd.f32 %v2707, %v4324
    %v4328 = vmul.f32 %v4327, %v4327
    %v4329 = vsel %vm2711, %v4328, 0.0
    %4330 = vadd.xlane.f32.xlu0 %v4329
    %v4331 = vpop.xlane.xlu0 %4330
    %v4332 = vmul.f32 %v4331, %v524
    %v4333 = vadd.f32 %v4332, 1e-06
    %v4334 = vrsqrt.pop %v4333
    %v4335 = vmul.f32 %v4327, %v4334
    %v4336 = vmul.f32 %v4335, %v2348
    %v4338 = vsel %vm226, %v4336, 0
    %4340 = vmatprep.subr.mxu0 0.0
    %4341 = vmatpush1.msra.mxu0 %v89
    %4342 = vmatprep.subr.mxu0 0.0
    %4343 = vmatpush1.msra.mxu0 %v90
    %4344 = vmatprep.subr.mxu0 0.0
    %4345 = vmatpush1.msra.mxu0 %v91
    %4346 = vmatprep.subr.mxu0 0.0
    %4347 = vmatpush1.msra.mxu0 %v92
    %4348 = vmatprep.subr.mxu0 0.0
    %4349 = vmatpush1.msra.mxu0 0.0
    %4350 = vmatprep.subr.mxu0 0.0
    %4351 = vmatpush1.msra.mxu0 0.0
    %4352 = vmatprep.subr.mxu0 0.0
    %4353 = vmatpush1.msra.mxu0 0.0
    %4354 = vmatprep.subr.mxu0 0.0
    %4355 = vmatpush1.msra.mxu0 0.0
    %4356 = vmatprep.subr.mxu0 0.0
    %4357 = vmatpush1.msra.mxu0 0.0
    %4358 = vmatprep.subr.mxu0 0.0
    %4359 = vmatpush1.msra.mxu0 0.0
    %4360 = vmatprep.subr.mxu0 0.0
    %4361 = vmatpush1.msra.mxu0 0.0
    %4362 = vmatprep.subr.mxu0 0.0
    %4363 = vmatpush1.msra.mxu0 0.0
    %4364 = vmatprep.subr.mxu0 0.0
    %4365 = vmatpush1.msra.mxu0 0.0
    %4366 = vmatprep.subr.mxu0 0.0
    %4367 = vmatpush1.msra.mxu0 0.0
    %4368 = vmatprep.subr.mxu0 0.0
    %4369 = vmatpush1.msra.mxu0 0.0
    %4370 = vmatprep.subr.mxu0 0.0
    %4371 = vmatpush1.msra.mxu0 0.0
    %4372 = vmatprep.subr.mxu0 0.0
    %4373 = vmatpush1.msra.mxu0 0.0
    %4374 = vmatprep.subr.mxu0 0.0
    %4375 = vmatpush1.msra.mxu0 0.0
    %4376 = vmatprep.subr.mxu0 0.0
    %4377 = vmatpush1.msra.mxu0 0.0
    %4378 = vmatprep.subr.mxu0 0.0
    %4379 = vmatpush1.msra.mxu0 0.0
    %4380 = vmatprep.subr.mxu0 0.0
    %4381 = vmatpush1.msra.mxu0 0.0
    %4382 = vmatprep.subr.mxu0 0.0
    %4383 = vmatpush1.msra.mxu0 0.0
    %4384 = vmatprep.subr.mxu0 0.0
    %4385 = vmatpush1.msra.mxu0 0.0
    %4386 = vmatprep.subr.mxu0 0.0
    %4387 = vmatpush1.msra.mxu0 0.0
    %4388 = vmatprep.subr.mxu0 0.0
    %4389 = vmatpush1.msra.mxu0 0.0
    %4390 = vmatprep.subr.mxu0 0.0
    %4391 = vmatpush1.msra.mxu0 0.0
    %4392 = vmatprep.subr.mxu0 0.0
    %4393 = vmatpush1.msra.mxu0 0.0
    %4394 = vmatprep.subr.mxu0 0.0
    %4395 = vmatpush1.msra.mxu0 0.0
    %4396 = vmatprep.subr.mxu0 0.0
    %4397 = vmatpush1.msra.mxu0 0.0
    %4398 = vmatprep.subr.mxu0 0.0
    %4399 = vmatpush1.msra.mxu0 0.0
    %4400 = vmatprep.subr.mxu0 0.0
    %4401 = vmatpush1.msra.mxu0 0.0
    %4402 = vmatprep.subr.mxu0 0.0
    %4403 = vmatpush1.msra.mxu0 0.0
    %4404 = vmatprep.mubr.f32.mxu0 0.0
    %4405 = vmatmul.mubr.f32.gmra.mrb[0].mxu0 %v4338
    %v4406 = vpop.f32.mrb[0].mxu0
    %v4407 = vadd.f32 %v2356, %v4406
    %v4408 = vpop.f32.mrb[0].mxu0
    %4409 = vdwg.mxu0
    %v4410 = vmul.f32 %v4407, %v4407
    %v4411 = vmul.f32 %v4407, %v4410
    %v4412 = vmul.f32 %v4411, 0.044715
    %v4413 = vadd.f32 %v4407, %v4412
    %v4414 = vmul.f32 %v4413, 0.7978846
    %v4415 = vtanh.pop %v4414
    %v4416 = vadd.f32 %v4415, 1.0
    %v4417 = vmul.f32 %v4416, 0.5
    %v4418 = vmul.f32 %v4407, %v4417
    %v4420 = vsel %vm141, %v4418, 0
    %4422 = vmatprep.subr.mxu0 0.0
    %4423 = vmatpush1.msra.mxu0 %v94
    %4424 = vmatprep.subr.mxu0 0.0
    %4425 = vmatpush1.msra.mxu0 %v95
    %4426 = vmatprep.subr.mxu0 0.0
    %4427 = vmatpush1.msra.mxu0 %v96
    %4428 = vmatprep.subr.mxu0 0.0
    %4429 = vmatpush1.msra.mxu0 %v97
    %4430 = vmatprep.subr.mxu0 0.0
    %4431 = vmatpush1.msra.mxu0 %v98
    %4432 = vmatprep.subr.mxu0 0.0
    %4433 = vmatpush1.msra.mxu0 %v99
    %4434 = vmatprep.subr.mxu0 0.0
    %4435 = vmatpush1.msra.mxu0 %v100
    %4436 = vmatprep.subr.mxu0 0.0
    %4437 = vmatpush1.msra.mxu0 %v101
    %4438 = vmatprep.subr.mxu0 0.0
    %4439 = vmatpush1.msra.mxu0 0.0
    %4440 = vmatprep.subr.mxu0 0.0
    %4441 = vmatpush1.msra.mxu0 0.0
    %4442 = vmatprep.subr.mxu0 0.0
    %4443 = vmatpush1.msra.mxu0 0.0
    %4444 = vmatprep.subr.mxu0 0.0
    %4445 = vmatpush1.msra.mxu0 0.0
    %4446 = vmatprep.subr.mxu0 0.0
    %4447 = vmatpush1.msra.mxu0 0.0
    %4448 = vmatprep.subr.mxu0 0.0
    %4449 = vmatpush1.msra.mxu0 0.0
    %4450 = vmatprep.subr.mxu0 0.0
    %4451 = vmatpush1.msra.mxu0 0.0
    %4452 = vmatprep.subr.mxu0 0.0
    %4453 = vmatpush1.msra.mxu0 0.0
    %4454 = vmatprep.subr.mxu0 0.0
    %4455 = vmatpush1.msra.mxu0 0.0
    %4456 = vmatprep.subr.mxu0 0.0
    %4457 = vmatpush1.msra.mxu0 0.0
    %4458 = vmatprep.subr.mxu0 0.0
    %4459 = vmatpush1.msra.mxu0 0.0
    %4460 = vmatprep.subr.mxu0 0.0
    %4461 = vmatpush1.msra.mxu0 0.0
    %4462 = vmatprep.subr.mxu0 0.0
    %4463 = vmatpush1.msra.mxu0 0.0
    %4464 = vmatprep.subr.mxu0 0.0
    %4465 = vmatpush1.msra.mxu0 0.0
    %4466 = vmatprep.subr.mxu0 0.0
    %4467 = vmatpush1.msra.mxu0 0.0
    %4468 = vmatprep.subr.mxu0 0.0
    %4469 = vmatpush1.msra.mxu0 0.0
    %4470 = vmatprep.subr.mxu0 0.0
    %4471 = vmatpush1.msra.mxu0 0.0
    %4472 = vmatprep.subr.mxu0 0.0
    %4473 = vmatpush1.msra.mxu0 0.0
    %4474 = vmatprep.subr.mxu0 0.0
    %4475 = vmatpush1.msra.mxu0 0.0
    %4476 = vmatprep.subr.mxu0 0.0
    %4477 = vmatpush1.msra.mxu0 0.0
    %4478 = vmatprep.subr.mxu0 0.0
    %4479 = vmatpush1.msra.mxu0 0.0
    %4480 = vmatprep.subr.mxu0 0.0
    %4481 = vmatpush1.msra.mxu0 0.0
    %4482 = vmatprep.subr.mxu0 0.0
    %4483 = vmatpush1.msra.mxu0 0.0
    %4484 = vmatprep.subr.mxu0 0.0
    %4485 = vmatpush1.msra.mxu0 0.0
    %4486 = vmatprep.mubr.f32.mxu0 0.0
    %4487 = vmatmul.mubr.f32.gmra.mrb[0].mxu0 %v4420
    %v4488 = vpop.f32.mrb[0].mxu0
    %v4489 = vadd.f32 %v2448, %v4488
    %v4490 = vpop.f32.mrb[0].mxu0
    %4491 = vdwg.mxu0
    %v4492 = vadd.f32 %v4327, %v4489
    %v4494 = vsel %vm226, %v4492, 0
    %4496 = vmatprep.subr.mxu0 0.0
    %4497 = vmatpush1.msra.mxu0 %v103
    %4498 = vmatprep.subr.mxu0 0.0
    %4499 = vmatpush1.msra.mxu0 %v104
    %4500 = vmatprep.subr.mxu0 0.0
    %4501 = vmatpush1.msra.mxu0 %v105
    %4502 = vmatprep.subr.mxu0 0.0
    %4503 = vmatpush1.msra.mxu0 %v106
    %4504 = vmatprep.subr.mxu0 0.0
    %4505 = vmatpush1.msra.mxu0 0.0
    %4506 = vmatprep.subr.mxu0 0.0
    %4507 = vmatpush1.msra.mxu0 0.0
    %4508 = vmatprep.subr.mxu0 0.0
    %4509 = vmatpush1.msra.mxu0 0.0
    %4510 = vmatprep.subr.mxu0 0.0
    %4511 = vmatpush1.msra.mxu0 0.0
    %4512 = vmatprep.subr.mxu0 0.0
    %4513 = vmatpush1.msra.mxu0 0.0
    %4514 = vmatprep.subr.mxu0 0.0
    %4515 = vmatpush1.msra.mxu0 0.0
    %4516 = vmatprep.subr.mxu0 0.0
    %4517 = vmatpush1.msra.mxu0 0.0
    %4518 = vmatprep.subr.mxu0 0.0
    %4519 = vmatpush1.msra.mxu0 0.0
    %4520 = vmatprep.subr.mxu0 0.0
    %4521 = vmatpush1.msra.mxu0 0.0
    %4522 = vmatprep.subr.mxu0 0.0
    %4523 = vmatpush1.msra.mxu0 0.0
    %4524 = vmatprep.subr.mxu0 0.0
    %4525 = vmatpush1.msra.mxu0 0.0
    %4526 = vmatprep.subr.mxu0 0.0
    %4527 = vmatpush1.msra.mxu0 0.0
    %4528 = vmatprep.subr.mxu0 0.0
    %4529 = vmatpush1.msra.mxu0 0.0
    %4530 = vmatprep.subr.mxu0 0.0
    %4531 = vmatpush1.msra.mxu0 0.0
    %4532 = vmatprep.subr.mxu0 0.0
    %4533 = vmatpush1.msra.mxu0 0.0
    %4534 = vmatprep.subr.mxu0 0.0
    %4535 = vmatpush1.msra.mxu0 0.0
    %4536 = vmatprep.subr.mxu0 0.0
    %4537 = vmatpush1.msra.mxu0 0.0
    %4538 = vmatprep.subr.mxu0 0.0
    %4539 = vmatpush1.msra.mxu0 0.0
    %4540 = vmatprep.subr.mxu0 0.0
    %4541 = vmatpush1.msra.mxu0 0.0
    %4542 = vmatprep.subr.mxu0 0.0
    %4543 = vmatpush1.msra.mxu0 0.0
    %4544 = vmatprep.subr.mxu0 0.0
    %4545 = vmatpush1.msra.mxu0 0.0
    %4546 = vmatprep.subr.mxu0 0.0
    %4547 = vmatpush1.msra.mxu0 0.0
    %4548 = vmatprep.subr.mxu0 0.0
    %4549 = vmatpush1.msra.mxu0 0.0
    %4550 = vmatprep.subr.mxu0 0.0
    %4551 = vmatpush1.msra.mxu0 0.0
    %4552 = vmatprep.subr.mxu0 0.0
    %4553 = vmatpush1.msra.mxu0 0.0
    %4554 = vmatprep.subr.mxu0 0.0
    %4555 = vmatpush1.msra.mxu0 0.0
    %4556 = vmatprep.subr.mxu0 0.0
    %4557 = vmatpush1.msra.mxu0 0.0
    %4558 = vmatprep.subr.mxu0 0.0
    %4559 = vmatpush1.msra.mxu0 0.0
    %4560 = vmatprep.mubr.f32.mxu0 0.0
    %4561 = vmatmul.mubr.f32.gmra.mrb[0].mxu0 %v4494
    %v4562 = vpop.f32.mrb[0].mxu0
    %v4563 = vadd.f32 %v2534, %v4562
    %v4564 = vpop.f32.mrb[0].mxu0
    %4565 = vdwg.mxu0
    %v4566 = vsel %vm2613, %v4563, -inf
    %4567 = vmax.xlane.f32.xlu0 %v4566
    %v4568 = vpop.xlane.xlu0 %4567
    %vm4569 = vcmp.eq.f32.partialorder %v4563, %v4568
    %v4570 = vsel %vm4569, %v398, 64
    %v4571 = vsel %vm2613, %v4570, 2147483647
    %v4572 = vand.u32 %v4571, 65535
    %v4573 = vshra.s32 %v4571, 16
    %v4574 = vcvt.s32.f32 %v4572
    %v4575 = vcvt.s32.f32 %v4573
    %4576 = vmin.xlane.f32.xlu0 %v4575
    %v4577 = vpop.xlane.xlu0 %4576
    %vm4578 = vcmp.eq.f32.partialorder %v4575, %v4577
    %v4579 = vsel %vm4578, %v4574, inf
    %4580 = vmin.xlane.f32.xlu0 %v4579
    %v4581 = vpop.xlane.xlu0 %4580
    %v4582 = vcvt.f32.s32 %v4581
    %v4583 = vcvt.f32.s32 %v4577
    %v4584 = vshll.u32 %v4583, 16
    %v4585 = vadd.s32 %v4584, %v4582
    %vm4586 = vcmp.eq.s32.totalorder %v4585, %v398
    %v4587 = vsel %vm4586, 1, 0
    %v4588 = vcvt.s32.f32 %v4587
    %v4590 = vsel %vm141, %v4588, 0
    %4592 = vmatprep.subr.mxu0 0.0
    %4593 = vmatpush1.msra.mxu0 %v69
    %4594 = vmatprep.subr.mxu0 0.0
    %4595 = vmatpush1.msra.mxu0 %v70
    %4596 = vmatprep.subr.mxu0 0.0
    %4597 = vmatpush1.msra.mxu0 %v71
    %4598 = vmatprep.subr.mxu0 0.0
    %4599 = vmatpush1.msra.mxu0 %v72
    %4600 = vmatprep.subr.mxu0 0.0
    %4601 = vmatpush1.msra.mxu0 %v73
    %4602 = vmatprep.subr.mxu0 0.0
    %4603 = vmatpush1.msra.mxu0 %v74
    %4604 = vmatprep.subr.mxu0 0.0
    %4605 = vmatpush1.msra.mxu0 %v75
    %4606 = vmatprep.subr.mxu0 0.0
    %4607 = vmatpush1.msra.mxu0 %v76
    %4608 = vmatprep.subr.mxu0 0.0
    %4609 = vmatpush1.msra.mxu0 0.0
    %4610 = vmatprep.subr.mxu0 0.0
    %4611 = vmatpush1.msra.mxu0 0.0
    %4612 = vmatprep.subr.mxu0 0.0
    %4613 = vmatpush1.msra.mxu0 0.0
    %4614 = vmatprep.subr.mxu0 0.0
    %4615 = vmatpush1.msra.mxu0 0.0
    %4616 = vmatprep.subr.mxu0 0.0
    %4617 = vmatpush1.msra.mxu0 0.0
    %4618 = vmatprep.subr.mxu0 0.0
    %4619 = vmatpush1.msra.mxu0 0.0
    %4620 = vmatprep.subr.mxu0 0.0
    %4621 = vmatpush1.msra.mxu0 0.0
    %4622 = vmatprep.subr.mxu0 0.0
    %4623 = vmatpush1.msra.mxu0 0.0
    %4624 = vmatprep.subr.mxu0 0.0
    %4625 = vmatpush1.msra.mxu0 0.0
    %4626 = vmatprep.subr.mxu0 0.0
    %4627 = vmatpush1.msra.mxu0 0.0
    %4628 = vmatprep.subr.mxu0 0.0
    %4629 = vmatpush1.msra.mxu0 0.0
    %4630 = vmatprep.subr.mxu0 0.0
    %4631 = vmatpush1.msra.mxu0 0.0
    %4632 = vmatprep.subr.mxu0 0.0
    %4633 = vmatpush1.msra.mxu0 0.0
    %4634 = vmatprep.subr.mxu0 0.0
    %4635 = vmatpush1.msra.mxu0 0.0
    %4636 = vmatprep.subr.mxu0 0.0
    %4637 = vmatpush1.msra.mxu0 0.0
    %4638 = vmatprep.subr.mxu0 0.0
    %4639 = vmatpush1.msra.mxu0 0.0
    %4640 = vmatprep.subr.mxu0 0.0
    %4641 = vmatpush1.msra.mxu0 0.0
    %4642 = vmatprep.subr.mxu0 0.0
    %4643 = vmatpush1.msra.mxu0 0.0
    %4644 = vmatprep.subr.mxu0 0.0
    %4645 = vmatpush1.msra.mxu0 0.0
    %4646 = vmatprep.subr.mxu0 0.0
    %4647 = vmatpush1.msra.mxu0 0.0
    %4648 = vmatprep.subr.mxu0 0.0
    %4649 = vmatpush1.msra.mxu0 0.0
    %4650 = vmatprep.subr.mxu0 0.0
    %4651 = vmatpush1.msra.mxu0 0.0
    %4652 = vmatprep.subr.mxu0 0.0
    %4653 = vmatpush1.msra.mxu0 0.0
    %4654 = vmatprep.subr.mxu0 0.0
    %4655 = vmatpush1.msra.mxu0 0.0
    %4656 = vmatprep.mubr.f32.mxu0 0.0
    %4657 = vmatmul.mubr.f32.gmra.mrb[0].mxu0 %v4590
    %v4658 = vpop.f32.mrb[0].mxu0
    %v4659 = vadd.f32 0.0, %v4658
    %v4660 = vpop.f32.mrb[0].mxu0
    %4661 = vdwg.mxu0
    %v4662 = vmul.f32 %v4659, %v4659
    %v4663 = vsel %vm2711, %v4662, 0.0
    %4664 = vadd.xlane.f32.xlu0 %v4663
    %v4665 = vpop.xlane.xlu0 %4664
    %v4666 = vmul.f32 %v4665, %v524
    %v4667 = vadd.f32 %v4666, 1e-06
    %v4668 = vrsqrt.pop %v4667
    %v4669 = vmul.f32 %v4659, %v4668
    %v4670 = vmul.f32 %v4669, %v545
    %v4672 = vsel %vm226, %v4670, 0
    %4674 = vmatprep.subr.mxu0 0.0
    %4675 = vmatpush1.msra.mxu0 %v79
    %4676 = vmatprep.subr.mxu0 0.0
    %4677 = vmatpush1.msra.mxu0 %v80
    %4678 = vmatprep.subr.mxu0 0.0
    %4679 = vmatpush1.msra.mxu0 %v81
    %4680 = vmatprep.subr.mxu0 0.0
    %4681 = vmatpush1.msra.mxu0 %v82
    %4682 = vmatprep.subr.mxu0 0.0
    %4683 = vmatpush1.msra.mxu0 0.0
    %4684 = vmatprep.subr.mxu0 0.0
    %4685 = vmatpush1.msra.mxu0 0.0
    %4686 = vmatprep.subr.mxu0 0.0
    %4687 = vmatpush1.msra.mxu0 0.0
    %4688 = vmatprep.subr.mxu0 0.0
    %4689 = vmatpush1.msra.mxu0 0.0
    %4690 = vmatprep.subr.mxu0 0.0
    %4691 = vmatpush1.msra.mxu0 0.0
    %4692 = vmatprep.subr.mxu0 0.0
    %4693 = vmatpush1.msra.mxu0 0.0
    %4694 = vmatprep.subr.mxu0 0.0
    %4695 = vmatpush1.msra.mxu0 0.0
    %4696 = vmatprep.subr.mxu0 0.0
    %4697 = vmatpush1.msra.mxu0 0.0
    %4698 = vmatprep.subr.mxu0 0.0
    %4699 = vmatpush1.msra.mxu0 0.0
    %4700 = vmatprep.subr.mxu0 0.0
    %4701 = vmatpush1.msra.mxu0 0.0
    %4702 = vmatprep.subr.mxu0 0.0
    %4703 = vmatpush1.msra.mxu0 0.0
    %4704 = vmatprep.subr.mxu0 0.0
    %4705 = vmatpush1.msra.mxu0 0.0
    %4706 = vmatprep.subr.mxu0 0.0
    %4707 = vmatpush1.msra.mxu0 0.0
    %4708 = vmatprep.subr.mxu0 0.0
    %4709 = vmatpush1.msra.mxu0 0.0
    %4710 = vmatprep.subr.mxu0 0.0
    %4711 = vmatpush1.msra.mxu0 0.0
    %4712 = vmatprep.subr.mxu0 0.0
    %4713 = vmatpush1.msra.mxu0 0.0
    %4714 = vmatprep.subr.mxu0 0.0
    %4715 = vmatpush1.msra.mxu0 0.0
    %4716 = vmatprep.subr.mxu0 0.0
    %4717 = vmatpush1.msra.mxu0 0.0
    %4718 = vmatprep.subr.mxu0 0.0
    %4719 = vmatpush1.msra.mxu0 0.0
    %4720 = vmatprep.subr.mxu0 0.0
    %4721 = vmatpush1.msra.mxu0 0.0
    %4722 = vmatprep.subr.mxu0 0.0
    %4723 = vmatpush1.msra.mxu0 0.0
    %4724 = vmatprep.subr.mxu0 0.0
    %4725 = vmatpush1.msra.mxu0 0.0
    %4726 = vmatprep.subr.mxu0 0.0
    %4727 = vmatpush1.msra.mxu0 0.0
    %4728 = vmatprep.subr.mxu0 0.0
    %4729 = vmatpush1.msra.mxu0 0.0
    %4730 = vmatprep.subr.mxu0 0.0
    %4731 = vmatpush1.msra.mxu0 0.0
    %4732 = vmatprep.subr.mxu0 0.0
    %4733 = vmatpush1.msra.mxu0 0.0
    %4734 = vmatprep.subr.mxu0 0.0
    %4735 = vmatpush1.msra.mxu0 0.0
    %4736 = vmatprep.subr.mxu0 0.0
    %4737 = vmatpush1.msra.mxu0 0.0
    %4738 = vmatprep.mubr.f32.mxu0 0.0
    %4739 = vmatmul.mubr.f32.gmra.mrb[0].mxu0 %v4672
    %v4740 = vpop.f32.mrb[0].mxu0
    %v4741 = vadd.f32 %v555, %v4740
    %v4742 = vpop.f32.mrb[0].mxu0
    %4743 = vdwg.mxu0
    %v4746 = vunpack.c.l.s4 1966171168
    %v4747 = vunpack.c.0.s8 %v4746
    %v4748 = vlaneseq
    %v4749 = vshrl.u32 %v4748, 7
    %v4750 = vsub.s32 %v4747, %v4749
    %v4751 = vrot.slane %v4741, %v4750
    %v4752 = vcombine.high %v4751, %v4751
    %v4754 = vunpack.c.l.s4 1966171168
    %v4755 = vunpack.c.0.s8 %v4754
    %v4756 = vlaneseq
    %v4757 = vshrl.u32 %v4756, 7
    %v4758 = vsub.s32 %v4755, %v4757
    %v4759 = vrot.slane %v4751, %v4758
    %v4761 = vunpack.c.l.s4 1966171168
    %v4762 = vunpack.c.0.s8 %v4761
    %v4763 = vlaneseq
    %v4764 = vshrl.u32 %v4763, 7
    %v4765 = vsub.s32 %v4762, %v4764
    %v4766 = vrot.slane %v4752, %v4765
    %v4767 = vlaneseq
    %v4768 = vshrl.u32 %v4767, 7
    %v4769 = vsub.s32 0, %v4768
    %v4770 = vrot.slane %v4759, %v4769
    %v4771 = vlaneseq
    %v4772 = vshrl.u32 %v4771, 7
    %v4773 = vsub.s32 0, %v4772
    %v4774 = vrot.slane %v4766, %v4773
    %4775 = vrot.lane.b32.xlu0 %v4770, 96
    %v4776 = vpop.permute.xlu0 %4775
    %4777 = vrot.lane.b32.xlu0 %v4774, 96
    %v4778 = vpop.permute.xlu0 %4777
    %4781 = vst.msk [vmem:[#allocation2 + $0xd] sm:$0x1] %vm810, %v4776
    %4782 = vst.msk [vmem:[#allocation2 + $0x1d] sm:$0x1] %vm810, %v4778
    %v4783 = vld [vmem:[#allocation2] sm:$0xff]
    %v4784 = vld [vmem:[#allocation2 + $0x8] sm:$0xff]
    %v4785 = vld [vmem:[#allocation2 + $0x10] sm:$0xff]
    %v4786 = vld [vmem:[#allocation2 + $0x18] sm:$0xff]
    %vm4787 = vcmp.lt.s32.totalorder %v398, 14
    %v4788 = vsel %vm818, %v4759, 0
    %v4791 = vsel %vm818, %v4783, 0
    %v4794 = vsel %vm818, %v4784, 0
    %4796 = vmatprep.subr.mxu0 0.0
    %4797 = vmatpush1.xpose.msra.mxu0 %v4791
    %4798 = vmatprep.subr.mxu0 0.0
    %4799 = vmatpush1.xpose.msra.mxu0 %v4794
    %4800 = vmatprep.subr.mxu0 0.0
    %4801 = vmatpush1.xpose.msra.mxu0 0.0
    %4802 = vmatprep.subr.mxu0 0.0
    %4803 = vmatpush1.xpose.msra.mxu0 0.0
    %4804 = vmatprep.subr.mxu0 0.0
    %4805 = vmatpush1.xpose.msra.mxu0 0.0
    %4806 = vmatprep.subr.mxu0 0.0
    %4807 = vmatpush1.xpose.msra.mxu0 0.0
    %4808 = vmatprep.subr.mxu0 0.0
    %4809 = vmatpush1.xpose.msra.mxu0 0.0
    %4810 = vmatprep.subr.mxu0 0.0
    %4811 = vmatpush1.xpose.msra.mxu0 0.0
    %4812 = vmatprep.subr.mxu0 0.0
    %4813 = vmatpush1.xpose.msra.mxu0 0.0
    %4814 = vmatprep.subr.mxu0 0.0
    %4815 = vmatpush1.xpose.msra.mxu0 0.0
    %4816 = vmatprep.subr.mxu0 0.0
    %4817 = vmatpush1.xpose.msra.mxu0 0.0
    %4818 = vmatprep.subr.mxu0 0.0
    %4819 = vmatpush1.xpose.msra.mxu0 0.0
    %4820 = vmatprep.subr.mxu0 0.0
    %4821 = vmatpush1.xpose.msra.mxu0 0.0
    %4822 = vmatprep.subr.mxu0 0.0
    %4823 = vmatpush1.xpose.msra.mxu0 0.0
    %4824 = vmatprep.subr.mxu0 0.0
    %4825 = vmatpush1.xpose.msra.mxu0 0.0
    %4826 = vmatprep.subr.mxu0 0.0
    %4827 = vmatpush1.xpose.msra.mxu0 0.0
    %4828 = vmatprep.subr.mxu0 0.0
    %4829 = vmatpush1.xpose.msra.mxu0 0.0
    %4830 = vmatprep.subr.mxu0 0.0
    %4831 = vmatpush1.xpose.msra.mxu0 0.0
    %4832 = vmatprep.subr.mxu0 0.0
    %4833 = vmatpush1.xpose.msra.mxu0 0.0
    %4834 = vmatprep.subr.mxu0 0.0
    %4835 = vmatpush1.xpose.msra.mxu0 0.0
    %4836 = vmatprep.subr.mxu0 0.0
    %4837 = vmatpush1.xpose.msra.mxu0 0.0
    %4838 = vmatprep.subr.mxu0 0.0
    %4839 = vmatpush1.xpose.msra.mxu0 0.0
    %4840 = vmatprep.subr.mxu0 0.0
    %4841 = vmatpush1.xpose.msra.mxu0 0.0
    %4842 = vmatprep.subr.mxu0 0.0
    %4843 = vmatpush1.xpose.msra.mxu0 0.0
    %4844 = vmatprep.subr.mxu0 0.0
    %4845 = vmatpush1.xpose.msra.mxu0 0.0
    %4846 = vmatprep.subr.mxu0 0.0
    %4847 = vmatpush1.xpose.msra.mxu0 0.0
    %4848 = vmatprep.subr.mxu0 0.0
    %4849 = vmatpush1.xpose.msra.mxu0 0.0
    %4850 = vmatprep.subr.mxu0 0.0
    %4851 = vmatpush1.xpose.msra.mxu0 0.0
    %4852 = vmatprep.subr.mxu0 0.0
    %4853 = vmatpush1.xpose.msra.mxu0 0.0
    %4854 = vmatprep.subr.mxu0 0.0
    %4855 = vmatpush1.xpose.msra.mxu0 0.0
    %4856 = vmatprep.subr.mxu0 0.0
    %4857 = vmatpush1.xpose.msra.mxu0 0.0
    %4858 = vmatprep.subr.mxu0 0.0
    %4859 = vmatpush1.xpose.msra.mxu0 0.0
    %4860 = vmatprep.mubr.f32.mxu0 0.0
    %4861 = vmatmul.mubr.f32.gmra.mrb[0].mxu0 %v4788
    %v4862 = vpop.f32.mrb[0].mxu0
    %v4863 = vadd.f32 0.0, %v4862
    %v4864 = vpop.f32.mrb[0].mxu0
    %4865 = vdwg.mxu0
    %v4866 = vsel %vm818, %v4766, 0
    %v4869 = vsel %vm818, %v4785, 0
    %v4872 = vsel %vm818, %v4786, 0
    %4874 = vmatprep.subr.mxu0 0.0
    %4875 = vmatpush1.xpose.msra.mxu0 %v4869
    %4876 = vmatprep.subr.mxu0 0.0
    %4877 = vmatpush1.xpose.msra.mxu0 %v4872
    %4878 = vmatprep.subr.mxu0 0.0
    %4879 = vmatpush1.xpose.msra.mxu0 0.0
    %4880 = vmatprep.subr.mxu0 0.0
    %4881 = vmatpush1.xpose.msra.mxu0 0.0
    %4882 = vmatprep.subr.mxu0 0.0
    %4883 = vmatpush1.xpose.msra.mxu0 0.0
    %4884 = vmatprep.subr.mxu0 0.0
    %4885 = vmatpush1.xpose.msra.mxu0 0.0
    %4886 = vmatprep.subr.mxu0 0.0
    %4887 = vmatpush1.xpose.msra.mxu0 0.0
    %4888 = vmatprep.subr.mxu0 0.0
    %4889 = vmatpush1.xpose.msra.mxu0 0.0
    %4890 = vmatprep.subr.mxu0 0.0
    %4891 = vmatpush1.xpose.msra.mxu0 0.0
    %4892 = vmatprep.subr.mxu0 0.0
    %4893 = vmatpush1.xpose.msra.mxu0 0.0
    %4894 = vmatprep.subr.mxu0 0.0
    %4895 = vmatpush1.xpose.msra.mxu0 0.0
    %4896 = vmatprep.subr.mxu0 0.0
    %4897 = vmatpush1.xpose.msra.mxu0 0.0
    %4898 = vmatprep.subr.mxu0 0.0
    %4899 = vmatpush1.xpose.msra.mxu0 0.0
    %4900 = vmatprep.subr.mxu0 0.0
    %4901 = vmatpush1.xpose.msra.mxu0 0.0
    %4902 = vmatprep.subr.mxu0 0.0
    %4903 = vmatpush1.xpose.msra.mxu0 0.0
    %4904 = vmatprep.subr.mxu0 0.0
    %4905 = vmatpush1.xpose.msra.mxu0 0.0
    %4906 = vmatprep.subr.mxu0 0.0
    %4907 = vmatpush1.xpose.msra.mxu0 0.0
    %4908 = vmatprep.subr.mxu0 0.0
    %4909 = vmatpush1.xpose.msra.mxu0 0.0
    %4910 = vmatprep.subr.mxu0 0.0
    %4911 = vmatpush1.xpose.msra.mxu0 0.0
    %4912 = vmatprep.subr.mxu0 0.0
    %4913 = vmatpush1.xpose.msra.mxu0 0.0
    %4914 = vmatprep.subr.mxu0 0.0
    %4915 = vmatpush1.xpose.msra.mxu0 0.0
    %4916 = vmatprep.subr.mxu0 0.0
    %4917 = vmatpush1.xpose.msra.mxu0 0.0
    %4918 = vmatprep.subr.mxu0 0.0
    %4919 = vmatpush1.xpose.msra.mxu0 0.0
    %4920 = vmatprep.subr.mxu0 0.0
    %4921 = vmatpush1.xpose.msra.mxu0 0.0
    %4922 = vmatprep.subr.mxu0 0.0
    %4923 = vmatpush1.xpose.msra.mxu0 0.0
    %4924 = vmatprep.subr.mxu0 0.0
    %4925 = vmatpush1.xpose.msra.mxu0 0.0
    %4926 = vmatprep.subr.mxu0 0.0
    %4927 = vmatpush1.xpose.msra.mxu0 0.0
    %4928 = vmatprep.subr.mxu0 0.0
    %4929 = vmatpush1.xpose.msra.mxu0 0.0
    %4930 = vmatprep.subr.mxu0 0.0
    %4931 = vmatpush1.xpose.msra.mxu0 0.0
    %4932 = vmatprep.subr.mxu0 0.0
    %4933 = vmatpush1.xpose.msra.mxu0 0.0
    %4934 = vmatprep.subr.mxu0 0.0
    %4935 = vmatpush1.xpose.msra.mxu0 0.0
    %4936 = vmatprep.subr.mxu0 0.0
    %4937 = vmatpush1.xpose.msra.mxu0 0.0
    %4938 = vmatprep.mubr.f32.mxu0 0.0
    %4939 = vmatmul.mubr.f32.gmra.mrb[0].mxu0 %v4866
    %v4940 = vpop.f32.mrb[0].mxu0
    %v4941 = vadd.f32 0.0, %v4940
    %v4942 = vpop.f32.mrb[0].mxu0
    %4943 = vdwg.mxu0
    %v4944 = vmul.f32 %v4863, 0.35355338
    %v4945 = vmul.f32 %v4941, 0.35355338
    %v4946 = vsel %vm4787, %v4944, -1e+30
    %v4947 = vsel %vm4787, %v4945, -1e+30
    %v4948 = vsel %vm979, %v4946, -inf
    %4949 = vmax.xlane.f32.xlu0 %v4948
    %v4950 = vpop.xlane.xlu0 %4949
    %v4951 = vsel %vm979, %v4947, -inf
    %4952 = vmax.xlane.f32.xlu0 %v4951
    %v4953 = vpop.xlane.xlu0 %4952
    %v4954 = vsub.f32 %v4946, %v4950
    %v4955 = vsub.f32 %v4947, %v4953
    %v4956 = vmul.f32 %v4954, 1.442695
    %v4957 = vpow.pop %v4956
    %v4958 = vmul.f32 %v4955, 1.442695
    %v4959 = vpow.pop %v4958
    %v4960 = vsel %vm979, %v4957, 0.0
    %4961 = vadd.xlane.f32.xlu0 %v4960
    %v4962 = vpop.xlane.xlu0 %4961
    %v4963 = vsel %vm979, %v4959, 0.0
    %4964 = vadd.xlane.f32.xlu0 %v4963
    %v4965 = vpop.xlane.xlu0 %4964
    %v4966 = vrcp.pop %v4962
    %v4967 = vrcp.pop %v4965
    %4968 = vrot.lane.b32.xlu0 %v4783, 96
    %v4969 = vpop.permute.xlu0 %4968
    %4970 = vrot.lane.b32.xlu0 %v4784, 96
    %v4971 = vpop.permute.xlu0 %4970
    %v4975 = vsel %vm1006, %v4957, 0
    %4977 = vmatprep.subr.mxu0 0.0
    %4978 = vmatpush1.msra.mxu0 %v4969
    %4979 = vmatprep.subr.mxu0 0.0
    %4980 = vmatpush1.msra.mxu0 %v4971
    %4981 = vmatprep.subr.mxu0 0.0
    %4982 = vmatpush1.msra.mxu0 0.0
    %4983 = vmatprep.subr.mxu0 0.0
    %4984 = vmatpush1.msra.mxu0 0.0
    %4985 = vmatprep.subr.mxu0 0.0
    %4986 = vmatpush1.msra.mxu0 0.0
    %4987 = vmatprep.subr.mxu0 0.0
    %4988 = vmatpush1.msra.mxu0 0.0
    %4989 = vmatprep.subr.mxu0 0.0
    %4990 = vmatpush1.msra.mxu0 0.0
    %4991 = vmatprep.subr.mxu0 0.0
    %4992 = vmatpush1.msra.mxu0 0.0
    %4993 = vmatprep.subr.mxu0 0.0
    %4994 = vmatpush1.msra.mxu0 0.0
    %4995 = vmatprep.subr.mxu0 0.0
    %4996 = vmatpush1.msra.mxu0 0.0
    %4997 = vmatprep.subr.mxu0 0.0
    %4998 = vmatpush1.msra.mxu0 0.0
    %4999 = vmatprep.subr.mxu0 0.0
    %5000 = vmatpush1.msra.mxu0 0.0
    %5001 = vmatprep.subr.mxu0 0.0
    %5002 = vmatpush1.msra.mxu0 0.0
    %5003 = vmatprep.subr.mxu0 0.0
    %5004 = vmatpush1.msra.mxu0 0.0
    %5005 = vmatprep.subr.mxu0 0.0
    %5006 = vmatpush1.msra.mxu0 0.0
    %5007 = vmatprep.subr.mxu0 0.0
    %5008 = vmatpush1.msra.mxu0 0.0
    %5009 = vmatprep.subr.mxu0 0.0
    %5010 = vmatpush1.msra.mxu0 0.0
    %5011 = vmatprep.subr.mxu0 0.0
    %5012 = vmatpush1.msra.mxu0 0.0
    %5013 = vmatprep.subr.mxu0 0.0
    %5014 = vmatpush1.msra.mxu0 0.0
    %5015 = vmatprep.subr.mxu0 0.0
    %5016 = vmatpush1.msra.mxu0 0.0
    %5017 = vmatprep.subr.mxu0 0.0
    %5018 = vmatpush1.msra.mxu0 0.0
    %5019 = vmatprep.subr.mxu0 0.0
    %5020 = vmatpush1.msra.mxu0 0.0
    %5021 = vmatprep.subr.mxu0 0.0
    %5022 = vmatpush1.msra.mxu0 0.0
    %5023 = vmatprep.subr.mxu0 0.0
    %5024 = vmatpush1.msra.mxu0 0.0
    %5025 = vmatprep.subr.mxu0 0.0
    %5026 = vmatpush1.msra.mxu0 0.0
    %5027 = vmatprep.subr.mxu0 0.0
    %5028 = vmatpush1.msra.mxu0 0.0
    %5029 = vmatprep.subr.mxu0 0.0
    %5030 = vmatpush1.msra.mxu0 0.0
    %5031 = vmatprep.subr.mxu0 0.0
    %5032 = vmatpush1.msra.mxu0 0.0
    %5033 = vmatprep.subr.mxu0 0.0
    %5034 = vmatpush1.msra.mxu0 0.0
    %5035 = vmatprep.subr.mxu0 0.0
    %5036 = vmatpush1.msra.mxu0 0.0
    %5037 = vmatprep.subr.mxu0 0.0
    %5038 = vmatpush1.msra.mxu0 0.0
    %5039 = vmatprep.subr.mxu0 0.0
    %5040 = vmatpush1.msra.mxu0 0.0
    %5041 = vmatprep.mubr.f32.mxu0 0.0
    %5042 = vmatmul.mubr.f32.gmra.mrb[0].mxu0 %v4975
    %v5043 = vpop.f32.mrb[0].mxu0
    %v5044 = vadd.f32 0.0, %v5043
    %v5045 = vpop.f32.mrb[0].mxu0
    %5046 = vdwg.mxu0
    %5047 = vrot.lane.b32.xlu0 %v4785, 96
    %v5048 = vpop.permute.xlu0 %5047
    %5049 = vrot.lane.b32.xlu0 %v4786, 96
    %v5050 = vpop.permute.xlu0 %5049
    %v5054 = vsel %vm1006, %v4959, 0
    %5056 = vmatprep.subr.mxu0 0.0
    %5057 = vmatpush1.msra.mxu0 %v5048
    %5058 = vmatprep.subr.mxu0 0.0
    %5059 = vmatpush1.msra.mxu0 %v5050
    %5060 = vmatprep.subr.mxu0 0.0
    %5061 = vmatpush1.msra.mxu0 0.0
    %5062 = vmatprep.subr.mxu0 0.0
    %5063 = vmatpush1.msra.mxu0 0.0
    %5064 = vmatprep.subr.mxu0 0.0
    %5065 = vmatpush1.msra.mxu0 0.0
    %5066 = vmatprep.subr.mxu0 0.0
    %5067 = vmatpush1.msra.mxu0 0.0
    %5068 = vmatprep.subr.mxu0 0.0
    %5069 = vmatpush1.msra.mxu0 0.0
    %5070 = vmatprep.subr.mxu0 0.0
    %5071 = vmatpush1.msra.mxu0 0.0
    %5072 = vmatprep.subr.mxu0 0.0
    %5073 = vmatpush1.msra.mxu0 0.0
    %5074 = vmatprep.subr.mxu0 0.0
    %5075 = vmatpush1.msra.mxu0 0.0
    %5076 = vmatprep.subr.mxu0 0.0
    %5077 = vmatpush1.msra.mxu0 0.0
    %5078 = vmatprep.subr.mxu0 0.0
    %5079 = vmatpush1.msra.mxu0 0.0
    %5080 = vmatprep.subr.mxu0 0.0
    %5081 = vmatpush1.msra.mxu0 0.0
    %5082 = vmatprep.subr.mxu0 0.0
    %5083 = vmatpush1.msra.mxu0 0.0
    %5084 = vmatprep.subr.mxu0 0.0
    %5085 = vmatpush1.msra.mxu0 0.0
    %5086 = vmatprep.subr.mxu0 0.0
    %5087 = vmatpush1.msra.mxu0 0.0
    %5088 = vmatprep.subr.mxu0 0.0
    %5089 = vmatpush1.msra.mxu0 0.0
    %5090 = vmatprep.subr.mxu0 0.0
    %5091 = vmatpush1.msra.mxu0 0.0
    %5092 = vmatprep.subr.mxu0 0.0
    %5093 = vmatpush1.msra.mxu0 0.0
    %5094 = vmatprep.subr.mxu0 0.0
    %5095 = vmatpush1.msra.mxu0 0.0
    %5096 = vmatprep.subr.mxu0 0.0
    %5097 = vmatpush1.msra.mxu0 0.0
    %5098 = vmatprep.subr.mxu0 0.0
    %5099 = vmatpush1.msra.mxu0 0.0
    %5100 = vmatprep.subr.mxu0 0.0
    %5101 = vmatpush1.msra.mxu0 0.0
    %5102 = vmatprep.subr.mxu0 0.0
    %5103 = vmatpush1.msra.mxu0 0.0
    %5104 = vmatprep.subr.mxu0 0.0
    %5105 = vmatpush1.msra.mxu0 0.0
    %5106 = vmatprep.subr.mxu0 0.0
    %5107 = vmatpush1.msra.mxu0 0.0
    %5108 = vmatprep.subr.mxu0 0.0
    %5109 = vmatpush1.msra.mxu0 0.0
    %5110 = vmatprep.subr.mxu0 0.0
    %5111 = vmatpush1.msra.mxu0 0.0
    %5112 = vmatprep.subr.mxu0 0.0
    %5113 = vmatpush1.msra.mxu0 0.0
    %5114 = vmatprep.subr.mxu0 0.0
    %5115 = vmatpush1.msra.mxu0 0.0
    %5116 = vmatprep.subr.mxu0 0.0
    %5117 = vmatpush1.msra.mxu0 0.0
    %5118 = vmatprep.subr.mxu0 0.0
    %5119 = vmatpush1.msra.mxu0 0.0
    %5120 = vmatprep.mubr.f32.mxu0 0.0
    %5121 = vmatmul.mubr.f32.gmra.mrb[0].mxu0 %v5054
    %v5122 = vpop.f32.mrb[0].mxu0
    %v5123 = vadd.f32 0.0, %v5122
    %v5124 = vpop.f32.mrb[0].mxu0
    %5125 = vdwg.mxu0
    %v5126 = vmul.f32 %v5044, %v4966
    %v5127 = vmul.f32 %v5123, %v4967
    %5128 = vrot.lane.b32.xlu0 %v4770, 120
    %v5129 = vpop.permute.xlu0 %5128
    %5130 = vrot.lane.b32.xlu0 %v4783, 120
    %v5131 = vpop.permute.xlu0 %5130
    %5132 = vrot.lane.b32.xlu0 %v4784, 120
    %v5133 = vpop.permute.xlu0 %5132
    %v5134 = vsel %vm818, %v5129, 0
    %v5136 = vsel %vm818, %v5131, 0
    %v5138 = vsel %vm818, %v5133, 0
    %5140 = vmatprep.subr.mxu0 0.0
    %5141 = vmatpush1.xpose.msra.mxu0 %v5136
    %5142 = vmatprep.subr.mxu0 0.0
    %5143 = vmatpush1.xpose.msra.mxu0 %v5138
    %5144 = vmatprep.subr.mxu0 0.0
    %5145 = vmatpush1.xpose.msra.mxu0 0.0
    %5146 = vmatprep.subr.mxu0 0.0
    %5147 = vmatpush1.xpose.msra.mxu0 0.0
    %5148 = vmatprep.subr.mxu0 0.0
    %5149 = vmatpush1.xpose.msra.mxu0 0.0
    %5150 = vmatprep.subr.mxu0 0.0
    %5151 = vmatpush1.xpose.msra.mxu0 0.0
    %5152 = vmatprep.subr.mxu0 0.0
    %5153 = vmatpush1.xpose.msra.mxu0 0.0
    %5154 = vmatprep.subr.mxu0 0.0
    %5155 = vmatpush1.xpose.msra.mxu0 0.0
    %5156 = vmatprep.subr.mxu0 0.0
    %5157 = vmatpush1.xpose.msra.mxu0 0.0
    %5158 = vmatprep.subr.mxu0 0.0
    %5159 = vmatpush1.xpose.msra.mxu0 0.0
    %5160 = vmatprep.subr.mxu0 0.0
    %5161 = vmatpush1.xpose.msra.mxu0 0.0
    %5162 = vmatprep.subr.mxu0 0.0
    %5163 = vmatpush1.xpose.msra.mxu0 0.0
    %5164 = vmatprep.subr.mxu0 0.0
    %5165 = vmatpush1.xpose.msra.mxu0 0.0
    %5166 = vmatprep.subr.mxu0 0.0
    %5167 = vmatpush1.xpose.msra.mxu0 0.0
    %5168 = vmatprep.subr.mxu0 0.0
    %5169 = vmatpush1.xpose.msra.mxu0 0.0
    %5170 = vmatprep.subr.mxu0 0.0
    %5171 = vmatpush1.xpose.msra.mxu0 0.0
    %5172 = vmatprep.subr.mxu0 0.0
    %5173 = vmatpush1.xpose.msra.mxu0 0.0
    %5174 = vmatprep.subr.mxu0 0.0
    %5175 = vmatpush1.xpose.msra.mxu0 0.0
    %5176 = vmatprep.subr.mxu0 0.0
    %5177 = vmatpush1.xpose.msra.mxu0 0.0
    %5178 = vmatprep.subr.mxu0 0.0
    %5179 = vmatpush1.xpose.msra.mxu0 0.0
    %5180 = vmatprep.subr.mxu0 0.0
    %5181 = vmatpush1.xpose.msra.mxu0 0.0
    %5182 = vmatprep.subr.mxu0 0.0
    %5183 = vmatpush1.xpose.msra.mxu0 0.0
    %5184 = vmatprep.subr.mxu0 0.0
    %5185 = vmatpush1.xpose.msra.mxu0 0.0
    %5186 = vmatprep.subr.mxu0 0.0
    %5187 = vmatpush1.xpose.msra.mxu0 0.0
    %5188 = vmatprep.subr.mxu0 0.0
    %5189 = vmatpush1.xpose.msra.mxu0 0.0
    %5190 = vmatprep.subr.mxu0 0.0
    %5191 = vmatpush1.xpose.msra.mxu0 0.0
    %5192 = vmatprep.subr.mxu0 0.0
    %5193 = vmatpush1.xpose.msra.mxu0 0.0
    %5194 = vmatprep.subr.mxu0 0.0
    %5195 = vmatpush1.xpose.msra.mxu0 0.0
    %5196 = vmatprep.subr.mxu0 0.0
    %5197 = vmatpush1.xpose.msra.mxu0 0.0
    %5198 = vmatprep.subr.mxu0 0.0
    %5199 = vmatpush1.xpose.msra.mxu0 0.0
    %5200 = vmatprep.subr.mxu0 0.0
    %5201 = vmatpush1.xpose.msra.mxu0 0.0
    %5202 = vmatprep.subr.mxu0 0.0
    %5203 = vmatpush1.xpose.msra.mxu0 0.0
    %5204 = vmatprep.mubr.f32.mxu0 0.0
    %5205 = vmatmul.mubr.f32.gmra.mrb[0].mxu0 %v5134
    %v5206 = vpop.f32.mrb[0].mxu0
    %v5207 = vadd.f32 0.0, %v5206
    %v5208 = vpop.f32.mrb[0].mxu0
    %5209 = vdwg.mxu0
    %5210 = vrot.lane.b32.xlu0 %v4774, 120
    %v5211 = vpop.permute.xlu0 %5210
    %5212 = vrot.lane.b32.xlu0 %v4785, 120
    %v5213 = vpop.permute.xlu0 %5212
    %5214 = vrot.lane.b32.xlu0 %v4786, 120
    %v5215 = vpop.permute.xlu0 %5214
    %v5216 = vsel %vm818, %v5211, 0
    %v5218 = vsel %vm818, %v5213, 0
    %v5220 = vsel %vm818, %v5215, 0
    %5222 = vmatprep.subr.mxu0 0.0
    %5223 = vmatpush1.xpose.msra.mxu0 %v5218
    %5224 = vmatprep.subr.mxu0 0.0
    %5225 = vmatpush1.xpose.msra.mxu0 %v5220
    %5226 = vmatprep.subr.mxu0 0.0
    %5227 = vmatpush1.xpose.msra.mxu0 0.0
    %5228 = vmatprep.subr.mxu0 0.0
    %5229 = vmatpush1.xpose.msra.mxu0 0.0
    %5230 = vmatprep.subr.mxu0 0.0
    %5231 = vmatpush1.xpose.msra.mxu0 0.0
    %5232 = vmatprep.subr.mxu0 0.0
    %5233 = vmatpush1.xpose.msra.mxu0 0.0
    %5234 = vmatprep.subr.mxu0 0.0
    %5235 = vmatpush1.xpose.msra.mxu0 0.0
    %5236 = vmatprep.subr.mxu0 0.0
    %5237 = vmatpush1.xpose.msra.mxu0 0.0
    %5238 = vmatprep.subr.mxu0 0.0
    %5239 = vmatpush1.xpose.msra.mxu0 0.0
    %5240 = vmatprep.subr.mxu0 0.0
    %5241 = vmatpush1.xpose.msra.mxu0 0.0
    %5242 = vmatprep.subr.mxu0 0.0
    %5243 = vmatpush1.xpose.msra.mxu0 0.0
    %5244 = vmatprep.subr.mxu0 0.0
    %5245 = vmatpush1.xpose.msra.mxu0 0.0
    %5246 = vmatprep.subr.mxu0 0.0
    %5247 = vmatpush1.xpose.msra.mxu0 0.0
    %5248 = vmatprep.subr.mxu0 0.0
    %5249 = vmatpush1.xpose.msra.mxu0 0.0
    %5250 = vmatprep.subr.mxu0 0.0
    %5251 = vmatpush1.xpose.msra.mxu0 0.0
    %5252 = vmatprep.subr.mxu0 0.0
    %5253 = vmatpush1.xpose.msra.mxu0 0.0
    %5254 = vmatprep.subr.mxu0 0.0
    %5255 = vmatpush1.xpose.msra.mxu0 0.0
    %5256 = vmatprep.subr.mxu0 0.0
    %5257 = vmatpush1.xpose.msra.mxu0 0.0
    %5258 = vmatprep.subr.mxu0 0.0
    %5259 = vmatpush1.xpose.msra.mxu0 0.0
    %5260 = vmatprep.subr.mxu0 0.0
    %5261 = vmatpush1.xpose.msra.mxu0 0.0
    %5262 = vmatprep.subr.mxu0 0.0
    %5263 = vmatpush1.xpose.msra.mxu0 0.0
    %5264 = vmatprep.subr.mxu0 0.0
    %5265 = vmatpush1.xpose.msra.mxu0 0.0
    %5266 = vmatprep.subr.mxu0 0.0
    %5267 = vmatpush1.xpose.msra.mxu0 0.0
    %5268 = vmatprep.subr.mxu0 0.0
    %5269 = vmatpush1.xpose.msra.mxu0 0.0
    %5270 = vmatprep.subr.mxu0 0.0
    %5271 = vmatpush1.xpose.msra.mxu0 0.0
    %5272 = vmatprep.subr.mxu0 0.0
    %5273 = vmatpush1.xpose.msra.mxu0 0.0
    %5274 = vmatprep.subr.mxu0 0.0
    %5275 = vmatpush1.xpose.msra.mxu0 0.0
    %5276 = vmatprep.subr.mxu0 0.0
    %5277 = vmatpush1.xpose.msra.mxu0 0.0
    %5278 = vmatprep.subr.mxu0 0.0
    %5279 = vmatpush1.xpose.msra.mxu0 0.0
    %5280 = vmatprep.subr.mxu0 0.0
    %5281 = vmatpush1.xpose.msra.mxu0 0.0
    %5282 = vmatprep.subr.mxu0 0.0
    %5283 = vmatpush1.xpose.msra.mxu0 0.0
    %5284 = vmatprep.subr.mxu0 0.0
    %5285 = vmatpush1.xpose.msra.mxu0 0.0
    %5286 = vmatprep.mubr.f32.mxu0 0.0
    %5287 = vmatmul.mubr.f32.gmra.mrb[0].mxu0 %v5216
    %v5288 = vpop.f32.mrb[0].mxu0
    %v5289 = vadd.f32 0.0, %v5288
    %v5290 = vpop.f32.mrb[0].mxu0
    %5291 = vdwg.mxu0
    %v5292 = vmul.f32 %v5207, 0.35355338
    %v5293 = vmul.f32 %v5289, 0.35355338
    %v5294 = vsel %vm4787, %v5292, -1e+30
    %v5295 = vsel %vm4787, %v5293, -1e+30
    %v5296 = vsel %vm979, %v5294, -inf
    %5297 = vmax.xlane.f32.xlu0 %v5296
    %v5298 = vpop.xlane.xlu0 %5297
    %v5299 = vsel %vm979, %v5295, -inf
    %5300 = vmax.xlane.f32.xlu0 %v5299
    %v5301 = vpop.xlane.xlu0 %5300
    %v5302 = vsub.f32 %v5294, %v5298
    %v5303 = vsub.f32 %v5295, %v5301
    %v5304 = vmul.f32 %v5302, 1.442695
    %v5305 = vpow.pop %v5304
    %v5306 = vmul.f32 %v5303, 1.442695
    %v5307 = vpow.pop %v5306
    %v5308 = vsel %vm979, %v5305, 0.0
    %5309 = vadd.xlane.f32.xlu0 %v5308
    %v5310 = vpop.xlane.xlu0 %5309
    %v5311 = vsel %vm979, %v5307, 0.0
    %5312 = vadd.xlane.f32.xlu0 %v5311
    %v5313 = vpop.xlane.xlu0 %5312
    %v5314 = vrcp.pop %v5310
    %v5315 = vrcp.pop %v5313
    %5316 = vrot.lane.b32.xlu0 %v4783, 88
    %v5317 = vpop.permute.xlu0 %5316
    %5318 = vrot.lane.b32.xlu0 %v4784, 88
    %v5319 = vpop.permute.xlu0 %5318
    %v5323 = vsel %vm1006, %v5305, 0
    %5325 = vmatprep.subr.mxu0 0.0
    %5326 = vmatpush1.msra.mxu0 %v5317
    %5327 = vmatprep.subr.mxu0 0.0
    %5328 = vmatpush1.msra.mxu0 %v5319
    %5329 = vmatprep.subr.mxu0 0.0
    %5330 = vmatpush1.msra.mxu0 0.0
    %5331 = vmatprep.subr.mxu0 0.0
    %5332 = vmatpush1.msra.mxu0 0.0
    %5333 = vmatprep.subr.mxu0 0.0
    %5334 = vmatpush1.msra.mxu0 0.0
    %5335 = vmatprep.subr.mxu0 0.0
    %5336 = vmatpush1.msra.mxu0 0.0
    %5337 = vmatprep.subr.mxu0 0.0
    %5338 = vmatpush1.msra.mxu0 0.0
    %5339 = vmatprep.subr.mxu0 0.0
    %5340 = vmatpush1.msra.mxu0 0.0
    %5341 = vmatprep.subr.mxu0 0.0
    %5342 = vmatpush1.msra.mxu0 0.0
    %5343 = vmatprep.subr.mxu0 0.0
    %5344 = vmatpush1.msra.mxu0 0.0
    %5345 = vmatprep.subr.mxu0 0.0
    %5346 = vmatpush1.msra.mxu0 0.0
    %5347 = vmatprep.subr.mxu0 0.0
    %5348 = vmatpush1.msra.mxu0 0.0
    %5349 = vmatprep.subr.mxu0 0.0
    %5350 = vmatpush1.msra.mxu0 0.0
    %5351 = vmatprep.subr.mxu0 0.0
    %5352 = vmatpush1.msra.mxu0 0.0
    %5353 = vmatprep.subr.mxu0 0.0
    %5354 = vmatpush1.msra.mxu0 0.0
    %5355 = vmatprep.subr.mxu0 0.0
    %5356 = vmatpush1.msra.mxu0 0.0
    %5357 = vmatprep.subr.mxu0 0.0
    %5358 = vmatpush1.msra.mxu0 0.0
    %5359 = vmatprep.subr.mxu0 0.0
    %5360 = vmatpush1.msra.mxu0 0.0
    %5361 = vmatprep.subr.mxu0 0.0
    %5362 = vmatpush1.msra.mxu0 0.0
    %5363 = vmatprep.subr.mxu0 0.0
    %5364 = vmatpush1.msra.mxu0 0.0
    %5365 = vmatprep.subr.mxu0 0.0
    %5366 = vmatpush1.msra.mxu0 0.0
    %5367 = vmatprep.subr.mxu0 0.0
    %5368 = vmatpush1.msra.mxu0 0.0
    %5369 = vmatprep.subr.mxu0 0.0
    %5370 = vmatpush1.msra.mxu0 0.0
    %5371 = vmatprep.subr.mxu0 0.0
    %5372 = vmatpush1.msra.mxu0 0.0
    %5373 = vmatprep.subr.mxu0 0.0
    %5374 = vmatpush1.msra.mxu0 0.0
    %5375 = vmatprep.subr.mxu0 0.0
    %5376 = vmatpush1.msra.mxu0 0.0
    %5377 = vmatprep.subr.mxu0 0.0
    %5378 = vmatpush1.msra.mxu0 0.0
    %5379 = vmatprep.subr.mxu0 0.0
    %5380 = vmatpush1.msra.mxu0 0.0
    %5381 = vmatprep.subr.mxu0 0.0
    %5382 = vmatpush1.msra.mxu0 0.0
    %5383 = vmatprep.subr.mxu0 0.0
    %5384 = vmatpush1.msra.mxu0 0.0
    %5385 = vmatprep.subr.mxu0 0.0
    %5386 = vmatpush1.msra.mxu0 0.0
    %5387 = vmatprep.subr.mxu0 0.0
    %5388 = vmatpush1.msra.mxu0 0.0
    %5389 = vmatprep.mubr.f32.mxu0 0.0
    %5390 = vmatmul.mubr.f32.gmra.mrb[0].mxu0 %v5323
    %v5391 = vpop.f32.mrb[0].mxu0
    %v5392 = vadd.f32 0.0, %v5391
    %v5393 = vpop.f32.mrb[0].mxu0
    %5394 = vdwg.mxu0
    %5395 = vrot.lane.b32.xlu0 %v4785, 88
    %v5396 = vpop.permute.xlu0 %5395
    %5397 = vrot.lane.b32.xlu0 %v4786, 88
    %v5398 = vpop.permute.xlu0 %5397
    %v5402 = vsel %vm1006, %v5307, 0
    %5404 = vmatprep.subr.mxu0 0.0
    %5405 = vmatpush1.msra.mxu0 %v5396
    %5406 = vmatprep.subr.mxu0 0.0
    %5407 = vmatpush1.msra.mxu0 %v5398
    %5408 = vmatprep.subr.mxu0 0.0
    %5409 = vmatpush1.msra.mxu0 0.0
    %5410 = vmatprep.subr.mxu0 0.0
    %5411 = vmatpush1.msra.mxu0 0.0
    %5412 = vmatprep.subr.mxu0 0.0
    %5413 = vmatpush1.msra.mxu0 0.0
    %5414 = vmatprep.subr.mxu0 0.0
    %5415 = vmatpush1.msra.mxu0 0.0
    %5416 = vmatprep.subr.mxu0 0.0
    %5417 = vmatpush1.msra.mxu0 0.0
    %5418 = vmatprep.subr.mxu0 0.0
    %5419 = vmatpush1.msra.mxu0 0.0
    %5420 = vmatprep.subr.mxu0 0.0
    %5421 = vmatpush1.msra.mxu0 0.0
    %5422 = vmatprep.subr.mxu0 0.0
    %5423 = vmatpush1.msra.mxu0 0.0
    %5424 = vmatprep.subr.mxu0 0.0
    %5425 = vmatpush1.msra.mxu0 0.0
    %5426 = vmatprep.subr.mxu0 0.0
    %5427 = vmatpush1.msra.mxu0 0.0
    %5428 = vmatprep.subr.mxu0 0.0
    %5429 = vmatpush1.msra.mxu0 0.0
    %5430 = vmatprep.subr.mxu0 0.0
    %5431 = vmatpush1.msra.mxu0 0.0
    %5432 = vmatprep.subr.mxu0 0.0
    %5433 = vmatpush1.msra.mxu0 0.0
    %5434 = vmatprep.subr.mxu0 0.0
    %5435 = vmatpush1.msra.mxu0 0.0
    %5436 = vmatprep.subr.mxu0 0.0
    %5437 = vmatpush1.msra.mxu0 0.0
    %5438 = vmatprep.subr.mxu0 0.0
    %5439 = vmatpush1.msra.mxu0 0.0
    %5440 = vmatprep.subr.mxu0 0.0
    %5441 = vmatpush1.msra.mxu0 0.0
    %5442 = vmatprep.subr.mxu0 0.0
    %5443 = vmatpush1.msra.mxu0 0.0
    %5444 = vmatprep.subr.mxu0 0.0
    %5445 = vmatpush1.msra.mxu0 0.0
    %5446 = vmatprep.subr.mxu0 0.0
    %5447 = vmatpush1.msra.mxu0 0.0
    %5448 = vmatprep.subr.mxu0 0.0
    %5449 = vmatpush1.msra.mxu0 0.0
    %5450 = vmatprep.subr.mxu0 0.0
    %5451 = vmatpush1.msra.mxu0 0.0
    %5452 = vmatprep.subr.mxu0 0.0
    %5453 = vmatpush1.msra.mxu0 0.0
    %5454 = vmatprep.subr.mxu0 0.0
    %5455 = vmatpush1.msra.mxu0 0.0
    %5456 = vmatprep.subr.mxu0 0.0
    %5457 = vmatpush1.msra.mxu0 0.0
    %5458 = vmatprep.subr.mxu0 0.0
    %5459 = vmatpush1.msra.mxu0 0.0
    %5460 = vmatprep.subr.mxu0 0.0
    %5461 = vmatpush1.msra.mxu0 0.0
    %5462 = vmatprep.subr.mxu0 0.0
    %5463 = vmatpush1.msra.mxu0 0.0
    %5464 = vmatprep.subr.mxu0 0.0
    %5465 = vmatpush1.msra.mxu0 0.0
    %5466 = vmatprep.subr.mxu0 0.0
    %5467 = vmatpush1.msra.mxu0 0.0
    %5468 = vmatprep.mubr.f32.mxu0 0.0
    %5469 = vmatmul.mubr.f32.gmra.mrb[0].mxu0 %v5402
    %v5470 = vpop.f32.mrb[0].mxu0
    %v5471 = vadd.f32 0.0, %v5470
    %v5472 = vpop.f32.mrb[0].mxu0
    %5473 = vdwg.mxu0
    %v5474 = vmul.f32 %v5392, %v5314
    %v5475 = vmul.f32 %v5471, %v5315
    %5476 = vrot.lane.b32.xlu0 %v4770, 112
    %v5477 = vpop.permute.xlu0 %5476
    %5478 = vrot.lane.b32.xlu0 %v4783, 112
    %v5479 = vpop.permute.xlu0 %5478
    %5480 = vrot.lane.b32.xlu0 %v4784, 112
    %v5481 = vpop.permute.xlu0 %5480
    %v5482 = vsel %vm818, %v5477, 0
    %v5484 = vsel %vm818, %v5479, 0
    %v5486 = vsel %vm818, %v5481, 0
    %5488 = vmatprep.subr.mxu0 0.0
    %5489 = vmatpush1.xpose.msra.mxu0 %v5484
    %5490 = vmatprep.subr.mxu0 0.0
    %5491 = vmatpush1.xpose.msra.mxu0 %v5486
    %5492 = vmatprep.subr.mxu0 0.0
    %5493 = vmatpush1.xpose.msra.mxu0 0.0
    %5494 = vmatprep.subr.mxu0 0.0
    %5495 = vmatpush1.xpose.msra.mxu0 0.0
    %5496 = vmatprep.subr.mxu0 0.0
    %5497 = vmatpush1.xpose.msra.mxu0 0.0
    %5498 = vmatprep.subr.mxu0 0.0
    %5499 = vmatpush1.xpose.msra.mxu0 0.0
    %5500 = vmatprep.subr.mxu0 0.0
    %5501 = vmatpush1.xpose.msra.mxu0 0.0
    %5502 = vmatprep.subr.mxu0 0.0
    %5503 = vmatpush1.xpose.msra.mxu0 0.0
    %5504 = vmatprep.subr.mxu0 0.0
    %5505 = vmatpush1.xpose.msra.mxu0 0.0
    %5506 = vmatprep.subr.mxu0 0.0
    %5507 = vmatpush1.xpose.msra.mxu0 0.0
    %5508 = vmatprep.subr.mxu0 0.0
    %5509 = vmatpush1.xpose.msra.mxu0 0.0
    %5510 = vmatprep.subr.mxu0 0.0
    %5511 = vmatpush1.xpose.msra.mxu0 0.0
    %5512 = vmatprep.subr.mxu0 0.0
    %5513 = vmatpush1.xpose.msra.mxu0 0.0
    %5514 = vmatprep.subr.mxu0 0.0
    %5515 = vmatpush1.xpose.msra.mxu0 0.0
    %5516 = vmatprep.subr.mxu0 0.0
    %5517 = vmatpush1.xpose.msra.mxu0 0.0
    %5518 = vmatprep.subr.mxu0 0.0
    %5519 = vmatpush1.xpose.msra.mxu0 0.0
    %5520 = vmatprep.subr.mxu0 0.0
    %5521 = vmatpush1.xpose.msra.mxu0 0.0
    %5522 = vmatprep.subr.mxu0 0.0
    %5523 = vmatpush1.xpose.msra.mxu0 0.0
    %5524 = vmatprep.subr.mxu0 0.0
    %5525 = vmatpush1.xpose.msra.mxu0 0.0
    %5526 = vmatprep.subr.mxu0 0.0
    %5527 = vmatpush1.xpose.msra.mxu0 0.0
    %5528 = vmatprep.subr.mxu0 0.0
    %5529 = vmatpush1.xpose.msra.mxu0 0.0
    %5530 = vmatprep.subr.mxu0 0.0
    %5531 = vmatpush1.xpose.msra.mxu0 0.0
    %5532 = vmatprep.subr.mxu0 0.0
    %5533 = vmatpush1.xpose.msra.mxu0 0.0
    %5534 = vmatprep.subr.mxu0 0.0
    %5535 = vmatpush1.xpose.msra.mxu0 0.0
    %5536 = vmatprep.subr.mxu0 0.0
    %5537 = vmatpush1.xpose.msra.mxu0 0.0
    %5538 = vmatprep.subr.mxu0 0.0
    %5539 = vmatpush1.xpose.msra.mxu0 0.0
    %5540 = vmatprep.subr.mxu0 0.0
    %5541 = vmatpush1.xpose.msra.mxu0 0.0
    %5542 = vmatprep.subr.mxu0 0.0
    %5543 = vmatpush1.xpose.msra.mxu0 0.0
    %5544 = vmatprep.subr.mxu0 0.0
    %5545 = vmatpush1.xpose.msra.mxu0 0.0
    %5546 = vmatprep.subr.mxu0 0.0
    %5547 = vmatpush1.xpose.msra.mxu0 0.0
    %5548 = vmatprep.subr.mxu0 0.0
    %5549 = vmatpush1.xpose.msra.mxu0 0.0
    %5550 = vmatprep.subr.mxu0 0.0
    %5551 = vmatpush1.xpose.msra.mxu0 0.0
    %5552 = vmatprep.mubr.f32.mxu0 0.0
    %5553 = vmatmul.mubr.f32.gmra.mrb[0].mxu0 %v5482
    %v5554 = vpop.f32.mrb[0].mxu0
    %v5555 = vadd.f32 0.0, %v5554
    %v5556 = vpop.f32.mrb[0].mxu0
    %5557 = vdwg.mxu0
    %5558 = vrot.lane.b32.xlu0 %v4774, 112
    %v5559 = vpop.permute.xlu0 %5558
    %5560 = vrot.lane.b32.xlu0 %v4785, 112
    %v5561 = vpop.permute.xlu0 %5560
    %5562 = vrot.lane.b32.xlu0 %v4786, 112
    %v5563 = vpop.permute.xlu0 %5562
    %v5564 = vsel %vm818, %v5559, 0
    %v5566 = vsel %vm818, %v5561, 0
    %v5568 = vsel %vm818, %v5563, 0
    %5570 = vmatprep.subr.mxu0 0.0
    %5571 = vmatpush1.xpose.msra.mxu0 %v5566
    %5572 = vmatprep.subr.mxu0 0.0
    %5573 = vmatpush1.xpose.msra.mxu0 %v5568
    %5574 = vmatprep.subr.mxu0 0.0
    %5575 = vmatpush1.xpose.msra.mxu0 0.0
    %5576 = vmatprep.subr.mxu0 0.0
    %5577 = vmatpush1.xpose.msra.mxu0 0.0
    %5578 = vmatprep.subr.mxu0 0.0
    %5579 = vmatpush1.xpose.msra.mxu0 0.0
    %5580 = vmatprep.subr.mxu0 0.0
    %5581 = vmatpush1.xpose.msra.mxu0 0.0
    %5582 = vmatprep.subr.mxu0 0.0
    %5583 = vmatpush1.xpose.msra.mxu0 0.0
    %5584 = vmatprep.subr.mxu0 0.0
    %5585 = vmatpush1.xpose.msra.mxu0 0.0
    %5586 = vmatprep.subr.mxu0 0.0
    %5587 = vmatpush1.xpose.msra.mxu0 0.0
    %5588 = vmatprep.subr.mxu0 0.0
    %5589 = vmatpush1.xpose.msra.mxu0 0.0
    %5590 = vmatprep.subr.mxu0 0.0
    %5591 = vmatpush1.xpose.msra.mxu0 0.0
    %5592 = vmatprep.subr.mxu0 0.0
    %5593 = vmatpush1.xpose.msra.mxu0 0.0
    %5594 = vmatprep.subr.mxu0 0.0
    %5595 = vmatpush1.xpose.msra.mxu0 0.0
    %5596 = vmatprep.subr.mxu0 0.0
    %5597 = vmatpush1.xpose.msra.mxu0 0.0
    %5598 = vmatprep.subr.mxu0 0.0
    %5599 = vmatpush1.xpose.msra.mxu0 0.0
    %5600 = vmatprep.subr.mxu0 0.0
    %5601 = vmatpush1.xpose.msra.mxu0 0.0
    %5602 = vmatprep.subr.mxu0 0.0
    %5603 = vmatpush1.xpose.msra.mxu0 0.0
    %5604 = vmatprep.subr.mxu0 0.0
    %5605 = vmatpush1.xpose.msra.mxu0 0.0
    %5606 = vmatprep.subr.mxu0 0.0
    %5607 = vmatpush1.xpose.msra.mxu0 0.0
    %5608 = vmatprep.subr.mxu0 0.0
    %5609 = vmatpush1.xpose.msra.mxu0 0.0
    %5610 = vmatprep.subr.mxu0 0.0
    %5611 = vmatpush1.xpose.msra.mxu0 0.0
    %5612 = vmatprep.subr.mxu0 0.0
    %5613 = vmatpush1.xpose.msra.mxu0 0.0
    %5614 = vmatprep.subr.mxu0 0.0
    %5615 = vmatpush1.xpose.msra.mxu0 0.0
    %5616 = vmatprep.subr.mxu0 0.0
    %5617 = vmatpush1.xpose.msra.mxu0 0.0
    %5618 = vmatprep.subr.mxu0 0.0
    %5619 = vmatpush1.xpose.msra.mxu0 0.0
    %5620 = vmatprep.subr.mxu0 0.0
    %5621 = vmatpush1.xpose.msra.mxu0 0.0
    %5622 = vmatprep.subr.mxu0 0.0
    %5623 = vmatpush1.xpose.msra.mxu0 0.0
    %5624 = vmatprep.subr.mxu0 0.0
    %5625 = vmatpush1.xpose.msra.mxu0 0.0
    %5626 = vmatprep.subr.mxu0 0.0
    %5627 = vmatpush1.xpose.msra.mxu0 0.0
    %5628 = vmatprep.subr.mxu0 0.0
    %5629 = vmatpush1.xpose.msra.mxu0 0.0
    %5630 = vmatprep.subr.mxu0 0.0
    %5631 = vmatpush1.xpose.msra.mxu0 0.0
    %5632 = vmatprep.subr.mxu0 0.0
    %5633 = vmatpush1.xpose.msra.mxu0 0.0
    %5634 = vmatprep.mubr.f32.mxu0 0.0
    %5635 = vmatmul.mubr.f32.gmra.mrb[0].mxu0 %v5564
    %v5636 = vpop.f32.mrb[0].mxu0
    %v5637 = vadd.f32 0.0, %v5636
    %v5638 = vpop.f32.mrb[0].mxu0
    %5639 = vdwg.mxu0
    %v5640 = vmul.f32 %v5555, 0.35355338
    %v5641 = vmul.f32 %v5637, 0.35355338
    %v5642 = vsel %vm4787, %v5640, -1e+30
    %v5643 = vsel %vm4787, %v5641, -1e+30
    %v5644 = vsel %vm979, %v5642, -inf
    %5645 = vmax.xlane.f32.xlu0 %v5644
    %v5646 = vpop.xlane.xlu0 %5645
    %v5647 = vsel %vm979, %v5643, -inf
    %5648 = vmax.xlane.f32.xlu0 %v5647
    %v5649 = vpop.xlane.xlu0 %5648
    %v5650 = vsub.f32 %v5642, %v5646
    %v5651 = vsub.f32 %v5643, %v5649
    %v5652 = vmul.f32 %v5650, 1.442695
    %v5653 = vpow.pop %v5652
    %v5654 = vmul.f32 %v5651, 1.442695
    %v5655 = vpow.pop %v5654
    %v5656 = vsel %vm979, %v5653, 0.0
    %5657 = vadd.xlane.f32.xlu0 %v5656
    %v5658 = vpop.xlane.xlu0 %5657
    %v5659 = vsel %vm979, %v5655, 0.0
    %5660 = vadd.xlane.f32.xlu0 %v5659
    %v5661 = vpop.xlane.xlu0 %5660
    %v5662 = vrcp.pop %v5658
    %v5663 = vrcp.pop %v5661
    %5664 = vrot.lane.b32.xlu0 %v4783, 80
    %v5665 = vpop.permute.xlu0 %5664
    %5666 = vrot.lane.b32.xlu0 %v4784, 80
    %v5667 = vpop.permute.xlu0 %5666
    %v5671 = vsel %vm1006, %v5653, 0
    %5673 = vmatprep.subr.mxu0 0.0
    %5674 = vmatpush1.msra.mxu0 %v5665
    %5675 = vmatprep.subr.mxu0 0.0
    %5676 = vmatpush1.msra.mxu0 %v5667
    %5677 = vmatprep.subr.mxu0 0.0
    %5678 = vmatpush1.msra.mxu0 0.0
    %5679 = vmatprep.subr.mxu0 0.0
    %5680 = vmatpush1.msra.mxu0 0.0
    %5681 = vmatprep.subr.mxu0 0.0
    %5682 = vmatpush1.msra.mxu0 0.0
    %5683 = vmatprep.subr.mxu0 0.0
    %5684 = vmatpush1.msra.mxu0 0.0
    %5685 = vmatprep.subr.mxu0 0.0
    %5686 = vmatpush1.msra.mxu0 0.0
    %5687 = vmatprep.subr.mxu0 0.0
    %5688 = vmatpush1.msra.mxu0 0.0
    %5689 = vmatprep.subr.mxu0 0.0
    %5690 = vmatpush1.msra.mxu0 0.0
    %5691 = vmatprep.subr.mxu0 0.0
    %5692 = vmatpush1.msra.mxu0 0.0
    %5693 = vmatprep.subr.mxu0 0.0
    %5694 = vmatpush1.msra.mxu0 0.0
    %5695 = vmatprep.subr.mxu0 0.0
    %5696 = vmatpush1.msra.mxu0 0.0
    %5697 = vmatprep.subr.mxu0 0.0
    %5698 = vmatpush1.msra.mxu0 0.0
    %5699 = vmatprep.subr.mxu0 0.0
    %5700 = vmatpush1.msra.mxu0 0.0
    %5701 = vmatprep.subr.mxu0 0.0
    %5702 = vmatpush1.msra.mxu0 0.0
    %5703 = vmatprep.subr.mxu0 0.0
    %5704 = vmatpush1.msra.mxu0 0.0
    %5705 = vmatprep.subr.mxu0 0.0
    %5706 = vmatpush1.msra.mxu0 0.0
    %5707 = vmatprep.subr.mxu0 0.0
    %5708 = vmatpush1.msra.mxu0 0.0
    %5709 = vmatprep.subr.mxu0 0.0
    %5710 = vmatpush1.msra.mxu0 0.0
    %5711 = vmatprep.subr.mxu0 0.0
    %5712 = vmatpush1.msra.mxu0 0.0
    %5713 = vmatprep.subr.mxu0 0.0
    %5714 = vmatpush1.msra.mxu0 0.0
    %5715 = vmatprep.subr.mxu0 0.0
    %5716 = vmatpush1.msra.mxu0 0.0
    %5717 = vmatprep.subr.mxu0 0.0
    %5718 = vmatpush1.msra.mxu0 0.0
    %5719 = vmatprep.subr.mxu0 0.0
    %5720 = vmatpush1.msra.mxu0 0.0
    %5721 = vmatprep.subr.mxu0 0.0
    %5722 = vmatpush1.msra.mxu0 0.0
    %5723 = vmatprep.subr.mxu0 0.0
    %5724 = vmatpush1.msra.mxu0 0.0
    %5725 = vmatprep.subr.mxu0 0.0
    %5726 = vmatpush1.msra.mxu0 0.0
    %5727 = vmatprep.subr.mxu0 0.0
    %5728 = vmatpush1.msra.mxu0 0.0
    %5729 = vmatprep.subr.mxu0 0.0
    %5730 = vmatpush1.msra.mxu0 0.0
    %5731 = vmatprep.subr.mxu0 0.0
    %5732 = vmatpush1.msra.mxu0 0.0
    %5733 = vmatprep.subr.mxu0 0.0
    %5734 = vmatpush1.msra.mxu0 0.0
    %5735 = vmatprep.subr.mxu0 0.0
    %5736 = vmatpush1.msra.mxu0 0.0
    %5737 = vmatprep.mubr.f32.mxu0 0.0
    %5738 = vmatmul.mubr.f32.gmra.mrb[0].mxu0 %v5671
    %v5739 = vpop.f32.mrb[0].mxu0
    %v5740 = vadd.f32 0.0, %v5739
    %v5741 = vpop.f32.mrb[0].mxu0
    %5742 = vdwg.mxu0
    %5743 = vrot.lane.b32.xlu0 %v4785, 80
    %v5744 = vpop.permute.xlu0 %5743
    %5745 = vrot.lane.b32.xlu0 %v4786, 80
    %v5746 = vpop.permute.xlu0 %5745
    %v5750 = vsel %vm1006, %v5655, 0
    %5752 = vmatprep.subr.mxu0 0.0
    %5753 = vmatpush1.msra.mxu0 %v5744
    %5754 = vmatprep.subr.mxu0 0.0
    %5755 = vmatpush1.msra.mxu0 %v5746
    %5756 = vmatprep.subr.mxu0 0.0
    %5757 = vmatpush1.msra.mxu0 0.0
    %5758 = vmatprep.subr.mxu0 0.0
    %5759 = vmatpush1.msra.mxu0 0.0
    %5760 = vmatprep.subr.mxu0 0.0
    %5761 = vmatpush1.msra.mxu0 0.0
    %5762 = vmatprep.subr.mxu0 0.0
    %5763 = vmatpush1.msra.mxu0 0.0
    %5764 = vmatprep.subr.mxu0 0.0
    %5765 = vmatpush1.msra.mxu0 0.0
    %5766 = vmatprep.subr.mxu0 0.0
    %5767 = vmatpush1.msra.mxu0 0.0
    %5768 = vmatprep.subr.mxu0 0.0
    %5769 = vmatpush1.msra.mxu0 0.0
    %5770 = vmatprep.subr.mxu0 0.0
    %5771 = vmatpush1.msra.mxu0 0.0
    %5772 = vmatprep.subr.mxu0 0.0
    %5773 = vmatpush1.msra.mxu0 0.0
    %5774 = vmatprep.subr.mxu0 0.0
    %5775 = vmatpush1.msra.mxu0 0.0
    %5776 = vmatprep.subr.mxu0 0.0
    %5777 = vmatpush1.msra.mxu0 0.0
    %5778 = vmatprep.subr.mxu0 0.0
    %5779 = vmatpush1.msra.mxu0 0.0
    %5780 = vmatprep.subr.mxu0 0.0
    %5781 = vmatpush1.msra.mxu0 0.0
    %5782 = vmatprep.subr.mxu0 0.0
    %5783 = vmatpush1.msra.mxu0 0.0
    %5784 = vmatprep.subr.mxu0 0.0
    %5785 = vmatpush1.msra.mxu0 0.0
    %5786 = vmatprep.subr.mxu0 0.0
    %5787 = vmatpush1.msra.mxu0 0.0
    %5788 = vmatprep.subr.mxu0 0.0
    %5789 = vmatpush1.msra.mxu0 0.0
    %5790 = vmatprep.subr.mxu0 0.0
    %5791 = vmatpush1.msra.mxu0 0.0
    %5792 = vmatprep.subr.mxu0 0.0
    %5793 = vmatpush1.msra.mxu0 0.0
    %5794 = vmatprep.subr.mxu0 0.0
    %5795 = vmatpush1.msra.mxu0 0.0
    %5796 = vmatprep.subr.mxu0 0.0
    %5797 = vmatpush1.msra.mxu0 0.0
    %5798 = vmatprep.subr.mxu0 0.0
    %5799 = vmatpush1.msra.mxu0 0.0
    %5800 = vmatprep.subr.mxu0 0.0
    %5801 = vmatpush1.msra.mxu0 0.0
    %5802 = vmatprep.subr.mxu0 0.0
    %5803 = vmatpush1.msra.mxu0 0.0
    %5804 = vmatprep.subr.mxu0 0.0
    %5805 = vmatpush1.msra.mxu0 0.0
    %5806 = vmatprep.subr.mxu0 0.0
    %5807 = vmatpush1.msra.mxu0 0.0
    %5808 = vmatprep.subr.mxu0 0.0
    %5809 = vmatpush1.msra.mxu0 0.0
    %5810 = vmatprep.subr.mxu0 0.0
    %5811 = vmatpush1.msra.mxu0 0.0
    %5812 = vmatprep.subr.mxu0 0.0
    %5813 = vmatpush1.msra.mxu0 0.0
    %5814 = vmatprep.subr.mxu0 0.0
    %5815 = vmatpush1.msra.mxu0 0.0
    %5816 = vmatprep.mubr.f32.mxu0 0.0
    %5817 = vmatmul.mubr.f32.gmra.mrb[0].mxu0 %v5750
    %v5818 = vpop.f32.mrb[0].mxu0
    %v5819 = vadd.f32 0.0, %v5818
    %v5820 = vpop.f32.mrb[0].mxu0
    %5821 = vdwg.mxu0
    %v5822 = vmul.f32 %v5740, %v5662
    %v5823 = vmul.f32 %v5819, %v5663
    %5824 = vrot.lane.b32.xlu0 %v4770, 104
    %v5825 = vpop.permute.xlu0 %5824
    %5826 = vrot.lane.b32.xlu0 %v4783, 104
    %v5827 = vpop.permute.xlu0 %5826
    %5828 = vrot.lane.b32.xlu0 %v4784, 104
    %v5829 = vpop.permute.xlu0 %5828
    %v5830 = vsel %vm818, %v5825, 0
    %v5832 = vsel %vm818, %v5827, 0
    %v5834 = vsel %vm818, %v5829, 0
    %5836 = vmatprep.subr.mxu0 0.0
    %5837 = vmatpush1.xpose.msra.mxu0 %v5832
    %5838 = vmatprep.subr.mxu0 0.0
    %5839 = vmatpush1.xpose.msra.mxu0 %v5834
    %5840 = vmatprep.subr.mxu0 0.0
    %5841 = vmatpush1.xpose.msra.mxu0 0.0
    %5842 = vmatprep.subr.mxu0 0.0
    %5843 = vmatpush1.xpose.msra.mxu0 0.0
    %5844 = vmatprep.subr.mxu0 0.0
    %5845 = vmatpush1.xpose.msra.mxu0 0.0
    %5846 = vmatprep.subr.mxu0 0.0
    %5847 = vmatpush1.xpose.msra.mxu0 0.0
    %5848 = vmatprep.subr.mxu0 0.0
    %5849 = vmatpush1.xpose.msra.mxu0 0.0
    %5850 = vmatprep.subr.mxu0 0.0
    %5851 = vmatpush1.xpose.msra.mxu0 0.0
    %5852 = vmatprep.subr.mxu0 0.0
    %5853 = vmatpush1.xpose.msra.mxu0 0.0
    %5854 = vmatprep.subr.mxu0 0.0
    %5855 = vmatpush1.xpose.msra.mxu0 0.0
    %5856 = vmatprep.subr.mxu0 0.0
    %5857 = vmatpush1.xpose.msra.mxu0 0.0
    %5858 = vmatprep.subr.mxu0 0.0
    %5859 = vmatpush1.xpose.msra.mxu0 0.0
    %5860 = vmatprep.subr.mxu0 0.0
    %5861 = vmatpush1.xpose.msra.mxu0 0.0
    %5862 = vmatprep.subr.mxu0 0.0
    %5863 = vmatpush1.xpose.msra.mxu0 0.0
    %5864 = vmatprep.subr.mxu0 0.0
    %5865 = vmatpush1.xpose.msra.mxu0 0.0
    %5866 = vmatprep.subr.mxu0 0.0
    %5867 = vmatpush1.xpose.msra.mxu0 0.0
    %5868 = vmatprep.subr.mxu0 0.0
    %5869 = vmatpush1.xpose.msra.mxu0 0.0
    %5870 = vmatprep.subr.mxu0 0.0
    %5871 = vmatpush1.xpose.msra.mxu0 0.0
    %5872 = vmatprep.subr.mxu0 0.0
    %5873 = vmatpush1.xpose.msra.mxu0 0.0
    %5874 = vmatprep.subr.mxu0 0.0
    %5875 = vmatpush1.xpose.msra.mxu0 0.0
    %5876 = vmatprep.subr.mxu0 0.0
    %5877 = vmatpush1.xpose.msra.mxu0 0.0
    %5878 = vmatprep.subr.mxu0 0.0
    %5879 = vmatpush1.xpose.msra.mxu0 0.0
    %5880 = vmatprep.subr.mxu0 0.0
    %5881 = vmatpush1.xpose.msra.mxu0 0.0
    %5882 = vmatprep.subr.mxu0 0.0
    %5883 = vmatpush1.xpose.msra.mxu0 0.0
    %5884 = vmatprep.subr.mxu0 0.0
    %5885 = vmatpush1.xpose.msra.mxu0 0.0
    %5886 = vmatprep.subr.mxu0 0.0
    %5887 = vmatpush1.xpose.msra.mxu0 0.0
    %5888 = vmatprep.subr.mxu0 0.0
    %5889 = vmatpush1.xpose.msra.mxu0 0.0
    %5890 = vmatprep.subr.mxu0 0.0
    %5891 = vmatpush1.xpose.msra.mxu0 0.0
    %5892 = vmatprep.subr.mxu0 0.0
    %5893 = vmatpush1.xpose.msra.mxu0 0.0
    %5894 = vmatprep.subr.mxu0 0.0
    %5895 = vmatpush1.xpose.msra.mxu0 0.0
    %5896 = vmatprep.subr.mxu0 0.0
    %5897 = vmatpush1.xpose.msra.mxu0 0.0
    %5898 = vmatprep.subr.mxu0 0.0
    %5899 = vmatpush1.xpose.msra.mxu0 0.0
    %5900 = vmatprep.mubr.f32.mxu0 0.0
    %5901 = vmatmul.mubr.f32.gmra.mrb[0].mxu0 %v5830
    %v5902 = vpop.f32.mrb[0].mxu0
    %v5903 = vadd.f32 0.0, %v5902
    %v5904 = vpop.f32.mrb[0].mxu0
    %5905 = vdwg.mxu0
    %5906 = vrot.lane.b32.xlu0 %v4774, 104
    %v5907 = vpop.permute.xlu0 %5906
    %5908 = vrot.lane.b32.xlu0 %v4785, 104
    %v5909 = vpop.permute.xlu0 %5908
    %5910 = vrot.lane.b32.xlu0 %v4786, 104
    %v5911 = vpop.permute.xlu0 %5910
    %v5912 = vsel %vm818, %v5907, 0
    %v5914 = vsel %vm818, %v5909, 0
    %v5916 = vsel %vm818, %v5911, 0
    %5918 = vmatprep.subr.mxu0 0.0
    %5919 = vmatpush1.xpose.msra.mxu0 %v5914
    %5920 = vmatprep.subr.mxu0 0.0
    %5921 = vmatpush1.xpose.msra.mxu0 %v5916
    %5922 = vmatprep.subr.mxu0 0.0
    %5923 = vmatpush1.xpose.msra.mxu0 0.0
    %5924 = vmatprep.subr.mxu0 0.0
    %5925 = vmatpush1.xpose.msra.mxu0 0.0
    %5926 = vmatprep.subr.mxu0 0.0
    %5927 = vmatpush1.xpose.msra.mxu0 0.0
    %5928 = vmatprep.subr.mxu0 0.0
    %5929 = vmatpush1.xpose.msra.mxu0 0.0
    %5930 = vmatprep.subr.mxu0 0.0
    %5931 = vmatpush1.xpose.msra.mxu0 0.0
    %5932 = vmatprep.subr.mxu0 0.0
    %5933 = vmatpush1.xpose.msra.mxu0 0.0
    %5934 = vmatprep.subr.mxu0 0.0
    %5935 = vmatpush1.xpose.msra.mxu0 0.0
    %5936 = vmatprep.subr.mxu0 0.0
    %5937 = vmatpush1.xpose.msra.mxu0 0.0
    %5938 = vmatprep.subr.mxu0 0.0
    %5939 = vmatpush1.xpose.msra.mxu0 0.0
    %5940 = vmatprep.subr.mxu0 0.0
    %5941 = vmatpush1.xpose.msra.mxu0 0.0
    %5942 = vmatprep.subr.mxu0 0.0
    %5943 = vmatpush1.xpose.msra.mxu0 0.0
    %5944 = vmatprep.subr.mxu0 0.0
    %5945 = vmatpush1.xpose.msra.mxu0 0.0
    %5946 = vmatprep.subr.mxu0 0.0
    %5947 = vmatpush1.xpose.msra.mxu0 0.0
    %5948 = vmatprep.subr.mxu0 0.0
    %5949 = vmatpush1.xpose.msra.mxu0 0.0
    %5950 = vmatprep.subr.mxu0 0.0
    %5951 = vmatpush1.xpose.msra.mxu0 0.0
    %5952 = vmatprep.subr.mxu0 0.0
    %5953 = vmatpush1.xpose.msra.mxu0 0.0
    %5954 = vmatprep.subr.mxu0 0.0
    %5955 = vmatpush1.xpose.msra.mxu0 0.0
    %5956 = vmatprep.subr.mxu0 0.0
    %5957 = vmatpush1.xpose.msra.mxu0 0.0
    %5958 = vmatprep.subr.mxu0 0.0
    %5959 = vmatpush1.xpose.msra.mxu0 0.0
    %5960 = vmatprep.subr.mxu0 0.0
    %5961 = vmatpush1.xpose.msra.mxu0 0.0
    %5962 = vmatprep.subr.mxu0 0.0
    %5963 = vmatpush1.xpose.msra.mxu0 0.0
    %5964 = vmatprep.subr.mxu0 0.0
    %5965 = vmatpush1.xpose.msra.mxu0 0.0
    %5966 = vmatprep.subr.mxu0 0.0
    %5967 = vmatpush1.xpose.msra.mxu0 0.0
    %5968 = vmatprep.subr.mxu0 0.0
    %5969 = vmatpush1.xpose.msra.mxu0 0.0
    %5970 = vmatprep.subr.mxu0 0.0
    %5971 = vmatpush1.xpose.msra.mxu0 0.0
    %5972 = vmatprep.subr.mxu0 0.0
    %5973 = vmatpush1.xpose.msra.mxu0 0.0
    %5974 = vmatprep.subr.mxu0 0.0
    %5975 = vmatpush1.xpose.msra.mxu0 0.0
    %5976 = vmatprep.subr.mxu0 0.0
    %5977 = vmatpush1.xpose.msra.mxu0 0.0
    %5978 = vmatprep.subr.mxu0 0.0
    %5979 = vmatpush1.xpose.msra.mxu0 0.0
    %5980 = vmatprep.subr.mxu0 0.0
    %5981 = vmatpush1.xpose.msra.mxu0 0.0
    %5982 = vmatprep.mubr.f32.mxu0 0.0
    %5983 = vmatmul.mubr.f32.gmra.mrb[0].mxu0 %v5912
    %v5984 = vpop.f32.mrb[0].mxu0
    %v5985 = vadd.f32 0.0, %v5984
    %v5986 = vpop.f32.mrb[0].mxu0
    %5987 = vdwg.mxu0
    %v5988 = vmul.f32 %v5903, 0.35355338
    %v5989 = vmul.f32 %v5985, 0.35355338
    %v5990 = vsel %vm4787, %v5988, -1e+30
    %v5991 = vsel %vm4787, %v5989, -1e+30
    %v5992 = vsel %vm979, %v5990, -inf
    %5993 = vmax.xlane.f32.xlu0 %v5992
    %v5994 = vpop.xlane.xlu0 %5993
    %v5995 = vsel %vm979, %v5991, -inf
    %5996 = vmax.xlane.f32.xlu0 %v5995
    %v5997 = vpop.xlane.xlu0 %5996
    %v5998 = vsub.f32 %v5990, %v5994
    %v5999 = vsub.f32 %v5991, %v5997
    %v6000 = vmul.f32 %v5998, 1.442695
    %v6001 = vpow.pop %v6000
    %v6002 = vmul.f32 %v5999, 1.442695
    %v6003 = vpow.pop %v6002
    %v6004 = vsel %vm979, %v6001, 0.0
    %6005 = vadd.xlane.f32.xlu0 %v6004
    %v6006 = vpop.xlane.xlu0 %6005
    %v6007 = vsel %vm979, %v6003, 0.0
    %6008 = vadd.xlane.f32.xlu0 %v6007
    %v6009 = vpop.xlane.xlu0 %6008
    %v6010 = vrcp.pop %v6006
    %v6011 = vrcp.pop %v6009
    %6012 = vrot.lane.b32.xlu0 %v4783, 72
    %v6013 = vpop.permute.xlu0 %6012
    %6014 = vrot.lane.b32.xlu0 %v4784, 72
    %v6015 = vpop.permute.xlu0 %6014
    %v6019 = vsel %vm1006, %v6001, 0
    %6021 = vmatprep.subr.mxu0 0.0
    %6022 = vmatpush1.msra.mxu0 %v6013
    %6023 = vmatprep.subr.mxu0 0.0
    %6024 = vmatpush1.msra.mxu0 %v6015
    %6025 = vmatprep.subr.mxu0 0.0
    %6026 = vmatpush1.msra.mxu0 0.0
    %6027 = vmatprep.subr.mxu0 0.0
    %6028 = vmatpush1.msra.mxu0 0.0
    %6029 = vmatprep.subr.mxu0 0.0
    %6030 = vmatpush1.msra.mxu0 0.0
    %6031 = vmatprep.subr.mxu0 0.0
    %6032 = vmatpush1.msra.mxu0 0.0
    %6033 = vmatprep.subr.mxu0 0.0
    %6034 = vmatpush1.msra.mxu0 0.0
    %6035 = vmatprep.subr.mxu0 0.0
    %6036 = vmatpush1.msra.mxu0 0.0
    %6037 = vmatprep.subr.mxu0 0.0
    %6038 = vmatpush1.msra.mxu0 0.0
    %6039 = vmatprep.subr.mxu0 0.0
    %6040 = vmatpush1.msra.mxu0 0.0
    %6041 = vmatprep.subr.mxu0 0.0
    %6042 = vmatpush1.msra.mxu0 0.0
    %6043 = vmatprep.subr.mxu0 0.0
    %6044 = vmatpush1.msra.mxu0 0.0
    %6045 = vmatprep.subr.mxu0 0.0
    %6046 = vmatpush1.msra.mxu0 0.0
    %6047 = vmatprep.subr.mxu0 0.0
    %6048 = vmatpush1.msra.mxu0 0.0
    %6049 = vmatprep.subr.mxu0 0.0
    %6050 = vmatpush1.msra.mxu0 0.0
    %6051 = vmatprep.subr.mxu0 0.0
    %6052 = vmatpush1.msra.mxu0 0.0
    %6053 = vmatprep.subr.mxu0 0.0
    %6054 = vmatpush1.msra.mxu0 0.0
    %6055 = vmatprep.subr.mxu0 0.0
    %6056 = vmatpush1.msra.mxu0 0.0
    %6057 = vmatprep.subr.mxu0 0.0
    %6058 = vmatpush1.msra.mxu0 0.0
    %6059 = vmatprep.subr.mxu0 0.0
    %6060 = vmatpush1.msra.mxu0 0.0
    %6061 = vmatprep.subr.mxu0 0.0
    %6062 = vmatpush1.msra.mxu0 0.0
    %6063 = vmatprep.subr.mxu0 0.0
    %6064 = vmatpush1.msra.mxu0 0.0
    %6065 = vmatprep.subr.mxu0 0.0
    %6066 = vmatpush1.msra.mxu0 0.0
    %6067 = vmatprep.subr.mxu0 0.0
    %6068 = vmatpush1.msra.mxu0 0.0
    %6069 = vmatprep.subr.mxu0 0.0
    %6070 = vmatpush1.msra.mxu0 0.0
    %6071 = vmatprep.subr.mxu0 0.0
    %6072 = vmatpush1.msra.mxu0 0.0
    %6073 = vmatprep.subr.mxu0 0.0
    %6074 = vmatpush1.msra.mxu0 0.0
    %6075 = vmatprep.subr.mxu0 0.0
    %6076 = vmatpush1.msra.mxu0 0.0
    %6077 = vmatprep.subr.mxu0 0.0
    %6078 = vmatpush1.msra.mxu0 0.0
    %6079 = vmatprep.subr.mxu0 0.0
    %6080 = vmatpush1.msra.mxu0 0.0
    %6081 = vmatprep.subr.mxu0 0.0
    %6082 = vmatpush1.msra.mxu0 0.0
    %6083 = vmatprep.subr.mxu0 0.0
    %6084 = vmatpush1.msra.mxu0 0.0
    %6085 = vmatprep.mubr.f32.mxu0 0.0
    %6086 = vmatmul.mubr.f32.gmra.mrb[0].mxu0 %v6019
    %v6087 = vpop.f32.mrb[0].mxu0
    %v6088 = vadd.f32 0.0, %v6087
    %v6089 = vpop.f32.mrb[0].mxu0
    %6090 = vdwg.mxu0
    %6091 = vrot.lane.b32.xlu0 %v4785, 72
    %v6092 = vpop.permute.xlu0 %6091
    %6093 = vrot.lane.b32.xlu0 %v4786, 72
    %v6094 = vpop.permute.xlu0 %6093
    %v6098 = vsel %vm1006, %v6003, 0
    %6100 = vmatprep.subr.mxu0 0.0
    %6101 = vmatpush1.msra.mxu0 %v6092
    %6102 = vmatprep.subr.mxu0 0.0
    %6103 = vmatpush1.msra.mxu0 %v6094
    %6104 = vmatprep.subr.mxu0 0.0
    %6105 = vmatpush1.msra.mxu0 0.0
    %6106 = vmatprep.subr.mxu0 0.0
    %6107 = vmatpush1.msra.mxu0 0.0
    %6108 = vmatprep.subr.mxu0 0.0
    %6109 = vmatpush1.msra.mxu0 0.0
    %6110 = vmatprep.subr.mxu0 0.0
    %6111 = vmatpush1.msra.mxu0 0.0
    %6112 = vmatprep.subr.mxu0 0.0
    %6113 = vmatpush1.msra.mxu0 0.0
    %6114 = vmatprep.subr.mxu0 0.0
    %6115 = vmatpush1.msra.mxu0 0.0
    %6116 = vmatprep.subr.mxu0 0.0
    %6117 = vmatpush1.msra.mxu0 0.0
    %6118 = vmatprep.subr.mxu0 0.0
    %6119 = vmatpush1.msra.mxu0 0.0
    %6120 = vmatprep.subr.mxu0 0.0
    %6121 = vmatpush1.msra.mxu0 0.0
    %6122 = vmatprep.subr.mxu0 0.0
    %6123 = vmatpush1.msra.mxu0 0.0
    %6124 = vmatprep.subr.mxu0 0.0
    %6125 = vmatpush1.msra.mxu0 0.0
    %6126 = vmatprep.subr.mxu0 0.0
    %6127 = vmatpush1.msra.mxu0 0.0
    %6128 = vmatprep.subr.mxu0 0.0
    %6129 = vmatpush1.msra.mxu0 0.0
    %6130 = vmatprep.subr.mxu0 0.0
    %6131 = vmatpush1.msra.mxu0 0.0
    %6132 = vmatprep.subr.mxu0 0.0
    %6133 = vmatpush1.msra.mxu0 0.0
    %6134 = vmatprep.subr.mxu0 0.0
    %6135 = vmatpush1.msra.mxu0 0.0
    %6136 = vmatprep.subr.mxu0 0.0
    %6137 = vmatpush1.msra.mxu0 0.0
    %6138 = vmatprep.subr.mxu0 0.0
    %6139 = vmatpush1.msra.mxu0 0.0
    %6140 = vmatprep.subr.mxu0 0.0
    %6141 = vmatpush1.msra.mxu0 0.0
    %6142 = vmatprep.subr.mxu0 0.0
    %6143 = vmatpush1.msra.mxu0 0.0
    %6144 = vmatprep.subr.mxu0 0.0
    %6145 = vmatpush1.msra.mxu0 0.0
    %6146 = vmatprep.subr.mxu0 0.0
    %6147 = vmatpush1.msra.mxu0 0.0
    %6148 = vmatprep.subr.mxu0 0.0
    %6149 = vmatpush1.msra.mxu0 0.0
    %6150 = vmatprep.subr.mxu0 0.0
    %6151 = vmatpush1.msra.mxu0 0.0
    %6152 = vmatprep.subr.mxu0 0.0
    %6153 = vmatpush1.msra.mxu0 0.0
    %6154 = vmatprep.subr.mxu0 0.0
    %6155 = vmatpush1.msra.mxu0 0.0
    %6156 = vmatprep.subr.mxu0 0.0
    %6157 = vmatpush1.msra.mxu0 0.0
    %6158 = vmatprep.subr.mxu0 0.0
    %6159 = vmatpush1.msra.mxu0 0.0
    %6160 = vmatprep.subr.mxu0 0.0
    %6161 = vmatpush1.msra.mxu0 0.0
    %6162 = vmatprep.subr.mxu0 0.0
    %6163 = vmatpush1.msra.mxu0 0.0
    %6164 = vmatprep.mubr.f32.mxu0 0.0
    %6165 = vmatmul.mubr.f32.gmra.mrb[0].mxu0 %v6098
    %v6166 = vpop.f32.mrb[0].mxu0
    %v6167 = vadd.f32 0.0, %v6166
    %v6168 = vpop.f32.mrb[0].mxu0
    %6169 = vdwg.mxu0
    %v6170 = vmul.f32 %v6088, %v6010
    %v6171 = vmul.f32 %v6167, %v6011
    %6174 = vrot.lane.b32.xlu0 %v5474, 8
    %v6175 = vpop.permute.xlu0 %6174
    %6176 = vrot.lane.b32.xlu0 %v5475, 8
    %v6177 = vpop.permute.xlu0 %6176
    %6182 = vrot.lane.b32.xlu0 %v5822, 16
    %v6183 = vpop.permute.xlu0 %6182
    %6184 = vrot.lane.b32.xlu0 %v5823, 16
    %v6185 = vpop.permute.xlu0 %6184
    %6190 = vrot.lane.b32.xlu0 %v6170, 24
    %v6191 = vpop.permute.xlu0 %6190
    %6192 = vrot.lane.b32.xlu0 %v6171, 24
    %v6193 = vpop.permute.xlu0 %6192
    %v6196 = vsel %vm818, %v5126, %v6175
    %v6197 = vsel %vm818, %v5127, %v6177
    %v6198 = vsel %vm1006, %v6196, %v6183
    %v6199 = vsel %vm1006, %v6197, %v6185
    %v6200 = vsel %vm2233, %v6198, %v6191
    %v6201 = vsel %vm2233, %v6199, %v6193
    %v6204 = vrot.slane %v6201, 7
    %v6205 = vsel %vm699, %v6204, %v6200
    %v6206 = vsel %vm226, %v6205, 0
    %6208 = vmatprep.subr.mxu0 0.0
    %6209 = vmatpush1.msra.mxu0 %v84
    %6210 = vmatprep.subr.mxu0 0.0
    %6211 = vmatpush1.msra.mxu0 %v85
    %6212 = vmatprep.subr.mxu0 0.0
    %6213 = vmatpush1.msra.mxu0 %v86
    %6214 = vmatprep.subr.mxu0 0.0
    %6215 = vmatpush1.msra.mxu0 %v87
    %6216 = vmatprep.subr.mxu0 0.0
    %6217 = vmatpush1.msra.mxu0 0.0
    %6218 = vmatprep.subr.mxu0 0.0
    %6219 = vmatpush1.msra.mxu0 0.0
    %6220 = vmatprep.subr.mxu0 0.0
    %6221 = vmatpush1.msra.mxu0 0.0
    %6222 = vmatprep.subr.mxu0 0.0
    %6223 = vmatpush1.msra.mxu0 0.0
    %6224 = vmatprep.subr.mxu0 0.0
    %6225 = vmatpush1.msra.mxu0 0.0
    %6226 = vmatprep.subr.mxu0 0.0
    %6227 = vmatpush1.msra.mxu0 0.0
    %6228 = vmatprep.subr.mxu0 0.0
    %6229 = vmatpush1.msra.mxu0 0.0
    %6230 = vmatprep.subr.mxu0 0.0
    %6231 = vmatpush1.msra.mxu0 0.0
    %6232 = vmatprep.subr.mxu0 0.0
    %6233 = vmatpush1.msra.mxu0 0.0
    %6234 = vmatprep.subr.mxu0 0.0
    %6235 = vmatpush1.msra.mxu0 0.0
    %6236 = vmatprep.subr.mxu0 0.0
    %6237 = vmatpush1.msra.mxu0 0.0
    %6238 = vmatprep.subr.mxu0 0.0
    %6239 = vmatpush1.msra.mxu0 0.0
    %6240 = vmatprep.subr.mxu0 0.0
    %6241 = vmatpush1.msra.mxu0 0.0
    %6242 = vmatprep.subr.mxu0 0.0
    %6243 = vmatpush1.msra.mxu0 0.0
    %6244 = vmatprep.subr.mxu0 0.0
    %6245 = vmatpush1.msra.mxu0 0.0
    %6246 = vmatprep.subr.mxu0 0.0
    %6247 = vmatpush1.msra.mxu0 0.0
    %6248 = vmatprep.subr.mxu0 0.0
    %6249 = vmatpush1.msra.mxu0 0.0
    %6250 = vmatprep.subr.mxu0 0.0
    %6251 = vmatpush1.msra.mxu0 0.0
    %6252 = vmatprep.subr.mxu0 0.0
    %6253 = vmatpush1.msra.mxu0 0.0
    %6254 = vmatprep.subr.mxu0 0.0
    %6255 = vmatpush1.msra.mxu0 0.0
    %6256 = vmatprep.subr.mxu0 0.0
    %6257 = vmatpush1.msra.mxu0 0.0
    %6258 = vmatprep.subr.mxu0 0.0
    %6259 = vmatpush1.msra.mxu0 0.0
    %6260 = vmatprep.subr.mxu0 0.0
    %6261 = vmatpush1.msra.mxu0 0.0
    %6262 = vmatprep.subr.mxu0 0.0
    %6263 = vmatpush1.msra.mxu0 0.0
    %6264 = vmatprep.subr.mxu0 0.0
    %6265 = vmatpush1.msra.mxu0 0.0
    %6266 = vmatprep.subr.mxu0 0.0
    %6267 = vmatpush1.msra.mxu0 0.0
    %6268 = vmatprep.subr.mxu0 0.0
    %6269 = vmatpush1.msra.mxu0 0.0
    %6270 = vmatprep.subr.mxu0 0.0
    %6271 = vmatpush1.msra.mxu0 0.0
    %6272 = vmatprep.mubr.f32.mxu0 0.0
    %6273 = vmatmul.mubr.f32.gmra.mrb[0].mxu0 %v6206
    %v6274 = vpop.f32.mrb[0].mxu0
    %v6275 = vadd.f32 %v2240, %v6274
    %v6276 = vpop.f32.mrb[0].mxu0
    %6277 = vdwg.mxu0
    %v6278 = vadd.f32 %v4659, %v6275
    %v6279 = vmul.f32 %v6278, %v6278
    %v6280 = vsel %vm2711, %v6279, 0.0
    %6281 = vadd.xlane.f32.xlu0 %v6280
    %v6282 = vpop.xlane.xlu0 %6281
    %v6283 = vmul.f32 %v6282, %v524
    %v6284 = vadd.f32 %v6283, 1e-06
    %v6285 = vrsqrt.pop %v6284
    %v6286 = vmul.f32 %v6278, %v6285
    %v6287 = vmul.f32 %v6286, %v2348
    %v6289 = vsel %vm226, %v6287, 0
    %6291 = vmatprep.subr.mxu0 0.0
    %6292 = vmatpush1.msra.mxu0 %v89
    %6293 = vmatprep.subr.mxu0 0.0
    %6294 = vmatpush1.msra.mxu0 %v90
    %6295 = vmatprep.subr.mxu0 0.0
    %6296 = vmatpush1.msra.mxu0 %v91
    %6297 = vmatprep.subr.mxu0 0.0
    %6298 = vmatpush1.msra.mxu0 %v92
    %6299 = vmatprep.subr.mxu0 0.0
    %6300 = vmatpush1.msra.mxu0 0.0
    %6301 = vmatprep.subr.mxu0 0.0
    %6302 = vmatpush1.msra.mxu0 0.0
    %6303 = vmatprep.subr.mxu0 0.0
    %6304 = vmatpush1.msra.mxu0 0.0
    %6305 = vmatprep.subr.mxu0 0.0
    %6306 = vmatpush1.msra.mxu0 0.0
    %6307 = vmatprep.subr.mxu0 0.0
    %6308 = vmatpush1.msra.mxu0 0.0
    %6309 = vmatprep.subr.mxu0 0.0
    %6310 = vmatpush1.msra.mxu0 0.0
    %6311 = vmatprep.subr.mxu0 0.0
    %6312 = vmatpush1.msra.mxu0 0.0
    %6313 = vmatprep.subr.mxu0 0.0
    %6314 = vmatpush1.msra.mxu0 0.0
    %6315 = vmatprep.subr.mxu0 0.0
    %6316 = vmatpush1.msra.mxu0 0.0
    %6317 = vmatprep.subr.mxu0 0.0
    %6318 = vmatpush1.msra.mxu0 0.0
    %6319 = vmatprep.subr.mxu0 0.0
    %6320 = vmatpush1.msra.mxu0 0.0
    %6321 = vmatprep.subr.mxu0 0.0
    %6322 = vmatpush1.msra.mxu0 0.0
    %6323 = vmatprep.subr.mxu0 0.0
    %6324 = vmatpush1.msra.mxu0 0.0
    %6325 = vmatprep.subr.mxu0 0.0
    %6326 = vmatpush1.msra.mxu0 0.0
    %6327 = vmatprep.subr.mxu0 0.0
    %6328 = vmatpush1.msra.mxu0 0.0
    %6329 = vmatprep.subr.mxu0 0.0
    %6330 = vmatpush1.msra.mxu0 0.0
    %6331 = vmatprep.subr.mxu0 0.0
    %6332 = vmatpush1.msra.mxu0 0.0
    %6333 = vmatprep.subr.mxu0 0.0
    %6334 = vmatpush1.msra.mxu0 0.0
    %6335 = vmatprep.subr.mxu0 0.0
    %6336 = vmatpush1.msra.mxu0 0.0
    %6337 = vmatprep.subr.mxu0 0.0
    %6338 = vmatpush1.msra.mxu0 0.0
    %6339 = vmatprep.subr.mxu0 0.0
    %6340 = vmatpush1.msra.mxu0 0.0
    %6341 = vmatprep.subr.mxu0 0.0
    %6342 = vmatpush1.msra.mxu0 0.0
    %6343 = vmatprep.subr.mxu0 0.0
    %6344 = vmatpush1.msra.mxu0 0.0
    %6345 = vmatprep.subr.mxu0 0.0
    %6346 = vmatpush1.msra.mxu0 0.0
    %6347 = vmatprep.subr.mxu0 0.0
    %6348 = vmatpush1.msra.mxu0 0.0
    %6349 = vmatprep.subr.mxu0 0.0
    %6350 = vmatpush1.msra.mxu0 0.0
    %6351 = vmatprep.subr.mxu0 0.0
    %6352 = vmatpush1.msra.mxu0 0.0
    %6353 = vmatprep.subr.mxu0 0.0
    %6354 = vmatpush1.msra.mxu0 0.0
    %6355 = vmatprep.mubr.f32.mxu0 0.0
    %6356 = vmatmul.mubr.f32.gmra.mrb[0].mxu0 %v6289
    %v6357 = vpop.f32.mrb[0].mxu0
    %v6358 = vadd.f32 %v2356, %v6357
    %v6359 = vpop.f32.mrb[0].mxu0
    %6360 = vdwg.mxu0
    %v6361 = vmul.f32 %v6358, %v6358
    %v6362 = vmul.f32 %v6358, %v6361
    %v6363 = vmul.f32 %v6362, 0.044715
    %v6364 = vadd.f32 %v6358, %v6363
    %v6365 = vmul.f32 %v6364, 0.7978846
    %v6366 = vtanh.pop %v6365
    %v6367 = vadd.f32 %v6366, 1.0
    %v6368 = vmul.f32 %v6367, 0.5
    %v6369 = vmul.f32 %v6358, %v6368
    %v6371 = vsel %vm141, %v6369, 0
    %6373 = vmatprep.subr.mxu0 0.0
    %6374 = vmatpush1.msra.mxu0 %v94
    %6375 = vmatprep.subr.mxu0 0.0
    %6376 = vmatpush1.msra.mxu0 %v95
    %6377 = vmatprep.subr.mxu0 0.0
    %6378 = vmatpush1.msra.mxu0 %v96
    %6379 = vmatprep.subr.mxu0 0.0
    %6380 = vmatpush1.msra.mxu0 %v97
    %6381 = vmatprep.subr.mxu0 0.0
    %6382 = vmatpush1.msra.mxu0 %v98
    %6383 = vmatprep.subr.mxu0 0.0
    %6384 = vmatpush1.msra.mxu0 %v99
    %6385 = vmatprep.subr.mxu0 0.0
    %6386 = vmatpush1.msra.mxu0 %v100
    %6387 = vmatprep.subr.mxu0 0.0
    %6388 = vmatpush1.msra.mxu0 %v101
    %6389 = vmatprep.subr.mxu0 0.0
    %6390 = vmatpush1.msra.mxu0 0.0
    %6391 = vmatprep.subr.mxu0 0.0
    %6392 = vmatpush1.msra.mxu0 0.0
    %6393 = vmatprep.subr.mxu0 0.0
    %6394 = vmatpush1.msra.mxu0 0.0
    %6395 = vmatprep.subr.mxu0 0.0
    %6396 = vmatpush1.msra.mxu0 0.0
    %6397 = vmatprep.subr.mxu0 0.0
    %6398 = vmatpush1.msra.mxu0 0.0
    %6399 = vmatprep.subr.mxu0 0.0
    %6400 = vmatpush1.msra.mxu0 0.0
    %6401 = vmatprep.subr.mxu0 0.0
    %6402 = vmatpush1.msra.mxu0 0.0
    %6403 = vmatprep.subr.mxu0 0.0
    %6404 = vmatpush1.msra.mxu0 0.0
    %6405 = vmatprep.subr.mxu0 0.0
    %6406 = vmatpush1.msra.mxu0 0.0
    %6407 = vmatprep.subr.mxu0 0.0
    %6408 = vmatpush1.msra.mxu0 0.0
    %6409 = vmatprep.subr.mxu0 0.0
    %6410 = vmatpush1.msra.mxu0 0.0
    %6411 = vmatprep.subr.mxu0 0.0
    %6412 = vmatpush1.msra.mxu0 0.0
    %6413 = vmatprep.subr.mxu0 0.0
    %6414 = vmatpush1.msra.mxu0 0.0
    %6415 = vmatprep.subr.mxu0 0.0
    %6416 = vmatpush1.msra.mxu0 0.0
    %6417 = vmatprep.subr.mxu0 0.0
    %6418 = vmatpush1.msra.mxu0 0.0
    %6419 = vmatprep.subr.mxu0 0.0
    %6420 = vmatpush1.msra.mxu0 0.0
    %6421 = vmatprep.subr.mxu0 0.0
    %6422 = vmatpush1.msra.mxu0 0.0
    %6423 = vmatprep.subr.mxu0 0.0
    %6424 = vmatpush1.msra.mxu0 0.0
    %6425 = vmatprep.subr.mxu0 0.0
    %6426 = vmatpush1.msra.mxu0 0.0
    %6427 = vmatprep.subr.mxu0 0.0
    %6428 = vmatpush1.msra.mxu0 0.0
    %6429 = vmatprep.subr.mxu0 0.0
    %6430 = vmatpush1.msra.mxu0 0.0
    %6431 = vmatprep.subr.mxu0 0.0
    %6432 = vmatpush1.msra.mxu0 0.0
    %6433 = vmatprep.subr.mxu0 0.0
    %6434 = vmatpush1.msra.mxu0 0.0
    %6435 = vmatprep.subr.mxu0 0.0
    %6436 = vmatpush1.msra.mxu0 0.0
    %6437 = vmatprep.mubr.f32.mxu0 0.0
    %6438 = vmatmul.mubr.f32.gmra.mrb[0].mxu0 %v6371
    %v6439 = vpop.f32.mrb[0].mxu0
    %v6440 = vadd.f32 %v2448, %v6439
    %v6441 = vpop.f32.mrb[0].mxu0
    %6442 = vdwg.mxu0
    %v6443 = vadd.f32 %v6278, %v6440
    %v6445 = vsel %vm226, %v6443, 0
    %6447 = vmatprep.subr.mxu0 0.0
    %6448 = vmatpush1.msra.mxu0 %v103
    %6449 = vmatprep.subr.mxu0 0.0
    %6450 = vmatpush1.msra.mxu0 %v104
    %6451 = vmatprep.subr.mxu0 0.0
    %6452 = vmatpush1.msra.mxu0 %v105
    %6453 = vmatprep.subr.mxu0 0.0
    %6454 = vmatpush1.msra.mxu0 %v106
    %6455 = vmatprep.subr.mxu0 0.0
    %6456 = vmatpush1.msra.mxu0 0.0
    %6457 = vmatprep.subr.mxu0 0.0
    %6458 = vmatpush1.msra.mxu0 0.0
    %6459 = vmatprep.subr.mxu0 0.0
    %6460 = vmatpush1.msra.mxu0 0.0
    %6461 = vmatprep.subr.mxu0 0.0
    %6462 = vmatpush1.msra.mxu0 0.0
    %6463 = vmatprep.subr.mxu0 0.0
    %6464 = vmatpush1.msra.mxu0 0.0
    %6465 = vmatprep.subr.mxu0 0.0
    %6466 = vmatpush1.msra.mxu0 0.0
    %6467 = vmatprep.subr.mxu0 0.0
    %6468 = vmatpush1.msra.mxu0 0.0
    %6469 = vmatprep.subr.mxu0 0.0
    %6470 = vmatpush1.msra.mxu0 0.0
    %6471 = vmatprep.subr.mxu0 0.0
    %6472 = vmatpush1.msra.mxu0 0.0
    %6473 = vmatprep.subr.mxu0 0.0
    %6474 = vmatpush1.msra.mxu0 0.0
    %6475 = vmatprep.subr.mxu0 0.0
    %6476 = vmatpush1.msra.mxu0 0.0
    %6477 = vmatprep.subr.mxu0 0.0
    %6478 = vmatpush1.msra.mxu0 0.0
    %6479 = vmatprep.subr.mxu0 0.0
    %6480 = vmatpush1.msra.mxu0 0.0
    %6481 = vmatprep.subr.mxu0 0.0
    %6482 = vmatpush1.msra.mxu0 0.0
    %6483 = vmatprep.subr.mxu0 0.0
    %6484 = vmatpush1.msra.mxu0 0.0
    %6485 = vmatprep.subr.mxu0 0.0
    %6486 = vmatpush1.msra.mxu0 0.0
    %6487 = vmatprep.subr.mxu0 0.0
    %6488 = vmatpush1.msra.mxu0 0.0
    %6489 = vmatprep.subr.mxu0 0.0
    %6490 = vmatpush1.msra.mxu0 0.0
    %6491 = vmatprep.subr.mxu0 0.0
    %6492 = vmatpush1.msra.mxu0 0.0
    %6493 = vmatprep.subr.mxu0 0.0
    %6494 = vmatpush1.msra.mxu0 0.0
    %6495 = vmatprep.subr.mxu0 0.0
    %6496 = vmatpush1.msra.mxu0 0.0
    %6497 = vmatprep.subr.mxu0 0.0
    %6498 = vmatpush1.msra.mxu0 0.0
    %6499 = vmatprep.subr.mxu0 0.0
    %6500 = vmatpush1.msra.mxu0 0.0
    %6501 = vmatprep.subr.mxu0 0.0
    %6502 = vmatpush1.msra.mxu0 0.0
    %6503 = vmatprep.subr.mxu0 0.0
    %6504 = vmatpush1.msra.mxu0 0.0
    %6505 = vmatprep.subr.mxu0 0.0
    %6506 = vmatpush1.msra.mxu0 0.0
    %6507 = vmatprep.subr.mxu0 0.0
    %6508 = vmatpush1.msra.mxu0 0.0
    %6509 = vmatprep.subr.mxu0 0.0
    %6510 = vmatpush1.msra.mxu0 0.0
    %6511 = vmatprep.mubr.f32.mxu0 0.0
    %6512 = vmatmul.mubr.f32.gmra.mrb[0].mxu0 %v6445
    %v6513 = vpop.f32.mrb[0].mxu0
    %v6514 = vadd.f32 %v2534, %v6513
    %v6515 = vpop.f32.mrb[0].mxu0
    %6516 = vdwg.mxu0
    %v6517 = vsel %vm2613, %v6514, -inf
    %6518 = vmax.xlane.f32.xlu0 %v6517
    %v6519 = vpop.xlane.xlu0 %6518
    %vm6520 = vcmp.eq.f32.partialorder %v6514, %v6519
    %v6521 = vsel %vm6520, %v398, 64
    %v6522 = vsel %vm2613, %v6521, 2147483647
    %v6523 = vand.u32 %v6522, 65535
    %v6524 = vshra.s32 %v6522, 16
    %v6525 = vcvt.s32.f32 %v6523
    %v6526 = vcvt.s32.f32 %v6524
    %6527 = vmin.xlane.f32.xlu0 %v6526
    %v6528 = vpop.xlane.xlu0 %6527
    %vm6529 = vcmp.eq.f32.partialorder %v6526, %v6528
    %v6530 = vsel %vm6529, %v6525, inf
    %6531 = vmin.xlane.f32.xlu0 %v6530
    %v6532 = vpop.xlane.xlu0 %6531
    %v6533 = vcvt.f32.s32 %v6532
    %v6534 = vcvt.f32.s32 %v6528
    %v6535 = vshll.u32 %v6534, 16
    %v6536 = vadd.s32 %v6535, %v6533
    %vm6537 = vcmp.eq.s32.totalorder %v6536, %v398
    %v6538 = vsel %vm6537, 1, 0
    %v6539 = vcvt.s32.f32 %v6538
    %v6541 = vsel %vm141, %v6539, 0
    %6543 = vmatprep.subr.mxu0 0.0
    %6544 = vmatpush1.msra.mxu0 %v69
    %6545 = vmatprep.subr.mxu0 0.0
    %6546 = vmatpush1.msra.mxu0 %v70
    %6547 = vmatprep.subr.mxu0 0.0
    %6548 = vmatpush1.msra.mxu0 %v71
    %6549 = vmatprep.subr.mxu0 0.0
    %6550 = vmatpush1.msra.mxu0 %v72
    %6551 = vmatprep.subr.mxu0 0.0
    %6552 = vmatpush1.msra.mxu0 %v73
    %6553 = vmatprep.subr.mxu0 0.0
    %6554 = vmatpush1.msra.mxu0 %v74
    %6555 = vmatprep.subr.mxu0 0.0
    %6556 = vmatpush1.msra.mxu0 %v75
    %6557 = vmatprep.subr.mxu0 0.0
    %6558 = vmatpush1.msra.mxu0 %v76
    %6559 = vmatprep.subr.mxu0 0.0
    %6560 = vmatpush1.msra.mxu0 0.0
    %6561 = vmatprep.subr.mxu0 0.0
    %6562 = vmatpush1.msra.mxu0 0.0
    %6563 = vmatprep.subr.mxu0 0.0
    %6564 = vmatpush1.msra.mxu0 0.0
    %6565 = vmatprep.subr.mxu0 0.0
    %6566 = vmatpush1.msra.mxu0 0.0
    %6567 = vmatprep.subr.mxu0 0.0
    %6568 = vmatpush1.msra.mxu0 0.0
    %6569 = vmatprep.subr.mxu0 0.0
    %6570 = vmatpush1.msra.mxu0 0.0
    %6571 = vmatprep.subr.mxu0 0.0
    %6572 = vmatpush1.msra.mxu0 0.0
    %6573 = vmatprep.subr.mxu0 0.0
    %6574 = vmatpush1.msra.mxu0 0.0
    %6575 = vmatprep.subr.mxu0 0.0
    %6576 = vmatpush1.msra.mxu0 0.0
    %6577 = vmatprep.subr.mxu0 0.0
    %6578 = vmatpush1.msra.mxu0 0.0
    %6579 = vmatprep.subr.mxu0 0.0
    %6580 = vmatpush1.msra.mxu0 0.0
    %6581 = vmatprep.subr.mxu0 0.0
    %6582 = vmatpush1.msra.mxu0 0.0
    %6583 = vmatprep.subr.mxu0 0.0
    %6584 = vmatpush1.msra.mxu0 0.0
    %6585 = vmatprep.subr.mxu0 0.0
    %6586 = vmatpush1.msra.mxu0 0.0
    %6587 = vmatprep.subr.mxu0 0.0
    %6588 = vmatpush1.msra.mxu0 0.0
    %6589 = vmatprep.subr.mxu0 0.0
    %6590 = vmatpush1.msra.mxu0 0.0
    %6591 = vmatprep.subr.mxu0 0.0
    %6592 = vmatpush1.msra.mxu0 0.0
    %6593 = vmatprep.subr.mxu0 0.0
    %6594 = vmatpush1.msra.mxu0 0.0
    %6595 = vmatprep.subr.mxu0 0.0
    %6596 = vmatpush1.msra.mxu0 0.0
    %6597 = vmatprep.subr.mxu0 0.0
    %6598 = vmatpush1.msra.mxu0 0.0
    %6599 = vmatprep.subr.mxu0 0.0
    %6600 = vmatpush1.msra.mxu0 0.0
    %6601 = vmatprep.subr.mxu0 0.0
    %6602 = vmatpush1.msra.mxu0 0.0
    %6603 = vmatprep.subr.mxu0 0.0
    %6604 = vmatpush1.msra.mxu0 0.0
    %6605 = vmatprep.subr.mxu0 0.0
    %6606 = vmatpush1.msra.mxu0 0.0
    %6607 = vmatprep.mubr.f32.mxu0 0.0
    %6608 = vmatmul.mubr.f32.gmra.mrb[0].mxu0 %v6541
    %v6609 = vpop.f32.mrb[0].mxu0
    %v6610 = vadd.f32 0.0, %v6609
    %v6611 = vpop.f32.mrb[0].mxu0
    %6612 = vdwg.mxu0
    %v6613 = vmul.f32 %v6610, %v6610
    %v6614 = vsel %vm2711, %v6613, 0.0
    %6615 = vadd.xlane.f32.xlu0 %v6614
    %v6616 = vpop.xlane.xlu0 %6615
    %v6617 = vmul.f32 %v6616, %v524
    %v6618 = vadd.f32 %v6617, 1e-06
    %v6619 = vrsqrt.pop %v6618
    %v6620 = vmul.f32 %v6610, %v6619
    %v6621 = vmul.f32 %v6620, %v545
    %v6623 = vsel %vm226, %v6621, 0
    %6625 = vmatprep.subr.mxu0 0.0
    %6626 = vmatpush1.msra.mxu0 %v79
    %6627 = vmatprep.subr.mxu0 0.0
    %6628 = vmatpush1.msra.mxu0 %v80
    %6629 = vmatprep.subr.mxu0 0.0
    %6630 = vmatpush1.msra.mxu0 %v81
    %6631 = vmatprep.subr.mxu0 0.0
    %6632 = vmatpush1.msra.mxu0 %v82
    %6633 = vmatprep.subr.mxu0 0.0
    %6634 = vmatpush1.msra.mxu0 0.0
    %6635 = vmatprep.subr.mxu0 0.0
    %6636 = vmatpush1.msra.mxu0 0.0
    %6637 = vmatprep.subr.mxu0 0.0
    %6638 = vmatpush1.msra.mxu0 0.0
    %6639 = vmatprep.subr.mxu0 0.0
    %6640 = vmatpush1.msra.mxu0 0.0
    %6641 = vmatprep.subr.mxu0 0.0
    %6642 = vmatpush1.msra.mxu0 0.0
    %6643 = vmatprep.subr.mxu0 0.0
    %6644 = vmatpush1.msra.mxu0 0.0
    %6645 = vmatprep.subr.mxu0 0.0
    %6646 = vmatpush1.msra.mxu0 0.0
    %6647 = vmatprep.subr.mxu0 0.0
    %6648 = vmatpush1.msra.mxu0 0.0
    %6649 = vmatprep.subr.mxu0 0.0
    %6650 = vmatpush1.msra.mxu0 0.0
    %6651 = vmatprep.subr.mxu0 0.0
    %6652 = vmatpush1.msra.mxu0 0.0
    %6653 = vmatprep.subr.mxu0 0.0
    %6654 = vmatpush1.msra.mxu0 0.0
    %6655 = vmatprep.subr.mxu0 0.0
    %6656 = vmatpush1.msra.mxu0 0.0
    %6657 = vmatprep.subr.mxu0 0.0
    %6658 = vmatpush1.msra.mxu0 0.0
    %6659 = vmatprep.subr.mxu0 0.0
    %6660 = vmatpush1.msra.mxu0 0.0
    %6661 = vmatprep.subr.mxu0 0.0
    %6662 = vmatpush1.msra.mxu0 0.0
    %6663 = vmatprep.subr.mxu0 0.0
    %6664 = vmatpush1.msra.mxu0 0.0
    %6665 = vmatprep.subr.mxu0 0.0
    %6666 = vmatpush1.msra.mxu0 0.0
    %6667 = vmatprep.subr.mxu0 0.0
    %6668 = vmatpush1.msra.mxu0 0.0
    %6669 = vmatprep.subr.mxu0 0.0
    %6670 = vmatpush1.msra.mxu0 0.0
    %6671 = vmatprep.subr.mxu0 0.0
    %6672 = vmatpush1.msra.mxu0 0.0
    %6673 = vmatprep.subr.mxu0 0.0
    %6674 = vmatpush1.msra.mxu0 0.0
    %6675 = vmatprep.subr.mxu0 0.0
    %6676 = vmatpush1.msra.mxu0 0.0
    %6677 = vmatprep.subr.mxu0 0.0
    %6678 = vmatpush1.msra.mxu0 0.0
    %6679 = vmatprep.subr.mxu0 0.0
    %6680 = vmatpush1.msra.mxu0 0.0
    %6681 = vmatprep.subr.mxu0 0.0
    %6682 = vmatpush1.msra.mxu0 0.0
    %6683 = vmatprep.subr.mxu0 0.0
    %6684 = vmatpush1.msra.mxu0 0.0
    %6685 = vmatprep.subr.mxu0 0.0
    %6686 = vmatpush1.msra.mxu0 0.0
    %6687 = vmatprep.subr.mxu0 0.0
    %6688 = vmatpush1.msra.mxu0 0.0
    %6689 = vmatprep.mubr.f32.mxu0 0.0
    %6690 = vmatmul.mubr.f32.gmra.mrb[0].mxu0 %v6623
    %v6691 = vpop.f32.mrb[0].mxu0
    %v6692 = vadd.f32 %v555, %v6691
    %v6693 = vpop.f32.mrb[0].mxu0
    %6694 = vdwg.mxu0
    %v6697 = vunpack.c.l.s4 1966171168
    %v6698 = vunpack.c.0.s8 %v6697
    %v6699 = vlaneseq
    %v6700 = vshrl.u32 %v6699, 7
    %v6701 = vsub.s32 %v6698, %v6700
    %v6702 = vrot.slane %v6692, %v6701
    %v6703 = vcombine.high %v6702, %v6702
    %v6705 = vunpack.c.l.s4 1966171168
    %v6706 = vunpack.c.0.s8 %v6705
    %v6707 = vlaneseq
    %v6708 = vshrl.u32 %v6707, 7
    %v6709 = vsub.s32 %v6706, %v6708
    %v6710 = vrot.slane %v6702, %v6709
    %v6712 = vunpack.c.l.s4 1966171168
    %v6713 = vunpack.c.0.s8 %v6712
    %v6714 = vlaneseq
    %v6715 = vshrl.u32 %v6714, 7
    %v6716 = vsub.s32 %v6713, %v6715
    %v6717 = vrot.slane %v6703, %v6716
    %v6718 = vlaneseq
    %v6719 = vshrl.u32 %v6718, 7
    %v6720 = vsub.s32 0, %v6719
    %v6721 = vrot.slane %v6710, %v6720
    %v6722 = vlaneseq
    %v6723 = vshrl.u32 %v6722, 7
    %v6724 = vsub.s32 0, %v6723
    %v6725 = vrot.slane %v6717, %v6724
    %6726 = vrot.lane.b32.xlu0 %v6721, 96
    %v6727 = vpop.permute.xlu0 %6726
    %6728 = vrot.lane.b32.xlu0 %v6725, 96
    %v6729 = vpop.permute.xlu0 %6728
    %6732 = vst.msk [vmem:[#allocation2 + $0xe] sm:$0x1] %vm810, %v6727
    %6733 = vst.msk [vmem:[#allocation2 + $0x1e] sm:$0x1] %vm810, %v6729
    %v6734 = vld [vmem:[#allocation2] sm:$0xff]
    %v6735 = vld [vmem:[#allocation2 + $0x8] sm:$0xff]
    %v6736 = vld [vmem:[#allocation2 + $0x10] sm:$0xff]
    %v6737 = vld [vmem:[#allocation2 + $0x18] sm:$0xff]
    %vm6738 = vcmp.lt.s32.totalorder %v398, 15
    %v6739 = vsel %vm818, %v6710, 0
    %v6742 = vsel %vm818, %v6734, 0
    %v6745 = vsel %vm818, %v6735, 0
    %6747 = vmatprep.subr.mxu0 0.0
    %6748 = vmatpush1.xpose.msra.mxu0 %v6742
    %6749 = vmatprep.subr.mxu0 0.0
    %6750 = vmatpush1.xpose.msra.mxu0 %v6745
    %6751 = vmatprep.subr.mxu0 0.0
    %6752 = vmatpush1.xpose.msra.mxu0 0.0
    %6753 = vmatprep.subr.mxu0 0.0
    %6754 = vmatpush1.xpose.msra.mxu0 0.0
    %6755 = vmatprep.subr.mxu0 0.0
    %6756 = vmatpush1.xpose.msra.mxu0 0.0
    %6757 = vmatprep.subr.mxu0 0.0
    %6758 = vmatpush1.xpose.msra.mxu0 0.0
    %6759 = vmatprep.subr.mxu0 0.0
    %6760 = vmatpush1.xpose.msra.mxu0 0.0
    %6761 = vmatprep.subr.mxu0 0.0
    %6762 = vmatpush1.xpose.msra.mxu0 0.0
    %6763 = vmatprep.subr.mxu0 0.0
    %6764 = vmatpush1.xpose.msra.mxu0 0.0
    %6765 = vmatprep.subr.mxu0 0.0
    %6766 = vmatpush1.xpose.msra.mxu0 0.0
    %6767 = vmatprep.subr.mxu0 0.0
    %6768 = vmatpush1.xpose.msra.mxu0 0.0
    %6769 = vmatprep.subr.mxu0 0.0
    %6770 = vmatpush1.xpose.msra.mxu0 0.0
    %6771 = vmatprep.subr.mxu0 0.0
    %6772 = vmatpush1.xpose.msra.mxu0 0.0
    %6773 = vmatprep.subr.mxu0 0.0
    %6774 = vmatpush1.xpose.msra.mxu0 0.0
    %6775 = vmatprep.subr.mxu0 0.0
    %6776 = vmatpush1.xpose.msra.mxu0 0.0
    %6777 = vmatprep.subr.mxu0 0.0
    %6778 = vmatpush1.xpose.msra.mxu0 0.0
    %6779 = vmatprep.subr.mxu0 0.0
    %6780 = vmatpush1.xpose.msra.mxu0 0.0
    %6781 = vmatprep.subr.mxu0 0.0
    %6782 = vmatpush1.xpose.msra.mxu0 0.0
    %6783 = vmatprep.subr.mxu0 0.0
    %6784 = vmatpush1.xpose.msra.mxu0 0.0
    %6785 = vmatprep.subr.mxu0 0.0
    %6786 = vmatpush1.xpose.msra.mxu0 0.0
    %6787 = vmatprep.subr.mxu0 0.0
    %6788 = vmatpush1.xpose.msra.mxu0 0.0
    %6789 = vmatprep.subr.mxu0 0.0
    %6790 = vmatpush1.xpose.msra.mxu0 0.0
    %6791 = vmatprep.subr.mxu0 0.0
    %6792 = vmatpush1.xpose.msra.mxu0 0.0
    %6793 = vmatprep.subr.mxu0 0.0
    %6794 = vmatpush1.xpose.msra.mxu0 0.0
    %6795 = vmatprep.subr.mxu0 0.0
    %6796 = vmatpush1.xpose.msra.mxu0 0.0
    %6797 = vmatprep.subr.mxu0 0.0
    %6798 = vmatpush1.xpose.msra.mxu0 0.0
    %6799 = vmatprep.subr.mxu0 0.0
    %6800 = vmatpush1.xpose.msra.mxu0 0.0
    %6801 = vmatprep.subr.mxu0 0.0
    %6802 = vmatpush1.xpose.msra.mxu0 0.0
    %6803 = vmatprep.subr.mxu0 0.0
    %6804 = vmatpush1.xpose.msra.mxu0 0.0
    %6805 = vmatprep.subr.mxu0 0.0
    %6806 = vmatpush1.xpose.msra.mxu0 0.0
    %6807 = vmatprep.subr.mxu0 0.0
    %6808 = vmatpush1.xpose.msra.mxu0 0.0
    %6809 = vmatprep.subr.mxu0 0.0
    %6810 = vmatpush1.xpose.msra.mxu0 0.0
    %6811 = vmatprep.mubr.f32.mxu0 0.0
    %6812 = vmatmul.mubr.f32.gmra.mrb[0].mxu0 %v6739
    %v6813 = vpop.f32.mrb[0].mxu0
    %v6814 = vadd.f32 0.0, %v6813
    %v6815 = vpop.f32.mrb[0].mxu0
    %6816 = vdwg.mxu0
    %v6817 = vsel %vm818, %v6717, 0
    %v6820 = vsel %vm818, %v6736, 0
    %v6823 = vsel %vm818, %v6737, 0
    %6825 = vmatprep.subr.mxu0 0.0
    %6826 = vmatpush1.xpose.msra.mxu0 %v6820
    %6827 = vmatprep.subr.mxu0 0.0
    %6828 = vmatpush1.xpose.msra.mxu0 %v6823
    %6829 = vmatprep.subr.mxu0 0.0
    %6830 = vmatpush1.xpose.msra.mxu0 0.0
    %6831 = vmatprep.subr.mxu0 0.0
    %6832 = vmatpush1.xpose.msra.mxu0 0.0
    %6833 = vmatprep.subr.mxu0 0.0
    %6834 = vmatpush1.xpose.msra.mxu0 0.0
    %6835 = vmatprep.subr.mxu0 0.0
    %6836 = vmatpush1.xpose.msra.mxu0 0.0
    %6837 = vmatprep.subr.mxu0 0.0
    %6838 = vmatpush1.xpose.msra.mxu0 0.0
    %6839 = vmatprep.subr.mxu0 0.0
    %6840 = vmatpush1.xpose.msra.mxu0 0.0
    %6841 = vmatprep.subr.mxu0 0.0
    %6842 = vmatpush1.xpose.msra.mxu0 0.0
    %6843 = vmatprep.subr.mxu0 0.0
    %6844 = vmatpush1.xpose.msra.mxu0 0.0
    %6845 = vmatprep.subr.mxu0 0.0
    %6846 = vmatpush1.xpose.msra.mxu0 0.0
    %6847 = vmatprep.subr.mxu0 0.0
    %6848 = vmatpush1.xpose.msra.mxu0 0.0
    %6849 = vmatprep.subr.mxu0 0.0
    %6850 = vmatpush1.xpose.msra.mxu0 0.0
    %6851 = vmatprep.subr.mxu0 0.0
    %6852 = vmatpush1.xpose.msra.mxu0 0.0
    %6853 = vmatprep.subr.mxu0 0.0
    %6854 = vmatpush1.xpose.msra.mxu0 0.0
    %6855 = vmatprep.subr.mxu0 0.0
    %6856 = vmatpush1.xpose.msra.mxu0 0.0
    %6857 = vmatprep.subr.mxu0 0.0
    %6858 = vmatpush1.xpose.msra.mxu0 0.0
    %6859 = vmatprep.subr.mxu0 0.0
    %6860 = vmatpush1.xpose.msra.mxu0 0.0
    %6861 = vmatprep.subr.mxu0 0.0
    %6862 = vmatpush1.xpose.msra.mxu0 0.0
    %6863 = vmatprep.subr.mxu0 0.0
    %6864 = vmatpush1.xpose.msra.mxu0 0.0
    %6865 = vmatprep.subr.mxu0 0.0
    %6866 = vmatpush1.xpose.msra.mxu0 0.0
    %6867 = vmatprep.subr.mxu0 0.0
    %6868 = vmatpush1.xpose.msra.mxu0 0.0
    %6869 = vmatprep.subr.mxu0 0.0
    %6870 = vmatpush1.xpose.msra.mxu0 0.0
    %6871 = vmatprep.subr.mxu0 0.0
    %6872 = vmatpush1.xpose.msra.mxu0 0.0
    %6873 = vmatprep.subr.mxu0 0.0
    %6874 = vmatpush1.xpose.msra.mxu0 0.0
    %6875 = vmatprep.subr.mxu0 0.0
    %6876 = vmatpush1.xpose.msra.mxu0 0.0
    %6877 = vmatprep.subr.mxu0 0.0
    %6878 = vmatpush1.xpose.msra.mxu0 0.0
    %6879 = vmatprep.subr.mxu0 0.0
    %6880 = vmatpush1.xpose.msra.mxu0 0.0
    %6881 = vmatprep.subr.mxu0 0.0
    %6882 = vmatpush1.xpose.msra.mxu0 0.0
    %6883 = vmatprep.subr.mxu0 0.0
    %6884 = vmatpush1.xpose.msra.mxu0 0.0
    %6885 = vmatprep.subr.mxu0 0.0
    %6886 = vmatpush1.xpose.msra.mxu0 0.0
    %6887 = vmatprep.subr.mxu0 0.0
    %6888 = vmatpush1.xpose.msra.mxu0 0.0
    %6889 = vmatprep.mubr.f32.mxu0 0.0
    %6890 = vmatmul.mubr.f32.gmra.mrb[0].mxu0 %v6817
    %v6891 = vpop.f32.mrb[0].mxu0
    %v6892 = vadd.f32 0.0, %v6891
    %v6893 = vpop.f32.mrb[0].mxu0
    %6894 = vdwg.mxu0
    %v6895 = vmul.f32 %v6814, 0.35355338
    %v6896 = vmul.f32 %v6892, 0.35355338
    %v6897 = vsel %vm6738, %v6895, -1e+30
    %v6898 = vsel %vm6738, %v6896, -1e+30
    %v6899 = vsel %vm979, %v6897, -inf
    %6900 = vmax.xlane.f32.xlu0 %v6899
    %v6901 = vpop.xlane.xlu0 %6900
    %v6902 = vsel %vm979, %v6898, -inf
    %6903 = vmax.xlane.f32.xlu0 %v6902
    %v6904 = vpop.xlane.xlu0 %6903
    %v6905 = vsub.f32 %v6897, %v6901
    %v6906 = vsub.f32 %v6898, %v6904
    %v6907 = vmul.f32 %v6905, 1.442695
    %v6908 = vpow.pop %v6907
    %v6909 = vmul.f32 %v6906, 1.442695
    %v6910 = vpow.pop %v6909
    %v6911 = vsel %vm979, %v6908, 0.0
    %6912 = vadd.xlane.f32.xlu0 %v6911
    %v6913 = vpop.xlane.xlu0 %6912
    %v6914 = vsel %vm979, %v6910, 0.0
    %6915 = vadd.xlane.f32.xlu0 %v6914
    %v6916 = vpop.xlane.xlu0 %6915
    %v6917 = vrcp.pop %v6913
    %v6918 = vrcp.pop %v6916
    %6919 = vrot.lane.b32.xlu0 %v6734, 96
    %v6920 = vpop.permute.xlu0 %6919
    %6921 = vrot.lane.b32.xlu0 %v6735, 96
    %v6922 = vpop.permute.xlu0 %6921
    %v6926 = vsel %vm1006, %v6908, 0
    %6928 = vmatprep.subr.mxu0 0.0
    %6929 = vmatpush1.msra.mxu0 %v6920
    %6930 = vmatprep.subr.mxu0 0.0
    %6931 = vmatpush1.msra.mxu0 %v6922
    %6932 = vmatprep.subr.mxu0 0.0
    %6933 = vmatpush1.msra.mxu0 0.0
    %6934 = vmatprep.subr.mxu0 0.0
    %6935 = vmatpush1.msra.mxu0 0.0
    %6936 = vmatprep.subr.mxu0 0.0
    %6937 = vmatpush1.msra.mxu0 0.0
    %6938 = vmatprep.subr.mxu0 0.0
    %6939 = vmatpush1.msra.mxu0 0.0
    %6940 = vmatprep.subr.mxu0 0.0
    %6941 = vmatpush1.msra.mxu0 0.0
    %6942 = vmatprep.subr.mxu0 0.0
    %6943 = vmatpush1.msra.mxu0 0.0
    %6944 = vmatprep.subr.mxu0 0.0
    %6945 = vmatpush1.msra.mxu0 0.0
    %6946 = vmatprep.subr.mxu0 0.0
    %6947 = vmatpush1.msra.mxu0 0.0
    %6948 = vmatprep.subr.mxu0 0.0
    %6949 = vmatpush1.msra.mxu0 0.0
    %6950 = vmatprep.subr.mxu0 0.0
    %6951 = vmatpush1.msra.mxu0 0.0
    %6952 = vmatprep.subr.mxu0 0.0
    %6953 = vmatpush1.msra.mxu0 0.0
    %6954 = vmatprep.subr.mxu0 0.0
    %6955 = vmatpush1.msra.mxu0 0.0
    %6956 = vmatprep.subr.mxu0 0.0
    %6957 = vmatpush1.msra.mxu0 0.0
    %6958 = vmatprep.subr.mxu0 0.0
    %6959 = vmatpush1.msra.mxu0 0.0
    %6960 = vmatprep.subr.mxu0 0.0
    %6961 = vmatpush1.msra.mxu0 0.0
    %6962 = vmatprep.subr.mxu0 0.0
    %6963 = vmatpush1.msra.mxu0 0.0
    %6964 = vmatprep.subr.mxu0 0.0
    %6965 = vmatpush1.msra.mxu0 0.0
    %6966 = vmatprep.subr.mxu0 0.0
    %6967 = vmatpush1.msra.mxu0 0.0
    %6968 = vmatprep.subr.mxu0 0.0
    %6969 = vmatpush1.msra.mxu0 0.0
    %6970 = vmatprep.subr.mxu0 0.0
    %6971 = vmatpush1.msra.mxu0 0.0
    %6972 = vmatprep.subr.mxu0 0.0
    %6973 = vmatpush1.msra.mxu0 0.0
    %6974 = vmatprep.subr.mxu0 0.0
    %6975 = vmatpush1.msra.mxu0 0.0
    %6976 = vmatprep.subr.mxu0 0.0
    %6977 = vmatpush1.msra.mxu0 0.0
    %6978 = vmatprep.subr.mxu0 0.0
    %6979 = vmatpush1.msra.mxu0 0.0
    %6980 = vmatprep.subr.mxu0 0.0
    %6981 = vmatpush1.msra.mxu0 0.0
    %6982 = vmatprep.subr.mxu0 0.0
    %6983 = vmatpush1.msra.mxu0 0.0
    %6984 = vmatprep.subr.mxu0 0.0
    %6985 = vmatpush1.msra.mxu0 0.0
    %6986 = vmatprep.subr.mxu0 0.0
    %6987 = vmatpush1.msra.mxu0 0.0
    %6988 = vmatprep.subr.mxu0 0.0
    %6989 = vmatpush1.msra.mxu0 0.0
    %6990 = vmatprep.subr.mxu0 0.0
    %6991 = vmatpush1.msra.mxu0 0.0
    %6992 = vmatprep.mubr.f32.mxu0 0.0
    %6993 = vmatmul.mubr.f32.gmra.mrb[0].mxu0 %v6926
    %v6994 = vpop.f32.mrb[0].mxu0
    %v6995 = vadd.f32 0.0, %v6994
    %v6996 = vpop.f32.mrb[0].mxu0
    %6997 = vdwg.mxu0
    %6998 = vrot.lane.b32.xlu0 %v6736, 96
    %v6999 = vpop.permute.xlu0 %6998
    %7000 = vrot.lane.b32.xlu0 %v6737, 96
    %v7001 = vpop.permute.xlu0 %7000
    %v7005 = vsel %vm1006, %v6910, 0
    %7007 = vmatprep.subr.mxu0 0.0
    %7008 = vmatpush1.msra.mxu0 %v6999
    %7009 = vmatprep.subr.mxu0 0.0
    %7010 = vmatpush1.msra.mxu0 %v7001
    %7011 = vmatprep.subr.mxu0 0.0
    %7012 = vmatpush1.msra.mxu0 0.0
    %7013 = vmatprep.subr.mxu0 0.0
    %7014 = vmatpush1.msra.mxu0 0.0
    %7015 = vmatprep.subr.mxu0 0.0
    %7016 = vmatpush1.msra.mxu0 0.0
    %7017 = vmatprep.subr.mxu0 0.0
    %7018 = vmatpush1.msra.mxu0 0.0
    %7019 = vmatprep.subr.mxu0 0.0
    %7020 = vmatpush1.msra.mxu0 0.0
    %7021 = vmatprep.subr.mxu0 0.0
    %7022 = vmatpush1.msra.mxu0 0.0
    %7023 = vmatprep.subr.mxu0 0.0
    %7024 = vmatpush1.msra.mxu0 0.0
    %7025 = vmatprep.subr.mxu0 0.0
    %7026 = vmatpush1.msra.mxu0 0.0
    %7027 = vmatprep.subr.mxu0 0.0
    %7028 = vmatpush1.msra.mxu0 0.0
    %7029 = vmatprep.subr.mxu0 0.0
    %7030 = vmatpush1.msra.mxu0 0.0
    %7031 = vmatprep.subr.mxu0 0.0
    %7032 = vmatpush1.msra.mxu0 0.0
    %7033 = vmatprep.subr.mxu0 0.0
    %7034 = vmatpush1.msra.mxu0 0.0
    %7035 = vmatprep.subr.mxu0 0.0
    %7036 = vmatpush1.msra.mxu0 0.0
    %7037 = vmatprep.subr.mxu0 0.0
    %7038 = vmatpush1.msra.mxu0 0.0
    %7039 = vmatprep.subr.mxu0 0.0
    %7040 = vmatpush1.msra.mxu0 0.0
    %7041 = vmatprep.subr.mxu0 0.0
    %7042 = vmatpush1.msra.mxu0 0.0
    %7043 = vmatprep.subr.mxu0 0.0
    %7044 = vmatpush1.msra.mxu0 0.0
    %7045 = vmatprep.subr.mxu0 0.0
    %7046 = vmatpush1.msra.mxu0 0.0
    %7047 = vmatprep.subr.mxu0 0.0
    %7048 = vmatpush1.msra.mxu0 0.0
    %7049 = vmatprep.subr.mxu0 0.0
    %7050 = vmatpush1.msra.mxu0 0.0
    %7051 = vmatprep.subr.mxu0 0.0
    %7052 = vmatpush1.msra.mxu0 0.0
    %7053 = vmatprep.subr.mxu0 0.0
    %7054 = vmatpush1.msra.mxu0 0.0
    %7055 = vmatprep.subr.mxu0 0.0
    %7056 = vmatpush1.msra.mxu0 0.0
    %7057 = vmatprep.subr.mxu0 0.0
    %7058 = vmatpush1.msra.mxu0 0.0
    %7059 = vmatprep.subr.mxu0 0.0
    %7060 = vmatpush1.msra.mxu0 0.0
    %7061 = vmatprep.subr.mxu0 0.0
    %7062 = vmatpush1.msra.mxu0 0.0
    %7063 = vmatprep.subr.mxu0 0.0
    %7064 = vmatpush1.msra.mxu0 0.0
    %7065 = vmatprep.subr.mxu0 0.0
    %7066 = vmatpush1.msra.mxu0 0.0
    %7067 = vmatprep.subr.mxu0 0.0
    %7068 = vmatpush1.msra.mxu0 0.0
    %7069 = vmatprep.subr.mxu0 0.0
    %7070 = vmatpush1.msra.mxu0 0.0
    %7071 = vmatprep.mubr.f32.mxu0 0.0
    %7072 = vmatmul.mubr.f32.gmra.mrb[0].mxu0 %v7005
    %v7073 = vpop.f32.mrb[0].mxu0
    %v7074 = vadd.f32 0.0, %v7073
    %v7075 = vpop.f32.mrb[0].mxu0
    %7076 = vdwg.mxu0
    %v7077 = vmul.f32 %v6995, %v6917
    %v7078 = vmul.f32 %v7074, %v6918
    %7079 = vrot.lane.b32.xlu0 %v6721, 120
    %v7080 = vpop.permute.xlu0 %7079
    %7081 = vrot.lane.b32.xlu0 %v6734, 120
    %v7082 = vpop.permute.xlu0 %7081
    %7083 = vrot.lane.b32.xlu0 %v6735, 120
    %v7084 = vpop.permute.xlu0 %7083
    %v7085 = vsel %vm818, %v7080, 0
    %v7087 = vsel %vm818, %v7082, 0
    %v7089 = vsel %vm818, %v7084, 0
    %7091 = vmatprep.subr.mxu0 0.0
    %7092 = vmatpush1.xpose.msra.mxu0 %v7087
    %7093 = vmatprep.subr.mxu0 0.0
    %7094 = vmatpush1.xpose.msra.mxu0 %v7089
    %7095 = vmatprep.subr.mxu0 0.0
    %7096 = vmatpush1.xpose.msra.mxu0 0.0
    %7097 = vmatprep.subr.mxu0 0.0
    %7098 = vmatpush1.xpose.msra.mxu0 0.0
    %7099 = vmatprep.subr.mxu0 0.0
    %7100 = vmatpush1.xpose.msra.mxu0 0.0
    %7101 = vmatprep.subr.mxu0 0.0
    %7102 = vmatpush1.xpose.msra.mxu0 0.0
    %7103 = vmatprep.subr.mxu0 0.0
    %7104 = vmatpush1.xpose.msra.mxu0 0.0
    %7105 = vmatprep.subr.mxu0 0.0
    %7106 = vmatpush1.xpose.msra.mxu0 0.0
    %7107 = vmatprep.subr.mxu0 0.0
    %7108 = vmatpush1.xpose.msra.mxu0 0.0
    %7109 = vmatprep.subr.mxu0 0.0
    %7110 = vmatpush1.xpose.msra.mxu0 0.0
    %7111 = vmatprep.subr.mxu0 0.0
    %7112 = vmatpush1.xpose.msra.mxu0 0.0
    %7113 = vmatprep.subr.mxu0 0.0
    %7114 = vmatpush1.xpose.msra.mxu0 0.0
    %7115 = vmatprep.subr.mxu0 0.0
    %7116 = vmatpush1.xpose.msra.mxu0 0.0
    %7117 = vmatprep.subr.mxu0 0.0
    %7118 = vmatpush1.xpose.msra.mxu0 0.0
    %7119 = vmatprep.subr.mxu0 0.0
    %7120 = vmatpush1.xpose.msra.mxu0 0.0
    %7121 = vmatprep.subr.mxu0 0.0
    %7122 = vmatpush1.xpose.msra.mxu0 0.0
    %7123 = vmatprep.subr.mxu0 0.0
    %7124 = vmatpush1.xpose.msra.mxu0 0.0
    %7125 = vmatprep.subr.mxu0 0.0
    %7126 = vmatpush1.xpose.msra.mxu0 0.0
    %7127 = vmatprep.subr.mxu0 0.0
    %7128 = vmatpush1.xpose.msra.mxu0 0.0
    %7129 = vmatprep.subr.mxu0 0.0
    %7130 = vmatpush1.xpose.msra.mxu0 0.0
    %7131 = vmatprep.subr.mxu0 0.0
    %7132 = vmatpush1.xpose.msra.mxu0 0.0
    %7133 = vmatprep.subr.mxu0 0.0
    %7134 = vmatpush1.xpose.msra.mxu0 0.0
    %7135 = vmatprep.subr.mxu0 0.0
    %7136 = vmatpush1.xpose.msra.mxu0 0.0
    %7137 = vmatprep.subr.mxu0 0.0
    %7138 = vmatpush1.xpose.msra.mxu0 0.0
    %7139 = vmatprep.subr.mxu0 0.0
    %7140 = vmatpush1.xpose.msra.mxu0 0.0
    %7141 = vmatprep.subr.mxu0 0.0
    %7142 = vmatpush1.xpose.msra.mxu0 0.0
    %7143 = vmatprep.subr.mxu0 0.0
    %7144 = vmatpush1.xpose.msra.mxu0 0.0
    %7145 = vmatprep.subr.mxu0 0.0
    %7146 = vmatpush1.xpose.msra.mxu0 0.0
    %7147 = vmatprep.subr.mxu0 0.0
    %7148 = vmatpush1.xpose.msra.mxu0 0.0
    %7149 = vmatprep.subr.mxu0 0.0
    %7150 = vmatpush1.xpose.msra.mxu0 0.0
    %7151 = vmatprep.subr.mxu0 0.0
    %7152 = vmatpush1.xpose.msra.mxu0 0.0
    %7153 = vmatprep.subr.mxu0 0.0
    %7154 = vmatpush1.xpose.msra.mxu0 0.0
    %7155 = vmatprep.mubr.f32.mxu0 0.0
    %7156 = vmatmul.mubr.f32.gmra.mrb[0].mxu0 %v7085
    %v7157 = vpop.f32.mrb[0].mxu0
    %v7158 = vadd.f32 0.0, %v7157
    %v7159 = vpop.f32.mrb[0].mxu0
    %7160 = vdwg.mxu0
    %7161 = vrot.lane.b32.xlu0 %v6725, 120
    %v7162 = vpop.permute.xlu0 %7161
    %7163 = vrot.lane.b32.xlu0 %v6736, 120
    %v7164 = vpop.permute.xlu0 %7163
    %7165 = vrot.lane.b32.xlu0 %v6737, 120
    %v7166 = vpop.permute.xlu0 %7165
    %v7167 = vsel %vm818, %v7162, 0
    %v7169 = vsel %vm818, %v7164, 0
    %v7171 = vsel %vm818, %v7166, 0
    %7173 = vmatprep.subr.mxu0 0.0
    %7174 = vmatpush1.xpose.msra.mxu0 %v7169
    %7175 = vmatprep.subr.mxu0 0.0
    %7176 = vmatpush1.xpose.msra.mxu0 %v7171
    %7177 = vmatprep.subr.mxu0 0.0
    %7178 = vmatpush1.xpose.msra.mxu0 0.0
    %7179 = vmatprep.subr.mxu0 0.0
    %7180 = vmatpush1.xpose.msra.mxu0 0.0
    %7181 = vmatprep.subr.mxu0 0.0
    %7182 = vmatpush1.xpose.msra.mxu0 0.0
    %7183 = vmatprep.subr.mxu0 0.0
    %7184 = vmatpush1.xpose.msra.mxu0 0.0
    %7185 = vmatprep.subr.mxu0 0.0
    %7186 = vmatpush1.xpose.msra.mxu0 0.0
    %7187 = vmatprep.subr.mxu0 0.0
    %7188 = vmatpush1.xpose.msra.mxu0 0.0
    %7189 = vmatprep.subr.mxu0 0.0
    %7190 = vmatpush1.xpose.msra.mxu0 0.0
    %7191 = vmatprep.subr.mxu0 0.0
    %7192 = vmatpush1.xpose.msra.mxu0 0.0
    %7193 = vmatprep.subr.mxu0 0.0
    %7194 = vmatpush1.xpose.msra.mxu0 0.0
    %7195 = vmatprep.subr.mxu0 0.0
    %7196 = vmatpush1.xpose.msra.mxu0 0.0
    %7197 = vmatprep.subr.mxu0 0.0
    %7198 = vmatpush1.xpose.msra.mxu0 0.0
    %7199 = vmatprep.subr.mxu0 0.0
    %7200 = vmatpush1.xpose.msra.mxu0 0.0
    %7201 = vmatprep.subr.mxu0 0.0
    %7202 = vmatpush1.xpose.msra.mxu0 0.0
    %7203 = vmatprep.subr.mxu0 0.0
    %7204 = vmatpush1.xpose.msra.mxu0 0.0
    %7205 = vmatprep.subr.mxu0 0.0
    %7206 = vmatpush1.xpose.msra.mxu0 0.0
    %7207 = vmatprep.subr.mxu0 0.0
    %7208 = vmatpush1.xpose.msra.mxu0 0.0
    %7209 = vmatprep.subr.mxu0 0.0
    %7210 = vmatpush1.xpose.msra.mxu0 0.0
    %7211 = vmatprep.subr.mxu0 0.0
    %7212 = vmatpush1.xpose.msra.mxu0 0.0
    %7213 = vmatprep.subr.mxu0 0.0
    %7214 = vmatpush1.xpose.msra.mxu0 0.0
    %7215 = vmatprep.subr.mxu0 0.0
    %7216 = vmatpush1.xpose.msra.mxu0 0.0
    %7217 = vmatprep.subr.mxu0 0.0
    %7218 = vmatpush1.xpose.msra.mxu0 0.0
    %7219 = vmatprep.subr.mxu0 0.0
    %7220 = vmatpush1.xpose.msra.mxu0 0.0
    %7221 = vmatprep.subr.mxu0 0.0
    %7222 = vmatpush1.xpose.msra.mxu0 0.0
    %7223 = vmatprep.subr.mxu0 0.0
    %7224 = vmatpush1.xpose.msra.mxu0 0.0
    %7225 = vmatprep.subr.mxu0 0.0
    %7226 = vmatpush1.xpose.msra.mxu0 0.0
    %7227 = vmatprep.subr.mxu0 0.0
    %7228 = vmatpush1.xpose.msra.mxu0 0.0
    %7229 = vmatprep.subr.mxu0 0.0
    %7230 = vmatpush1.xpose.msra.mxu0 0.0
    %7231 = vmatprep.subr.mxu0 0.0
    %7232 = vmatpush1.xpose.msra.mxu0 0.0
    %7233 = vmatprep.subr.mxu0 0.0
    %7234 = vmatpush1.xpose.msra.mxu0 0.0
    %7235 = vmatprep.subr.mxu0 0.0
    %7236 = vmatpush1.xpose.msra.mxu0 0.0
    %7237 = vmatprep.mubr.f32.mxu0 0.0
    %7238 = vmatmul.mubr.f32.gmra.mrb[0].mxu0 %v7167
    %v7239 = vpop.f32.mrb[0].mxu0
    %v7240 = vadd.f32 0.0, %v7239
    %v7241 = vpop.f32.mrb[0].mxu0
    %7242 = vdwg.mxu0
    %v7243 = vmul.f32 %v7158, 0.35355338
    %v7244 = vmul.f32 %v7240, 0.35355338
    %v7245 = vsel %vm6738, %v7243, -1e+30
    %v7246 = vsel %vm6738, %v7244, -1e+30
    %v7247 = vsel %vm979, %v7245, -inf
    %7248 = vmax.xlane.f32.xlu0 %v7247
    %v7249 = vpop.xlane.xlu0 %7248
    %v7250 = vsel %vm979, %v7246, -inf
    %7251 = vmax.xlane.f32.xlu0 %v7250
    %v7252 = vpop.xlane.xlu0 %7251
    %v7253 = vsub.f32 %v7245, %v7249
    %v7254 = vsub.f32 %v7246, %v7252
    %v7255 = vmul.f32 %v7253, 1.442695
    %v7256 = vpow.pop %v7255
    %v7257 = vmul.f32 %v7254, 1.442695
    %v7258 = vpow.pop %v7257
    %v7259 = vsel %vm979, %v7256, 0.0
    %7260 = vadd.xlane.f32.xlu0 %v7259
    %v7261 = vpop.xlane.xlu0 %7260
    %v7262 = vsel %vm979, %v7258, 0.0
    %7263 = vadd.xlane.f32.xlu0 %v7262
    %v7264 = vpop.xlane.xlu0 %7263
    %v7265 = vrcp.pop %v7261
    %v7266 = vrcp.pop %v7264
    %7267 = vrot.lane.b32.xlu0 %v6734, 88
    %v7268 = vpop.permute.xlu0 %7267
    %7269 = vrot.lane.b32.xlu0 %v6735, 88
    %v7270 = vpop.permute.xlu0 %7269
    %v7274 = vsel %vm1006, %v7256, 0
    %7276 = vmatprep.subr.mxu0 0.0
    %7277 = vmatpush1.msra.mxu0 %v7268
    %7278 = vmatprep.subr.mxu0 0.0
    %7279 = vmatpush1.msra.mxu0 %v7270
    %7280 = vmatprep.subr.mxu0 0.0
    %7281 = vmatpush1.msra.mxu0 0.0
    %7282 = vmatprep.subr.mxu0 0.0
    %7283 = vmatpush1.msra.mxu0 0.0
    %7284 = vmatprep.subr.mxu0 0.0
    %7285 = vmatpush1.msra.mxu0 0.0
    %7286 = vmatprep.subr.mxu0 0.0
    %7287 = vmatpush1.msra.mxu0 0.0
    %7288 = vmatprep.subr.mxu0 0.0
    %7289 = vmatpush1.msra.mxu0 0.0
    %7290 = vmatprep.subr.mxu0 0.0
    %7291 = vmatpush1.msra.mxu0 0.0
    %7292 = vmatprep.subr.mxu0 0.0
    %7293 = vmatpush1.msra.mxu0 0.0
    %7294 = vmatprep.subr.mxu0 0.0
    %7295 = vmatpush1.msra.mxu0 0.0
    %7296 = vmatprep.subr.mxu0 0.0
    %7297 = vmatpush1.msra.mxu0 0.0
    %7298 = vmatprep.subr.mxu0 0.0
    %7299 = vmatpush1.msra.mxu0 0.0
    %7300 = vmatprep.subr.mxu0 0.0
    %7301 = vmatpush1.msra.mxu0 0.0
    %7302 = vmatprep.subr.mxu0 0.0
    %7303 = vmatpush1.msra.mxu0 0.0
    %7304 = vmatprep.subr.mxu0 0.0
    %7305 = vmatpush1.msra.mxu0 0.0
    %7306 = vmatprep.subr.mxu0 0.0
    %7307 = vmatpush1.msra.mxu0 0.0
    %7308 = vmatprep.subr.mxu0 0.0
    %7309 = vmatpush1.msra.mxu0 0.0
    %7310 = vmatprep.subr.mxu0 0.0
    %7311 = vmatpush1.msra.mxu0 0.0
    %7312 = vmatprep.subr.mxu0 0.0
    %7313 = vmatpush1.msra.mxu0 0.0
    %7314 = vmatprep.subr.mxu0 0.0
    %7315 = vmatpush1.msra.mxu0 0.0
    %7316 = vmatprep.subr.mxu0 0.0
    %7317 = vmatpush1.msra.mxu0 0.0
    %7318 = vmatprep.subr.mxu0 0.0
    %7319 = vmatpush1.msra.mxu0 0.0
    %7320 = vmatprep.subr.mxu0 0.0
    %7321 = vmatpush1.msra.mxu0 0.0
    %7322 = vmatprep.subr.mxu0 0.0
    %7323 = vmatpush1.msra.mxu0 0.0
    %7324 = vmatprep.subr.mxu0 0.0
    %7325 = vmatpush1.msra.mxu0 0.0
    %7326 = vmatprep.subr.mxu0 0.0
    %7327 = vmatpush1.msra.mxu0 0.0
    %7328 = vmatprep.subr.mxu0 0.0
    %7329 = vmatpush1.msra.mxu0 0.0
    %7330 = vmatprep.subr.mxu0 0.0
    %7331 = vmatpush1.msra.mxu0 0.0
    %7332 = vmatprep.subr.mxu0 0.0
    %7333 = vmatpush1.msra.mxu0 0.0
    %7334 = vmatprep.subr.mxu0 0.0
    %7335 = vmatpush1.msra.mxu0 0.0
    %7336 = vmatprep.subr.mxu0 0.0
    %7337 = vmatpush1.msra.mxu0 0.0
    %7338 = vmatprep.subr.mxu0 0.0
    %7339 = vmatpush1.msra.mxu0 0.0
    %7340 = vmatprep.mubr.f32.mxu0 0.0
    %7341 = vmatmul.mubr.f32.gmra.mrb[0].mxu0 %v7274
    %v7342 = vpop.f32.mrb[0].mxu0
    %v7343 = vadd.f32 0.0, %v7342
    %v7344 = vpop.f32.mrb[0].mxu0
    %7345 = vdwg.mxu0
    %7346 = vrot.lane.b32.xlu0 %v6736, 88
    %v7347 = vpop.permute.xlu0 %7346
    %7348 = vrot.lane.b32.xlu0 %v6737, 88
    %v7349 = vpop.permute.xlu0 %7348
    %v7353 = vsel %vm1006, %v7258, 0
    %7355 = vmatprep.subr.mxu0 0.0
    %7356 = vmatpush1.msra.mxu0 %v7347
    %7357 = vmatprep.subr.mxu0 0.0
    %7358 = vmatpush1.msra.mxu0 %v7349
    %7359 = vmatprep.subr.mxu0 0.0
    %7360 = vmatpush1.msra.mxu0 0.0
    %7361 = vmatprep.subr.mxu0 0.0
    %7362 = vmatpush1.msra.mxu0 0.0
    %7363 = vmatprep.subr.mxu0 0.0
    %7364 = vmatpush1.msra.mxu0 0.0
    %7365 = vmatprep.subr.mxu0 0.0
    %7366 = vmatpush1.msra.mxu0 0.0
    %7367 = vmatprep.subr.mxu0 0.0
    %7368 = vmatpush1.msra.mxu0 0.0
    %7369 = vmatprep.subr.mxu0 0.0
    %7370 = vmatpush1.msra.mxu0 0.0
    %7371 = vmatprep.subr.mxu0 0.0
    %7372 = vmatpush1.msra.mxu0 0.0
    %7373 = vmatprep.subr.mxu0 0.0
    %7374 = vmatpush1.msra.mxu0 0.0
    %7375 = vmatprep.subr.mxu0 0.0
    %7376 = vmatpush1.msra.mxu0 0.0
    %7377 = vmatprep.subr.mxu0 0.0
    %7378 = vmatpush1.msra.mxu0 0.0
    %7379 = vmatprep.subr.mxu0 0.0
    %7380 = vmatpush1.msra.mxu0 0.0
    %7381 = vmatprep.subr.mxu0 0.0
    %7382 = vmatpush1.msra.mxu0 0.0
    %7383 = vmatprep.subr.mxu0 0.0
    %7384 = vmatpush1.msra.mxu0 0.0
    %7385 = vmatprep.subr.mxu0 0.0
    %7386 = vmatpush1.msra.mxu0 0.0
    %7387 = vmatprep.subr.mxu0 0.0
    %7388 = vmatpush1.msra.mxu0 0.0
    %7389 = vmatprep.subr.mxu0 0.0
    %7390 = vmatpush1.msra.mxu0 0.0
    %7391 = vmatprep.subr.mxu0 0.0
    %7392 = vmatpush1.msra.mxu0 0.0
    %7393 = vmatprep.subr.mxu0 0.0
    %7394 = vmatpush1.msra.mxu0 0.0
    %7395 = vmatprep.subr.mxu0 0.0
    %7396 = vmatpush1.msra.mxu0 0.0
    %7397 = vmatprep.subr.mxu0 0.0
    %7398 = vmatpush1.msra.mxu0 0.0
    %7399 = vmatprep.subr.mxu0 0.0
    %7400 = vmatpush1.msra.mxu0 0.0
    %7401 = vmatprep.subr.mxu0 0.0
    %7402 = vmatpush1.msra.mxu0 0.0
    %7403 = vmatprep.subr.mxu0 0.0
    %7404 = vmatpush1.msra.mxu0 0.0
    %7405 = vmatprep.subr.mxu0 0.0
    %7406 = vmatpush1.msra.mxu0 0.0
    %7407 = vmatprep.subr.mxu0 0.0
    %7408 = vmatpush1.msra.mxu0 0.0
    %7409 = vmatprep.subr.mxu0 0.0
    %7410 = vmatpush1.msra.mxu0 0.0
    %7411 = vmatprep.subr.mxu0 0.0
    %7412 = vmatpush1.msra.mxu0 0.0
    %7413 = vmatprep.subr.mxu0 0.0
    %7414 = vmatpush1.msra.mxu0 0.0
    %7415 = vmatprep.subr.mxu0 0.0
    %7416 = vmatpush1.msra.mxu0 0.0
    %7417 = vmatprep.subr.mxu0 0.0
    %7418 = vmatpush1.msra.mxu0 0.0
    %7419 = vmatprep.mubr.f32.mxu0 0.0
    %7420 = vmatmul.mubr.f32.gmra.mrb[0].mxu0 %v7353
    %v7421 = vpop.f32.mrb[0].mxu0
    %v7422 = vadd.f32 0.0, %v7421
    %v7423 = vpop.f32.mrb[0].mxu0
    %7424 = vdwg.mxu0
    %v7425 = vmul.f32 %v7343, %v7265
    %v7426 = vmul.f32 %v7422, %v7266
    %7427 = vrot.lane.b32.xlu0 %v6721, 112
    %v7428 = vpop.permute.xlu0 %7427
    %7429 = vrot.lane.b32.xlu0 %v6734, 112
    %v7430 = vpop.permute.xlu0 %7429
    %7431 = vrot.lane.b32.xlu0 %v6735, 112
    %v7432 = vpop.permute.xlu0 %7431
    %v7433 = vsel %vm818, %v7428, 0
    %v7435 = vsel %vm818, %v7430, 0
    %v7437 = vsel %vm818, %v7432, 0
    %7439 = vmatprep.subr.mxu0 0.0
    %7440 = vmatpush1.xpose.msra.mxu0 %v7435
    %7441 = vmatprep.subr.mxu0 0.0
    %7442 = vmatpush1.xpose.msra.mxu0 %v7437
    %7443 = vmatprep.subr.mxu0 0.0
    %7444 = vmatpush1.xpose.msra.mxu0 0.0
    %7445 = vmatprep.subr.mxu0 0.0
    %7446 = vmatpush1.xpose.msra.mxu0 0.0
    %7447 = vmatprep.subr.mxu0 0.0
    %7448 = vmatpush1.xpose.msra.mxu0 0.0
    %7449 = vmatprep.subr.mxu0 0.0
    %7450 = vmatpush1.xpose.msra.mxu0 0.0
    %7451 = vmatprep.subr.mxu0 0.0
    %7452 = vmatpush1.xpose.msra.mxu0 0.0
    %7453 = vmatprep.subr.mxu0 0.0
    %7454 = vmatpush1.xpose.msra.mxu0 0.0
    %7455 = vmatprep.subr.mxu0 0.0
    %7456 = vmatpush1.xpose.msra.mxu0 0.0
    %7457 = vmatprep.subr.mxu0 0.0
    %7458 = vmatpush1.xpose.msra.mxu0 0.0
    %7459 = vmatprep.subr.mxu0 0.0
    %7460 = vmatpush1.xpose.msra.mxu0 0.0
    %7461 = vmatprep.subr.mxu0 0.0
    %7462 = vmatpush1.xpose.msra.mxu0 0.0
    %7463 = vmatprep.subr.mxu0 0.0
    %7464 = vmatpush1.xpose.msra.mxu0 0.0
    %7465 = vmatprep.subr.mxu0 0.0
    %7466 = vmatpush1.xpose.msra.mxu0 0.0
    %7467 = vmatprep.subr.mxu0 0.0
    %7468 = vmatpush1.xpose.msra.mxu0 0.0
    %7469 = vmatprep.subr.mxu0 0.0
    %7470 = vmatpush1.xpose.msra.mxu0 0.0
    %7471 = vmatprep.subr.mxu0 0.0
    %7472 = vmatpush1.xpose.msra.mxu0 0.0
    %7473 = vmatprep.subr.mxu0 0.0
    %7474 = vmatpush1.xpose.msra.mxu0 0.0
    %7475 = vmatprep.subr.mxu0 0.0
    %7476 = vmatpush1.xpose.msra.mxu0 0.0
    %7477 = vmatprep.subr.mxu0 0.0
    %7478 = vmatpush1.xpose.msra.mxu0 0.0
    %7479 = vmatprep.subr.mxu0 0.0
    %7480 = vmatpush1.xpose.msra.mxu0 0.0
    %7481 = vmatprep.subr.mxu0 0.0
    %7482 = vmatpush1.xpose.msra.mxu0 0.0
    %7483 = vmatprep.subr.mxu0 0.0
    %7484 = vmatpush1.xpose.msra.mxu0 0.0
    %7485 = vmatprep.subr.mxu0 0.0
    %7486 = vmatpush1.xpose.msra.mxu0 0.0
    %7487 = vmatprep.subr.mxu0 0.0
    %7488 = vmatpush1.xpose.msra.mxu0 0.0
    %7489 = vmatprep.subr.mxu0 0.0
    %7490 = vmatpush1.xpose.msra.mxu0 0.0
    %7491 = vmatprep.subr.mxu0 0.0
    %7492 = vmatpush1.xpose.msra.mxu0 0.0
    %7493 = vmatprep.subr.mxu0 0.0
    %7494 = vmatpush1.xpose.msra.mxu0 0.0
    %7495 = vmatprep.subr.mxu0 0.0
    %7496 = vmatpush1.xpose.msra.mxu0 0.0
    %7497 = vmatprep.subr.mxu0 0.0
    %7498 = vmatpush1.xpose.msra.mxu0 0.0
    %7499 = vmatprep.subr.mxu0 0.0
    %7500 = vmatpush1.xpose.msra.mxu0 0.0
    %7501 = vmatprep.subr.mxu0 0.0
    %7502 = vmatpush1.xpose.msra.mxu0 0.0
    %7503 = vmatprep.mubr.f32.mxu0 0.0
    %7504 = vmatmul.mubr.f32.gmra.mrb[0].mxu0 %v7433
    %v7505 = vpop.f32.mrb[0].mxu0
    %v7506 = vadd.f32 0.0, %v7505
    %v7507 = vpop.f32.mrb[0].mxu0
    %7508 = vdwg.mxu0
    %7509 = vrot.lane.b32.xlu0 %v6725, 112
    %v7510 = vpop.permute.xlu0 %7509
    %7511 = vrot.lane.b32.xlu0 %v6736, 112
    %v7512 = vpop.permute.xlu0 %7511
    %7513 = vrot.lane.b32.xlu0 %v6737, 112
    %v7514 = vpop.permute.xlu0 %7513
    %v7515 = vsel %vm818, %v7510, 0
    %v7517 = vsel %vm818, %v7512, 0
    %v7519 = vsel %vm818, %v7514, 0
    %7521 = vmatprep.subr.mxu0 0.0
    %7522 = vmatpush1.xpose.msra.mxu0 %v7517
    %7523 = vmatprep.subr.mxu0 0.0
    %7524 = vmatpush1.xpose.msra.mxu0 %v7519
    %7525 = vmatprep.subr.mxu0 0.0
    %7526 = vmatpush1.xpose.msra.mxu0 0.0
    %7527 = vmatprep.subr.mxu0 0.0
    %7528 = vmatpush1.xpose.msra.mxu0 0.0
    %7529 = vmatprep.subr.mxu0 0.0
    %7530 = vmatpush1.xpose.msra.mxu0 0.0
    %7531 = vmatprep.subr.mxu0 0.0
    %7532 = vmatpush1.xpose.msra.mxu0 0.0
    %7533 = vmatprep.subr.mxu0 0.0
    %7534 = vmatpush1.xpose.msra.mxu0 0.0
    %7535 = vmatprep.subr.mxu0 0.0
    %7536 = vmatpush1.xpose.msra.mxu0 0.0
    %7537 = vmatprep.subr.mxu0 0.0
    %7538 = vmatpush1.xpose.msra.mxu0 0.0
    %7539 = vmatprep.subr.mxu0 0.0
    %7540 = vmatpush1.xpose.msra.mxu0 0.0
    %7541 = vmatprep.subr.mxu0 0.0
    %7542 = vmatpush1.xpose.msra.mxu0 0.0
    %7543 = vmatprep.subr.mxu0 0.0
    %7544 = vmatpush1.xpose.msra.mxu0 0.0
    %7545 = vmatprep.subr.mxu0 0.0
    %7546 = vmatpush1.xpose.msra.mxu0 0.0
    %7547 = vmatprep.subr.mxu0 0.0
    %7548 = vmatpush1.xpose.msra.mxu0 0.0
    %7549 = vmatprep.subr.mxu0 0.0
    %7550 = vmatpush1.xpose.msra.mxu0 0.0
    %7551 = vmatprep.subr.mxu0 0.0
    %7552 = vmatpush1.xpose.msra.mxu0 0.0
    %7553 = vmatprep.subr.mxu0 0.0
    %7554 = vmatpush1.xpose.msra.mxu0 0.0
    %7555 = vmatprep.subr.mxu0 0.0
    %7556 = vmatpush1.xpose.msra.mxu0 0.0
    %7557 = vmatprep.subr.mxu0 0.0
    %7558 = vmatpush1.xpose.msra.mxu0 0.0
    %7559 = vmatprep.subr.mxu0 0.0
    %7560 = vmatpush1.xpose.msra.mxu0 0.0
    %7561 = vmatprep.subr.mxu0 0.0
    %7562 = vmatpush1.xpose.msra.mxu0 0.0
    %7563 = vmatprep.subr.mxu0 0.0
    %7564 = vmatpush1.xpose.msra.mxu0 0.0
    %7565 = vmatprep.subr.mxu0 0.0
    %7566 = vmatpush1.xpose.msra.mxu0 0.0
    %7567 = vmatprep.subr.mxu0 0.0
    %7568 = vmatpush1.xpose.msra.mxu0 0.0
    %7569 = vmatprep.subr.mxu0 0.0
    %7570 = vmatpush1.xpose.msra.mxu0 0.0
    %7571 = vmatprep.subr.mxu0 0.0
    %7572 = vmatpush1.xpose.msra.mxu0 0.0
    %7573 = vmatprep.subr.mxu0 0.0
    %7574 = vmatpush1.xpose.msra.mxu0 0.0
    %7575 = vmatprep.subr.mxu0 0.0
    %7576 = vmatpush1.xpose.msra.mxu0 0.0
    %7577 = vmatprep.subr.mxu0 0.0
    %7578 = vmatpush1.xpose.msra.mxu0 0.0
    %7579 = vmatprep.subr.mxu0 0.0
    %7580 = vmatpush1.xpose.msra.mxu0 0.0
    %7581 = vmatprep.subr.mxu0 0.0
    %7582 = vmatpush1.xpose.msra.mxu0 0.0
    %7583 = vmatprep.subr.mxu0 0.0
    %7584 = vmatpush1.xpose.msra.mxu0 0.0
    %7585 = vmatprep.mubr.f32.mxu0 0.0
    %7586 = vmatmul.mubr.f32.gmra.mrb[0].mxu0 %v7515
    %v7587 = vpop.f32.mrb[0].mxu0
    %v7588 = vadd.f32 0.0, %v7587
    %v7589 = vpop.f32.mrb[0].mxu0
    %7590 = vdwg.mxu0
    %v7591 = vmul.f32 %v7506, 0.35355338
    %v7592 = vmul.f32 %v7588, 0.35355338
    %v7593 = vsel %vm6738, %v7591, -1e+30
    %v7594 = vsel %vm6738, %v7592, -1e+30
    %v7595 = vsel %vm979, %v7593, -inf
    %7596 = vmax.xlane.f32.xlu0 %v7595
    %v7597 = vpop.xlane.xlu0 %7596
    %v7598 = vsel %vm979, %v7594, -inf
    %7599 = vmax.xlane.f32.xlu0 %v7598
    %v7600 = vpop.xlane.xlu0 %7599
    %v7601 = vsub.f32 %v7593, %v7597
    %v7602 = vsub.f32 %v7594, %v7600
    %v7603 = vmul.f32 %v7601, 1.442695
    %v7604 = vpow.pop %v7603
    %v7605 = vmul.f32 %v7602, 1.442695
    %v7606 = vpow.pop %v7605
    %v7607 = vsel %vm979, %v7604, 0.0
    %7608 = vadd.xlane.f32.xlu0 %v7607
    %v7609 = vpop.xlane.xlu0 %7608
    %v7610 = vsel %vm979, %v7606, 0.0
    %7611 = vadd.xlane.f32.xlu0 %v7610
    %v7612 = vpop.xlane.xlu0 %7611
    %v7613 = vrcp.pop %v7609
    %v7614 = vrcp.pop %v7612
    %7615 = vrot.lane.b32.xlu0 %v6734, 80
    %v7616 = vpop.permute.xlu0 %7615
    %7617 = vrot.lane.b32.xlu0 %v6735, 80
    %v7618 = vpop.permute.xlu0 %7617
    %v7622 = vsel %vm1006, %v7604, 0
    %7624 = vmatprep.subr.mxu0 0.0
    %7625 = vmatpush1.msra.mxu0 %v7616
    %7626 = vmatprep.subr.mxu0 0.0
    %7627 = vmatpush1.msra.mxu0 %v7618
    %7628 = vmatprep.subr.mxu0 0.0
    %7629 = vmatpush1.msra.mxu0 0.0
    %7630 = vmatprep.subr.mxu0 0.0
    %7631 = vmatpush1.msra.mxu0 0.0
    %7632 = vmatprep.subr.mxu0 0.0
    %7633 = vmatpush1.msra.mxu0 0.0
    %7634 = vmatprep.subr.mxu0 0.0
    %7635 = vmatpush1.msra.mxu0 0.0
    %7636 = vmatprep.subr.mxu0 0.0
    %7637 = vmatpush1.msra.mxu0 0.0
    %7638 = vmatprep.subr.mxu0 0.0
    %7639 = vmatpush1.msra.mxu0 0.0
    %7640 = vmatprep.subr.mxu0 0.0
    %7641 = vmatpush1.msra.mxu0 0.0
    %7642 = vmatprep.subr.mxu0 0.0
    %7643 = vmatpush1.msra.mxu0 0.0
    %7644 = vmatprep.subr.mxu0 0.0
    %7645 = vmatpush1.msra.mxu0 0.0
    %7646 = vmatprep.subr.mxu0 0.0
    %7647 = vmatpush1.msra.mxu0 0.0
    %7648 = vmatprep.subr.mxu0 0.0
    %7649 = vmatpush1.msra.mxu0 0.0
    %7650 = vmatprep.subr.mxu0 0.0
    %7651 = vmatpush1.msra.mxu0 0.0
    %7652 = vmatprep.subr.mxu0 0.0
    %7653 = vmatpush1.msra.mxu0 0.0
    %7654 = vmatprep.subr.mxu0 0.0
    %7655 = vmatpush1.msra.mxu0 0.0
    %7656 = vmatprep.subr.mxu0 0.0
    %7657 = vmatpush1.msra.mxu0 0.0
    %7658 = vmatprep.subr.mxu0 0.0
    %7659 = vmatpush1.msra.mxu0 0.0
    %7660 = vmatprep.subr.mxu0 0.0
    %7661 = vmatpush1.msra.mxu0 0.0
    %7662 = vmatprep.subr.mxu0 0.0
    %7663 = vmatpush1.msra.mxu0 0.0
    %7664 = vmatprep.subr.mxu0 0.0
    %7665 = vmatpush1.msra.mxu0 0.0
    %7666 = vmatprep.subr.mxu0 0.0
    %7667 = vmatpush1.msra.mxu0 0.0
    %7668 = vmatprep.subr.mxu0 0.0
    %7669 = vmatpush1.msra.mxu0 0.0
    %7670 = vmatprep.subr.mxu0 0.0
    %7671 = vmatpush1.msra.mxu0 0.0
    %7672 = vmatprep.subr.mxu0 0.0
    %7673 = vmatpush1.msra.mxu0 0.0
    %7674 = vmatprep.subr.mxu0 0.0
    %7675 = vmatpush1.msra.mxu0 0.0
    %7676 = vmatprep.subr.mxu0 0.0
    %7677 = vmatpush1.msra.mxu0 0.0
    %7678 = vmatprep.subr.mxu0 0.0
    %7679 = vmatpush1.msra.mxu0 0.0
    %7680 = vmatprep.subr.mxu0 0.0
    %7681 = vmatpush1.msra.mxu0 0.0
    %7682 = vmatprep.subr.mxu0 0.0
    %7683 = vmatpush1.msra.mxu0 0.0
    %7684 = vmatprep.subr.mxu0 0.0
    %7685 = vmatpush1.msra.mxu0 0.0
    %7686 = vmatprep.subr.mxu0 0.0
    %7687 = vmatpush1.msra.mxu0 0.0
    %7688 = vmatprep.mubr.f32.mxu0 0.0
    %7689 = vmatmul.mubr.f32.gmra.mrb[0].mxu0 %v7622
    %v7690 = vpop.f32.mrb[0].mxu0
    %v7691 = vadd.f32 0.0, %v7690
    %v7692 = vpop.f32.mrb[0].mxu0
    %7693 = vdwg.mxu0
    %7694 = vrot.lane.b32.xlu0 %v6736, 80
    %v7695 = vpop.permute.xlu0 %7694
    %7696 = vrot.lane.b32.xlu0 %v6737, 80
    %v7697 = vpop.permute.xlu0 %7696
    %v7701 = vsel %vm1006, %v7606, 0
    %7703 = vmatprep.subr.mxu0 0.0
    %7704 = vmatpush1.msra.mxu0 %v7695
    %7705 = vmatprep.subr.mxu0 0.0
    %7706 = vmatpush1.msra.mxu0 %v7697
    %7707 = vmatprep.subr.mxu0 0.0
    %7708 = vmatpush1.msra.mxu0 0.0
    %7709 = vmatprep.subr.mxu0 0.0
    %7710 = vmatpush1.msra.mxu0 0.0
    %7711 = vmatprep.subr.mxu0 0.0
    %7712 = vmatpush1.msra.mxu0 0.0
    %7713 = vmatprep.subr.mxu0 0.0
    %7714 = vmatpush1.msra.mxu0 0.0
    %7715 = vmatprep.subr.mxu0 0.0
    %7716 = vmatpush1.msra.mxu0 0.0
    %7717 = vmatprep.subr.mxu0 0.0
    %7718 = vmatpush1.msra.mxu0 0.0
    %7719 = vmatprep.subr.mxu0 0.0
    %7720 = vmatpush1.msra.mxu0 0.0
    %7721 = vmatprep.subr.mxu0 0.0
    %7722 = vmatpush1.msra.mxu0 0.0
    %7723 = vmatprep.subr.mxu0 0.0
    %7724 = vmatpush1.msra.mxu0 0.0
    %7725 = vmatprep.subr.mxu0 0.0
    %7726 = vmatpush1.msra.mxu0 0.0
    %7727 = vmatprep.subr.mxu0 0.0
    %7728 = vmatpush1.msra.mxu0 0.0
    %7729 = vmatprep.subr.mxu0 0.0
    %7730 = vmatpush1.msra.mxu0 0.0
    %7731 = vmatprep.subr.mxu0 0.0
    %7732 = vmatpush1.msra.mxu0 0.0
    %7733 = vmatprep.subr.mxu0 0.0
    %7734 = vmatpush1.msra.mxu0 0.0
    %7735 = vmatprep.subr.mxu0 0.0
    %7736 = vmatpush1.msra.mxu0 0.0
    %7737 = vmatprep.subr.mxu0 0.0
    %7738 = vmatpush1.msra.mxu0 0.0
    %7739 = vmatprep.subr.mxu0 0.0
    %7740 = vmatpush1.msra.mxu0 0.0
    %7741 = vmatprep.subr.mxu0 0.0
    %7742 = vmatpush1.msra.mxu0 0.0
    %7743 = vmatprep.subr.mxu0 0.0
    %7744 = vmatpush1.msra.mxu0 0.0
    %7745 = vmatprep.subr.mxu0 0.0
    %7746 = vmatpush1.msra.mxu0 0.0
    %7747 = vmatprep.subr.mxu0 0.0
    %7748 = vmatpush1.msra.mxu0 0.0
    %7749 = vmatprep.subr.mxu0 0.0
    %7750 = vmatpush1.msra.mxu0 0.0
    %7751 = vmatprep.subr.mxu0 0.0
    %7752 = vmatpush1.msra.mxu0 0.0
    %7753 = vmatprep.subr.mxu0 0.0
    %7754 = vmatpush1.msra.mxu0 0.0
    %7755 = vmatprep.subr.mxu0 0.0
    %7756 = vmatpush1.msra.mxu0 0.0
    %7757 = vmatprep.subr.mxu0 0.0
    %7758 = vmatpush1.msra.mxu0 0.0
    %7759 = vmatprep.subr.mxu0 0.0
    %7760 = vmatpush1.msra.mxu0 0.0
    %7761 = vmatprep.subr.mxu0 0.0
    %7762 = vmatpush1.msra.mxu0 0.0
    %7763 = vmatprep.subr.mxu0 0.0
    %7764 = vmatpush1.msra.mxu0 0.0
    %7765 = vmatprep.subr.mxu0 0.0
    %7766 = vmatpush1.msra.mxu0 0.0
    %7767 = vmatprep.mubr.f32.mxu0 0.0
    %7768 = vmatmul.mubr.f32.gmra.mrb[0].mxu0 %v7701
    %v7769 = vpop.f32.mrb[0].mxu0
    %v7770 = vadd.f32 0.0, %v7769
    %v7771 = vpop.f32.mrb[0].mxu0
    %7772 = vdwg.mxu0
    %v7773 = vmul.f32 %v7691, %v7613
    %v7774 = vmul.f32 %v7770, %v7614
    %7775 = vrot.lane.b32.xlu0 %v6721, 104
    %v7776 = vpop.permute.xlu0 %7775
    %7777 = vrot.lane.b32.xlu0 %v6734, 104
    %v7778 = vpop.permute.xlu0 %7777
    %7779 = vrot.lane.b32.xlu0 %v6735, 104
    %v7780 = vpop.permute.xlu0 %7779
    %v7781 = vsel %vm818, %v7776, 0
    %v7783 = vsel %vm818, %v7778, 0
    %v7785 = vsel %vm818, %v7780, 0
    %7787 = vmatprep.subr.mxu0 0.0
    %7788 = vmatpush1.xpose.msra.mxu0 %v7783
    %7789 = vmatprep.subr.mxu0 0.0
    %7790 = vmatpush1.xpose.msra.mxu0 %v7785
    %7791 = vmatprep.subr.mxu0 0.0
    %7792 = vmatpush1.xpose.msra.mxu0 0.0
    %7793 = vmatprep.subr.mxu0 0.0
    %7794 = vmatpush1.xpose.msra.mxu0 0.0
    %7795 = vmatprep.subr.mxu0 0.0
    %7796 = vmatpush1.xpose.msra.mxu0 0.0
    %7797 = vmatprep.subr.mxu0 0.0
    %7798 = vmatpush1.xpose.msra.mxu0 0.0
    %7799 = vmatprep.subr.mxu0 0.0
    %7800 = vmatpush1.xpose.msra.mxu0 0.0
    %7801 = vmatprep.subr.mxu0 0.0
    %7802 = vmatpush1.xpose.msra.mxu0 0.0
    %7803 = vmatprep.subr.mxu0 0.0
    %7804 = vmatpush1.xpose.msra.mxu0 0.0
    %7805 = vmatprep.subr.mxu0 0.0
    %7806 = vmatpush1.xpose.msra.mxu0 0.0
    %7807 = vmatprep.subr.mxu0 0.0
    %7808 = vmatpush1.xpose.msra.mxu0 0.0
    %7809 = vmatprep.subr.mxu0 0.0
    %7810 = vmatpush1.xpose.msra.mxu0 0.0
    %7811 = vmatprep.subr.mxu0 0.0
    %7812 = vmatpush1.xpose.msra.mxu0 0.0
    %7813 = vmatprep.subr.mxu0 0.0
    %7814 = vmatpush1.xpose.msra.mxu0 0.0
    %7815 = vmatprep.subr.mxu0 0.0
    %7816 = vmatpush1.xpose.msra.mxu0 0.0
    %7817 = vmatprep.subr.mxu0 0.0
    %7818 = vmatpush1.xpose.msra.mxu0 0.0
    %7819 = vmatprep.subr.mxu0 0.0
    %7820 = vmatpush1.xpose.msra.mxu0 0.0
    %7821 = vmatprep.subr.mxu0 0.0
    %7822 = vmatpush1.xpose.msra.mxu0 0.0
    %7823 = vmatprep.subr.mxu0 0.0
    %7824 = vmatpush1.xpose.msra.mxu0 0.0
    %7825 = vmatprep.subr.mxu0 0.0
    %7826 = vmatpush1.xpose.msra.mxu0 0.0
    %7827 = vmatprep.subr.mxu0 0.0
    %7828 = vmatpush1.xpose.msra.mxu0 0.0
    %7829 = vmatprep.subr.mxu0 0.0
    %7830 = vmatpush1.xpose.msra.mxu0 0.0
    %7831 = vmatprep.subr.mxu0 0.0
    %7832 = vmatpush1.xpose.msra.mxu0 0.0
    %7833 = vmatprep.subr.mxu0 0.0
    %7834 = vmatpush1.xpose.msra.mxu0 0.0
    %7835 = vmatprep.subr.mxu0 0.0
    %7836 = vmatpush1.xpose.msra.mxu0 0.0
    %7837 = vmatprep.subr.mxu0 0.0
    %7838 = vmatpush1.xpose.msra.mxu0 0.0
    %7839 = vmatprep.subr.mxu0 0.0
    %7840 = vmatpush1.xpose.msra.mxu0 0.0
    %7841 = vmatprep.subr.mxu0 0.0
    %7842 = vmatpush1.xpose.msra.mxu0 0.0
    %7843 = vmatprep.subr.mxu0 0.0
    %7844 = vmatpush1.xpose.msra.mxu0 0.0
    %7845 = vmatprep.subr.mxu0 0.0
    %7846 = vmatpush1.xpose.msra.mxu0 0.0
    %7847 = vmatprep.subr.mxu0 0.0
    %7848 = vmatpush1.xpose.msra.mxu0 0.0
    %7849 = vmatprep.subr.mxu0 0.0
    %7850 = vmatpush1.xpose.msra.mxu0 0.0
    %7851 = vmatprep.mubr.f32.mxu0 0.0
    %7852 = vmatmul.mubr.f32.gmra.mrb[0].mxu0 %v7781
    %v7853 = vpop.f32.mrb[0].mxu0
    %v7854 = vadd.f32 0.0, %v7853
    %v7855 = vpop.f32.mrb[0].mxu0
    %7856 = vdwg.mxu0
    %7857 = vrot.lane.b32.xlu0 %v6725, 104
    %v7858 = vpop.permute.xlu0 %7857
    %7859 = vrot.lane.b32.xlu0 %v6736, 104
    %v7860 = vpop.permute.xlu0 %7859
    %7861 = vrot.lane.b32.xlu0 %v6737, 104
    %v7862 = vpop.permute.xlu0 %7861
    %v7863 = vsel %vm818, %v7858, 0
    %v7865 = vsel %vm818, %v7860, 0
    %v7867 = vsel %vm818, %v7862, 0
    %7869 = vmatprep.subr.mxu0 0.0
    %7870 = vmatpush1.xpose.msra.mxu0 %v7865
    %7871 = vmatprep.subr.mxu0 0.0
    %7872 = vmatpush1.xpose.msra.mxu0 %v7867
    %7873 = vmatprep.subr.mxu0 0.0
    %7874 = vmatpush1.xpose.msra.mxu0 0.0
    %7875 = vmatprep.subr.mxu0 0.0
    %7876 = vmatpush1.xpose.msra.mxu0 0.0
    %7877 = vmatprep.subr.mxu0 0.0
    %7878 = vmatpush1.xpose.msra.mxu0 0.0
    %7879 = vmatprep.subr.mxu0 0.0
    %7880 = vmatpush1.xpose.msra.mxu0 0.0
    %7881 = vmatprep.subr.mxu0 0.0
    %7882 = vmatpush1.xpose.msra.mxu0 0.0
    %7883 = vmatprep.subr.mxu0 0.0
    %7884 = vmatpush1.xpose.msra.mxu0 0.0
    %7885 = vmatprep.subr.mxu0 0.0
    %7886 = vmatpush1.xpose.msra.mxu0 0.0
    %7887 = vmatprep.subr.mxu0 0.0
    %7888 = vmatpush1.xpose.msra.mxu0 0.0
    %7889 = vmatprep.subr.mxu0 0.0
    %7890 = vmatpush1.xpose.msra.mxu0 0.0
    %7891 = vmatprep.subr.mxu0 0.0
    %7892 = vmatpush1.xpose.msra.mxu0 0.0
    %7893 = vmatprep.subr.mxu0 0.0
    %7894 = vmatpush1.xpose.msra.mxu0 0.0
    %7895 = vmatprep.subr.mxu0 0.0
    %7896 = vmatpush1.xpose.msra.mxu0 0.0
    %7897 = vmatprep.subr.mxu0 0.0
    %7898 = vmatpush1.xpose.msra.mxu0 0.0
    %7899 = vmatprep.subr.mxu0 0.0
    %7900 = vmatpush1.xpose.msra.mxu0 0.0
    %7901 = vmatprep.subr.mxu0 0.0
    %7902 = vmatpush1.xpose.msra.mxu0 0.0
    %7903 = vmatprep.subr.mxu0 0.0
    %7904 = vmatpush1.xpose.msra.mxu0 0.0
    %7905 = vmatprep.subr.mxu0 0.0
    %7906 = vmatpush1.xpose.msra.mxu0 0.0
    %7907 = vmatprep.subr.mxu0 0.0
    %7908 = vmatpush1.xpose.msra.mxu0 0.0
    %7909 = vmatprep.subr.mxu0 0.0
    %7910 = vmatpush1.xpose.msra.mxu0 0.0
    %7911 = vmatprep.subr.mxu0 0.0
    %7912 = vmatpush1.xpose.msra.mxu0 0.0
    %7913 = vmatprep.subr.mxu0 0.0
    %7914 = vmatpush1.xpose.msra.mxu0 0.0
    %7915 = vmatprep.subr.mxu0 0.0
    %7916 = vmatpush1.xpose.msra.mxu0 0.0
    %7917 = vmatprep.subr.mxu0 0.0
    %7918 = vmatpush1.xpose.msra.mxu0 0.0
    %7919 = vmatprep.subr.mxu0 0.0
    %7920 = vmatpush1.xpose.msra.mxu0 0.0
    %7921 = vmatprep.subr.mxu0 0.0
    %7922 = vmatpush1.xpose.msra.mxu0 0.0
    %7923 = vmatprep.subr.mxu0 0.0
    %7924 = vmatpush1.xpose.msra.mxu0 0.0
    %7925 = vmatprep.subr.mxu0 0.0
    %7926 = vmatpush1.xpose.msra.mxu0 0.0
    %7927 = vmatprep.subr.mxu0 0.0
    %7928 = vmatpush1.xpose.msra.mxu0 0.0
    %7929 = vmatprep.subr.mxu0 0.0
    %7930 = vmatpush1.xpose.msra.mxu0 0.0
    %7931 = vmatprep.subr.mxu0 0.0
    %7932 = vmatpush1.xpose.msra.mxu0 0.0
    %7933 = vmatprep.mubr.f32.mxu0 0.0
    %7934 = vmatmul.mubr.f32.gmra.mrb[0].mxu0 %v7863
    %v7935 = vpop.f32.mrb[0].mxu0
    %v7936 = vadd.f32 0.0, %v7935
    %v7937 = vpop.f32.mrb[0].mxu0
    %7938 = vdwg.mxu0
    %v7939 = vmul.f32 %v7854, 0.35355338
    %v7940 = vmul.f32 %v7936, 0.35355338
    %v7941 = vsel %vm6738, %v7939, -1e+30
    %v7942 = vsel %vm6738, %v7940, -1e+30
    %v7943 = vsel %vm979, %v7941, -inf
    %7944 = vmax.xlane.f32.xlu0 %v7943
    %v7945 = vpop.xlane.xlu0 %7944
    %v7946 = vsel %vm979, %v7942, -inf
    %7947 = vmax.xlane.f32.xlu0 %v7946
    %v7948 = vpop.xlane.xlu0 %7947
    %v7949 = vsub.f32 %v7941, %v7945
    %v7950 = vsub.f32 %v7942, %v7948
    %v7951 = vmul.f32 %v7949, 1.442695
    %v7952 = vpow.pop %v7951
    %v7953 = vmul.f32 %v7950, 1.442695
    %v7954 = vpow.pop %v7953
    %v7955 = vsel %vm979, %v7952, 0.0
    %7956 = vadd.xlane.f32.xlu0 %v7955
    %v7957 = vpop.xlane.xlu0 %7956
    %v7958 = vsel %vm979, %v7954, 0.0
    %7959 = vadd.xlane.f32.xlu0 %v7958
    %v7960 = vpop.xlane.xlu0 %7959
    %v7961 = vrcp.pop %v7957
    %v7962 = vrcp.pop %v7960
    %7963 = vrot.lane.b32.xlu0 %v6734, 72
    %v7964 = vpop.permute.xlu0 %7963
    %7965 = vrot.lane.b32.xlu0 %v6735, 72
    %v7966 = vpop.permute.xlu0 %7965
    %v7970 = vsel %vm1006, %v7952, 0
    %7972 = vmatprep.subr.mxu0 0.0
    %7973 = vmatpush1.msra.mxu0 %v7964
    %7974 = vmatprep.subr.mxu0 0.0
    %7975 = vmatpush1.msra.mxu0 %v7966
    %7976 = vmatprep.subr.mxu0 0.0
    %7977 = vmatpush1.msra.mxu0 0.0
    %7978 = vmatprep.subr.mxu0 0.0
    %7979 = vmatpush1.msra.mxu0 0.0
    %7980 = vmatprep.subr.mxu0 0.0
    %7981 = vmatpush1.msra.mxu0 0.0
    %7982 = vmatprep.subr.mxu0 0.0
    %7983 = vmatpush1.msra.mxu0 0.0
    %7984 = vmatprep.subr.mxu0 0.0
    %7985 = vmatpush1.msra.mxu0 0.0
    %7986 = vmatprep.subr.mxu0 0.0
    %7987 = vmatpush1.msra.mxu0 0.0
    %7988 = vmatprep.subr.mxu0 0.0
    %7989 = vmatpush1.msra.mxu0 0.0
    %7990 = vmatprep.subr.mxu0 0.0
    %7991 = vmatpush1.msra.mxu0 0.0
    %7992 = vmatprep.subr.mxu0 0.0
    %7993 = vmatpush1.msra.mxu0 0.0
    %7994 = vmatprep.subr.mxu0 0.0
    %7995 = vmatpush1.msra.mxu0 0.0
    %7996 = vmatprep.subr.mxu0 0.0
    %7997 = vmatpush1.msra.mxu0 0.0
    %7998 = vmatprep.subr.mxu0 0.0
    %7999 = vmatpush1.msra.mxu0 0.0
    %8000 = vmatprep.subr.mxu0 0.0
    %8001 = vmatpush1.msra.mxu0 0.0
    %8002 = vmatprep.subr.mxu0 0.0
    %8003 = vmatpush1.msra.mxu0 0.0
    %8004 = vmatprep.subr.mxu0 0.0
    %8005 = vmatpush1.msra.mxu0 0.0
    %8006 = vmatprep.subr.mxu0 0.0
    %8007 = vmatpush1.msra.mxu0 0.0
    %8008 = vmatprep.subr.mxu0 0.0
    %8009 = vmatpush1.msra.mxu0 0.0
    %8010 = vmatprep.subr.mxu0 0.0
    %8011 = vmatpush1.msra.mxu0 0.0
    %8012 = vmatprep.subr.mxu0 0.0
    %8013 = vmatpush1.msra.mxu0 0.0
    %8014 = vmatprep.subr.mxu0 0.0
    %8015 = vmatpush1.msra.mxu0 0.0
    %8016 = vmatprep.subr.mxu0 0.0
    %8017 = vmatpush1.msra.mxu0 0.0
    %8018 = vmatprep.subr.mxu0 0.0
    %8019 = vmatpush1.msra.mxu0 0.0
    %8020 = vmatprep.subr.mxu0 0.0
    %8021 = vmatpush1.msra.mxu0 0.0
    %8022 = vmatprep.subr.mxu0 0.0
    %8023 = vmatpush1.msra.mxu0 0.0
    %8024 = vmatprep.subr.mxu0 0.0
    %8025 = vmatpush1.msra.mxu0 0.0
    %8026 = vmatprep.subr.mxu0 0.0
    %8027 = vmatpush1.msra.mxu0 0.0
    %8028 = vmatprep.subr.mxu0 0.0
    %8029 = vmatpush1.msra.mxu0 0.0
    %8030 = vmatprep.subr.mxu0 0.0
    %8031 = vmatpush1.msra.mxu0 0.0
    %8032 = vmatprep.subr.mxu0 0.0
    %8033 = vmatpush1.msra.mxu0 0.0
    %8034 = vmatprep.subr.mxu0 0.0
    %8035 = vmatpush1.msra.mxu0 0.0
    %8036 = vmatprep.mubr.f32.mxu0 0.0
    %8037 = vmatmul.mubr.f32.gmra.mrb[0].mxu0 %v7970
    %v8038 = vpop.f32.mrb[0].mxu0
    %v8039 = vadd.f32 0.0, %v8038
    %v8040 = vpop.f32.mrb[0].mxu0
    %8041 = vdwg.mxu0
    %8042 = vrot.lane.b32.xlu0 %v6736, 72
    %v8043 = vpop.permute.xlu0 %8042
    %8044 = vrot.lane.b32.xlu0 %v6737, 72
    %v8045 = vpop.permute.xlu0 %8044
    %v8049 = vsel %vm1006, %v7954, 0
    %8051 = vmatprep.subr.mxu0 0.0
    %8052 = vmatpush1.msra.mxu0 %v8043
    %8053 = vmatprep.subr.mxu0 0.0
    %8054 = vmatpush1.msra.mxu0 %v8045
    %8055 = vmatprep.subr.mxu0 0.0
    %8056 = vmatpush1.msra.mxu0 0.0
    %8057 = vmatprep.subr.mxu0 0.0
    %8058 = vmatpush1.msra.mxu0 0.0
    %8059 = vmatprep.subr.mxu0 0.0
    %8060 = vmatpush1.msra.mxu0 0.0
    %8061 = vmatprep.subr.mxu0 0.0
    %8062 = vmatpush1.msra.mxu0 0.0
    %8063 = vmatprep.subr.mxu0 0.0
    %8064 = vmatpush1.msra.mxu0 0.0
    %8065 = vmatprep.subr.mxu0 0.0
    %8066 = vmatpush1.msra.mxu0 0.0
    %8067 = vmatprep.subr.mxu0 0.0
    %8068 = vmatpush1.msra.mxu0 0.0
    %8069 = vmatprep.subr.mxu0 0.0
    %8070 = vmatpush1.msra.mxu0 0.0
    %8071 = vmatprep.subr.mxu0 0.0
    %8072 = vmatpush1.msra.mxu0 0.0
    %8073 = vmatprep.subr.mxu0 0.0
    %8074 = vmatpush1.msra.mxu0 0.0
    %8075 = vmatprep.subr.mxu0 0.0
    %8076 = vmatpush1.msra.mxu0 0.0
    %8077 = vmatprep.subr.mxu0 0.0
    %8078 = vmatpush1.msra.mxu0 0.0
    %8079 = vmatprep.subr.mxu0 0.0
    %8080 = vmatpush1.msra.mxu0 0.0
    %8081 = vmatprep.subr.mxu0 0.0
    %8082 = vmatpush1.msra.mxu0 0.0
    %8083 = vmatprep.subr.mxu0 0.0
    %8084 = vmatpush1.msra.mxu0 0.0
    %8085 = vmatprep.subr.mxu0 0.0
    %8086 = vmatpush1.msra.mxu0 0.0
    %8087 = vmatprep.subr.mxu0 0.0
    %8088 = vmatpush1.msra.mxu0 0.0
    %8089 = vmatprep.subr.mxu0 0.0
    %8090 = vmatpush1.msra.mxu0 0.0
    %8091 = vmatprep.subr.mxu0 0.0
    %8092 = vmatpush1.msra.mxu0 0.0
    %8093 = vmatprep.subr.mxu0 0.0
    %8094 = vmatpush1.msra.mxu0 0.0
    %8095 = vmatprep.subr.mxu0 0.0
    %8096 = vmatpush1.msra.mxu0 0.0
    %8097 = vmatprep.subr.mxu0 0.0
    %8098 = vmatpush1.msra.mxu0 0.0
    %8099 = vmatprep.subr.mxu0 0.0
    %8100 = vmatpush1.msra.mxu0 0.0
    %8101 = vmatprep.subr.mxu0 0.0
    %8102 = vmatpush1.msra.mxu0 0.0
    %8103 = vmatprep.subr.mxu0 0.0
    %8104 = vmatpush1.msra.mxu0 0.0
    %8105 = vmatprep.subr.mxu0 0.0
    %8106 = vmatpush1.msra.mxu0 0.0
    %8107 = vmatprep.subr.mxu0 0.0
    %8108 = vmatpush1.msra.mxu0 0.0
    %8109 = vmatprep.subr.mxu0 0.0
    %8110 = vmatpush1.msra.mxu0 0.0
    %8111 = vmatprep.subr.mxu0 0.0
    %8112 = vmatpush1.msra.mxu0 0.0
    %8113 = vmatprep.subr.mxu0 0.0
    %8114 = vmatpush1.msra.mxu0 0.0
    %8115 = vmatprep.mubr.f32.mxu0 0.0
    %8116 = vmatmul.mubr.f32.gmra.mrb[0].mxu0 %v8049
    %v8117 = vpop.f32.mrb[0].mxu0
    %v8118 = vadd.f32 0.0, %v8117
    %v8119 = vpop.f32.mrb[0].mxu0
    %8120 = vdwg.mxu0
    %v8121 = vmul.f32 %v8039, %v7961
    %v8122 = vmul.f32 %v8118, %v7962
    %8125 = vrot.lane.b32.xlu0 %v7425, 8
    %v8126 = vpop.permute.xlu0 %8125
    %8127 = vrot.lane.b32.xlu0 %v7426, 8
    %v8128 = vpop.permute.xlu0 %8127
    %8133 = vrot.lane.b32.xlu0 %v7773, 16
    %v8134 = vpop.permute.xlu0 %8133
    %8135 = vrot.lane.b32.xlu0 %v7774, 16
    %v8136 = vpop.permute.xlu0 %8135
    %8141 = vrot.lane.b32.xlu0 %v8121, 24
    %v8142 = vpop.permute.xlu0 %8141
    %8143 = vrot.lane.b32.xlu0 %v8122, 24
    %v8144 = vpop.permute.xlu0 %8143
    %v8147 = vsel %vm818, %v7077, %v8126
    %v8148 = vsel %vm818, %v7078, %v8128
    %v8149 = vsel %vm1006, %v8147, %v8134
    %v8150 = vsel %vm1006, %v8148, %v8136
    %v8151 = vsel %vm2233, %v8149, %v8142
    %v8152 = vsel %vm2233, %v8150, %v8144
    %v8155 = vrot.slane %v8152, 7
    %v8156 = vsel %vm699, %v8155, %v8151
    %v8157 = vsel %vm226, %v8156, 0
    %8159 = vmatprep.subr.mxu0 0.0
    %8160 = vmatpush1.msra.mxu0 %v84
    %8161 = vmatprep.subr.mxu0 0.0
    %8162 = vmatpush1.msra.mxu0 %v85
    %8163 = vmatprep.subr.mxu0 0.0
    %8164 = vmatpush1.msra.mxu0 %v86
    %8165 = vmatprep.subr.mxu0 0.0
    %8166 = vmatpush1.msra.mxu0 %v87
    %8167 = vmatprep.subr.mxu0 0.0
    %8168 = vmatpush1.msra.mxu0 0.0
    %8169 = vmatprep.subr.mxu0 0.0
    %8170 = vmatpush1.msra.mxu0 0.0
    %8171 = vmatprep.subr.mxu0 0.0
    %8172 = vmatpush1.msra.mxu0 0.0
    %8173 = vmatprep.subr.mxu0 0.0
    %8174 = vmatpush1.msra.mxu0 0.0
    %8175 = vmatprep.subr.mxu0 0.0
    %8176 = vmatpush1.msra.mxu0 0.0
    %8177 = vmatprep.subr.mxu0 0.0
    %8178 = vmatpush1.msra.mxu0 0.0
    %8179 = vmatprep.subr.mxu0 0.0
    %8180 = vmatpush1.msra.mxu0 0.0
    %8181 = vmatprep.subr.mxu0 0.0
    %8182 = vmatpush1.msra.mxu0 0.0
    %8183 = vmatprep.subr.mxu0 0.0
    %8184 = vmatpush1.msra.mxu0 0.0
    %8185 = vmatprep.subr.mxu0 0.0
    %8186 = vmatpush1.msra.mxu0 0.0
    %8187 = vmatprep.subr.mxu0 0.0
    %8188 = vmatpush1.msra.mxu0 0.0
    %8189 = vmatprep.subr.mxu0 0.0
    %8190 = vmatpush1.msra.mxu0 0.0
    %8191 = vmatprep.subr.mxu0 0.0
    %8192 = vmatpush1.msra.mxu0 0.0
    %8193 = vmatprep.subr.mxu0 0.0
    %8194 = vmatpush1.msra.mxu0 0.0
    %8195 = vmatprep.subr.mxu0 0.0
    %8196 = vmatpush1.msra.mxu0 0.0
    %8197 = vmatprep.subr.mxu0 0.0
    %8198 = vmatpush1.msra.mxu0 0.0
    %8199 = vmatprep.subr.mxu0 0.0
    %8200 = vmatpush1.msra.mxu0 0.0
    %8201 = vmatprep.subr.mxu0 0.0
    %8202 = vmatpush1.msra.mxu0 0.0
    %8203 = vmatprep.subr.mxu0 0.0
    %8204 = vmatpush1.msra.mxu0 0.0
    %8205 = vmatprep.subr.mxu0 0.0
    %8206 = vmatpush1.msra.mxu0 0.0
    %8207 = vmatprep.subr.mxu0 0.0
    %8208 = vmatpush1.msra.mxu0 0.0
    %8209 = vmatprep.subr.mxu0 0.0
    %8210 = vmatpush1.msra.mxu0 0.0
    %8211 = vmatprep.subr.mxu0 0.0
    %8212 = vmatpush1.msra.mxu0 0.0
    %8213 = vmatprep.subr.mxu0 0.0
    %8214 = vmatpush1.msra.mxu0 0.0
    %8215 = vmatprep.subr.mxu0 0.0
    %8216 = vmatpush1.msra.mxu0 0.0
    %8217 = vmatprep.subr.mxu0 0.0
    %8218 = vmatpush1.msra.mxu0 0.0
    %8219 = vmatprep.subr.mxu0 0.0
    %8220 = vmatpush1.msra.mxu0 0.0
    %8221 = vmatprep.subr.mxu0 0.0
    %8222 = vmatpush1.msra.mxu0 0.0
    %8223 = vmatprep.mubr.f32.mxu0 0.0
    %8224 = vmatmul.mubr.f32.gmra.mrb[0].mxu0 %v8157
    %v8225 = vpop.f32.mrb[0].mxu0
    %v8226 = vadd.f32 %v2240, %v8225
    %v8227 = vpop.f32.mrb[0].mxu0
    %8228 = vdwg.mxu0
    %v8229 = vadd.f32 %v6610, %v8226
    %v8230 = vmul.f32 %v8229, %v8229
    %v8231 = vsel %vm2711, %v8230, 0.0
    %8232 = vadd.xlane.f32.xlu0 %v8231
    %v8233 = vpop.xlane.xlu0 %8232
    %v8234 = vmul.f32 %v8233, %v524
    %v8235 = vadd.f32 %v8234, 1e-06
    %v8236 = vrsqrt.pop %v8235
    %v8237 = vmul.f32 %v8229, %v8236
    %v8238 = vmul.f32 %v8237, %v2348
    %v8240 = vsel %vm226, %v8238, 0
    %8242 = vmatprep.subr.mxu0 0.0
    %8243 = vmatpush1.msra.mxu0 %v89
    %8244 = vmatprep.subr.mxu0 0.0
    %8245 = vmatpush1.msra.mxu0 %v90
    %8246 = vmatprep.subr.mxu0 0.0
    %8247 = vmatpush1.msra.mxu0 %v91
    %8248 = vmatprep.subr.mxu0 0.0
    %8249 = vmatpush1.msra.mxu0 %v92
    %8250 = vmatprep.subr.mxu0 0.0
    %8251 = vmatpush1.msra.mxu0 0.0
    %8252 = vmatprep.subr.mxu0 0.0
    %8253 = vmatpush1.msra.mxu0 0.0
    %8254 = vmatprep.subr.mxu0 0.0
    %8255 = vmatpush1.msra.mxu0 0.0
    %8256 = vmatprep.subr.mxu0 0.0
    %8257 = vmatpush1.msra.mxu0 0.0
    %8258 = vmatprep.subr.mxu0 0.0
    %8259 = vmatpush1.msra.mxu0 0.0
    %8260 = vmatprep.subr.mxu0 0.0
    %8261 = vmatpush1.msra.mxu0 0.0
    %8262 = vmatprep.subr.mxu0 0.0
    %8263 = vmatpush1.msra.mxu0 0.0
    %8264 = vmatprep.subr.mxu0 0.0
    %8265 = vmatpush1.msra.mxu0 0.0
    %8266 = vmatprep.subr.mxu0 0.0
    %8267 = vmatpush1.msra.mxu0 0.0
    %8268 = vmatprep.subr.mxu0 0.0
    %8269 = vmatpush1.msra.mxu0 0.0
    %8270 = vmatprep.subr.mxu0 0.0
    %8271 = vmatpush1.msra.mxu0 0.0
    %8272 = vmatprep.subr.mxu0 0.0
    %8273 = vmatpush1.msra.mxu0 0.0
    %8274 = vmatprep.subr.mxu0 0.0
    %8275 = vmatpush1.msra.mxu0 0.0
    %8276 = vmatprep.subr.mxu0 0.0
    %8277 = vmatpush1.msra.mxu0 0.0
    %8278 = vmatprep.subr.mxu0 0.0
    %8279 = vmatpush1.msra.mxu0 0.0
    %8280 = vmatprep.subr.mxu0 0.0
    %8281 = vmatpush1.msra.mxu0 0.0
    %8282 = vmatprep.subr.mxu0 0.0
    %8283 = vmatpush1.msra.mxu0 0.0
    %8284 = vmatprep.subr.mxu0 0.0
    %8285 = vmatpush1.msra.mxu0 0.0
    %8286 = vmatprep.subr.mxu0 0.0
    %8287 = vmatpush1.msra.mxu0 0.0
    %8288 = vmatprep.subr.mxu0 0.0
    %8289 = vmatpush1.msra.mxu0 0.0
    %8290 = vmatprep.subr.mxu0 0.0
    %8291 = vmatpush1.msra.mxu0 0.0
    %8292 = vmatprep.subr.mxu0 0.0
    %8293 = vmatpush1.msra.mxu0 0.0
    %8294 = vmatprep.subr.mxu0 0.0
    %8295 = vmatpush1.msra.mxu0 0.0
    %8296 = vmatprep.subr.mxu0 0.0
    %8297 = vmatpush1.msra.mxu0 0.0
    %8298 = vmatprep.subr.mxu0 0.0
    %8299 = vmatpush1.msra.mxu0 0.0
    %8300 = vmatprep.subr.mxu0 0.0
    %8301 = vmatpush1.msra.mxu0 0.0
    %8302 = vmatprep.subr.mxu0 0.0
    %8303 = vmatpush1.msra.mxu0 0.0
    %8304 = vmatprep.subr.mxu0 0.0
    %8305 = vmatpush1.msra.mxu0 0.0
    %8306 = vmatprep.mubr.f32.mxu0 0.0
    %8307 = vmatmul.mubr.f32.gmra.mrb[0].mxu0 %v8240
    %v8308 = vpop.f32.mrb[0].mxu0
    %v8309 = vadd.f32 %v2356, %v8308
    %v8310 = vpop.f32.mrb[0].mxu0
    %8311 = vdwg.mxu0
    %v8312 = vmul.f32 %v8309, %v8309
    %v8313 = vmul.f32 %v8309, %v8312
    %v8314 = vmul.f32 %v8313, 0.044715
    %v8315 = vadd.f32 %v8309, %v8314
    %v8316 = vmul.f32 %v8315, 0.7978846
    %v8317 = vtanh.pop %v8316
    %v8318 = vadd.f32 %v8317, 1.0
    %v8319 = vmul.f32 %v8318, 0.5
    %v8320 = vmul.f32 %v8309, %v8319
    %v8322 = vsel %vm141, %v8320, 0
    %8324 = vmatprep.subr.mxu0 0.0
    %8325 = vmatpush1.msra.mxu0 %v94
    %8326 = vmatprep.subr.mxu0 0.0
    %8327 = vmatpush1.msra.mxu0 %v95
    %8328 = vmatprep.subr.mxu0 0.0
    %8329 = vmatpush1.msra.mxu0 %v96
    %8330 = vmatprep.subr.mxu0 0.0
    %8331 = vmatpush1.msra.mxu0 %v97
    %8332 = vmatprep.subr.mxu0 0.0
    %8333 = vmatpush1.msra.mxu0 %v98
    %8334 = vmatprep.subr.mxu0 0.0
    %8335 = vmatpush1.msra.mxu0 %v99
    %8336 = vmatprep.subr.mxu0 0.0
    %8337 = vmatpush1.msra.mxu0 %v100
    %8338 = vmatprep.subr.mxu0 0.0
    %8339 = vmatpush1.msra.mxu0 %v101
    %8340 = vmatprep.subr.mxu0 0.0
    %8341 = vmatpush1.msra.mxu0 0.0
    %8342 = vmatprep.subr.mxu0 0.0
    %8343 = vmatpush1.msra.mxu0 0.0
    %8344 = vmatprep.subr.mxu0 0.0
    %8345 = vmatpush1.msra.mxu0 0.0
    %8346 = vmatprep.subr.mxu0 0.0
    %8347 = vmatpush1.msra.mxu0 0.0
    %8348 = vmatprep.subr.mxu0 0.0
    %8349 = vmatpush1.msra.mxu0 0.0
    %8350 = vmatprep.subr.mxu0 0.0
    %8351 = vmatpush1.msra.mxu0 0.0
    %8352 = vmatprep.subr.mxu0 0.0
    %8353 = vmatpush1.msra.mxu0 0.0
    %8354 = vmatprep.subr.mxu0 0.0
    %8355 = vmatpush1.msra.mxu0 0.0
    %8356 = vmatprep.subr.mxu0 0.0
    %8357 = vmatpush1.msra.mxu0 0.0
    %8358 = vmatprep.subr.mxu0 0.0
    %8359 = vmatpush1.msra.mxu0 0.0
    %8360 = vmatprep.subr.mxu0 0.0
    %8361 = vmatpush1.msra.mxu0 0.0
    %8362 = vmatprep.subr.mxu0 0.0
    %8363 = vmatpush1.msra.mxu0 0.0
    %8364 = vmatprep.subr.mxu0 0.0
    %8365 = vmatpush1.msra.mxu0 0.0
    %8366 = vmatprep.subr.mxu0 0.0
    %8367 = vmatpush1.msra.mxu0 0.0
    %8368 = vmatprep.subr.mxu0 0.0
    %8369 = vmatpush1.msra.mxu0 0.0
    %8370 = vmatprep.subr.mxu0 0.0
    %8371 = vmatpush1.msra.mxu0 0.0
    %8372 = vmatprep.subr.mxu0 0.0
    %8373 = vmatpush1.msra.mxu0 0.0
    %8374 = vmatprep.subr.mxu0 0.0
    %8375 = vmatpush1.msra.mxu0 0.0
    %8376 = vmatprep.subr.mxu0 0.0
    %8377 = vmatpush1.msra.mxu0 0.0
    %8378 = vmatprep.subr.mxu0 0.0
    %8379 = vmatpush1.msra.mxu0 0.0
    %8380 = vmatprep.subr.mxu0 0.0
    %8381 = vmatpush1.msra.mxu0 0.0
    %8382 = vmatprep.subr.mxu0 0.0
    %8383 = vmatpush1.msra.mxu0 0.0
    %8384 = vmatprep.subr.mxu0 0.0
    %8385 = vmatpush1.msra.mxu0 0.0
    %8386 = vmatprep.subr.mxu0 0.0
    %8387 = vmatpush1.msra.mxu0 0.0
    %8388 = vmatprep.mubr.f32.mxu0 0.0
    %8389 = vmatmul.mubr.f32.gmra.mrb[0].mxu0 %v8322
    %v8390 = vpop.f32.mrb[0].mxu0
    %v8391 = vadd.f32 %v2448, %v8390
    %v8392 = vpop.f32.mrb[0].mxu0
    %8393 = vdwg.mxu0
    %v8394 = vadd.f32 %v8229, %v8391
    %v8396 = vsel %vm226, %v8394, 0
    %8398 = vmatprep.subr.mxu0 0.0
    %8399 = vmatpush1.msra.mxu0 %v103
    %8400 = vmatprep.subr.mxu0 0.0
    %8401 = vmatpush1.msra.mxu0 %v104
    %8402 = vmatprep.subr.mxu0 0.0
    %8403 = vmatpush1.msra.mxu0 %v105
    %8404 = vmatprep.subr.mxu0 0.0
    %8405 = vmatpush1.msra.mxu0 %v106
    %8406 = vmatprep.subr.mxu0 0.0
    %8407 = vmatpush1.msra.mxu0 0.0
    %8408 = vmatprep.subr.mxu0 0.0
    %8409 = vmatpush1.msra.mxu0 0.0
    %8410 = vmatprep.subr.mxu0 0.0
    %8411 = vmatpush1.msra.mxu0 0.0
    %8412 = vmatprep.subr.mxu0 0.0
    %8413 = vmatpush1.msra.mxu0 0.0
    %8414 = vmatprep.subr.mxu0 0.0
    %8415 = vmatpush1.msra.mxu0 0.0
    %8416 = vmatprep.subr.mxu0 0.0
    %8417 = vmatpush1.msra.mxu0 0.0
    %8418 = vmatprep.subr.mxu0 0.0
    %8419 = vmatpush1.msra.mxu0 0.0
    %8420 = vmatprep.subr.mxu0 0.0
    %8421 = vmatpush1.msra.mxu0 0.0
    %8422 = vmatprep.subr.mxu0 0.0
    %8423 = vmatpush1.msra.mxu0 0.0
    %8424 = vmatprep.subr.mxu0 0.0
    %8425 = vmatpush1.msra.mxu0 0.0
    %8426 = vmatprep.subr.mxu0 0.0
    %8427 = vmatpush1.msra.mxu0 0.0
    %8428 = vmatprep.subr.mxu0 0.0
    %8429 = vmatpush1.msra.mxu0 0.0
    %8430 = vmatprep.subr.mxu0 0.0
    %8431 = vmatpush1.msra.mxu0 0.0
    %8432 = vmatprep.subr.mxu0 0.0
    %8433 = vmatpush1.msra.mxu0 0.0
    %8434 = vmatprep.subr.mxu0 0.0
    %8435 = vmatpush1.msra.mxu0 0.0
    %8436 = vmatprep.subr.mxu0 0.0
    %8437 = vmatpush1.msra.mxu0 0.0
    %8438 = vmatprep.subr.mxu0 0.0
    %8439 = vmatpush1.msra.mxu0 0.0
    %8440 = vmatprep.subr.mxu0 0.0
    %8441 = vmatpush1.msra.mxu0 0.0
    %8442 = vmatprep.subr.mxu0 0.0
    %8443 = vmatpush1.msra.mxu0 0.0
    %8444 = vmatprep.subr.mxu0 0.0
    %8445 = vmatpush1.msra.mxu0 0.0
    %8446 = vmatprep.subr.mxu0 0.0
    %8447 = vmatpush1.msra.mxu0 0.0
    %8448 = vmatprep.subr.mxu0 0.0
    %8449 = vmatpush1.msra.mxu0 0.0
    %8450 = vmatprep.subr.mxu0 0.0
    %8451 = vmatpush1.msra.mxu0 0.0
    %8452 = vmatprep.subr.mxu0 0.0
    %8453 = vmatpush1.msra.mxu0 0.0
    %8454 = vmatprep.subr.mxu0 0.0
    %8455 = vmatpush1.msra.mxu0 0.0
    %8456 = vmatprep.subr.mxu0 0.0
    %8457 = vmatpush1.msra.mxu0 0.0
    %8458 = vmatprep.subr.mxu0 0.0
    %8459 = vmatpush1.msra.mxu0 0.0
    %8460 = vmatprep.subr.mxu0 0.0
    %8461 = vmatpush1.msra.mxu0 0.0
    %8462 = vmatprep.mubr.f32.mxu0 0.0
    %8463 = vmatmul.mubr.f32.gmra.mrb[0].mxu0 %v8396
    %v8464 = vpop.f32.mrb[0].mxu0
    %v8465 = vadd.f32 %v2534, %v8464
    %v8466 = vpop.f32.mrb[0].mxu0
    %8467 = vdwg.mxu0
    %v8468 = vsel %vm2613, %v8465, -inf
    %8469 = vmax.xlane.f32.xlu0 %v8468
    %v8470 = vpop.xlane.xlu0 %8469
    %vm8471 = vcmp.eq.f32.partialorder %v8465, %v8470
    %v8472 = vsel %vm8471, %v398, 64
    %v8473 = vsel %vm2613, %v8472, 2147483647
    %v8474 = vand.u32 %v8473, 65535
    %v8475 = vshra.s32 %v8473, 16
    %v8476 = vcvt.s32.f32 %v8474
    %v8477 = vcvt.s32.f32 %v8475
    %8478 = vmin.xlane.f32.xlu0 %v8477
    %v8479 = vpop.xlane.xlu0 %8478
    %vm8480 = vcmp.eq.f32.partialorder %v8477, %v8479
    %v8481 = vsel %vm8480, %v8476, inf
    %8482 = vmin.xlane.f32.xlu0 %v8481
    %v8483 = vpop.xlane.xlu0 %8482
    %v8484 = vcvt.f32.s32 %v8483
    %v8485 = vcvt.f32.s32 %v8479
    %v8486 = vshll.u32 %v8485, 16
    %v8487 = vadd.s32 %v8486, %v8484
    %vm8488 = vcmask 7168
    %v8489 = vsel %vm8488, %v2633, %v4585
    %vm8490 = vcmask 15360
    %v8491 = vsel %vm8490, %v8489, %v6536
    %vm8492 = vcmask 23552
    %v8493 = vsel %vm8492, %v8491, %v8487
    %vm8494 = vcmask 25600
    %8495 = vst.msk [vmem:[#allocation3] sm:$0x3] %vm8494, %v8493
    // Predicated region
    $region86: #{_llava_generate.1} parent=1 // pred_check
      _
    $region87: #{_llava_generate.1} parent=1 // pred_check_branch
      %8497 = sbr.rel (0) target = $region89
    $region88: #{_llava_generate.1} parent=1 // pred_region
      %s8499 = ssub.s32 32, 32
      %8500 = vsyncadd [#allocation4], %s8499
      %s8502 = sshll.u32 [#allocation3], 4
      %s8503 = int_to_ptr.vmem [resolvable:$true] %s8502
      %8505 = dma.vmem_to_hbm [thread:$0]  %s8503, 32, %s21, [#allocation4]
    $region89: #{_llava_generate.1} parent=1 // pred_fallthru
      _
    // Predicated region
    $region90: #{_llava_generate.1} parent=1 // pred_check
      _
    $region91: #{_llava_generate.1} parent=1 // pred_check_branch
      %8507 = sbr.rel (0) target = $region93
    $region92: #{_llava_generate.1} parent=1 // pred_region
      %8508 = dma.done [#allocation4], 32
    $region93: #{_llava_generate.1} parent=1 // pred_fallthru
      _
    %8509 = vsyncpa [#allocation4], 1

</llo_original>
